<compile_context>
chip_gen: v5e
topology: v5e:2x2
jax: 0.10.0
libtpu: 0.0.40
codegen_flags: <defaults>
</compile_context>

<pallas_src>
import functools
import math

import jax
import jax.numpy as jnp
import numpy as np
from jax.experimental import pallas as pl
from jax.experimental.pallas import tpu as pltpu

K = 9            # Conv1d kernel_size
PAD = 4          # Conv1d padding ("same" length for k=9)
LEAKY_SLOPE = 0.2
BN_EPS = 1e-5


def _decoder_kernel(wave_ref,
                    w0_ref, b0_ref, g0_ref, be0_ref,
                    w1_ref, b1_ref, g1_ref, be1_ref,
                    w2_ref, b2_ref, g2_ref, be2_ref,
                    w3_ref, b3_ref, g3_ref, be3_ref,
                    w4_ref, b4_ref,
                    out_ref,
                    x0, x1, x2, x3, x4,
                    *, n_batch, t_len, hidden, data_depth):
    """Fused 5-layer WaveformDecoder forward, everything VMEM-resident.

    wave_ref : (N, T)                      f32
    w*_ref   : (Cout, K*Cin)               f32  (im2col-flattened conv weights)
    b*/g*/be*: (Cout, 1)                   f32
    out_ref  : (N, D, T)                   f32
    x0..x4   : (N, Cin_l, T + 2*PAD)       f32 VMEM scratch (padded layer inputs)
    """
    nt = n_batch * t_len

    # ---- zero padded scratch buffers (halo columns must be 0) --------------
    for buf in (x0, x1, x2, x3, x4):
        buf[...] = jnp.zeros_like(buf)

    # ---- stage the waveform into the first padded buffer -------------------
    for n in range(n_batch):
        x0[n, :, pl.ds(PAD, t_len)] = wave_ref[pl.ds(n, 1), :]      # (1, T)

    # ---- helpers ------------------------------------------------------------
    def im2col(xin, cin):
        # -> (K*cin, N*T); row k*cin + ci holds xpad[n, ci, t+k] at col n*T + t
        cols = []
        for n in range(n_batch):
            taps = [xin[n, :, pl.ds(k, t_len)] for k in range(K)]   # (cin, T)
            cols.append(jnp.concatenate(taps, axis=0))              # (K*cin, T)
        return jnp.concatenate(cols, axis=1)                        # (K*cin, N*T)

    def conv(xin, cin, cout, w_ref, b_ref):
        # Conv1d(k=9, pad=4) on the zero-padded (N, cin, T+8) buffer, computed
        # in (C, N*T) layout.  Returns (cout, N*T) f32.
        if cin == 1:
            # first layer: 9 shifted scale-adds on the VPU (T lane-dense)
            w = w_ref[...]                                          # (cout, K)
            acc = jnp.zeros((cout, nt), jnp.float32)
            for k in range(K):
                row = jnp.concatenate(
                    [xin[n, :, pl.ds(k, t_len)] for n in range(n_batch)],
                    axis=1)                                         # (1, N*T)
                acc = acc + w[:, k:k + 1] * row
            return acc + b_ref[...]
        xcol = im2col(xin, cin)                                     # (K*cin, N*T)
        y = jnp.dot(w_ref[...], xcol, preferred_element_type=jnp.float32)
        return y + b_ref[...]

    def act_bn(y, g_ref, be_ref):
        # LeakyReLU(0.2) + BatchNorm1d in training mode (batch stats over the
        # N*T lane columns == (N, T); biased variance, clamped >= 0).
        y = jnp.where(y > 0, y, LEAKY_SLOPE * y)
        mean = jnp.mean(y, axis=1, keepdims=True)                   # (cout, 1)
        var = jnp.mean(y * y, axis=1, keepdims=True) - mean * mean
        var = jnp.maximum(var, 0.0)                                 # numerical guard
        scale = g_ref[...] * jax.lax.rsqrt(var + BN_EPS)
        shift = be_ref[...] - mean * scale
        return y * scale + shift

    def store_padded(xnext, y):
        # scatter (cout, N*T) back into the next layer's padded buffer interior
        for n in range(n_batch):
            xnext[n, :, pl.ds(PAD, t_len)] = y[:, n * t_len:(n + 1) * t_len]

    h, h2 = hidden, 2 * hidden

    # ---- fused 5-layer forward ----------------------------------------------
    y = act_bn(conv(x0, 1, h, w0_ref, b0_ref), g0_ref, be0_ref)
    store_padded(x1, y)
    y = act_bn(conv(x1, h, h2, w1_ref, b1_ref), g1_ref, be1_ref)
    store_padded(x2, y)
    y = act_bn(conv(x2, h2, h2, w2_ref, b2_ref), g2_ref, be2_ref)
    store_padded(x3, y)
    y = act_bn(conv(x3, h2, h, w3_ref, b3_ref), g3_ref, be3_ref)
    store_padded(x4, y)
    y = conv(x4, h, data_depth, w4_ref, b4_ref)                     # (D, N*T)
    for n in range(n_batch):
        out_ref[n] = y[:, n * t_len:(n + 1) * t_len]                # lane-dense (D, T)


def waveform_decoder_forward(waveform, layers):
    """(N, T) waveform -> (N, data_depth, T) payload, matching the PyTorch module."""
    waveform = waveform.astype(jnp.float32)
    n_batch, t_len = waveform.shape
    hidden = layers[0]["w"].shape[0]
    data_depth = layers[-1]["w"].shape[0]
    tp = t_len + 2 * PAD

    # Flatten params into the kernel's (Cout, K*Cin) / (Cout, 1) layouts.
    # Canonical weight layout is PyTorch's (Cout, Cin, K); im2col rows are
    # ordered (k, ci) -> flatten as transpose(0, 2, 1).reshape(Cout, K*Cin).
    flat = [waveform]
    for layer in layers:
        w = layer["w"].astype(jnp.float32)
        cout, cin, _ = w.shape
        flat.append(jnp.transpose(w, (0, 2, 1)).reshape(cout, K * cin))
        flat.append(layer["b"].reshape(cout, 1).astype(jnp.float32))
        if layer["with_bn"]:
            flat.append(layer["gamma"].reshape(cout, 1).astype(jnp.float32))
            flat.append(layer["beta"].reshape(cout, 1).astype(jnp.float32))

    def full_spec(x):
        return pl.BlockSpec(x.shape, lambda i, _nd=x.ndim: (0,) * _nd)

    kernel = functools.partial(
        _decoder_kernel, n_batch=n_batch, t_len=t_len,
        hidden=hidden, data_depth=data_depth)

    scratch_shapes = [
        pltpu.VMEM((n_batch, 1, tp), jnp.float32),
        pltpu.VMEM((n_batch, hidden, tp), jnp.float32),
        pltpu.VMEM((n_batch, 2 * hidden, tp), jnp.float32),
        pltpu.VMEM((n_batch, 2 * hidden, tp), jnp.float32),
        pltpu.VMEM((n_batch, hidden, tp), jnp.float32),
    ]

    # VMEM budget: scratch + im2col/matmul temporaries + headroom, capped at
    # 48 MiB so it stays safe on v7x (64 MiB physical per TensorCore).
    scratch_bytes = 4 * n_batch * tp * (1 + 6 * hidden)
    temp_bytes = 4 * (K * 2 * hidden) * (n_batch * t_len) * 3
    vmem_limit = int(min(max(scratch_bytes + temp_bytes + (8 << 20), 32 << 20),
                         48 << 20))

    return pl.pallas_call(
        kernel,
        out_shape=jax.ShapeDtypeStruct((n_batch, data_depth, t_len), jnp.float32),
        grid=(1,),
        in_specs=[full_spec(x) for x in flat],
        out_specs=pl.BlockSpec((n_batch, data_depth, t_len), lambda i: (0, 0, 0)),
        scratch_shapes=scratch_shapes,
        compiler_params=pltpu.CompilerParams(
            dimension_semantics=("arbitrary",),
            vmem_limit_bytes=vmem_limit),
    )(*flat)


def init_waveform_decoder_params(key, hidden_size=32, data_depth=1):
    """Deterministic synthetic parameters; canonical weight layout (Cout, Cin, K)."""
    specs = [
        (1, hidden_size, True),                     # features: conv1 + lrelu + bn
        (hidden_size, hidden_size * 2, True),       # features: conv2 + lrelu + bn
        (hidden_size * 2, hidden_size * 2, True),   # features: conv3 + lrelu + bn
        (hidden_size * 2, hidden_size, True),       # extractor: conv4 + lrelu + bn
        (hidden_size, data_depth, False),           # extractor: conv5
    ]
    layers = []
    for i, (cin, cout, with_bn) in enumerate(specs):
        kw, kb, kg, kbe = jax.random.split(jax.random.fold_in(key, i), 4)
        w = jax.random.normal(kw, (cout, cin, K), jnp.float32) / math.sqrt(cin * K)
        b = 0.05 * jax.random.normal(kb, (cout,), jnp.float32)
        if with_bn:
            gamma = 1.0 + 0.1 * jax.random.normal(kg, (cout,), jnp.float32)
            beta = 0.05 * jax.random.normal(kbe, (cout,), jnp.float32)
        else:
            gamma = jnp.ones((cout,), jnp.float32)
            beta = jnp.zeros((cout,), jnp.float32)
        layers.append(dict(w=w, b=b, gamma=gamma, beta=beta, with_bn=with_bn))
    return layers


def reference_forward(waveform, layers):
    """Pure-JAX reference (lax conv + training-mode BN) for correctness check."""
    x = waveform.astype(jnp.float32)[:, None, :]           # (N, 1, T)
    for layer in layers:
        x = jax.lax.conv_general_dilated(
            x, layer["w"], window_strides=(1,), padding=[(PAD, PAD)],
            dimension_numbers=("NCH", "OIH", "NCH"))
        x = x + layer["b"][None, :, None]
        if layer["with_bn"]:
            x = jnp.where(x > 0, x, LEAKY_SLOPE * x)
            mean = jnp.mean(x, axis=(0, 2), keepdims=True)
            var = jnp.mean((x - mean) ** 2, axis=(0, 2), keepdims=True)
            x = ((x - mean) * jax.lax.rsqrt(var + BN_EPS)
                 * layer["gamma"][None, :, None] + layer["beta"][None, :, None])
    return x


if __name__ == "__main__":
    key = jax.random.PRNGKey(0)
    N, T = 2, 128
    hidden_size, data_depth = 32, 1

    layers = init_waveform_decoder_params(key, hidden_size, data_depth)
    waveform = jax.random.normal(jax.random.fold_in(key, 1234), (N, T), jnp.float32)

    out = jax.block_until_ready(waveform_decoder_forward(waveform, layers))
    assert out.shape == (N, data_depth, T), out.shape

    ref = reference_forward(waveform, layers)
    np.testing.assert_allclose(np.asarray(out), np.asarray(ref), atol=2e-2, rtol=2e-2)

    print("KERNEL_OK")
</pallas_src>

<mosaic_0001>
module attributes {stable_mosaic.version = 11 : i64} {
  func.func @_decoder_kernel(%arg0: i32, %arg1: memref<2x128xf32, #tpu.memory_space<vmem>>, %arg2: memref<32x9xf32, #tpu.memory_space<vmem>>, %arg3: memref<32x1xf32, #tpu.memory_space<vmem>>, %arg4: memref<32x1xf32, #tpu.memory_space<vmem>>, %arg5: memref<32x1xf32, #tpu.memory_space<vmem>>, %arg6: memref<64x288xf32, #tpu.memory_space<vmem>>, %arg7: memref<64x1xf32, #tpu.memory_space<vmem>>, %arg8: memref<64x1xf32, #tpu.memory_space<vmem>>, %arg9: memref<64x1xf32, #tpu.memory_space<vmem>>, %arg10: memref<64x576xf32, #tpu.memory_space<vmem>>, %arg11: memref<64x1xf32, #tpu.memory_space<vmem>>, %arg12: memref<64x1xf32, #tpu.memory_space<vmem>>, %arg13: memref<64x1xf32, #tpu.memory_space<vmem>>, %arg14: memref<32x576xf32, #tpu.memory_space<vmem>>, %arg15: memref<32x1xf32, #tpu.memory_space<vmem>>, %arg16: memref<32x1xf32, #tpu.memory_space<vmem>>, %arg17: memref<32x1xf32, #tpu.memory_space<vmem>>, %arg18: memref<1x288xf32, #tpu.memory_space<vmem>>, %arg19: memref<1x1xf32, #tpu.memory_space<vmem>>, %arg20: memref<2x1x128xf32, #tpu.memory_space<vmem>>, %arg21: memref<2x1x136xf32, #tpu.memory_space<vmem>>, %arg22: memref<2x32x136xf32, #tpu.memory_space<vmem>>, %arg23: memref<2x64x136xf32, #tpu.memory_space<vmem>>, %arg24: memref<2x64x136xf32, #tpu.memory_space<vmem>>, %arg25: memref<2x32x136xf32, #tpu.memory_space<vmem>>) attributes {dimension_semantics = [#tpu.dimension_semantics<arbitrary>], iteration_bounds = array<i64: 1>, scalar_prefetch = 0 : i64, scratch_operands = 5 : i64, tpu.core_type = #tpu.core_type<tc>, window_params = [{pipeline_mode = #tpu.pipeline_mode<synchronous>, transform_indices = @transform_0, window_bounds = array<i64: 2, 128>}, {pipeline_mode = #tpu.pipeline_mode<synchronous>, transform_indices = @transform_1, window_bounds = array<i64: 32, 9>}, {pipeline_mode = #tpu.pipeline_mode<synchronous>, transform_indices = @transform_2, window_bounds = array<i64: 32, 1>}, {pipeline_mode = #tpu.pipeline_mode<synchronous>, transform_indices = @transform_3, window_bounds = array<i64: 32, 1>}, {pipeline_mode = #tpu.pipeline_mode<synchronous>, transform_indices = @transform_4, window_bounds = array<i64: 32, 1>}, {pipeline_mode = #tpu.pipeline_mode<synchronous>, transform_indices = @transform_5, window_bounds = array<i64: 64, 288>}, {pipeline_mode = #tpu.pipeline_mode<synchronous>, transform_indices = @transform_6, window_bounds = array<i64: 64, 1>}, {pipeline_mode = #tpu.pipeline_mode<synchronous>, transform_indices = @transform_7, window_bounds = array<i64: 64, 1>}, {pipeline_mode = #tpu.pipeline_mode<synchronous>, transform_indices = @transform_8, window_bounds = array<i64: 64, 1>}, {pipeline_mode = #tpu.pipeline_mode<synchronous>, transform_indices = @transform_9, window_bounds = array<i64: 64, 576>}, {pipeline_mode = #tpu.pipeline_mode<synchronous>, transform_indices = @transform_10, window_bounds = array<i64: 64, 1>}, {pipeline_mode = #tpu.pipeline_mode<synchronous>, transform_indices = @transform_11, window_bounds = array<i64: 64, 1>}, {pipeline_mode = #tpu.pipeline_mode<synchronous>, transform_indices = @transform_12, window_bounds = array<i64: 64, 1>}, {pipeline_mode = #tpu.pipeline_mode<synchronous>, transform_indices = @transform_13, window_bounds = array<i64: 32, 576>}, {pipeline_mode = #tpu.pipeline_mode<synchronous>, transform_indices = @transform_14, window_bounds = array<i64: 32, 1>}, {pipeline_mode = #tpu.pipeline_mode<synchronous>, transform_indices = @transform_15, window_bounds = array<i64: 32, 1>}, {pipeline_mode = #tpu.pipeline_mode<synchronous>, transform_indices = @transform_16, window_bounds = array<i64: 32, 1>}, {pipeline_mode = #tpu.pipeline_mode<synchronous>, transform_indices = @transform_17, window_bounds = array<i64: 1, 288>}, {pipeline_mode = #tpu.pipeline_mode<synchronous>, transform_indices = @transform_18, window_bounds = array<i64: 1, 1>}, {pipeline_mode = #tpu.pipeline_mode<synchronous>, transform_indices = @transform_19, window_bounds = array<i64: 2, 1, 128>}]} {
    %cst = arith.constant 0.000000e+00 : f32
    %0 = vector.broadcast %cst : f32 to vector<2x1x136xf32>
    %c0 = arith.constant 0 : index
    %c0_0 = arith.constant 0 : index
    %c0_1 = arith.constant 0 : index
    %1 = vector.load %arg21[%c0, %c0_0, %c0_1] : memref<2x1x136xf32, #tpu.memory_space<vmem>>, vector<2x1x136xf32>
    tpu.vector_store %arg21[%c0, %c0_0, %c0_1], %0 {strides = array<i32>} : memref<2x1x136xf32, #tpu.memory_space<vmem>>, vector<2x1x136xf32>,
    %cst_2 = arith.constant 0.000000e+00 : f32
    %2 = vector.broadcast %cst_2 : f32 to vector<2x32x136xf32>
    %c0_3 = arith.constant 0 : index
    %c0_4 = arith.constant 0 : index
    %c0_5 = arith.constant 0 : index
    %3 = vector.load %arg22[%c0_3, %c0_4, %c0_5] : memref<2x32x136xf32, #tpu.memory_space<vmem>>, vector<2x32x136xf32>
    tpu.vector_store %arg22[%c0_3, %c0_4, %c0_5], %2 {strides = array<i32>} : memref<2x32x136xf32, #tpu.memory_space<vmem>>, vector<2x32x136xf32>,
    %cst_6 = arith.constant 0.000000e+00 : f32
    %4 = vector.broadcast %cst_6 : f32 to vector<2x64x136xf32>
    %c0_7 = arith.constant 0 : index
    %c0_8 = arith.constant 0 : index
    %c0_9 = arith.constant 0 : index
    %5 = vector.load %arg23[%c0_7, %c0_8, %c0_9] : memref<2x64x136xf32, #tpu.memory_space<vmem>>, vector<2x64x136xf32>
    tpu.vector_store %arg23[%c0_7, %c0_8, %c0_9], %4 {strides = array<i32>} : memref<2x64x136xf32, #tpu.memory_space<vmem>>, vector<2x64x136xf32>,
    %cst_10 = arith.constant 0.000000e+00 : f32
    %6 = vector.broadcast %cst_10 : f32 to vector<2x64x136xf32>
    %c0_11 = arith.constant 0 : index
    %c0_12 = arith.constant 0 : index
    %c0_13 = arith.constant 0 : index
    %7 = vector.load %arg24[%c0_11, %c0_12, %c0_13] : memref<2x64x136xf32, #tpu.memory_space<vmem>>, vector<2x64x136xf32>
    tpu.vector_store %arg24[%c0_11, %c0_12, %c0_13], %6 {strides = array<i32>} : memref<2x64x136xf32, #tpu.memory_space<vmem>>, vector<2x64x136xf32>,
    %cst_14 = arith.constant 0.000000e+00 : f32
    %8 = vector.broadcast %cst_14 : f32 to vector<2x32x136xf32>
    %c0_15 = arith.constant 0 : index
    %c0_16 = arith.constant 0 : index
    %c0_17 = arith.constant 0 : index
    %9 = vector.load %arg25[%c0_15, %c0_16, %c0_17] : memref<2x32x136xf32, #tpu.memory_space<vmem>>, vector<2x32x136xf32>
    tpu.vector_store %arg25[%c0_15, %c0_16, %c0_17], %8 {strides = array<i32>} : memref<2x32x136xf32, #tpu.memory_space<vmem>>, vector<2x32x136xf32>,
    %c0_18 = arith.constant 0 : index
    %c0_19 = arith.constant 0 : index
    %10 = vector.load %arg1[%c0_18, %c0_19] : memref<2x128xf32, #tpu.memory_space<vmem>>, vector<1x128xf32>
    %c0_20 = arith.constant 0 : index
    %c0_21 = arith.constant 0 : index
    %c4 = arith.constant 4 : index
    %11 = vector.load %arg21[%c0_20, %c0_21, %c4] : memref<2x1x136xf32, #tpu.memory_space<vmem>>, vector<1x1x128xf32>
    %12 = vector.shape_cast %11 : vector<1x1x128xf32> to vector<1x128xf32>
    %13 = vector.shape_cast %10 : vector<1x128xf32> to vector<1x1x128xf32>
    tpu.vector_store %arg21[%c0_20, %c0_21, %c4], %13 {strides = array<i32>} : memref<2x1x136xf32, #tpu.memory_space<vmem>>, vector<1x1x128xf32>,
    %c1 = arith.constant 1 : index
    %c0_22 = arith.constant 0 : index
    %14 = vector.load %arg1[%c1, %c0_22] : memref<2x128xf32, #tpu.memory_space<vmem>>, vector<1x128xf32>
    %c1_23 = arith.constant 1 : index
    %c0_24 = arith.constant 0 : index
    %c4_25 = arith.constant 4 : index
    %15 = vector.load %arg21[%c1_23, %c0_24, %c4_25] : memref<2x1x136xf32, #tpu.memory_space<vmem>>, vector<1x1x128xf32>
    %16 = vector.shape_cast %15 : vector<1x1x128xf32> to vector<1x128xf32>
    %17 = vector.shape_cast %14 : vector<1x128xf32> to vector<1x1x128xf32>
    tpu.vector_store %arg21[%c1_23, %c0_24, %c4_25], %17 {strides = array<i32>} : memref<2x1x136xf32, #tpu.memory_space<vmem>>, vector<1x1x128xf32>,
    %c0_26 = arith.constant 0 : index
    %c0_27 = arith.constant 0 : index
    %18 = vector.load %arg2[%c0_26, %c0_27] : memref<32x9xf32, #tpu.memory_space<vmem>>, vector<32x9xf32>
    %cst_28 = arith.constant 0.000000e+00 : f32
    %19 = vector.broadcast %cst_28 : f32 to vector<32x256xf32>
    %c0_29 = arith.constant 0 : index
    %c0_30 = arith.constant 0 : index
    %c0_31 = arith.constant 0 : index
    %20 = vector.load %arg21[%c0_29, %c0_30, %c0_31] : memref<2x1x136xf32, #tpu.memory_space<vmem>>, vector<1x1x128xf32>
    %21 = vector.shape_cast %20 : vector<1x1x128xf32> to vector<1x128xf32>
    %c1_32 = arith.constant 1 : index
    %c0_33 = arith.constant 0 : index
    %c0_34 = arith.constant 0 : index
    %22 = vector.load %arg21[%c1_32, %c0_33, %c0_34] : memref<2x1x136xf32, #tpu.memory_space<vmem>>, vector<1x1x128xf32>
    %23 = vector.shape_cast %22 : vector<1x1x128xf32> to vector<1x128xf32>
    %24 = tpu.concatenate %21, %23 in 1 : vector<1x128xf32>, vector<1x128xf32> -> vector<1x256xf32>
    %25 = vector.extract_strided_slice %18 {offsets = [0, 0], sizes = [32, 1], strides = [1, 1]} : vector<32x9xf32> to vector<32x1xf32>
    %26 = vector.broadcast %25 : vector<32x1xf32> to vector<32x256xf32>
    %27 = vector.broadcast %24 : vector<1x256xf32> to vector<32x256xf32>
    %28 = arith.mulf %26, %27 : vector<32x256xf32>
    %29 = arith.addf %19, %28 : vector<32x256xf32>
    %c0_35 = arith.constant 0 : index
    %c0_36 = arith.constant 0 : index
    %c1_37 = arith.constant 1 : index
    %30 = vector.load %arg21[%c0_35, %c0_36, %c1_37] : memref<2x1x136xf32, #tpu.memory_space<vmem>>, vector<1x1x128xf32>
    %31 = vector.shape_cast %30 : vector<1x1x128xf32> to vector<1x128xf32>
    %c1_38 = arith.constant 1 : index
    %c0_39 = arith.constant 0 : index
    %c1_40 = arith.constant 1 : index
    %32 = vector.load %arg21[%c1_38, %c0_39, %c1_40] : memref<2x1x136xf32, #tpu.memory_space<vmem>>, vector<1x1x128xf32>
    %33 = vector.shape_cast %32 : vector<1x1x128xf32> to vector<1x128xf32>
    %34 = tpu.concatenate %31, %33 in 1 : vector<1x128xf32>, vector<1x128xf32> -> vector<1x256xf32>
    %35 = vector.extract_strided_slice %18 {offsets = [0, 1], sizes = [32, 1], strides = [1, 1]} : vector<32x9xf32> to vector<32x1xf32>
    %36 = vector.broadcast %35 : vector<32x1xf32> to vector<32x256xf32>
    %37 = vector.broadcast %34 : vector<1x256xf32> to vector<32x256xf32>
    %38 = arith.mulf %36, %37 : vector<32x256xf32>
    %39 = arith.addf %29, %38 : vector<32x256xf32>
    %c0_41 = arith.constant 0 : index
    %c0_42 = arith.constant 0 : index
    %c2 = arith.constant 2 : index
    %40 = vector.load %arg21[%c0_41, %c0_42, %c2] : memref<2x1x136xf32, #tpu.memory_space<vmem>>, vector<1x1x128xf32>
    %41 = vector.shape_cast %40 : vector<1x1x128xf32> to vector<1x128xf32>
    %c1_43 = arith.constant 1 : index
    %c0_44 = arith.constant 0 : index
    %c2_45 = arith.constant 2 : index
    %42 = vector.load %arg21[%c1_43, %c0_44, %c2_45] : memref<2x1x136xf32, #tpu.memory_space<vmem>>, vector<1x1x128xf32>
    %43 = vector.shape_cast %42 : vector<1x1x128xf32> to vector<1x128xf32>
    %44 = tpu.concatenate %41, %43 in 1 : vector<1x128xf32>, vector<1x128xf32> -> vector<1x256xf32>
    %45 = vector.extract_strided_slice %18 {offsets = [0, 2], sizes = [32, 1], strides = [1, 1]} : vector<32x9xf32> to vector<32x1xf32>
    %46 = vector.broadcast %45 : vector<32x1xf32> to vector<32x256xf32>
    %47 = vector.broadcast %44 : vector<1x256xf32> to vector<32x256xf32>
    %48 = arith.mulf %46, %47 : vector<32x256xf32>
    %49 = arith.addf %39, %48 : vector<32x256xf32>
    %c0_46 = arith.constant 0 : index
    %c0_47 = arith.constant 0 : index
    %c3 = arith.constant 3 : index
    %50 = vector.load %arg21[%c0_46, %c0_47, %c3] : memref<2x1x136xf32, #tpu.memory_space<vmem>>, vector<1x1x128xf32>
    %51 = vector.shape_cast %50 : vector<1x1x128xf32> to vector<1x128xf32>
    %c1_48 = arith.constant 1 : index
    %c0_49 = arith.constant 0 : index
    %c3_50 = arith.constant 3 : index
    %52 = vector.load %arg21[%c1_48, %c0_49, %c3_50] : memref<2x1x136xf32, #tpu.memory_space<vmem>>, vector<1x1x128xf32>
    %53 = vector.shape_cast %52 : vector<1x1x128xf32> to vector<1x128xf32>
    %54 = tpu.concatenate %51, %53 in 1 : vector<1x128xf32>, vector<1x128xf32> -> vector<1x256xf32>
    %55 = vector.extract_strided_slice %18 {offsets = [0, 3], sizes = [32, 1], strides = [1, 1]} : vector<32x9xf32> to vector<32x1xf32>
    %56 = vector.broadcast %55 : vector<32x1xf32> to vector<32x256xf32>
    %57 = vector.broadcast %54 : vector<1x256xf32> to vector<32x256xf32>
    %58 = arith.mulf %56, %57 : vector<32x256xf32>
    %59 = arith.addf %49, %58 : vector<32x256xf32>
    %c0_51 = arith.constant 0 : index
    %c0_52 = arith.constant 0 : index
    %c4_53 = arith.constant 4 : index
    %60 = vector.load %arg21[%c0_51, %c0_52, %c4_53] : memref<2x1x136xf32, #tpu.memory_space<vmem>>, vector<1x1x128xf32>
    %61 = vector.shape_cast %60 : vector<1x1x128xf32> to vector<1x128xf32>
    %c1_54 = arith.constant 1 : index
    %c0_55 = arith.constant 0 : index
    %c4_56 = arith.constant 4 : index
    %62 = vector.load %arg21[%c1_54, %c0_55, %c4_56] : memref<2x1x136xf32, #tpu.memory_space<vmem>>, vector<1x1x128xf32>
    %63 = vector.shape_cast %62 : vector<1x1x128xf32> to vector<1x128xf32>
    %64 = tpu.concatenate %61, %63 in 1 : vector<1x128xf32>, vector<1x128xf32> -> vector<1x256xf32>
    %65 = vector.extract_strided_slice %18 {offsets = [0, 4], sizes = [32, 1], strides = [1, 1]} : vector<32x9xf32> to vector<32x1xf32>
    %66 = vector.broadcast %65 : vector<32x1xf32> to vector<32x256xf32>
    %67 = vector.broadcast %64 : vector<1x256xf32> to vector<32x256xf32>
    %68 = arith.mulf %66, %67 : vector<32x256xf32>
    %69 = arith.addf %59, %68 : vector<32x256xf32>
    %c0_57 = arith.constant 0 : index
    %c0_58 = arith.constant 0 : index
    %c5 = arith.constant 5 : index
    %70 = vector.load %arg21[%c0_57, %c0_58, %c5] : memref<2x1x136xf32, #tpu.memory_space<vmem>>, vector<1x1x128xf32>
    %71 = vector.shape_cast %70 : vector<1x1x128xf32> to vector<1x128xf32>
    %c1_59 = arith.constant 1 : index
    %c0_60 = arith.constant 0 : index
    %c5_61 = arith.constant 5 : index
    %72 = vector.load %arg21[%c1_59, %c0_60, %c5_61] : memref<2x1x136xf32, #tpu.memory_space<vmem>>, vector<1x1x128xf32>
    %73 = vector.shape_cast %72 : vector<1x1x128xf32> to vector<1x128xf32>
    %74 = tpu.concatenate %71, %73 in 1 : vector<1x128xf32>, vector<1x128xf32> -> vector<1x256xf32>
    %75 = vector.extract_strided_slice %18 {offsets = [0, 5], sizes = [32, 1], strides = [1, 1]} : vector<32x9xf32> to vector<32x1xf32>
    %76 = vector.broadcast %75 : vector<32x1xf32> to vector<32x256xf32>
    %77 = vector.broadcast %74 : vector<1x256xf32> to vector<32x256xf32>
    %78 = arith.mulf %76, %77 : vector<32x256xf32>
    %79 = arith.addf %69, %78 : vector<32x256xf32>
    %c0_62 = arith.constant 0 : index
    %c0_63 = arith.constant 0 : index
    %c6 = arith.constant 6 : index
    %80 = vector.load %arg21[%c0_62, %c0_63, %c6] : memref<2x1x136xf32, #tpu.memory_space<vmem>>, vector<1x1x128xf32>
    %81 = vector.shape_cast %80 : vector<1x1x128xf32> to vector<1x128xf32>
    %c1_64 = arith.constant 1 : index
    %c0_65 = arith.constant 0 : index
    %c6_66 = arith.constant 6 : index
    %82 = vector.load %arg21[%c1_64, %c0_65, %c6_66] : memref<2x1x136xf32, #tpu.memory_space<vmem>>, vector<1x1x128xf32>
    %83 = vector.shape_cast %82 : vector<1x1x128xf32> to vector<1x128xf32>
    %84 = tpu.concatenate %81, %83 in 1 : vector<1x128xf32>, vector<1x128xf32> -> vector<1x256xf32>
    %85 = vector.extract_strided_slice %18 {offsets = [0, 6], sizes = [32, 1], strides = [1, 1]} : vector<32x9xf32> to vector<32x1xf32>
    %86 = vector.broadcast %85 : vector<32x1xf32> to vector<32x256xf32>
    %87 = vector.broadcast %84 : vector<1x256xf32> to vector<32x256xf32>
    %88 = arith.mulf %86, %87 : vector<32x256xf32>
    %89 = arith.addf %79, %88 : vector<32x256xf32>
    %c0_67 = arith.constant 0 : index
    %c0_68 = arith.constant 0 : index
    %c7 = arith.constant 7 : index
    %90 = vector.load %arg21[%c0_67, %c0_68, %c7] : memref<2x1x136xf32, #tpu.memory_space<vmem>>, vector<1x1x128xf32>
    %91 = vector.shape_cast %90 : vector<1x1x128xf32> to vector<1x128xf32>
    %c1_69 = arith.constant 1 : index
    %c0_70 = arith.constant 0 : index
    %c7_71 = arith.constant 7 : index
    %92 = vector.load %arg21[%c1_69, %c0_70, %c7_71] : memref<2x1x136xf32, #tpu.memory_space<vmem>>, vector<1x1x128xf32>
    %93 = vector.shape_cast %92 : vector<1x1x128xf32> to vector<1x128xf32>
    %94 = tpu.concatenate %91, %93 in 1 : vector<1x128xf32>, vector<1x128xf32> -> vector<1x256xf32>
    %95 = vector.extract_strided_slice %18 {offsets = [0, 7], sizes = [32, 1], strides = [1, 1]} : vector<32x9xf32> to vector<32x1xf32>
    %96 = vector.broadcast %95 : vector<32x1xf32> to vector<32x256xf32>
    %97 = vector.broadcast %94 : vector<1x256xf32> to vector<32x256xf32>
    %98 = arith.mulf %96, %97 : vector<32x256xf32>
    %99 = arith.addf %89, %98 : vector<32x256xf32>
    %c0_72 = arith.constant 0 : index
    %c0_73 = arith.constant 0 : index
    %c8 = arith.constant 8 : index
    %100 = vector.load %arg21[%c0_72, %c0_73, %c8] : memref<2x1x136xf32, #tpu.memory_space<vmem>>, vector<1x1x128xf32>
    %101 = vector.shape_cast %100 : vector<1x1x128xf32> to vector<1x128xf32>
    %c1_74 = arith.constant 1 : index
    %c0_75 = arith.constant 0 : index
    %c8_76 = arith.constant 8 : index
    %102 = vector.load %arg21[%c1_74, %c0_75, %c8_76] : memref<2x1x136xf32, #tpu.memory_space<vmem>>, vector<1x1x128xf32>
    %103 = vector.shape_cast %102 : vector<1x1x128xf32> to vector<1x128xf32>
    %104 = tpu.concatenate %101, %103 in 1 : vector<1x128xf32>, vector<1x128xf32> -> vector<1x256xf32>
    %105 = vector.extract_strided_slice %18 {offsets = [0, 8], sizes = [32, 1], strides = [1, 1]} : vector<32x9xf32> to vector<32x1xf32>
    %106 = vector.broadcast %105 : vector<32x1xf32> to vector<32x256xf32>
    %107 = vector.broadcast %104 : vector<1x256xf32> to vector<32x256xf32>
    %108 = arith.mulf %106, %107 : vector<32x256xf32>
    %109 = arith.addf %99, %108 : vector<32x256xf32>
    %c0_77 = arith.constant 0 : index
    %c0_78 = arith.constant 0 : index
    %110 = vector.load %arg3[%c0_77, %c0_78] : memref<32x1xf32, #tpu.memory_space<vmem>>, vector<32x1xf32>
    %111 = vector.broadcast %110 : vector<32x1xf32> to vector<32x256xf32>
    %112 = arith.addf %109, %111 : vector<32x256xf32>
    %cst_79 = arith.constant 0.000000e+00 : f32
    %113 = vector.broadcast %cst_79 : f32 to vector<32x256xf32>
    %114 = arith.cmpf ogt, %112, %113 : vector<32x256xf32>
    %cst_80 = arith.constant 2.000000e-01 : f32
    %115 = vector.broadcast %cst_80 : f32 to vector<32x256xf32>
    %116 = arith.mulf %115, %112 : vector<32x256xf32>
    %117 = arith.select %114, %112, %116 : vector<32x256xi1>, vector<32x256xf32>
    %cst_81 = arith.constant dense<0.000000e+00> : vector<32xf32>
    %118 = vector.multi_reduction <add>, %117, %cst_81 [1] : vector<32x256xf32> to vector<32xf32>
    %119 = vector.shape_cast %118 : vector<32xf32> to vector<32x1xf32>
    %cst_82 = arith.constant 2.560000e+02 : f32
    %120 = vector.broadcast %cst_82 : f32 to vector<32x1xf32>
    %121 = arith.divf %119, %120 : vector<32x1xf32>
    %122 = arith.mulf %117, %117 : vector<32x256xf32>
    %cst_83 = arith.constant dense<0.000000e+00> : vector<32xf32>
    %123 = vector.multi_reduction <add>, %122, %cst_83 [1] : vector<32x256xf32> to vector<32xf32>
    %124 = vector.shape_cast %123 : vector<32xf32> to vector<32x1xf32>
    %cst_84 = arith.constant 2.560000e+02 : f32
    %125 = vector.broadcast %cst_84 : f32 to vector<32x1xf32>
    %126 = arith.divf %124, %125 : vector<32x1xf32>
    %127 = arith.mulf %121, %121 : vector<32x1xf32>
    %128 = arith.subf %126, %127 : vector<32x1xf32>
    %cst_85 = arith.constant 0.000000e+00 : f32
    %129 = vector.broadcast %cst_85 : f32 to vector<32x1xf32>
    %130 = arith.maximumf %128, %129 : vector<32x1xf32>
    %c0_86 = arith.constant 0 : index
    %c0_87 = arith.constant 0 : index
    %131 = vector.load %arg4[%c0_86, %c0_87] : memref<32x1xf32, #tpu.memory_space<vmem>>, vector<32x1xf32>
    %cst_88 = arith.constant 9.99999974E-6 : f32
    %132 = vector.broadcast %cst_88 : f32 to vector<32x1xf32>
    %133 = arith.addf %130, %132 : vector<32x1xf32>
    %134 = math.rsqrt %133 : vector<32x1xf32>
    %135 = arith.mulf %131, %134 : vector<32x1xf32>
    %c0_89 = arith.constant 0 : index
    %c0_90 = arith.constant 0 : index
    %136 = vector.load %arg5[%c0_89, %c0_90] : memref<32x1xf32, #tpu.memory_space<vmem>>, vector<32x1xf32>
    %137 = arith.mulf %121, %135 : vector<32x1xf32>
    %138 = arith.subf %136, %137 : vector<32x1xf32>
    %139 = vector.broadcast %135 : vector<32x1xf32> to vector<32x256xf32>
    %140 = arith.mulf %117, %139 : vector<32x256xf32>
    %141 = vector.broadcast %138 : vector<32x1xf32> to vector<32x256xf32>
    %142 = arith.addf %140, %141 : vector<32x256xf32>
    %143 = vector.extract_strided_slice %142 {offsets = [0, 0], sizes = [32, 128], strides = [1, 1]} : vector<32x256xf32> to vector<32x128xf32>
    %c0_91 = arith.constant 0 : index
    %c0_92 = arith.constant 0 : index
    %c4_93 = arith.constant 4 : index
    %144 = vector.load %arg22[%c0_91, %c0_92, %c4_93] : memref<2x32x136xf32, #tpu.memory_space<vmem>>, vector<1x32x128xf32>
    %145 = vector.shape_cast %144 : vector<1x32x128xf32> to vector<32x128xf32>
    %146 = vector.shape_cast %143 : vector<32x128xf32> to vector<1x32x128xf32>
    tpu.vector_store %arg22[%c0_91, %c0_92, %c4_93], %146 {strides = array<i32>} : memref<2x32x136xf32, #tpu.memory_space<vmem>>, vector<1x32x128xf32>,
    %147 = vector.extract_strided_slice %142 {offsets = [0, 128], sizes = [32, 128], strides = [1, 1]} : vector<32x256xf32> to vector<32x128xf32>
    %c1_94 = arith.constant 1 : index
    %c0_95 = arith.constant 0 : index
    %c4_96 = arith.constant 4 : index
    %148 = vector.load %arg22[%c1_94, %c0_95, %c4_96] : memref<2x32x136xf32, #tpu.memory_space<vmem>>, vector<1x32x128xf32>
    %149 = vector.shape_cast %148 : vector<1x32x128xf32> to vector<32x128xf32>
    %150 = vector.shape_cast %147 : vector<32x128xf32> to vector<1x32x128xf32>
    tpu.vector_store %arg22[%c1_94, %c0_95, %c4_96], %150 {strides = array<i32>} : memref<2x32x136xf32, #tpu.memory_space<vmem>>, vector<1x32x128xf32>,
    %c0_97 = arith.constant 0 : index
    %c0_98 = arith.constant 0 : index
    %c0_99 = arith.constant 0 : index
    %151 = vector.load %arg22[%c0_97, %c0_98, %c0_99] : memref<2x32x136xf32, #tpu.memory_space<vmem>>, vector<1x32x128xf32>
    %152 = vector.shape_cast %151 : vector<1x32x128xf32> to vector<32x128xf32>
    %c0_100 = arith.constant 0 : index
    %c0_101 = arith.constant 0 : index
    %c1_102 = arith.constant 1 : index
    %153 = vector.load %arg22[%c0_100, %c0_101, %c1_102] : memref<2x32x136xf32, #tpu.memory_space<vmem>>, vector<1x32x128xf32>
    %154 = vector.shape_cast %153 : vector<1x32x128xf32> to vector<32x128xf32>
    %c0_103 = arith.constant 0 : index
    %c0_104 = arith.constant 0 : index
    %c2_105 = arith.constant 2 : index
    %155 = vector.load %arg22[%c0_103, %c0_104, %c2_105] : memref<2x32x136xf32, #tpu.memory_space<vmem>>, vector<1x32x128xf32>
    %156 = vector.shape_cast %155 : vector<1x32x128xf32> to vector<32x128xf32>
    %c0_106 = arith.constant 0 : index
    %c0_107 = arith.constant 0 : index
    %c3_108 = arith.constant 3 : index
    %157 = vector.load %arg22[%c0_106, %c0_107, %c3_108] : memref<2x32x136xf32, #tpu.memory_space<vmem>>, vector<1x32x128xf32>
    %158 = vector.shape_cast %157 : vector<1x32x128xf32> to vector<32x128xf32>
    %c0_109 = arith.constant 0 : index
    %c0_110 = arith.constant 0 : index
    %c4_111 = arith.constant 4 : index
    %159 = vector.load %arg22[%c0_109, %c0_110, %c4_111] : memref<2x32x136xf32, #tpu.memory_space<vmem>>, vector<1x32x128xf32>
    %160 = vector.shape_cast %159 : vector<1x32x128xf32> to vector<32x128xf32>
    %c0_112 = arith.constant 0 : index
    %c0_113 = arith.constant 0 : index
    %c5_114 = arith.constant 5 : index
    %161 = vector.load %arg22[%c0_112, %c0_113, %c5_114] : memref<2x32x136xf32, #tpu.memory_space<vmem>>, vector<1x32x128xf32>
    %162 = vector.shape_cast %161 : vector<1x32x128xf32> to vector<32x128xf32>
    %c0_115 = arith.constant 0 : index
    %c0_116 = arith.constant 0 : index
    %c6_117 = arith.constant 6 : index
    %163 = vector.load %arg22[%c0_115, %c0_116, %c6_117] : memref<2x32x136xf32, #tpu.memory_space<vmem>>, vector<1x32x128xf32>
    %164 = vector.shape_cast %163 : vector<1x32x128xf32> to vector<32x128xf32>
    %c0_118 = arith.constant 0 : index
    %c0_119 = arith.constant 0 : index
    %c7_120 = arith.constant 7 : index
    %165 = vector.load %arg22[%c0_118, %c0_119, %c7_120] : memref<2x32x136xf32, #tpu.memory_space<vmem>>, vector<1x32x128xf32>
    %166 = vector.shape_cast %165 : vector<1x32x128xf32> to vector<32x128xf32>
    %c0_121 = arith.constant 0 : index
    %c0_122 = arith.constant 0 : index
    %c8_123 = arith.constant 8 : index
    %167 = vector.load %arg22[%c0_121, %c0_122, %c8_123] : memref<2x32x136xf32, #tpu.memory_space<vmem>>, vector<1x32x128xf32>
    %168 = vector.shape_cast %167 : vector<1x32x128xf32> to vector<32x128xf32>
    %169 = tpu.concatenate %152, %154, %156, %158, %160, %162, %164, %166, %168 in 0 : vector<32x128xf32>, vector<32x128xf32>, vector<32x128xf32>, vector<32x128xf32>, vector<32x128xf32>, vector<32x128xf32>, vector<32x128xf32>, vector<32x128xf32>, vector<32x128xf32> -> vector<288x128xf32>
    %c1_124 = arith.constant 1 : index
    %c0_125 = arith.constant 0 : index
    %c0_126 = arith.constant 0 : index
    %170 = vector.load %arg22[%c1_124, %c0_125, %c0_126] : memref<2x32x136xf32, #tpu.memory_space<vmem>>, vector<1x32x128xf32>
    %171 = vector.shape_cast %170 : vector<1x32x128xf32> to vector<32x128xf32>
    %c1_127 = arith.constant 1 : index
    %c0_128 = arith.constant 0 : index
    %c1_129 = arith.constant 1 : index
    %172 = vector.load %arg22[%c1_127, %c0_128, %c1_129] : memref<2x32x136xf32, #tpu.memory_space<vmem>>, vector<1x32x128xf32>
    %173 = vector.shape_cast %172 : vector<1x32x128xf32> to vector<32x128xf32>
    %c1_130 = arith.constant 1 : index
    %c0_131 = arith.constant 0 : index
    %c2_132 = arith.constant 2 : index
    %174 = vector.load %arg22[%c1_130, %c0_131, %c2_132] : memref<2x32x136xf32, #tpu.memory_space<vmem>>, vector<1x32x128xf32>
    %175 = vector.shape_cast %174 : vector<1x32x128xf32> to vector<32x128xf32>
    %c1_133 = arith.constant 1 : index
    %c0_134 = arith.constant 0 : index
    %c3_135 = arith.constant 3 : index
    %176 = vector.load %arg22[%c1_133, %c0_134, %c3_135] : memref<2x32x136xf32, #tpu.memory_space<vmem>>, vector<1x32x128xf32>
    %177 = vector.shape_cast %176 : vector<1x32x128xf32> to vector<32x128xf32>
    %c1_136 = arith.constant 1 : index
    %c0_137 = arith.constant 0 : index
    %c4_138 = arith.constant 4 : index
    %178 = vector.load %arg22[%c1_136, %c0_137, %c4_138] : memref<2x32x136xf32, #tpu.memory_space<vmem>>, vector<1x32x128xf32>
    %179 = vector.shape_cast %178 : vector<1x32x128xf32> to vector<32x128xf32>
    %c1_139 = arith.constant 1 : index
    %c0_140 = arith.constant 0 : index
    %c5_141 = arith.constant 5 : index
    %180 = vector.load %arg22[%c1_139, %c0_140, %c5_141] : memref<2x32x136xf32, #tpu.memory_space<vmem>>, vector<1x32x128xf32>
    %181 = vector.shape_cast %180 : vector<1x32x128xf32> to vector<32x128xf32>
    %c1_142 = arith.constant 1 : index
    %c0_143 = arith.constant 0 : index
    %c6_144 = arith.constant 6 : index
    %182 = vector.load %arg22[%c1_142, %c0_143, %c6_144] : memref<2x32x136xf32, #tpu.memory_space<vmem>>, vector<1x32x128xf32>
    %183 = vector.shape_cast %182 : vector<1x32x128xf32> to vector<32x128xf32>
    %c1_145 = arith.constant 1 : index
    %c0_146 = arith.constant 0 : index
    %c7_147 = arith.constant 7 : index
    %184 = vector.load %arg22[%c1_145, %c0_146, %c7_147] : memref<2x32x136xf32, #tpu.memory_space<vmem>>, vector<1x32x128xf32>
    %185 = vector.shape_cast %184 : vector<1x32x128xf32> to vector<32x128xf32>
    %c1_148 = arith.constant 1 : index
    %c0_149 = arith.constant 0 : index
    %c8_150 = arith.constant 8 : index
    %186 = vector.load %arg22[%c1_148, %c0_149, %c8_150] : memref<2x32x136xf32, #tpu.memory_space<vmem>>, vector<1x32x128xf32>
    %187 = vector.shape_cast %186 : vector<1x32x128xf32> to vector<32x128xf32>
    %188 = tpu.concatenate %171, %173, %175, %177, %179, %181, %183, %185, %187 in 0 : vector<32x128xf32>, vector<32x128xf32>, vector<32x128xf32>, vector<32x128xf32>, vector<32x128xf32>, vector<32x128xf32>, vector<32x128xf32>, vector<32x128xf32>, vector<32x128xf32> -> vector<288x128xf32>
    %189 = tpu.concatenate %169, %188 in 1 : vector<288x128xf32>, vector<288x128xf32> -> vector<288x256xf32>
    %c0_151 = arith.constant 0 : index
    %c0_152 = arith.constant 0 : index
    %190 = vector.load %arg6[%c0_151, %c0_152] : memref<64x288xf32, #tpu.memory_space<vmem>>, vector<64x288xf32>
    %cst_153 = arith.constant dense<0.000000e+00> : vector<64x256xf32>
    %191 = tpu.matmul %190, %189, %cst_153 {dimension_numbers = #tpu.dot_dimension_numbers<[1], [0], [0], [1], [0, 0, 1, 1], [], []>} : vector<64x288xf32>, vector<288x256xf32>, vector<64x256xf32> -> vector<64x256xf32>
    %c0_154 = arith.constant 0 : index
    %c0_155 = arith.constant 0 : index
    %192 = vector.load %arg7[%c0_154, %c0_155] : memref<64x1xf32, #tpu.memory_space<vmem>>, vector<64x1xf32>
    %193 = vector.broadcast %192 : vector<64x1xf32> to vector<64x256xf32>
    %194 = arith.addf %191, %193 : vector<64x256xf32>
    %cst_156 = arith.constant 0.000000e+00 : f32
    %195 = vector.broadcast %cst_156 : f32 to vector<64x256xf32>
    %196 = arith.cmpf ogt, %194, %195 : vector<64x256xf32>
    %cst_157 = arith.constant 2.000000e-01 : f32
    %197 = vector.broadcast %cst_157 : f32 to vector<64x256xf32>
    %198 = arith.mulf %197, %194 : vector<64x256xf32>
    %199 = arith.select %196, %194, %198 : vector<64x256xi1>, vector<64x256xf32>
    %cst_158 = arith.constant dense<0.000000e+00> : vector<64xf32>
    %200 = vector.multi_reduction <add>, %199, %cst_158 [1] : vector<64x256xf32> to vector<64xf32>
    %201 = vector.shape_cast %200 : vector<64xf32> to vector<64x1xf32>
    %cst_159 = arith.constant 2.560000e+02 : f32
    %202 = vector.broadcast %cst_159 : f32 to vector<64x1xf32>
    %203 = arith.divf %201, %202 : vector<64x1xf32>
    %204 = arith.mulf %199, %199 : vector<64x256xf32>
    %cst_160 = arith.constant dense<0.000000e+00> : vector<64xf32>
    %205 = vector.multi_reduction <add>, %204, %cst_160 [1] : vector<64x256xf32> to vector<64xf32>
    %206 = vector.shape_cast %205 : vector<64xf32> to vector<64x1xf32>
    %cst_161 = arith.constant 2.560000e+02 : f32
    %207 = vector.broadcast %cst_161 : f32 to vector<64x1xf32>
    %208 = arith.divf %206, %207 : vector<64x1xf32>
    %209 = arith.mulf %203, %203 : vector<64x1xf32>
    %210 = arith.subf %208, %209 : vector<64x1xf32>
    %cst_162 = arith.constant 0.000000e+00 : f32
    %211 = vector.broadcast %cst_162 : f32 to vector<64x1xf32>
    %212 = arith.maximumf %210, %211 : vector<64x1xf32>
    %c0_163 = arith.constant 0 : index
    %c0_164 = arith.constant 0 : index
    %213 = vector.load %arg8[%c0_163, %c0_164] : memref<64x1xf32, #tpu.memory_space<vmem>>, vector<64x1xf32>
    %cst_165 = arith.constant 9.99999974E-6 : f32
    %214 = vector.broadcast %cst_165 : f32 to vector<64x1xf32>
    %215 = arith.addf %212, %214 : vector<64x1xf32>
    %216 = math.rsqrt %215 : vector<64x1xf32>
    %217 = arith.mulf %213, %216 : vector<64x1xf32>
    %c0_166 = arith.constant 0 : index
    %c0_167 = arith.constant 0 : index
    %218 = vector.load %arg9[%c0_166, %c0_167] : memref<64x1xf32, #tpu.memory_space<vmem>>, vector<64x1xf32>
    %219 = arith.mulf %203, %217 : vector<64x1xf32>
    %220 = arith.subf %218, %219 : vector<64x1xf32>
    %221 = vector.broadcast %217 : vector<64x1xf32> to vector<64x256xf32>
    %222 = arith.mulf %199, %221 : vector<64x256xf32>
    %223 = vector.broadcast %220 : vector<64x1xf32> to vector<64x256xf32>
    %224 = arith.addf %222, %223 : vector<64x256xf32>
    %225 = vector.extract_strided_slice %224 {offsets = [0, 0], sizes = [64, 128], strides = [1, 1]} : vector<64x256xf32> to vector<64x128xf32>
    %c0_168 = arith.constant 0 : index
    %c0_169 = arith.constant 0 : index
    %c4_170 = arith.constant 4 : index
    %226 = vector.load %arg23[%c0_168, %c0_169, %c4_170] : memref<2x64x136xf32, #tpu.memory_space<vmem>>, vector<1x64x128xf32>
    %227 = vector.shape_cast %226 : vector<1x64x128xf32> to vector<64x128xf32>
    %228 = vector.shape_cast %225 : vector<64x128xf32> to vector<1x64x128xf32>
    tpu.vector_store %arg23[%c0_168, %c0_169, %c4_170], %228 {strides = array<i32>} : memref<2x64x136xf32, #tpu.memory_space<vmem>>, vector<1x64x128xf32>,
    %229 = vector.extract_strided_slice %224 {offsets = [0, 128], sizes = [64, 128], strides = [1, 1]} : vector<64x256xf32> to vector<64x128xf32>
    %c1_171 = arith.constant 1 : index
    %c0_172 = arith.constant 0 : index
    %c4_173 = arith.constant 4 : index
    %230 = vector.load %arg23[%c1_171, %c0_172, %c4_173] : memref<2x64x136xf32, #tpu.memory_space<vmem>>, vector<1x64x128xf32>
    %231 = vector.shape_cast %230 : vector<1x64x128xf32> to vector<64x128xf32>
    %232 = vector.shape_cast %229 : vector<64x128xf32> to vector<1x64x128xf32>
    tpu.vector_store %arg23[%c1_171, %c0_172, %c4_173], %232 {strides = array<i32>} : memref<2x64x136xf32, #tpu.memory_space<vmem>>, vector<1x64x128xf32>,
    %c0_174 = arith.constant 0 : index
    %c0_175 = arith.constant 0 : index
    %c0_176 = arith.constant 0 : index
    %233 = vector.load %arg23[%c0_174, %c0_175, %c0_176] : memref<2x64x136xf32, #tpu.memory_space<vmem>>, vector<1x64x128xf32>
    %234 = vector.shape_cast %233 : vector<1x64x128xf32> to vector<64x128xf32>
    %c0_177 = arith.constant 0 : index
    %c0_178 = arith.constant 0 : index
    %c1_179 = arith.constant 1 : index
    %235 = vector.load %arg23[%c0_177, %c0_178, %c1_179] : memref<2x64x136xf32, #tpu.memory_space<vmem>>, vector<1x64x128xf32>
    %236 = vector.shape_cast %235 : vector<1x64x128xf32> to vector<64x128xf32>
    %c0_180 = arith.constant 0 : index
    %c0_181 = arith.constant 0 : index
    %c2_182 = arith.constant 2 : index
    %237 = vector.load %arg23[%c0_180, %c0_181, %c2_182] : memref<2x64x136xf32, #tpu.memory_space<vmem>>, vector<1x64x128xf32>
    %238 = vector.shape_cast %237 : vector<1x64x128xf32> to vector<64x128xf32>
    %c0_183 = arith.constant 0 : index
    %c0_184 = arith.constant 0 : index
    %c3_185 = arith.constant 3 : index
    %239 = vector.load %arg23[%c0_183, %c0_184, %c3_185] : memref<2x64x136xf32, #tpu.memory_space<vmem>>, vector<1x64x128xf32>
    %240 = vector.shape_cast %239 : vector<1x64x128xf32> to vector<64x128xf32>
    %c0_186 = arith.constant 0 : index
    %c0_187 = arith.constant 0 : index
    %c4_188 = arith.constant 4 : index
    %241 = vector.load %arg23[%c0_186, %c0_187, %c4_188] : memref<2x64x136xf32, #tpu.memory_space<vmem>>, vector<1x64x128xf32>
    %242 = vector.shape_cast %241 : vector<1x64x128xf32> to vector<64x128xf32>
    %c0_189 = arith.constant 0 : index
    %c0_190 = arith.constant 0 : index
    %c5_191 = arith.constant 5 : index
    %243 = vector.load %arg23[%c0_189, %c0_190, %c5_191] : memref<2x64x136xf32, #tpu.memory_space<vmem>>, vector<1x64x128xf32>
    %244 = vector.shape_cast %243 : vector<1x64x128xf32> to vector<64x128xf32>
    %c0_192 = arith.constant 0 : index
    %c0_193 = arith.constant 0 : index
    %c6_194 = arith.constant 6 : index
    %245 = vector.load %arg23[%c0_192, %c0_193, %c6_194] : memref<2x64x136xf32, #tpu.memory_space<vmem>>, vector<1x64x128xf32>
    %246 = vector.shape_cast %245 : vector<1x64x128xf32> to vector<64x128xf32>
    %c0_195 = arith.constant 0 : index
    %c0_196 = arith.constant 0 : index
    %c7_197 = arith.constant 7 : index
    %247 = vector.load %arg23[%c0_195, %c0_196, %c7_197] : memref<2x64x136xf32, #tpu.memory_space<vmem>>, vector<1x64x128xf32>
    %248 = vector.shape_cast %247 : vector<1x64x128xf32> to vector<64x128xf32>
    %c0_198 = arith.constant 0 : index
    %c0_199 = arith.constant 0 : index
    %c8_200 = arith.constant 8 : index
    %249 = vector.load %arg23[%c0_198, %c0_199, %c8_200] : memref<2x64x136xf32, #tpu.memory_space<vmem>>, vector<1x64x128xf32>
    %250 = vector.shape_cast %249 : vector<1x64x128xf32> to vector<64x128xf32>
    %251 = tpu.concatenate %234, %236, %238, %240, %242, %244, %246, %248, %250 in 0 : vector<64x128xf32>, vector<64x128xf32>, vector<64x128xf32>, vector<64x128xf32>, vector<64x128xf32>, vector<64x128xf32>, vector<64x128xf32>, vector<64x128xf32>, vector<64x128xf32> -> vector<576x128xf32>
    %c1_201 = arith.constant 1 : index
    %c0_202 = arith.constant 0 : index
    %c0_203 = arith.constant 0 : index
    %252 = vector.load %arg23[%c1_201, %c0_202, %c0_203] : memref<2x64x136xf32, #tpu.memory_space<vmem>>, vector<1x64x128xf32>
    %253 = vector.shape_cast %252 : vector<1x64x128xf32> to vector<64x128xf32>
    %c1_204 = arith.constant 1 : index
    %c0_205 = arith.constant 0 : index
    %c1_206 = arith.constant 1 : index
    %254 = vector.load %arg23[%c1_204, %c0_205, %c1_206] : memref<2x64x136xf32, #tpu.memory_space<vmem>>, vector<1x64x128xf32>
    %255 = vector.shape_cast %254 : vector<1x64x128xf32> to vector<64x128xf32>
    %c1_207 = arith.constant 1 : index
    %c0_208 = arith.constant 0 : index
    %c2_209 = arith.constant 2 : index
    %256 = vector.load %arg23[%c1_207, %c0_208, %c2_209] : memref<2x64x136xf32, #tpu.memory_space<vmem>>, vector<1x64x128xf32>
    %257 = vector.shape_cast %256 : vector<1x64x128xf32> to vector<64x128xf32>
    %c1_210 = arith.constant 1 : index
    %c0_211 = arith.constant 0 : index
    %c3_212 = arith.constant 3 : index
    %258 = vector.load %arg23[%c1_210, %c0_211, %c3_212] : memref<2x64x136xf32, #tpu.memory_space<vmem>>, vector<1x64x128xf32>
    %259 = vector.shape_cast %258 : vector<1x64x128xf32> to vector<64x128xf32>
    %c1_213 = arith.constant 1 : index
    %c0_214 = arith.constant 0 : index
    %c4_215 = arith.constant 4 : index
    %260 = vector.load %arg23[%c1_213, %c0_214, %c4_215] : memref<2x64x136xf32, #tpu.memory_space<vmem>>, vector<1x64x128xf32>
    %261 = vector.shape_cast %260 : vector<1x64x128xf32> to vector<64x128xf32>
    %c1_216 = arith.constant 1 : index
    %c0_217 = arith.constant 0 : index
    %c5_218 = arith.constant 5 : index
    %262 = vector.load %arg23[%c1_216, %c0_217, %c5_218] : memref<2x64x136xf32, #tpu.memory_space<vmem>>, vector<1x64x128xf32>
    %263 = vector.shape_cast %262 : vector<1x64x128xf32> to vector<64x128xf32>
    %c1_219 = arith.constant 1 : index
    %c0_220 = arith.constant 0 : index
    %c6_221 = arith.constant 6 : index
    %264 = vector.load %arg23[%c1_219, %c0_220, %c6_221] : memref<2x64x136xf32, #tpu.memory_space<vmem>>, vector<1x64x128xf32>
    %265 = vector.shape_cast %264 : vector<1x64x128xf32> to vector<64x128xf32>
    %c1_222 = arith.constant 1 : index
    %c0_223 = arith.constant 0 : index
    %c7_224 = arith.constant 7 : index
    %266 = vector.load %arg23[%c1_222, %c0_223, %c7_224] : memref<2x64x136xf32, #tpu.memory_space<vmem>>, vector<1x64x128xf32>
    %267 = vector.shape_cast %266 : vector<1x64x128xf32> to vector<64x128xf32>
    %c1_225 = arith.constant 1 : index
    %c0_226 = arith.constant 0 : index
    %c8_227 = arith.constant 8 : index
    %268 = vector.load %arg23[%c1_225, %c0_226, %c8_227] : memref<2x64x136xf32, #tpu.memory_space<vmem>>, vector<1x64x128xf32>
    %269 = vector.shape_cast %268 : vector<1x64x128xf32> to vector<64x128xf32>
    %270 = tpu.concatenate %253, %255, %257, %259, %261, %263, %265, %267, %269 in 0 : vector<64x128xf32>, vector<64x128xf32>, vector<64x128xf32>, vector<64x128xf32>, vector<64x128xf32>, vector<64x128xf32>, vector<64x128xf32>, vector<64x128xf32>, vector<64x128xf32> -> vector<576x128xf32>
    %271 = tpu.concatenate %251, %270 in 1 : vector<576x128xf32>, vector<576x128xf32> -> vector<576x256xf32>
    %c0_228 = arith.constant 0 : index
    %c0_229 = arith.constant 0 : index
    %272 = vector.load %arg10[%c0_228, %c0_229] : memref<64x576xf32, #tpu.memory_space<vmem>>, vector<64x576xf32>
    %cst_230 = arith.constant dense<0.000000e+00> : vector<64x256xf32>
    %273 = tpu.matmul %272, %271, %cst_230 {dimension_numbers = #tpu.dot_dimension_numbers<[1], [0], [0], [1], [0, 0, 1, 1], [], []>} : vector<64x576xf32>, vector<576x256xf32>, vector<64x256xf32> -> vector<64x256xf32>
    %c0_231 = arith.constant 0 : index
    %c0_232 = arith.constant 0 : index
    %274 = vector.load %arg11[%c0_231, %c0_232] : memref<64x1xf32, #tpu.memory_space<vmem>>, vector<64x1xf32>
    %275 = vector.broadcast %274 : vector<64x1xf32> to vector<64x256xf32>
    %276 = arith.addf %273, %275 : vector<64x256xf32>
    %cst_233 = arith.constant 0.000000e+00 : f32
    %277 = vector.broadcast %cst_233 : f32 to vector<64x256xf32>
    %278 = arith.cmpf ogt, %276, %277 : vector<64x256xf32>
    %cst_234 = arith.constant 2.000000e-01 : f32
    %279 = vector.broadcast %cst_234 : f32 to vector<64x256xf32>
    %280 = arith.mulf %279, %276 : vector<64x256xf32>
    %281 = arith.select %278, %276, %280 : vector<64x256xi1>, vector<64x256xf32>
    %cst_235 = arith.constant dense<0.000000e+00> : vector<64xf32>
    %282 = vector.multi_reduction <add>, %281, %cst_235 [1] : vector<64x256xf32> to vector<64xf32>
    %283 = vector.shape_cast %282 : vector<64xf32> to vector<64x1xf32>
    %cst_236 = arith.constant 2.560000e+02 : f32
    %284 = vector.broadcast %cst_236 : f32 to vector<64x1xf32>
    %285 = arith.divf %283, %284 : vector<64x1xf32>
    %286 = arith.mulf %281, %281 : vector<64x256xf32>
    %cst_237 = arith.constant dense<0.000000e+00> : vector<64xf32>
    %287 = vector.multi_reduction <add>, %286, %cst_237 [1] : vector<64x256xf32> to vector<64xf32>
    %288 = vector.shape_cast %287 : vector<64xf32> to vector<64x1xf32>
    %cst_238 = arith.constant 2.560000e+02 : f32
    %289 = vector.broadcast %cst_238 : f32 to vector<64x1xf32>
    %290 = arith.divf %288, %289 : vector<64x1xf32>
    %291 = arith.mulf %285, %285 : vector<64x1xf32>
    %292 = arith.subf %290, %291 : vector<64x1xf32>
    %cst_239 = arith.constant 0.000000e+00 : f32
    %293 = vector.broadcast %cst_239 : f32 to vector<64x1xf32>
    %294 = arith.maximumf %292, %293 : vector<64x1xf32>
    %c0_240 = arith.constant 0 : index
    %c0_241 = arith.constant 0 : index
    %295 = vector.load %arg12[%c0_240, %c0_241] : memref<64x1xf32, #tpu.memory_space<vmem>>, vector<64x1xf32>
    %cst_242 = arith.constant 9.99999974E-6 : f32
    %296 = vector.broadcast %cst_242 : f32 to vector<64x1xf32>
    %297 = arith.addf %294, %296 : vector<64x1xf32>
    %298 = math.rsqrt %297 : vector<64x1xf32>
    %299 = arith.mulf %295, %298 : vector<64x1xf32>
    %c0_243 = arith.constant 0 : index
    %c0_244 = arith.constant 0 : index
    %300 = vector.load %arg13[%c0_243, %c0_244] : memref<64x1xf32, #tpu.memory_space<vmem>>, vector<64x1xf32>
    %301 = arith.mulf %285, %299 : vector<64x1xf32>
    %302 = arith.subf %300, %301 : vector<64x1xf32>
    %303 = vector.broadcast %299 : vector<64x1xf32> to vector<64x256xf32>
    %304 = arith.mulf %281, %303 : vector<64x256xf32>
    %305 = vector.broadcast %302 : vector<64x1xf32> to vector<64x256xf32>
    %306 = arith.addf %304, %305 : vector<64x256xf32>
    %307 = vector.extract_strided_slice %306 {offsets = [0, 0], sizes = [64, 128], strides = [1, 1]} : vector<64x256xf32> to vector<64x128xf32>
    %c0_245 = arith.constant 0 : index
    %c0_246 = arith.constant 0 : index
    %c4_247 = arith.constant 4 : index
    %308 = vector.load %arg24[%c0_245, %c0_246, %c4_247] : memref<2x64x136xf32, #tpu.memory_space<vmem>>, vector<1x64x128xf32>
    %309 = vector.shape_cast %308 : vector<1x64x128xf32> to vector<64x128xf32>
    %310 = vector.shape_cast %307 : vector<64x128xf32> to vector<1x64x128xf32>
    tpu.vector_store %arg24[%c0_245, %c0_246, %c4_247], %310 {strides = array<i32>} : memref<2x64x136xf32, #tpu.memory_space<vmem>>, vector<1x64x128xf32>,
    %311 = vector.extract_strided_slice %306 {offsets = [0, 128], sizes = [64, 128], strides = [1, 1]} : vector<64x256xf32> to vector<64x128xf32>
    %c1_248 = arith.constant 1 : index
    %c0_249 = arith.constant 0 : index
    %c4_250 = arith.constant 4 : index
    %312 = vector.load %arg24[%c1_248, %c0_249, %c4_250] : memref<2x64x136xf32, #tpu.memory_space<vmem>>, vector<1x64x128xf32>
    %313 = vector.shape_cast %312 : vector<1x64x128xf32> to vector<64x128xf32>
    %314 = vector.shape_cast %311 : vector<64x128xf32> to vector<1x64x128xf32>
    tpu.vector_store %arg24[%c1_248, %c0_249, %c4_250], %314 {strides = array<i32>} : memref<2x64x136xf32, #tpu.memory_space<vmem>>, vector<1x64x128xf32>,
    %c0_251 = arith.constant 0 : index
    %c0_252 = arith.constant 0 : index
    %c0_253 = arith.constant 0 : index
    %315 = vector.load %arg24[%c0_251, %c0_252, %c0_253] : memref<2x64x136xf32, #tpu.memory_space<vmem>>, vector<1x64x128xf32>
    %316 = vector.shape_cast %315 : vector<1x64x128xf32> to vector<64x128xf32>
    %c0_254 = arith.constant 0 : index
    %c0_255 = arith.constant 0 : index
    %c1_256 = arith.constant 1 : index
    %317 = vector.load %arg24[%c0_254, %c0_255, %c1_256] : memref<2x64x136xf32, #tpu.memory_space<vmem>>, vector<1x64x128xf32>
    %318 = vector.shape_cast %317 : vector<1x64x128xf32> to vector<64x128xf32>
    %c0_257 = arith.constant 0 : index
    %c0_258 = arith.constant 0 : index
    %c2_259 = arith.constant 2 : index
    %319 = vector.load %arg24[%c0_257, %c0_258, %c2_259] : memref<2x64x136xf32, #tpu.memory_space<vmem>>, vector<1x64x128xf32>
    %320 = vector.shape_cast %319 : vector<1x64x128xf32> to vector<64x128xf32>
    %c0_260 = arith.constant 0 : index
    %c0_261 = arith.constant 0 : index
    %c3_262 = arith.constant 3 : index
    %321 = vector.load %arg24[%c0_260, %c0_261, %c3_262] : memref<2x64x136xf32, #tpu.memory_space<vmem>>, vector<1x64x128xf32>
    %322 = vector.shape_cast %321 : vector<1x64x128xf32> to vector<64x128xf32>
    %c0_263 = arith.constant 0 : index
    %c0_264 = arith.constant 0 : index
    %c4_265 = arith.constant 4 : index
    %323 = vector.load %arg24[%c0_263, %c0_264, %c4_265] : memref<2x64x136xf32, #tpu.memory_space<vmem>>, vector<1x64x128xf32>
    %324 = vector.shape_cast %323 : vector<1x64x128xf32> to vector<64x128xf32>
    %c0_266 = arith.constant 0 : index
    %c0_267 = arith.constant 0 : index
    %c5_268 = arith.constant 5 : index
    %325 = vector.load %arg24[%c0_266, %c0_267, %c5_268] : memref<2x64x136xf32, #tpu.memory_space<vmem>>, vector<1x64x128xf32>
    %326 = vector.shape_cast %325 : vector<1x64x128xf32> to vector<64x128xf32>
    %c0_269 = arith.constant 0 : index
    %c0_270 = arith.constant 0 : index
    %c6_271 = arith.constant 6 : index
    %327 = vector.load %arg24[%c0_269, %c0_270, %c6_271] : memref<2x64x136xf32, #tpu.memory_space<vmem>>, vector<1x64x128xf32>
    %328 = vector.shape_cast %327 : vector<1x64x128xf32> to vector<64x128xf32>
    %c0_272 = arith.constant 0 : index
    %c0_273 = arith.constant 0 : index
    %c7_274 = arith.constant 7 : index
    %329 = vector.load %arg24[%c0_272, %c0_273, %c7_274] : memref<2x64x136xf32, #tpu.memory_space<vmem>>, vector<1x64x128xf32>
    %330 = vector.shape_cast %329 : vector<1x64x128xf32> to vector<64x128xf32>
    %c0_275 = arith.constant 0 : index
    %c0_276 = arith.constant 0 : index
    %c8_277 = arith.constant 8 : index
    %331 = vector.load %arg24[%c0_275, %c0_276, %c8_277] : memref<2x64x136xf32, #tpu.memory_space<vmem>>, vector<1x64x128xf32>
    %332 = vector.shape_cast %331 : vector<1x64x128xf32> to vector<64x128xf32>
    %333 = tpu.concatenate %316, %318, %320, %322, %324, %326, %328, %330, %332 in 0 : vector<64x128xf32>, vector<64x128xf32>, vector<64x128xf32>, vector<64x128xf32>, vector<64x128xf32>, vector<64x128xf32>, vector<64x128xf32>, vector<64x128xf32>, vector<64x128xf32> -> vector<576x128xf32>
    %c1_278 = arith.constant 1 : index
    %c0_279 = arith.constant 0 : index
    %c0_280 = arith.constant 0 : index
    %334 = vector.load %arg24[%c1_278, %c0_279, %c0_280] : memref<2x64x136xf32, #tpu.memory_space<vmem>>, vector<1x64x128xf32>
    %335 = vector.shape_cast %334 : vector<1x64x128xf32> to vector<64x128xf32>
    %c1_281 = arith.constant 1 : index
    %c0_282 = arith.constant 0 : index
    %c1_283 = arith.constant 1 : index
    %336 = vector.load %arg24[%c1_281, %c0_282, %c1_283] : memref<2x64x136xf32, #tpu.memory_space<vmem>>, vector<1x64x128xf32>
    %337 = vector.shape_cast %336 : vector<1x64x128xf32> to vector<64x128xf32>
    %c1_284 = arith.constant 1 : index
    %c0_285 = arith.constant 0 : index
    %c2_286 = arith.constant 2 : index
    %338 = vector.load %arg24[%c1_284, %c0_285, %c2_286] : memref<2x64x136xf32, #tpu.memory_space<vmem>>, vector<1x64x128xf32>
    %339 = vector.shape_cast %338 : vector<1x64x128xf32> to vector<64x128xf32>
    %c1_287 = arith.constant 1 : index
    %c0_288 = arith.constant 0 : index
    %c3_289 = arith.constant 3 : index
    %340 = vector.load %arg24[%c1_287, %c0_288, %c3_289] : memref<2x64x136xf32, #tpu.memory_space<vmem>>, vector<1x64x128xf32>
    %341 = vector.shape_cast %340 : vector<1x64x128xf32> to vector<64x128xf32>
    %c1_290 = arith.constant 1 : index
    %c0_291 = arith.constant 0 : index
    %c4_292 = arith.constant 4 : index
    %342 = vector.load %arg24[%c1_290, %c0_291, %c4_292] : memref<2x64x136xf32, #tpu.memory_space<vmem>>, vector<1x64x128xf32>
    %343 = vector.shape_cast %342 : vector<1x64x128xf32> to vector<64x128xf32>
    %c1_293 = arith.constant 1 : index
    %c0_294 = arith.constant 0 : index
    %c5_295 = arith.constant 5 : index
    %344 = vector.load %arg24[%c1_293, %c0_294, %c5_295] : memref<2x64x136xf32, #tpu.memory_space<vmem>>, vector<1x64x128xf32>
    %345 = vector.shape_cast %344 : vector<1x64x128xf32> to vector<64x128xf32>
    %c1_296 = arith.constant 1 : index
    %c0_297 = arith.constant 0 : index
    %c6_298 = arith.constant 6 : index
    %346 = vector.load %arg24[%c1_296, %c0_297, %c6_298] : memref<2x64x136xf32, #tpu.memory_space<vmem>>, vector<1x64x128xf32>
    %347 = vector.shape_cast %346 : vector<1x64x128xf32> to vector<64x128xf32>
    %c1_299 = arith.constant 1 : index
    %c0_300 = arith.constant 0 : index
    %c7_301 = arith.constant 7 : index
    %348 = vector.load %arg24[%c1_299, %c0_300, %c7_301] : memref<2x64x136xf32, #tpu.memory_space<vmem>>, vector<1x64x128xf32>
    %349 = vector.shape_cast %348 : vector<1x64x128xf32> to vector<64x128xf32>
    %c1_302 = arith.constant 1 : index
    %c0_303 = arith.constant 0 : index
    %c8_304 = arith.constant 8 : index
    %350 = vector.load %arg24[%c1_302, %c0_303, %c8_304] : memref<2x64x136xf32, #tpu.memory_space<vmem>>, vector<1x64x128xf32>
    %351 = vector.shape_cast %350 : vector<1x64x128xf32> to vector<64x128xf32>
    %352 = tpu.concatenate %335, %337, %339, %341, %343, %345, %347, %349, %351 in 0 : vector<64x128xf32>, vector<64x128xf32>, vector<64x128xf32>, vector<64x128xf32>, vector<64x128xf32>, vector<64x128xf32>, vector<64x128xf32>, vector<64x128xf32>, vector<64x128xf32> -> vector<576x128xf32>
    %353 = tpu.concatenate %333, %352 in 1 : vector<576x128xf32>, vector<576x128xf32> -> vector<576x256xf32>
    %c0_305 = arith.constant 0 : index
    %c0_306 = arith.constant 0 : index
    %354 = vector.load %arg14[%c0_305, %c0_306] : memref<32x576xf32, #tpu.memory_space<vmem>>, vector<32x576xf32>
    %cst_307 = arith.constant dense<0.000000e+00> : vector<32x256xf32>
    %355 = tpu.matmul %354, %353, %cst_307 {dimension_numbers = #tpu.dot_dimension_numbers<[1], [0], [0], [1], [0, 0, 1, 1], [], []>} : vector<32x576xf32>, vector<576x256xf32>, vector<32x256xf32> -> vector<32x256xf32>
    %c0_308 = arith.constant 0 : index
    %c0_309 = arith.constant 0 : index
    %356 = vector.load %arg15[%c0_308, %c0_309] : memref<32x1xf32, #tpu.memory_space<vmem>>, vector<32x1xf32>
    %357 = vector.broadcast %356 : vector<32x1xf32> to vector<32x256xf32>
    %358 = arith.addf %355, %357 : vector<32x256xf32>
    %cst_310 = arith.constant 0.000000e+00 : f32
    %359 = vector.broadcast %cst_310 : f32 to vector<32x256xf32>
    %360 = arith.cmpf ogt, %358, %359 : vector<32x256xf32>
    %cst_311 = arith.constant 2.000000e-01 : f32
    %361 = vector.broadcast %cst_311 : f32 to vector<32x256xf32>
    %362 = arith.mulf %361, %358 : vector<32x256xf32>
    %363 = arith.select %360, %358, %362 : vector<32x256xi1>, vector<32x256xf32>
    %cst_312 = arith.constant dense<0.000000e+00> : vector<32xf32>
    %364 = vector.multi_reduction <add>, %363, %cst_312 [1] : vector<32x256xf32> to vector<32xf32>
    %365 = vector.shape_cast %364 : vector<32xf32> to vector<32x1xf32>
    %cst_313 = arith.constant 2.560000e+02 : f32
    %366 = vector.broadcast %cst_313 : f32 to vector<32x1xf32>
    %367 = arith.divf %365, %366 : vector<32x1xf32>
    %368 = arith.mulf %363, %363 : vector<32x256xf32>
    %cst_314 = arith.constant dense<0.000000e+00> : vector<32xf32>
    %369 = vector.multi_reduction <add>, %368, %cst_314 [1] : vector<32x256xf32> to vector<32xf32>
    %370 = vector.shape_cast %369 : vector<32xf32> to vector<32x1xf32>
    %cst_315 = arith.constant 2.560000e+02 : f32
    %371 = vector.broadcast %cst_315 : f32 to vector<32x1xf32>
    %372 = arith.divf %370, %371 : vector<32x1xf32>
    %373 = arith.mulf %367, %367 : vector<32x1xf32>
    %374 = arith.subf %372, %373 : vector<32x1xf32>
    %cst_316 = arith.constant 0.000000e+00 : f32
    %375 = vector.broadcast %cst_316 : f32 to vector<32x1xf32>
    %376 = arith.maximumf %374, %375 : vector<32x1xf32>
    %c0_317 = arith.constant 0 : index
    %c0_318 = arith.constant 0 : index
    %377 = vector.load %arg16[%c0_317, %c0_318] : memref<32x1xf32, #tpu.memory_space<vmem>>, vector<32x1xf32>
    %cst_319 = arith.constant 9.99999974E-6 : f32
    %378 = vector.broadcast %cst_319 : f32 to vector<32x1xf32>
    %379 = arith.addf %376, %378 : vector<32x1xf32>
    %380 = math.rsqrt %379 : vector<32x1xf32>
    %381 = arith.mulf %377, %380 : vector<32x1xf32>
    %c0_320 = arith.constant 0 : index
    %c0_321 = arith.constant 0 : index
    %382 = vector.load %arg17[%c0_320, %c0_321] : memref<32x1xf32, #tpu.memory_space<vmem>>, vector<32x1xf32>
    %383 = arith.mulf %367, %381 : vector<32x1xf32>
    %384 = arith.subf %382, %383 : vector<32x1xf32>
    %385 = vector.broadcast %381 : vector<32x1xf32> to vector<32x256xf32>
    %386 = arith.mulf %363, %385 : vector<32x256xf32>
    %387 = vector.broadcast %384 : vector<32x1xf32> to vector<32x256xf32>
    %388 = arith.addf %386, %387 : vector<32x256xf32>
    %389 = vector.extract_strided_slice %388 {offsets = [0, 0], sizes = [32, 128], strides = [1, 1]} : vector<32x256xf32> to vector<32x128xf32>
    %c0_322 = arith.constant 0 : index
    %c0_323 = arith.constant 0 : index
    %c4_324 = arith.constant 4 : index
    %390 = vector.load %arg25[%c0_322, %c0_323, %c4_324] : memref<2x32x136xf32, #tpu.memory_space<vmem>>, vector<1x32x128xf32>
    %391 = vector.shape_cast %390 : vector<1x32x128xf32> to vector<32x128xf32>
    %392 = vector.shape_cast %389 : vector<32x128xf32> to vector<1x32x128xf32>
    tpu.vector_store %arg25[%c0_322, %c0_323, %c4_324], %392 {strides = array<i32>} : memref<2x32x136xf32, #tpu.memory_space<vmem>>, vector<1x32x128xf32>,
    %393 = vector.extract_strided_slice %388 {offsets = [0, 128], sizes = [32, 128], strides = [1, 1]} : vector<32x256xf32> to vector<32x128xf32>
    %c1_325 = arith.constant 1 : index
    %c0_326 = arith.constant 0 : index
    %c4_327 = arith.constant 4 : index
    %394 = vector.load %arg25[%c1_325, %c0_326, %c4_327] : memref<2x32x136xf32, #tpu.memory_space<vmem>>, vector<1x32x128xf32>
    %395 = vector.shape_cast %394 : vector<1x32x128xf32> to vector<32x128xf32>
    %396 = vector.shape_cast %393 : vector<32x128xf32> to vector<1x32x128xf32>
    tpu.vector_store %arg25[%c1_325, %c0_326, %c4_327], %396 {strides = array<i32>} : memref<2x32x136xf32, #tpu.memory_space<vmem>>, vector<1x32x128xf32>,
    %c0_328 = arith.constant 0 : index
    %c0_329 = arith.constant 0 : index
    %c0_330 = arith.constant 0 : index
    %397 = vector.load %arg25[%c0_328, %c0_329, %c0_330] : memref<2x32x136xf32, #tpu.memory_space<vmem>>, vector<1x32x128xf32>
    %398 = vector.shape_cast %397 : vector<1x32x128xf32> to vector<32x128xf32>
    %c0_331 = arith.constant 0 : index
    %c0_332 = arith.constant 0 : index
    %c1_333 = arith.constant 1 : index
    %399 = vector.load %arg25[%c0_331, %c0_332, %c1_333] : memref<2x32x136xf32, #tpu.memory_space<vmem>>, vector<1x32x128xf32>
    %400 = vector.shape_cast %399 : vector<1x32x128xf32> to vector<32x128xf32>
    %c0_334 = arith.constant 0 : index
    %c0_335 = arith.constant 0 : index
    %c2_336 = arith.constant 2 : index
    %401 = vector.load %arg25[%c0_334, %c0_335, %c2_336] : memref<2x32x136xf32, #tpu.memory_space<vmem>>, vector<1x32x128xf32>
    %402 = vector.shape_cast %401 : vector<1x32x128xf32> to vector<32x128xf32>
    %c0_337 = arith.constant 0 : index
    %c0_338 = arith.constant 0 : index
    %c3_339 = arith.constant 3 : index
    %403 = vector.load %arg25[%c0_337, %c0_338, %c3_339] : memref<2x32x136xf32, #tpu.memory_space<vmem>>, vector<1x32x128xf32>
    %404 = vector.shape_cast %403 : vector<1x32x128xf32> to vector<32x128xf32>
    %c0_340 = arith.constant 0 : index
    %c0_341 = arith.constant 0 : index
    %c4_342 = arith.constant 4 : index
    %405 = vector.load %arg25[%c0_340, %c0_341, %c4_342] : memref<2x32x136xf32, #tpu.memory_space<vmem>>, vector<1x32x128xf32>
    %406 = vector.shape_cast %405 : vector<1x32x128xf32> to vector<32x128xf32>
    %c0_343 = arith.constant 0 : index
    %c0_344 = arith.constant 0 : index
    %c5_345 = arith.constant 5 : index
    %407 = vector.load %arg25[%c0_343, %c0_344, %c5_345] : memref<2x32x136xf32, #tpu.memory_space<vmem>>, vector<1x32x128xf32>
    %408 = vector.shape_cast %407 : vector<1x32x128xf32> to vector<32x128xf32>
    %c0_346 = arith.constant 0 : index
    %c0_347 = arith.constant 0 : index
    %c6_348 = arith.constant 6 : index
    %409 = vector.load %arg25[%c0_346, %c0_347, %c6_348] : memref<2x32x136xf32, #tpu.memory_space<vmem>>, vector<1x32x128xf32>
    %410 = vector.shape_cast %409 : vector<1x32x128xf32> to vector<32x128xf32>
    %c0_349 = arith.constant 0 : index
    %c0_350 = arith.constant 0 : index
    %c7_351 = arith.constant 7 : index
    %411 = vector.load %arg25[%c0_349, %c0_350, %c7_351] : memref<2x32x136xf32, #tpu.memory_space<vmem>>, vector<1x32x128xf32>
    %412 = vector.shape_cast %411 : vector<1x32x128xf32> to vector<32x128xf32>
    %c0_352 = arith.constant 0 : index
    %c0_353 = arith.constant 0 : index
    %c8_354 = arith.constant 8 : index
    %413 = vector.load %arg25[%c0_352, %c0_353, %c8_354] : memref<2x32x136xf32, #tpu.memory_space<vmem>>, vector<1x32x128xf32>
    %414 = vector.shape_cast %413 : vector<1x32x128xf32> to vector<32x128xf32>
    %415 = tpu.concatenate %398, %400, %402, %404, %406, %408, %410, %412, %414 in 0 : vector<32x128xf32>, vector<32x128xf32>, vector<32x128xf32>, vector<32x128xf32>, vector<32x128xf32>, vector<32x128xf32>, vector<32x128xf32>, vector<32x128xf32>, vector<32x128xf32> -> vector<288x128xf32>
    %c1_355 = arith.constant 1 : index
    %c0_356 = arith.constant 0 : index
    %c0_357 = arith.constant 0 : index
    %416 = vector.load %arg25[%c1_355, %c0_356, %c0_357] : memref<2x32x136xf32, #tpu.memory_space<vmem>>, vector<1x32x128xf32>
    %417 = vector.shape_cast %416 : vector<1x32x128xf32> to vector<32x128xf32>
    %c1_358 = arith.constant 1 : index
    %c0_359 = arith.constant 0 : index
    %c1_360 = arith.constant 1 : index
    %418 = vector.load %arg25[%c1_358, %c0_359, %c1_360] : memref<2x32x136xf32, #tpu.memory_space<vmem>>, vector<1x32x128xf32>
    %419 = vector.shape_cast %418 : vector<1x32x128xf32> to vector<32x128xf32>
    %c1_361 = arith.constant 1 : index
    %c0_362 = arith.constant 0 : index
    %c2_363 = arith.constant 2 : index
    %420 = vector.load %arg25[%c1_361, %c0_362, %c2_363] : memref<2x32x136xf32, #tpu.memory_space<vmem>>, vector<1x32x128xf32>
    %421 = vector.shape_cast %420 : vector<1x32x128xf32> to vector<32x128xf32>
    %c1_364 = arith.constant 1 : index
    %c0_365 = arith.constant 0 : index
    %c3_366 = arith.constant 3 : index
    %422 = vector.load %arg25[%c1_364, %c0_365, %c3_366] : memref<2x32x136xf32, #tpu.memory_space<vmem>>, vector<1x32x128xf32>
    %423 = vector.shape_cast %422 : vector<1x32x128xf32> to vector<32x128xf32>
    %c1_367 = arith.constant 1 : index
    %c0_368 = arith.constant 0 : index
    %c4_369 = arith.constant 4 : index
    %424 = vector.load %arg25[%c1_367, %c0_368, %c4_369] : memref<2x32x136xf32, #tpu.memory_space<vmem>>, vector<1x32x128xf32>
    %425 = vector.shape_cast %424 : vector<1x32x128xf32> to vector<32x128xf32>
    %c1_370 = arith.constant 1 : index
    %c0_371 = arith.constant 0 : index
    %c5_372 = arith.constant 5 : index
    %426 = vector.load %arg25[%c1_370, %c0_371, %c5_372] : memref<2x32x136xf32, #tpu.memory_space<vmem>>, vector<1x32x128xf32>
    %427 = vector.shape_cast %426 : vector<1x32x128xf32> to vector<32x128xf32>
    %c1_373 = arith.constant 1 : index
    %c0_374 = arith.constant 0 : index
    %c6_375 = arith.constant 6 : index
    %428 = vector.load %arg25[%c1_373, %c0_374, %c6_375] : memref<2x32x136xf32, #tpu.memory_space<vmem>>, vector<1x32x128xf32>
    %429 = vector.shape_cast %428 : vector<1x32x128xf32> to vector<32x128xf32>
    %c1_376 = arith.constant 1 : index
    %c0_377 = arith.constant 0 : index
    %c7_378 = arith.constant 7 : index
    %430 = vector.load %arg25[%c1_376, %c0_377, %c7_378] : memref<2x32x136xf32, #tpu.memory_space<vmem>>, vector<1x32x128xf32>
    %431 = vector.shape_cast %430 : vector<1x32x128xf32> to vector<32x128xf32>
    %c1_379 = arith.constant 1 : index
    %c0_380 = arith.constant 0 : index
    %c8_381 = arith.constant 8 : index
    %432 = vector.load %arg25[%c1_379, %c0_380, %c8_381] : memref<2x32x136xf32, #tpu.memory_space<vmem>>, vector<1x32x128xf32>
    %433 = vector.shape_cast %432 : vector<1x32x128xf32> to vector<32x128xf32>
    %434 = tpu.concatenate %417, %419, %421, %423, %425, %427, %429, %431, %433 in 0 : vector<32x128xf32>, vector<32x128xf32>, vector<32x128xf32>, vector<32x128xf32>, vector<32x128xf32>, vector<32x128xf32>, vector<32x128xf32>, vector<32x128xf32>, vector<32x128xf32> -> vector<288x128xf32>
    %435 = tpu.concatenate %415, %434 in 1 : vector<288x128xf32>, vector<288x128xf32> -> vector<288x256xf32>
    %c0_382 = arith.constant 0 : index
    %c0_383 = arith.constant 0 : index
    %436 = vector.load %arg18[%c0_382, %c0_383] : memref<1x288xf32, #tpu.memory_space<vmem>>, vector<1x288xf32>
    %cst_384 = arith.constant dense<0.000000e+00> : vector<1x256xf32>
    %437 = tpu.matmul %436, %435, %cst_384 {dimension_numbers = #tpu.dot_dimension_numbers<[1], [0], [0], [1], [0, 0, 1, 1], [], []>} : vector<1x288xf32>, vector<288x256xf32>, vector<1x256xf32> -> vector<1x256xf32>
    %c0_385 = arith.constant 0 : index
    %c0_386 = arith.constant 0 : index
    %438 = vector.load %arg19[%c0_385, %c0_386] : memref<1x1xf32, #tpu.memory_space<vmem>>, vector<1x1xf32>
    %439 = vector.broadcast %438 : vector<1x1xf32> to vector<1x256xf32>
    %440 = arith.addf %437, %439 : vector<1x256xf32>
    %441 = vector.extract_strided_slice %440 {offsets = [0, 0], sizes = [1, 128], strides = [1, 1]} : vector<1x256xf32> to vector<1x128xf32>
    %c0_387 = arith.constant 0 : index
    %c0_388 = arith.constant 0 : index
    %c0_389 = arith.constant 0 : index
    %442 = vector.load %arg20[%c0_387, %c0_388, %c0_389] : memref<2x1x128xf32, #tpu.memory_space<vmem>>, vector<1x1x128xf32>
    %443 = vector.shape_cast %442 : vector<1x1x128xf32> to vector<1x128xf32>
    %444 = vector.shape_cast %441 : vector<1x128xf32> to vector<1x1x128xf32>
    tpu.vector_store %arg20[%c0_387, %c0_388, %c0_389], %444 {strides = array<i32>} : memref<2x1x128xf32, #tpu.memory_space<vmem>>, vector<1x1x128xf32>,
    %445 = vector.extract_strided_slice %440 {offsets = [0, 128], sizes = [1, 128], strides = [1, 1]} : vector<1x256xf32> to vector<1x128xf32>
    %c1_390 = arith.constant 1 : index
    %c0_391 = arith.constant 0 : index
    %c0_392 = arith.constant 0 : index
    %446 = vector.load %arg20[%c1_390, %c0_391, %c0_392] : memref<2x1x128xf32, #tpu.memory_space<vmem>>, vector<1x1x128xf32>
    %447 = vector.shape_cast %446 : vector<1x1x128xf32> to vector<1x128xf32>
    %448 = vector.shape_cast %445 : vector<1x128xf32> to vector<1x1x128xf32>
    tpu.vector_store %arg20[%c1_390, %c0_391, %c0_392], %448 {strides = array<i32>} : memref<2x1x128xf32, #tpu.memory_space<vmem>>, vector<1x1x128xf32>,
    return
  }
  func.func @transform_0(%arg0: i32) -> (i32, i32) {
    %c0_i32 = arith.constant 0 : i32
    %c0_i32_0 = arith.constant 0 : i32
    %c0_i32_1 = arith.constant 0 : i32
    return %c0_i32, %c0_i32_0 : i32, i32
  }
  func.func @transform_1(%arg0: i32) -> (i32, i32) {
    %c0_i32 = arith.constant 0 : i32
    %c0_i32_0 = arith.constant 0 : i32
    %c0_i32_1 = arith.constant 0 : i32
    return %c0_i32, %c0_i32_0 : i32, i32
  }
  func.func @transform_2(%arg0: i32) -> (i32, i32) {
    %c0_i32 = arith.constant 0 : i32
    %c0_i32_0 = arith.constant 0 : i32
    %c0_i32_1 = arith.constant 0 : i32
    return %c0_i32, %c0_i32_0 : i32, i32
  }
  func.func @transform_3(%arg0: i32) -> (i32, i32) {
    %c0_i32 = arith.constant 0 : i32
    %c0_i32_0 = arith.constant 0 : i32
    %c0_i32_1 = arith.constant 0 : i32
    return %c0_i32, %c0_i32_0 : i32, i32
  }
  func.func @transform_4(%arg0: i32) -> (i32, i32) {
    %c0_i32 = arith.constant 0 : i32
    %c0_i32_0 = arith.constant 0 : i32
    %c0_i32_1 = arith.constant 0 : i32
    return %c0_i32, %c0_i32_0 : i32, i32
  }
  func.func @transform_5(%arg0: i32) -> (i32, i32) {
    %c0_i32 = arith.constant 0 : i32
    %c0_i32_0 = arith.constant 0 : i32
    %c0_i32_1 = arith.constant 0 : i32
    return %c0_i32, %c0_i32_0 : i32, i32
  }
  func.func @transform_6(%arg0: i32) -> (i32, i32) {
    %c0_i32 = arith.constant 0 : i32
    %c0_i32_0 = arith.constant 0 : i32
    %c0_i32_1 = arith.constant 0 : i32
    return %c0_i32, %c0_i32_0 : i32, i32
  }
  func.func @transform_7(%arg0: i32) -> (i32, i32) {
    %c0_i32 = arith.constant 0 : i32
    %c0_i32_0 = arith.constant 0 : i32
    %c0_i32_1 = arith.constant 0 : i32
    return %c0_i32, %c0_i32_0 : i32, i32
  }
  func.func @transform_8(%arg0: i32) -> (i32, i32) {
    %c0_i32 = arith.constant 0 : i32
    %c0_i32_0 = arith.constant 0 : i32
    %c0_i32_1 = arith.constant 0 : i32
    return %c0_i32, %c0_i32_0 : i32, i32
  }
  func.func @transform_9(%arg0: i32) -> (i32, i32) {
    %c0_i32 = arith.constant 0 : i32
    %c0_i32_0 = arith.constant 0 : i32
    %c0_i32_1 = arith.constant 0 : i32
    return %c0_i32, %c0_i32_0 : i32, i32
  }
  func.func @transform_10(%arg0: i32) -> (i32, i32) {
    %c0_i32 = arith.constant 0 : i32
    %c0_i32_0 = arith.constant 0 : i32
    %c0_i32_1 = arith.constant 0 : i32
    return %c0_i32, %c0_i32_0 : i32, i32
  }
  func.func @transform_11(%arg0: i32) -> (i32, i32) {
    %c0_i32 = arith.constant 0 : i32
    %c0_i32_0 = arith.constant 0 : i32
    %c0_i32_1 = arith.constant 0 : i32
    return %c0_i32, %c0_i32_0 : i32, i32
  }
  func.func @transform_12(%arg0: i32) -> (i32, i32) {
    %c0_i32 = arith.constant 0 : i32
    %c0_i32_0 = arith.constant 0 : i32
    %c0_i32_1 = arith.constant 0 : i32
    return %c0_i32, %c0_i32_0 : i32, i32
  }
  func.func @transform_13(%arg0: i32) -> (i32, i32) {
    %c0_i32 = arith.constant 0 : i32
    %c0_i32_0 = arith.constant 0 : i32
    %c0_i32_1 = arith.constant 0 : i32
    return %c0_i32, %c0_i32_0 : i32, i32
  }
  func.func @transform_14(%arg0: i32) -> (i32, i32) {
    %c0_i32 = arith.constant 0 : i32
    %c0_i32_0 = arith.constant 0 : i32
    %c0_i32_1 = arith.constant 0 : i32
    return %c0_i32, %c0_i32_0 : i32, i32
  }
  func.func @transform_15(%arg0: i32) -> (i32, i32) {
    %c0_i32 = arith.constant 0 : i32
    %c0_i32_0 = arith.constant 0 : i32
    %c0_i32_1 = arith.constant 0 : i32
    return %c0_i32, %c0_i32_0 : i32, i32
  }
  func.func @transform_16(%arg0: i32) -> (i32, i32) {
    %c0_i32 = arith.constant 0 : i32
    %c0_i32_0 = arith.constant 0 : i32
    %c0_i32_1 = arith.constant 0 : i32
    return %c0_i32, %c0_i32_0 : i32, i32
  }
  func.func @transform_17(%arg0: i32) -> (i32, i32) {
    %c0_i32 = arith.constant 0 : i32
    %c0_i32_0 = arith.constant 0 : i32
    %c0_i32_1 = arith.constant 0 : i32
    return %c0_i32, %c0_i32_0 : i32, i32
  }
  func.func @transform_18(%arg0: i32) -> (i32, i32) {
    %c0_i32 = arith.constant 0 : i32
    %c0_i32_0 = arith.constant 0 : i32
    %c0_i32_1 = arith.constant 0 : i32
    return %c0_i32, %c0_i32_0 : i32, i32
  }
  func.func @transform_19(%arg0: i32) -> (i32, i32, i32) {
    %c0_i32 = arith.constant 0 : i32
    %c0_i32_0 = arith.constant 0 : i32
    %c0_i32_1 = arith.constant 0 : i32
    %c0_i32_2 = arith.constant 0 : i32
    return %c0_i32, %c0_i32_0, %c0_i32_1 : i32, i32, i32
  }
}

</mosaic_0001>

<llo_original>
// kernel: tpu_custom_call.1
$region0: #{tpu_custom_call.1}
  #allocation0 [shape = 'u32[]', space=smem, size = 0x4, offset = 0x4, fixed_abs, tag = 'smem constant byte address 0x4 - core index']
  #allocation1 [shape = 'u32[72,128]{1,0:T(1,128)}', space=vmem, size = 0x9000, scoped, tag = 'internal scratch']
  #allocation2 [shape = 'f32[2,1,136]{2,1,0:T(1,128)}', space=vmem, size = 0x800, scoped, tag = 'scratch operand']
  #allocation3 [shape = 'f32[2,32,136]{2,1,0:T(8,128)}', space=vmem, size = 0x10000, scoped, tag = 'scratch operand']
  #allocation4 [shape = 'f32[2,64,136]{2,1,0:T(8,128)}', space=vmem, size = 0x20000, scoped, tag = 'scratch operand']
  #allocation5 [shape = 'f32[2,64,136]{2,1,0:T(8,128)}', space=vmem, size = 0x20000, scoped, tag = 'scratch operand']
  #allocation6 [shape = 'f32[2,32,136]{2,1,0:T(8,128)}', space=vmem, size = 0x10000, scoped, tag = 'scratch operand']
  #allocation7 [shape = 'f32[1,1]{1,0:T(1,128)S(1)}', space=vmem, size = 0x200, scoped, tag = 'scoped memory for tpu_custom_call.1']
  %s0 = inlined_call_operand.vmem [shape: f32[2,128], index: 0, kind: input, shape index: {}]
  %s1 = inlined_call_operand.vmem [shape: f32[32,9], index: 1, kind: input, shape index: {}]
  %s2 = inlined_call_operand.vmem [shape: f32[32,1], index: 2, kind: input, shape index: {}]
  %s3 = inlined_call_operand.vmem [shape: f32[32,1], index: 3, kind: input, shape index: {}]
  %s4 = inlined_call_operand.vmem [shape: f32[32,1], index: 4, kind: input, shape index: {}]
  %s5 = inlined_call_operand.hbm [shape: f32[64,288], index: 5, kind: input, shape index: {}]
  %s6 = inlined_call_operand.vmem [shape: f32[64,1], index: 6, kind: input, shape index: {}]
  %s7 = inlined_call_operand.vmem [shape: f32[64,1], index: 7, kind: input, shape index: {}]
  %s8 = inlined_call_operand.vmem [shape: f32[64,1], index: 8, kind: input, shape index: {}]
  %s9 = inlined_call_operand.hbm [shape: f32[64,576], index: 9, kind: input, shape index: {}]
  %s10 = inlined_call_operand.vmem [shape: f32[64,1], index: 10, kind: input, shape index: {}]
  %s11 = inlined_call_operand.vmem [shape: f32[64,1], index: 11, kind: input, shape index: {}]
  %s12 = inlined_call_operand.vmem [shape: f32[64,1], index: 12, kind: input, shape index: {}]
  %s13 = inlined_call_operand.hbm [shape: f32[32,576], index: 13, kind: input, shape index: {}]
  %s14 = inlined_call_operand.vmem [shape: f32[32,1], index: 14, kind: input, shape index: {}]
  %s15 = inlined_call_operand.vmem [shape: f32[32,1], index: 15, kind: input, shape index: {}]
  %s16 = inlined_call_operand.vmem [shape: f32[32,1], index: 16, kind: input, shape index: {}]
  %s17 = inlined_call_operand.vmem [shape: f32[1,288], index: 17, kind: input, shape index: {}]
  %s18 = inlined_call_operand.<no memory space> [shape: f32[1,1], index: 18, kind: input, shape index: {}]
  %s19 = inlined_call_operand.hbm [shape: f32[2,1,128], index: 19, kind: output, shape index: {}]
  %s20 = sld [smem:[#allocation0]]
  $region98: #{tpu_custom_call.1} parent=0
    _
  %s22 = ssub.s32 1, %s20
  %s23 = scalar_select 0, %s22, %s20
  %v24 = vstv %s18
  %25 = vst [vmem:[#allocation7] sm:$0x1] %v24
  $region1: #{tpu_custom_call.1} parent=0
    #allocation8 [shape = 'u8[98304]{0}', space=vmem, size = 0x18000, scoped, tag = 'input window, operand 5, single buffered']
    #allocation9 [shape = 's32[1]{0}', space=sflag, size = 0x4, scoped, tag = 'scoped memory for tpu_custom_call.1']
    #allocation10 [shape = 's32[1]{0}', space=sflag, size = 0x4, scoped, tag = 'scoped memory for tpu_custom_call.1']
    #allocation11 [shape = 'u8[163840]{0}', space=vmem, size = 0x28000, scoped, tag = 'input window, operand 9, single buffered']
    #allocation12 [shape = 's32[1]{0}', space=sflag, size = 0x4, scoped, tag = 'scoped memory for tpu_custom_call.1']
    #allocation13 [shape = 'u8[81920]{0}', space=vmem, size = 0x14000, scoped, tag = 'input window, operand 13, single buffered']
    #allocation14 [shape = 'u8[1024]{0}', space=vmem, size = 0x400, scoped, tag = 'output window, operand 0, single buffered']
    %26 = vsyncpa [#allocation9], 0
    %27 = vsyncpa [#allocation12], 0
    %28 = vsyncpa [#allocation10], 0
    // Predicated region
    $region2: #{tpu_custom_call.1} parent=1 // pred_check
      _
    $region3: #{tpu_custom_call.1} parent=1 // pred_check_branch
      %30 = sbr.rel (0) target = $region5
    $region4: #{tpu_custom_call.1} parent=1 // pred_region
      _
    $region5: #{tpu_custom_call.1} parent=1 // pred_fallthru
      _
    // Predicated region
    $region6: #{tpu_custom_call.1} parent=1 // pred_check
      _
    $region7: #{tpu_custom_call.1} parent=1 // pred_check_branch
      %32 = sbr.rel (0) target = $region9
    $region8: #{tpu_custom_call.1} parent=1 // pred_region
      _
    $region9: #{tpu_custom_call.1} parent=1 // pred_fallthru
      _
    // Predicated region
    $region10: #{tpu_custom_call.1} parent=1 // pred_check
      _
    $region11: #{tpu_custom_call.1} parent=1 // pred_check_branch
      %34 = sbr.rel (0) target = $region13
    $region12: #{tpu_custom_call.1} parent=1 // pred_region
      _
    $region13: #{tpu_custom_call.1} parent=1 // pred_fallthru
      _
    // Predicated region
    $region14: #{tpu_custom_call.1} parent=1 // pred_check
      _
    $region15: #{tpu_custom_call.1} parent=1 // pred_check_branch
      %36 = sbr.rel (0) target = $region17
    $region16: #{tpu_custom_call.1} parent=1 // pred_region
      _
    $region17: #{tpu_custom_call.1} parent=1 // pred_fallthru
      _
    // Predicated region
    $region18: #{tpu_custom_call.1} parent=1 // pred_check
      _
    $region19: #{tpu_custom_call.1} parent=1 // pred_check_branch
      %38 = sbr.rel (0) target = $region21
    $region20: #{tpu_custom_call.1} parent=1 // pred_region
      _
    $region21: #{tpu_custom_call.1} parent=1 // pred_fallthru
      _
    // Predicated region
    $region22: #{tpu_custom_call.1} parent=1 // pred_check
      _
    $region23: #{tpu_custom_call.1} parent=1 // pred_check_branch
      %40 = sbr.rel (0) target = $region25
    $region24: #{tpu_custom_call.1} parent=1 // pred_region
      %42 = vsyncadd [#allocation9], 0
      %s43 = sshll.u32 %s5, 4
      %s44 = int_to_ptr.hbm [resolvable:$true] %s43
      %s45 = sshll.u32 [#allocation8], 4
      %s46 = int_to_ptr.vmem [resolvable:$true] %s45
      %51 = dma.hbm_to_vmem [thread:$0]  %s44, 3072, %s46, [#allocation9], 384, 384, 24
    $region25: #{tpu_custom_call.1} parent=1 // pred_fallthru
      _
    // Predicated region
    $region26: #{tpu_custom_call.1} parent=1 // pred_check
      _
    $region27: #{tpu_custom_call.1} parent=1 // pred_check_branch
      %53 = sbr.rel (0) target = $region29
    $region28: #{tpu_custom_call.1} parent=1 // pred_region
      _
    $region29: #{tpu_custom_call.1} parent=1 // pred_fallthru
      _
    // Predicated region
    $region30: #{tpu_custom_call.1} parent=1 // pred_check
      _
    $region31: #{tpu_custom_call.1} parent=1 // pred_check_branch
      %55 = sbr.rel (0) target = $region33
    $region32: #{tpu_custom_call.1} parent=1 // pred_region
      _
    $region33: #{tpu_custom_call.1} parent=1 // pred_fallthru
      _
    // Predicated region
    $region34: #{tpu_custom_call.1} parent=1 // pred_check
      _
    $region35: #{tpu_custom_call.1} parent=1 // pred_check_branch
      %57 = sbr.rel (0) target = $region37
    $region36: #{tpu_custom_call.1} parent=1 // pred_region
      _
    $region37: #{tpu_custom_call.1} parent=1 // pred_fallthru
      _
    // Predicated region
    $region38: #{tpu_custom_call.1} parent=1 // pred_check
      _
    $region39: #{tpu_custom_call.1} parent=1 // pred_check_branch
      %59 = sbr.rel (0) target = $region41
    $region40: #{tpu_custom_call.1} parent=1 // pred_region
      %61 = vsyncadd [#allocation12], 0
      %s62 = sshll.u32 %s9, 4
      %s63 = int_to_ptr.hbm [resolvable:$true] %s62
      %s64 = sshll.u32 [#allocation11], 4
      %s65 = int_to_ptr.vmem [resolvable:$true] %s64
      %70 = dma.hbm_to_vmem [thread:$0]  %s63, 5120, %s65, [#allocation12], 640, 640, 40
    $region41: #{tpu_custom_call.1} parent=1 // pred_fallthru
      _
    // Predicated region
    $region42: #{tpu_custom_call.1} parent=1 // pred_check
      _
    $region43: #{tpu_custom_call.1} parent=1 // pred_check_branch
      %72 = sbr.rel (0) target = $region45
    $region44: #{tpu_custom_call.1} parent=1 // pred_region
      _
    $region45: #{tpu_custom_call.1} parent=1 // pred_fallthru
      _
    // Predicated region
    $region46: #{tpu_custom_call.1} parent=1 // pred_check
      _
    $region47: #{tpu_custom_call.1} parent=1 // pred_check_branch
      %74 = sbr.rel (0) target = $region49
    $region48: #{tpu_custom_call.1} parent=1 // pred_region
      _
    $region49: #{tpu_custom_call.1} parent=1 // pred_fallthru
      _
    // Predicated region
    $region50: #{tpu_custom_call.1} parent=1 // pred_check
      _
    $region51: #{tpu_custom_call.1} parent=1 // pred_check_branch
      %76 = sbr.rel (0) target = $region53
    $region52: #{tpu_custom_call.1} parent=1 // pred_region
      _
    $region53: #{tpu_custom_call.1} parent=1 // pred_fallthru
      _
    // Predicated region
    $region54: #{tpu_custom_call.1} parent=1 // pred_check
      _
    $region55: #{tpu_custom_call.1} parent=1 // pred_check_branch
      %78 = sbr.rel (0) target = $region57
    $region56: #{tpu_custom_call.1} parent=1 // pred_region
      %80 = vsyncadd [#allocation12], 0
      %s81 = sshll.u32 %s13, 4
      %s82 = int_to_ptr.hbm [resolvable:$true] %s81
      %s83 = sshll.u32 [#allocation13], 4
      %s84 = int_to_ptr.vmem [resolvable:$true] %s83
      %89 = dma.hbm_to_vmem [thread:$0]  %s82, 2560, %s84, [#allocation12], 640, 640, 40
    $region57: #{tpu_custom_call.1} parent=1 // pred_fallthru
      _
    // Predicated region
    $region58: #{tpu_custom_call.1} parent=1 // pred_check
      _
    $region59: #{tpu_custom_call.1} parent=1 // pred_check_branch
      %91 = sbr.rel (0) target = $region61
    $region60: #{tpu_custom_call.1} parent=1 // pred_region
      _
    $region61: #{tpu_custom_call.1} parent=1 // pred_fallthru
      _
    // Predicated region
    $region62: #{tpu_custom_call.1} parent=1 // pred_check
      _
    $region63: #{tpu_custom_call.1} parent=1 // pred_check_branch
      %93 = sbr.rel (0) target = $region65
    $region64: #{tpu_custom_call.1} parent=1 // pred_region
      _
    $region65: #{tpu_custom_call.1} parent=1 // pred_fallthru
      _
    // Predicated region
    $region66: #{tpu_custom_call.1} parent=1 // pred_check
      _
    $region67: #{tpu_custom_call.1} parent=1 // pred_check_branch
      %95 = sbr.rel (0) target = $region69
    $region68: #{tpu_custom_call.1} parent=1 // pred_region
      _
    $region69: #{tpu_custom_call.1} parent=1 // pred_fallthru
      _
    // Predicated region
    $region70: #{tpu_custom_call.1} parent=1 // pred_check
      _
    $region71: #{tpu_custom_call.1} parent=1 // pred_check_branch
      %97 = sbr.rel (0) target = $region73
    $region72: #{tpu_custom_call.1} parent=1 // pred_region
      _
    $region73: #{tpu_custom_call.1} parent=1 // pred_fallthru
      _
    // Predicated region
    $region74: #{tpu_custom_call.1} parent=1 // pred_check
      _
    $region75: #{tpu_custom_call.1} parent=1 // pred_check_branch
      %99 = sbr.rel (0) target = $region77
    $region76: #{tpu_custom_call.1} parent=1 // pred_region
      _
    $region77: #{tpu_custom_call.1} parent=1 // pred_fallthru
      _
    // Predicated region
    $region78: #{tpu_custom_call.1} parent=1 // pred_check
      _
    $region79: #{tpu_custom_call.1} parent=1 // pred_check_branch
      %101 = sbr.rel (0) target = $region81
    $region80: #{tpu_custom_call.1} parent=1 // pred_region
      %103 = dma.done [#allocation9], 3072
    $region81: #{tpu_custom_call.1} parent=1 // pred_fallthru
      _
    // Predicated region
    $region82: #{tpu_custom_call.1} parent=1 // pred_check
      _
    $region83: #{tpu_custom_call.1} parent=1 // pred_check_branch
      %105 = sbr.rel (0) target = $region85
    $region84: #{tpu_custom_call.1} parent=1 // pred_region
      %107 = dma.done [#allocation12], 5120
    $region85: #{tpu_custom_call.1} parent=1 // pred_fallthru
      _
    // Predicated region
    $region86: #{tpu_custom_call.1} parent=1 // pred_check
      _
    $region87: #{tpu_custom_call.1} parent=1 // pred_check_branch
      %109 = sbr.rel (0) target = $region89
    $region88: #{tpu_custom_call.1} parent=1 // pred_region
      %111 = dma.done [#allocation12], 2560
    $region89: #{tpu_custom_call.1} parent=1 // pred_fallthru
      _
    %v112 = vlaneseq
    %vm113 = vcmp.ge.s32.totalorder %v112, 0
    %vm114 = vcmp.lt.s32.totalorder %v112, 136
    %vm115 = vmand %vm113, %vm114
    %116 = vst.msk [vmem:[#allocation2] sm:$0x3] %vm115, 0.0
    %117 = vst.msk [vmem:[#allocation2 + $0x2] sm:$0x3] %vm115, 0.0
    %118 = vst [vmem:[#allocation3] sm:$0xff] 0.0
    %vm119 = vcmask 64512
    %120 = vst.msk [vmem:[#allocation3 + $0x8] sm:$0xff] %vm119, 0.0
    %121 = vst [vmem:[#allocation3 + $0x10] sm:$0xff] 0.0
    %122 = vst.msk [vmem:[#allocation3 + $0x18] sm:$0xff] %vm119, 0.0
    %123 = vst [vmem:[#allocation3 + $0x20] sm:$0xff] 0.0
    %124 = vst.msk [vmem:[#allocation3 + $0x28] sm:$0xff] %vm119, 0.0
    %125 = vst [vmem:[#allocation3 + $0x30] sm:$0xff] 0.0
    %126 = vst.msk [vmem:[#allocation3 + $0x38] sm:$0xff] %vm119, 0.0
    %127 = vst [vmem:[#allocation3 + $0x40] sm:$0xff] 0.0
    %128 = vst.msk [vmem:[#allocation3 + $0x48] sm:$0xff] %vm119, 0.0
    %129 = vst [vmem:[#allocation3 + $0x50] sm:$0xff] 0.0
    %130 = vst.msk [vmem:[#allocation3 + $0x58] sm:$0xff] %vm119, 0.0
    %131 = vst [vmem:[#allocation3 + $0x60] sm:$0xff] 0.0
    %132 = vst.msk [vmem:[#allocation3 + $0x68] sm:$0xff] %vm119, 0.0
    %133 = vst [vmem:[#allocation3 + $0x70] sm:$0xff] 0.0
    %134 = vst.msk [vmem:[#allocation3 + $0x78] sm:$0xff] %vm119, 0.0
    %135 = vst [vmem:[#allocation4] sm:$0xff] 0.0
    %136 = vst.msk [vmem:[#allocation4 + $0x8] sm:$0xff] %vm119, 0.0
    %137 = vst [vmem:[#allocation4 + $0x10] sm:$0xff] 0.0
    %138 = vst.msk [vmem:[#allocation4 + $0x18] sm:$0xff] %vm119, 0.0
    %139 = vst [vmem:[#allocation4 + $0x20] sm:$0xff] 0.0
    %140 = vst.msk [vmem:[#allocation4 + $0x28] sm:$0xff] %vm119, 0.0
    %141 = vst [vmem:[#allocation4 + $0x30] sm:$0xff] 0.0
    %142 = vst.msk [vmem:[#allocation4 + $0x38] sm:$0xff] %vm119, 0.0
    %143 = vst [vmem:[#allocation4 + $0x40] sm:$0xff] 0.0
    %144 = vst.msk [vmem:[#allocation4 + $0x48] sm:$0xff] %vm119, 0.0
    %145 = vst [vmem:[#allocation4 + $0x50] sm:$0xff] 0.0
    %146 = vst.msk [vmem:[#allocation4 + $0x58] sm:$0xff] %vm119, 0.0
    %147 = vst [vmem:[#allocation4 + $0x60] sm:$0xff] 0.0
    %148 = vst.msk [vmem:[#allocation4 + $0x68] sm:$0xff] %vm119, 0.0
    %149 = vst [vmem:[#allocation4 + $0x70] sm:$0xff] 0.0
    %150 = vst.msk [vmem:[#allocation4 + $0x78] sm:$0xff] %vm119, 0.0
    %151 = vst [vmem:[#allocation4 + $0x80] sm:$0xff] 0.0
    %152 = vst.msk [vmem:[#allocation4 + $0x88] sm:$0xff] %vm119, 0.0
    %153 = vst [vmem:[#allocation4 + $0x90] sm:$0xff] 0.0
    %154 = vst.msk [vmem:[#allocation4 + $0x98] sm:$0xff] %vm119, 0.0
    %155 = vst [vmem:[#allocation4 + $0xa0] sm:$0xff] 0.0
    %156 = vst.msk [vmem:[#allocation4 + $0xa8] sm:$0xff] %vm119, 0.0
    %157 = vst [vmem:[#allocation4 + $0xb0] sm:$0xff] 0.0
    %158 = vst.msk [vmem:[#allocation4 + $0xb8] sm:$0xff] %vm119, 0.0
    %159 = vst [vmem:[#allocation4 + $0xc0] sm:$0xff] 0.0
    %160 = vst.msk [vmem:[#allocation4 + $0xc8] sm:$0xff] %vm119, 0.0
    %161 = vst [vmem:[#allocation4 + $0xd0] sm:$0xff] 0.0
    %162 = vst.msk [vmem:[#allocation4 + $0xd8] sm:$0xff] %vm119, 0.0
    %163 = vst [vmem:[#allocation4 + $0xe0] sm:$0xff] 0.0
    %164 = vst.msk [vmem:[#allocation4 + $0xe8] sm:$0xff] %vm119, 0.0
    %165 = vst [vmem:[#allocation4 + $0xf0] sm:$0xff] 0.0
    %166 = vst.msk [vmem:[#allocation4 + $0xf8] sm:$0xff] %vm119, 0.0
    %167 = vst [vmem:[#allocation5] sm:$0xff] 0.0
    %168 = vst.msk [vmem:[#allocation5 + $0x8] sm:$0xff] %vm119, 0.0
    %169 = vst [vmem:[#allocation5 + $0x10] sm:$0xff] 0.0
    %170 = vst.msk [vmem:[#allocation5 + $0x18] sm:$0xff] %vm119, 0.0
    %171 = vst [vmem:[#allocation5 + $0x20] sm:$0xff] 0.0
    %172 = vst.msk [vmem:[#allocation5 + $0x28] sm:$0xff] %vm119, 0.0
    %173 = vst [vmem:[#allocation5 + $0x30] sm:$0xff] 0.0
    %174 = vst.msk [vmem:[#allocation5 + $0x38] sm:$0xff] %vm119, 0.0
    %175 = vst [vmem:[#allocation5 + $0x40] sm:$0xff] 0.0
    %176 = vst.msk [vmem:[#allocation5 + $0x48] sm:$0xff] %vm119, 0.0
    %177 = vst [vmem:[#allocation5 + $0x50] sm:$0xff] 0.0
    %178 = vst.msk [vmem:[#allocation5 + $0x58] sm:$0xff] %vm119, 0.0
    %179 = vst [vmem:[#allocation5 + $0x60] sm:$0xff] 0.0
    %180 = vst.msk [vmem:[#allocation5 + $0x68] sm:$0xff] %vm119, 0.0
    %181 = vst [vmem:[#allocation5 + $0x70] sm:$0xff] 0.0
    %182 = vst.msk [vmem:[#allocation5 + $0x78] sm:$0xff] %vm119, 0.0
    %183 = vst [vmem:[#allocation5 + $0x80] sm:$0xff] 0.0
    %184 = vst.msk [vmem:[#allocation5 + $0x88] sm:$0xff] %vm119, 0.0
    %185 = vst [vmem:[#allocation5 + $0x90] sm:$0xff] 0.0
    %186 = vst.msk [vmem:[#allocation5 + $0x98] sm:$0xff] %vm119, 0.0
    %187 = vst [vmem:[#allocation5 + $0xa0] sm:$0xff] 0.0
    %188 = vst.msk [vmem:[#allocation5 + $0xa8] sm:$0xff] %vm119, 0.0
    %189 = vst [vmem:[#allocation5 + $0xb0] sm:$0xff] 0.0
    %190 = vst.msk [vmem:[#allocation5 + $0xb8] sm:$0xff] %vm119, 0.0
    %191 = vst [vmem:[#allocation5 + $0xc0] sm:$0xff] 0.0
    %192 = vst.msk [vmem:[#allocation5 + $0xc8] sm:$0xff] %vm119, 0.0
    %193 = vst [vmem:[#allocation5 + $0xd0] sm:$0xff] 0.0
    %194 = vst.msk [vmem:[#allocation5 + $0xd8] sm:$0xff] %vm119, 0.0
    %195 = vst [vmem:[#allocation5 + $0xe0] sm:$0xff] 0.0
    %196 = vst.msk [vmem:[#allocation5 + $0xe8] sm:$0xff] %vm119, 0.0
    %197 = vst [vmem:[#allocation5 + $0xf0] sm:$0xff] 0.0
    %198 = vst.msk [vmem:[#allocation5 + $0xf8] sm:$0xff] %vm119, 0.0
    %199 = vst [vmem:[#allocation6] sm:$0xff] 0.0
    %200 = vst.msk [vmem:[#allocation6 + $0x8] sm:$0xff] %vm119, 0.0
    %201 = vst [vmem:[#allocation6 + $0x10] sm:$0xff] 0.0
    %202 = vst.msk [vmem:[#allocation6 + $0x18] sm:$0xff] %vm119, 0.0
    %203 = vst [vmem:[#allocation6 + $0x20] sm:$0xff] 0.0
    %204 = vst.msk [vmem:[#allocation6 + $0x28] sm:$0xff] %vm119, 0.0
    %205 = vst [vmem:[#allocation6 + $0x30] sm:$0xff] 0.0
    %206 = vst.msk [vmem:[#allocation6 + $0x38] sm:$0xff] %vm119, 0.0
    %207 = vst [vmem:[#allocation6 + $0x40] sm:$0xff] 0.0
    %208 = vst.msk [vmem:[#allocation6 + $0x48] sm:$0xff] %vm119, 0.0
    %209 = vst [vmem:[#allocation6 + $0x50] sm:$0xff] 0.0
    %210 = vst.msk [vmem:[#allocation6 + $0x58] sm:$0xff] %vm119, 0.0
    %211 = vst [vmem:[#allocation6 + $0x60] sm:$0xff] 0.0
    %212 = vst.msk [vmem:[#allocation6 + $0x68] sm:$0xff] %vm119, 0.0
    %213 = vst [vmem:[#allocation6 + $0x70] sm:$0xff] 0.0
    %214 = vst.msk [vmem:[#allocation6 + $0x78] sm:$0xff] %vm119, 0.0
    %v215 = vld [vmem:[%s0] sm:$0x1]
    %217 = vrot.lane.b32.xlu0 %v215, 4
    %v218 = vpop.permute.xlu0 %217
    %v219 = vrot.slane %v218, 7
    %vm220 = vcmask 31744
    %v221 = vsel %vm220, %v219, %v218
    %vm223 = vcmp.ge.s32.totalorder %v112, 4
    %vm224 = vcmp.lt.s32.totalorder %v112, 132
    %vm225 = vmand %vm223, %vm224
    %226 = vst.msk [vmem:[#allocation2] sm:$0x3] %vm225, %v221
    %v227 = vld [vmem:[%s0 + $0x1] sm:$0x1]
    %229 = vrot.lane.b32.xlu0 %v227, 4
    %v230 = vpop.permute.xlu0 %229
    %v231 = vrot.slane %v230, 7
    %v232 = vsel %vm220, %v231, %v230
    %s234 = scalar_lea.vmem [#allocation2], 2
    %235 = vst.msk [vmem:[%s234] sm:$0x3] %vm225, %v232
    %v236 = vld [vmem:[%s1] sm:$0xff]
    %v237 = vld [vmem:[%s1 + $0x8] sm:$0xff]
    %v238 = vld [vmem:[%s1 + $0x10] sm:$0xff]
    %v239 = vld [vmem:[%s1 + $0x18] sm:$0xff]
    %v240 = vld [vmem:[#allocation2] sm:$0x1]
    %v241 = vld [vmem:[%s234] sm:$0x1]
    %243 = vset.pattern.permute.xlu0 0
    %244 = vperm.xlu0 %243, %v236
    %v245 = vpop.permute.xlu0 %244
    %248 = vset.pattern.permute.xlu0 0
    %249 = vperm.xlu0 %248, %v237
    %v250 = vpop.permute.xlu0 %249
    %253 = vset.pattern.permute.xlu0 0
    %254 = vperm.xlu0 %253, %v238
    %v255 = vpop.permute.xlu0 %254
    %258 = vset.pattern.permute.xlu0 0
    %259 = vperm.xlu0 %258, %v239
    %v260 = vpop.permute.xlu0 %259
    %v262 = vperm.slane %v240, 0
    %v263 = vperm.slane %v241, 0
    %v264 = vmul.f32 %v245, %v262
    %v265 = vmul.f32 %v245, %v263
    %v266 = vmul.f32 %v250, %v262
    %v267 = vmul.f32 %v250, %v263
    %v268 = vmul.f32 %v255, %v262
    %v269 = vmul.f32 %v255, %v263
    %v270 = vmul.f32 %v260, %v262
    %v271 = vmul.f32 %v260, %v263
    %v272 = vadd.f32 %v264, 0.0
    %v273 = vadd.f32 %v265, 0.0
    %v274 = vadd.f32 %v266, 0.0
    %v275 = vadd.f32 %v267, 0.0
    %v276 = vadd.f32 %v268, 0.0
    %v277 = vadd.f32 %v269, 0.0
    %v278 = vadd.f32 %v270, 0.0
    %v279 = vadd.f32 %v271, 0.0
    %v280 = vld [vmem:[#allocation2] sm:$0x3]
    %v281 = vld [vmem:[%s234] sm:$0x3]
    %v283 = vperm.slane %v280, 0
    %v284 = vperm.slane %v280, 1
    %285 = vrot.lane.b32.xlu0 %v283, 127
    %v286 = vpop.permute.xlu0 %285
    %287 = vrot.lane.b32.xlu0 %v284, 127
    %v288 = vpop.permute.xlu0 %287
    %vm289 = vcmask 1039360
    %v290 = vsel %vm289, %v286, %v288
    %v293 = vperm.slane %v281, 0
    %v294 = vperm.slane %v281, 1
    %295 = vrot.lane.b32.xlu0 %v293, 127
    %v296 = vpop.permute.xlu0 %295
    %297 = vrot.lane.b32.xlu0 %v294, 127
    %v298 = vpop.permute.xlu0 %297
    %v299 = vsel %vm289, %v296, %v298
    %301 = vset.pattern.permute.xlu0 1
    %302 = vperm.xlu0 %301, %v236
    %v303 = vpop.permute.xlu0 %302
    %305 = vset.pattern.permute.xlu0 1
    %306 = vperm.xlu0 %305, %v237
    %v307 = vpop.permute.xlu0 %306
    %309 = vset.pattern.permute.xlu0 1
    %310 = vperm.xlu0 %309, %v238
    %v311 = vpop.permute.xlu0 %310
    %313 = vset.pattern.permute.xlu0 1
    %314 = vperm.xlu0 %313, %v239
    %v315 = vpop.permute.xlu0 %314
    %v317 = vperm.slane %v290, 0
    %v318 = vperm.slane %v299, 0
    %v319 = vmul.f32 %v303, %v317
    %v320 = vmul.f32 %v303, %v318
    %v321 = vmul.f32 %v307, %v317
    %v322 = vmul.f32 %v307, %v318
    %v323 = vmul.f32 %v311, %v317
    %v324 = vmul.f32 %v311, %v318
    %v325 = vmul.f32 %v315, %v317
    %v326 = vmul.f32 %v315, %v318
    %v327 = vadd.f32 %v272, %v319
    %v328 = vadd.f32 %v273, %v320
    %v329 = vadd.f32 %v274, %v321
    %v330 = vadd.f32 %v275, %v322
    %v331 = vadd.f32 %v276, %v323
    %v332 = vadd.f32 %v277, %v324
    %v333 = vadd.f32 %v278, %v325
    %v334 = vadd.f32 %v279, %v326
    %335 = vrot.lane.b32.xlu0 %v283, 126
    %v336 = vpop.permute.xlu0 %335
    %337 = vrot.lane.b32.xlu0 %v284, 126
    %v338 = vpop.permute.xlu0 %337
    %vm339 = vcmask 1031168
    %v340 = vsel %vm339, %v336, %v338
    %342 = vrot.lane.b32.xlu0 %v293, 126
    %v343 = vpop.permute.xlu0 %342
    %344 = vrot.lane.b32.xlu0 %v294, 126
    %v345 = vpop.permute.xlu0 %344
    %v346 = vsel %vm339, %v343, %v345
    %348 = vset.pattern.permute.xlu0 2
    %349 = vperm.xlu0 %348, %v236
    %v350 = vpop.permute.xlu0 %349
    %352 = vset.pattern.permute.xlu0 2
    %353 = vperm.xlu0 %352, %v237
    %v354 = vpop.permute.xlu0 %353
    %356 = vset.pattern.permute.xlu0 2
    %357 = vperm.xlu0 %356, %v238
    %v358 = vpop.permute.xlu0 %357
    %360 = vset.pattern.permute.xlu0 2
    %361 = vperm.xlu0 %360, %v239
    %v362 = vpop.permute.xlu0 %361
    %v364 = vperm.slane %v340, 0
    %v365 = vperm.slane %v346, 0
    %v366 = vmul.f32 %v350, %v364
    %v367 = vmul.f32 %v350, %v365
    %v368 = vmul.f32 %v354, %v364
    %v369 = vmul.f32 %v354, %v365
    %v370 = vmul.f32 %v358, %v364
    %v371 = vmul.f32 %v358, %v365
    %v372 = vmul.f32 %v362, %v364
    %v373 = vmul.f32 %v362, %v365
    %v374 = vadd.f32 %v327, %v366
    %v375 = vadd.f32 %v328, %v367
    %v376 = vadd.f32 %v329, %v368
    %v377 = vadd.f32 %v330, %v369
    %v378 = vadd.f32 %v331, %v370
    %v379 = vadd.f32 %v332, %v371
    %v380 = vadd.f32 %v333, %v372
    %v381 = vadd.f32 %v334, %v373
    %382 = vrot.lane.b32.xlu0 %v283, 125
    %v383 = vpop.permute.xlu0 %382
    %384 = vrot.lane.b32.xlu0 %v284, 125
    %v385 = vpop.permute.xlu0 %384
    %vm386 = vcmask 1022976
    %v387 = vsel %vm386, %v383, %v385
    %389 = vrot.lane.b32.xlu0 %v293, 125
    %v390 = vpop.permute.xlu0 %389
    %391 = vrot.lane.b32.xlu0 %v294, 125
    %v392 = vpop.permute.xlu0 %391
    %v393 = vsel %vm386, %v390, %v392
    %395 = vset.pattern.permute.xlu0 3
    %396 = vperm.xlu0 %395, %v236
    %v397 = vpop.permute.xlu0 %396
    %399 = vset.pattern.permute.xlu0 3
    %400 = vperm.xlu0 %399, %v237
    %v401 = vpop.permute.xlu0 %400
    %403 = vset.pattern.permute.xlu0 3
    %404 = vperm.xlu0 %403, %v238
    %v405 = vpop.permute.xlu0 %404
    %407 = vset.pattern.permute.xlu0 3
    %408 = vperm.xlu0 %407, %v239
    %v409 = vpop.permute.xlu0 %408
    %v411 = vperm.slane %v387, 0
    %v412 = vperm.slane %v393, 0
    %v413 = vmul.f32 %v397, %v411
    %v414 = vmul.f32 %v397, %v412
    %v415 = vmul.f32 %v401, %v411
    %v416 = vmul.f32 %v401, %v412
    %v417 = vmul.f32 %v405, %v411
    %v418 = vmul.f32 %v405, %v412
    %v419 = vmul.f32 %v409, %v411
    %v420 = vmul.f32 %v409, %v412
    %v421 = vadd.f32 %v374, %v413
    %v422 = vadd.f32 %v375, %v414
    %v423 = vadd.f32 %v376, %v415
    %v424 = vadd.f32 %v377, %v416
    %v425 = vadd.f32 %v378, %v417
    %v426 = vadd.f32 %v379, %v418
    %v427 = vadd.f32 %v380, %v419
    %v428 = vadd.f32 %v381, %v420
    %429 = vrot.lane.b32.xlu0 %v283, 124
    %v430 = vpop.permute.xlu0 %429
    %431 = vrot.lane.b32.xlu0 %v284, 124
    %v432 = vpop.permute.xlu0 %431
    %vm433 = vcmask 1014784
    %v434 = vsel %vm433, %v430, %v432
    %436 = vrot.lane.b32.xlu0 %v293, 124
    %v437 = vpop.permute.xlu0 %436
    %438 = vrot.lane.b32.xlu0 %v294, 124
    %v439 = vpop.permute.xlu0 %438
    %v440 = vsel %vm433, %v437, %v439
    %442 = vset.pattern.permute.xlu0 4
    %443 = vperm.xlu0 %442, %v236
    %v444 = vpop.permute.xlu0 %443
    %446 = vset.pattern.permute.xlu0 4
    %447 = vperm.xlu0 %446, %v237
    %v448 = vpop.permute.xlu0 %447
    %450 = vset.pattern.permute.xlu0 4
    %451 = vperm.xlu0 %450, %v238
    %v452 = vpop.permute.xlu0 %451
    %454 = vset.pattern.permute.xlu0 4
    %455 = vperm.xlu0 %454, %v239
    %v456 = vpop.permute.xlu0 %455
    %v458 = vperm.slane %v434, 0
    %v459 = vperm.slane %v440, 0
    %v460 = vmul.f32 %v444, %v458
    %v461 = vmul.f32 %v444, %v459
    %v462 = vmul.f32 %v448, %v458
    %v463 = vmul.f32 %v448, %v459
    %v464 = vmul.f32 %v452, %v458
    %v465 = vmul.f32 %v452, %v459
    %v466 = vmul.f32 %v456, %v458
    %v467 = vmul.f32 %v456, %v459
    %v468 = vadd.f32 %v421, %v460
    %v469 = vadd.f32 %v422, %v461
    %v470 = vadd.f32 %v423, %v462
    %v471 = vadd.f32 %v424, %v463
    %v472 = vadd.f32 %v425, %v464
    %v473 = vadd.f32 %v426, %v465
    %v474 = vadd.f32 %v427, %v466
    %v475 = vadd.f32 %v428, %v467
    %476 = vrot.lane.b32.xlu0 %v283, 123
    %v477 = vpop.permute.xlu0 %476
    %478 = vrot.lane.b32.xlu0 %v284, 123
    %v479 = vpop.permute.xlu0 %478
    %vm480 = vcmask 1006592
    %v481 = vsel %vm480, %v477, %v479
    %483 = vrot.lane.b32.xlu0 %v293, 123
    %v484 = vpop.permute.xlu0 %483
    %485 = vrot.lane.b32.xlu0 %v294, 123
    %v486 = vpop.permute.xlu0 %485
    %v487 = vsel %vm480, %v484, %v486
    %489 = vset.pattern.permute.xlu0 5
    %490 = vperm.xlu0 %489, %v236
    %v491 = vpop.permute.xlu0 %490
    %493 = vset.pattern.permute.xlu0 5
    %494 = vperm.xlu0 %493, %v237
    %v495 = vpop.permute.xlu0 %494
    %497 = vset.pattern.permute.xlu0 5
    %498 = vperm.xlu0 %497, %v238
    %v499 = vpop.permute.xlu0 %498
    %501 = vset.pattern.permute.xlu0 5
    %502 = vperm.xlu0 %501, %v239
    %v503 = vpop.permute.xlu0 %502
    %v505 = vperm.slane %v481, 0
    %v506 = vperm.slane %v487, 0
    %v507 = vmul.f32 %v491, %v505
    %v508 = vmul.f32 %v491, %v506
    %v509 = vmul.f32 %v495, %v505
    %v510 = vmul.f32 %v495, %v506
    %v511 = vmul.f32 %v499, %v505
    %v512 = vmul.f32 %v499, %v506
    %v513 = vmul.f32 %v503, %v505
    %v514 = vmul.f32 %v503, %v506
    %v515 = vadd.f32 %v468, %v507
    %v516 = vadd.f32 %v469, %v508
    %v517 = vadd.f32 %v470, %v509
    %v518 = vadd.f32 %v471, %v510
    %v519 = vadd.f32 %v472, %v511
    %v520 = vadd.f32 %v473, %v512
    %v521 = vadd.f32 %v474, %v513
    %v522 = vadd.f32 %v475, %v514
    %523 = vrot.lane.b32.xlu0 %v283, 122
    %v524 = vpop.permute.xlu0 %523
    %525 = vrot.lane.b32.xlu0 %v284, 122
    %v526 = vpop.permute.xlu0 %525
    %vm527 = vcmask 998400
    %v528 = vsel %vm527, %v524, %v526
    %530 = vrot.lane.b32.xlu0 %v293, 122
    %v531 = vpop.permute.xlu0 %530
    %532 = vrot.lane.b32.xlu0 %v294, 122
    %v533 = vpop.permute.xlu0 %532
    %v534 = vsel %vm527, %v531, %v533
    %536 = vset.pattern.permute.xlu0 6
    %537 = vperm.xlu0 %536, %v236
    %v538 = vpop.permute.xlu0 %537
    %540 = vset.pattern.permute.xlu0 6
    %541 = vperm.xlu0 %540, %v237
    %v542 = vpop.permute.xlu0 %541
    %544 = vset.pattern.permute.xlu0 6
    %545 = vperm.xlu0 %544, %v238
    %v546 = vpop.permute.xlu0 %545
    %548 = vset.pattern.permute.xlu0 6
    %549 = vperm.xlu0 %548, %v239
    %v550 = vpop.permute.xlu0 %549
    %v552 = vperm.slane %v528, 0
    %v553 = vperm.slane %v534, 0
    %v554 = vmul.f32 %v538, %v552
    %v555 = vmul.f32 %v538, %v553
    %v556 = vmul.f32 %v542, %v552
    %v557 = vmul.f32 %v542, %v553
    %v558 = vmul.f32 %v546, %v552
    %v559 = vmul.f32 %v546, %v553
    %v560 = vmul.f32 %v550, %v552
    %v561 = vmul.f32 %v550, %v553
    %v562 = vadd.f32 %v515, %v554
    %v563 = vadd.f32 %v516, %v555
    %v564 = vadd.f32 %v517, %v556
    %v565 = vadd.f32 %v518, %v557
    %v566 = vadd.f32 %v519, %v558
    %v567 = vadd.f32 %v520, %v559
    %v568 = vadd.f32 %v521, %v560
    %v569 = vadd.f32 %v522, %v561
    %570 = vrot.lane.b32.xlu0 %v283, 121
    %v571 = vpop.permute.xlu0 %570
    %572 = vrot.lane.b32.xlu0 %v284, 121
    %v573 = vpop.permute.xlu0 %572
    %vm574 = vcmask 990208
    %v575 = vsel %vm574, %v571, %v573
    %577 = vrot.lane.b32.xlu0 %v293, 121
    %v578 = vpop.permute.xlu0 %577
    %579 = vrot.lane.b32.xlu0 %v294, 121
    %v580 = vpop.permute.xlu0 %579
    %v581 = vsel %vm574, %v578, %v580
    %583 = vset.pattern.permute.xlu0 7
    %584 = vperm.xlu0 %583, %v236
    %v585 = vpop.permute.xlu0 %584
    %587 = vset.pattern.permute.xlu0 7
    %588 = vperm.xlu0 %587, %v237
    %v589 = vpop.permute.xlu0 %588
    %591 = vset.pattern.permute.xlu0 7
    %592 = vperm.xlu0 %591, %v238
    %v593 = vpop.permute.xlu0 %592
    %595 = vset.pattern.permute.xlu0 7
    %596 = vperm.xlu0 %595, %v239
    %v597 = vpop.permute.xlu0 %596
    %v599 = vperm.slane %v575, 0
    %v600 = vperm.slane %v581, 0
    %v601 = vmul.f32 %v585, %v599
    %v602 = vmul.f32 %v585, %v600
    %v603 = vmul.f32 %v589, %v599
    %v604 = vmul.f32 %v589, %v600
    %v605 = vmul.f32 %v593, %v599
    %v606 = vmul.f32 %v593, %v600
    %v607 = vmul.f32 %v597, %v599
    %v608 = vmul.f32 %v597, %v600
    %v609 = vadd.f32 %v562, %v601
    %v610 = vadd.f32 %v563, %v602
    %v611 = vadd.f32 %v564, %v603
    %v612 = vadd.f32 %v565, %v604
    %v613 = vadd.f32 %v566, %v605
    %v614 = vadd.f32 %v567, %v606
    %v615 = vadd.f32 %v568, %v607
    %v616 = vadd.f32 %v569, %v608
    %617 = vrot.lane.b32.xlu0 %v283, 120
    %v618 = vpop.permute.xlu0 %617
    %619 = vrot.lane.b32.xlu0 %v284, 120
    %v620 = vpop.permute.xlu0 %619
    %vm621 = vcmask 982016
    %v622 = vsel %vm621, %v618, %v620
    %624 = vrot.lane.b32.xlu0 %v293, 120
    %v625 = vpop.permute.xlu0 %624
    %626 = vrot.lane.b32.xlu0 %v294, 120
    %v627 = vpop.permute.xlu0 %626
    %v628 = vsel %vm621, %v625, %v627
    %630 = vset.pattern.permute.xlu0 8
    %631 = vperm.xlu0 %630, %v236
    %v632 = vpop.permute.xlu0 %631
    %634 = vset.pattern.permute.xlu0 8
    %635 = vperm.xlu0 %634, %v237
    %v636 = vpop.permute.xlu0 %635
    %638 = vset.pattern.permute.xlu0 8
    %639 = vperm.xlu0 %638, %v238
    %v640 = vpop.permute.xlu0 %639
    %642 = vset.pattern.permute.xlu0 8
    %643 = vperm.xlu0 %642, %v239
    %v644 = vpop.permute.xlu0 %643
    %v646 = vperm.slane %v622, 0
    %v647 = vperm.slane %v628, 0
    %v648 = vmul.f32 %v632, %v646
    %v649 = vmul.f32 %v632, %v647
    %v650 = vmul.f32 %v636, %v646
    %v651 = vmul.f32 %v636, %v647
    %v652 = vmul.f32 %v640, %v646
    %v653 = vmul.f32 %v640, %v647
    %v654 = vmul.f32 %v644, %v646
    %v655 = vmul.f32 %v644, %v647
    %v656 = vadd.f32 %v609, %v648
    %v657 = vadd.f32 %v610, %v649
    %v658 = vadd.f32 %v611, %v650
    %v659 = vadd.f32 %v612, %v651
    %v660 = vadd.f32 %v613, %v652
    %v661 = vadd.f32 %v614, %v653
    %v662 = vadd.f32 %v615, %v654
    %v663 = vadd.f32 %v616, %v655
    %v664 = vld [vmem:[%s2] sm:$0xff]
    %v665 = vld [vmem:[%s2 + $0x8] sm:$0xff]
    %v666 = vld [vmem:[%s2 + $0x10] sm:$0xff]
    %v667 = vld [vmem:[%s2 + $0x18] sm:$0xff]
    %669 = vset.pattern.permute.xlu0 0
    %670 = vperm.xlu0 %669, %v664
    %v671 = vpop.permute.xlu0 %670
    %674 = vset.pattern.permute.xlu0 0
    %675 = vperm.xlu0 %674, %v665
    %v676 = vpop.permute.xlu0 %675
    %679 = vset.pattern.permute.xlu0 0
    %680 = vperm.xlu0 %679, %v666
    %v681 = vpop.permute.xlu0 %680
    %684 = vset.pattern.permute.xlu0 0
    %685 = vperm.xlu0 %684, %v667
    %v686 = vpop.permute.xlu0 %685
    %v688 = vadd.f32 %v656, %v671
    %v689 = vadd.f32 %v657, %v671
    %v690 = vadd.f32 %v658, %v676
    %v691 = vadd.f32 %v659, %v676
    %v692 = vadd.f32 %v660, %v681
    %v693 = vadd.f32 %v661, %v681
    %v694 = vadd.f32 %v662, %v686
    %v695 = vadd.f32 %v663, %v686
    %vm696 = vcmp.gt.f32.partialorder %v688, 0.0
    %vm697 = vcmp.gt.f32.partialorder %v689, 0.0
    %vm698 = vcmp.gt.f32.partialorder %v690, 0.0
    %vm699 = vcmp.gt.f32.partialorder %v691, 0.0
    %vm700 = vcmp.gt.f32.partialorder %v692, 0.0
    %vm701 = vcmp.gt.f32.partialorder %v693, 0.0
    %vm702 = vcmp.gt.f32.partialorder %v694, 0.0
    %vm703 = vcmp.gt.f32.partialorder %v695, 0.0
    %v704 = vmul.f32 %v688, 0.2
    %v705 = vmul.f32 %v689, 0.2
    %v706 = vmul.f32 %v690, 0.2
    %v707 = vmul.f32 %v691, 0.2
    %v708 = vmul.f32 %v692, 0.2
    %v709 = vmul.f32 %v693, 0.2
    %v710 = vmul.f32 %v694, 0.2
    %v711 = vmul.f32 %v695, 0.2
    %v712 = vsel %vm696, %v688, %v704
    %v713 = vsel %vm697, %v689, %v705
    %v714 = vsel %vm698, %v690, %v706
    %v715 = vsel %vm699, %v691, %v707
    %v716 = vsel %vm700, %v692, %v708
    %v717 = vsel %vm701, %v693, %v709
    %v718 = vsel %vm702, %v694, %v710
    %v719 = vsel %vm703, %v695, %v711
    %v720 = vadd.f32 %v712, %v713
    %721 = vadd.xlane.f32.xlu0 %v720
    %v722 = vpop.xlane.xlu0 %721
    %v723 = vadd.f32 %v714, %v715
    %724 = vadd.xlane.f32.xlu0 %v723
    %v725 = vpop.xlane.xlu0 %724
    %v726 = vadd.f32 %v716, %v717
    %727 = vadd.xlane.f32.xlu0 %v726
    %v728 = vpop.xlane.xlu0 %727
    %v729 = vadd.f32 %v718, %v719
    %730 = vadd.xlane.f32.xlu0 %v729
    %v731 = vpop.xlane.xlu0 %730
    %v732 = vrcp.pop 256.0
    %v733 = vmul.f32 256.0, %v732
    %v734 = vsub.f32 1.0, %v733
    %v735 = vmul.f32 %v732, %v734
    %v736 = vadd.f32 %v732, %v735
    %vm737 = vweird.f32 %v732
    %v738 = vsel %vm737, %v732, %v736
    %v739 = vmul.f32 %v722, %v738
    %v740 = vmul.f32 %v725, %v738
    %v741 = vmul.f32 %v728, %v738
    %v742 = vmul.f32 %v731, %v738
    %v743 = vmul.f32 %v712, %v712
    %v744 = vmul.f32 %v713, %v713
    %v745 = vmul.f32 %v714, %v714
    %v746 = vmul.f32 %v715, %v715
    %v747 = vmul.f32 %v716, %v716
    %v748 = vmul.f32 %v717, %v717
    %v749 = vmul.f32 %v718, %v718
    %v750 = vmul.f32 %v719, %v719
    %v751 = vadd.f32 %v743, %v744
    %752 = vadd.xlane.f32.xlu0 %v751
    %v753 = vpop.xlane.xlu0 %752
    %v754 = vadd.f32 %v745, %v746
    %755 = vadd.xlane.f32.xlu0 %v754
    %v756 = vpop.xlane.xlu0 %755
    %v757 = vadd.f32 %v747, %v748
    %758 = vadd.xlane.f32.xlu0 %v757
    %v759 = vpop.xlane.xlu0 %758
    %v760 = vadd.f32 %v749, %v750
    %761 = vadd.xlane.f32.xlu0 %v760
    %v762 = vpop.xlane.xlu0 %761
    %v763 = vmul.f32 %v753, %v738
    %v764 = vmul.f32 %v756, %v738
    %v765 = vmul.f32 %v759, %v738
    %v766 = vmul.f32 %v762, %v738
    %v767 = vmul.f32 %v739, %v739
    %v768 = vmul.f32 %v740, %v740
    %v769 = vmul.f32 %v741, %v741
    %v770 = vmul.f32 %v742, %v742
    %v771 = vsub.f32 %v763, %v767
    %v772 = vsub.f32 %v764, %v768
    %v773 = vsub.f32 %v765, %v769
    %v774 = vsub.f32 %v766, %v770
    %v775 = vmax.f32 %v771, 0.0
    %v776 = vmax.f32 %v772, 0.0
    %v777 = vmax.f32 %v773, 0.0
    %v778 = vmax.f32 %v774, 0.0
    %v779 = vld [vmem:[%s3] sm:$0xff]
    %v780 = vld [vmem:[%s3 + $0x8] sm:$0xff]
    %v781 = vld [vmem:[%s3 + $0x10] sm:$0xff]
    %v782 = vld [vmem:[%s3 + $0x18] sm:$0xff]
    %v783 = vadd.f32 %v775, 1e-05
    %v784 = vadd.f32 %v776, 1e-05
    %v785 = vadd.f32 %v777, 1e-05
    %v786 = vadd.f32 %v778, 1e-05
    %v787 = vrsqrt.pop %v783
    %v788 = vmul.f32 %v787, %v783
    %v789 = vmul.f32 %v788, %v787
    %v790 = vmul.f32 0.5, %v789
    %v791 = vsub.f32 1.5, %v790
    %v792 = vmul.f32 %v787, %v791
    %vm793 = vweird.f32 %v783
    %vm794 = vweird.f32 %v787
    %vm795 = vmor %vm793, %vm794
    %v796 = vsel %vm795, %v787, %v792
    %v797 = vrsqrt.pop %v784
    %v798 = vmul.f32 %v797, %v784
    %v799 = vmul.f32 %v798, %v797
    %v800 = vmul.f32 0.5, %v799
    %v801 = vsub.f32 1.5, %v800
    %v802 = vmul.f32 %v797, %v801
    %vm803 = vweird.f32 %v784
    %vm804 = vweird.f32 %v797
    %vm805 = vmor %vm803, %vm804
    %v806 = vsel %vm805, %v797, %v802
    %v807 = vrsqrt.pop %v785
    %v808 = vmul.f32 %v807, %v785
    %v809 = vmul.f32 %v808, %v807
    %v810 = vmul.f32 0.5, %v809
    %v811 = vsub.f32 1.5, %v810
    %v812 = vmul.f32 %v807, %v811
    %vm813 = vweird.f32 %v785
    %vm814 = vweird.f32 %v807
    %vm815 = vmor %vm813, %vm814
    %v816 = vsel %vm815, %v807, %v812
    %v817 = vrsqrt.pop %v786
    %v818 = vmul.f32 %v817, %v786
    %v819 = vmul.f32 %v818, %v817
    %v820 = vmul.f32 0.5, %v819
    %v821 = vsub.f32 1.5, %v820
    %v822 = vmul.f32 %v817, %v821
    %vm823 = vweird.f32 %v786
    %vm824 = vweird.f32 %v817
    %vm825 = vmor %vm823, %vm824
    %v826 = vsel %vm825, %v817, %v822
    %v827 = vmul.f32 %v779, %v796
    %v828 = vmul.f32 %v780, %v806
    %v829 = vmul.f32 %v781, %v816
    %v830 = vmul.f32 %v782, %v826
    %v831 = vld [vmem:[%s4] sm:$0xff]
    %v832 = vld [vmem:[%s4 + $0x8] sm:$0xff]
    %v833 = vld [vmem:[%s4 + $0x10] sm:$0xff]
    %v834 = vld [vmem:[%s4 + $0x18] sm:$0xff]
    %v835 = vmul.f32 %v739, %v827
    %v836 = vmul.f32 %v740, %v828
    %v837 = vmul.f32 %v741, %v829
    %v838 = vmul.f32 %v742, %v830
    %v839 = vsub.f32 %v831, %v835
    %v840 = vsub.f32 %v832, %v836
    %v841 = vsub.f32 %v833, %v837
    %v842 = vsub.f32 %v834, %v838
    %844 = vset.pattern.permute.xlu0 0
    %845 = vperm.xlu0 %844, %v827
    %v846 = vpop.permute.xlu0 %845
    %849 = vset.pattern.permute.xlu0 0
    %850 = vperm.xlu0 %849, %v828
    %v851 = vpop.permute.xlu0 %850
    %854 = vset.pattern.permute.xlu0 0
    %855 = vperm.xlu0 %854, %v829
    %v856 = vpop.permute.xlu0 %855
    %859 = vset.pattern.permute.xlu0 0
    %860 = vperm.xlu0 %859, %v830
    %v861 = vpop.permute.xlu0 %860
    %v863 = vmul.f32 %v712, %v846
    %v864 = vmul.f32 %v713, %v846
    %v865 = vmul.f32 %v714, %v851
    %v866 = vmul.f32 %v715, %v851
    %v867 = vmul.f32 %v716, %v856
    %v868 = vmul.f32 %v717, %v856
    %v869 = vmul.f32 %v718, %v861
    %v870 = vmul.f32 %v719, %v861
    %872 = vset.pattern.permute.xlu0 0
    %873 = vperm.xlu0 %872, %v839
    %v874 = vpop.permute.xlu0 %873
    %877 = vset.pattern.permute.xlu0 0
    %878 = vperm.xlu0 %877, %v840
    %v879 = vpop.permute.xlu0 %878
    %882 = vset.pattern.permute.xlu0 0
    %883 = vperm.xlu0 %882, %v841
    %v884 = vpop.permute.xlu0 %883
    %887 = vset.pattern.permute.xlu0 0
    %888 = vperm.xlu0 %887, %v842
    %v889 = vpop.permute.xlu0 %888
    %v891 = vadd.f32 %v863, %v874
    %v892 = vadd.f32 %v864, %v874
    %v893 = vadd.f32 %v865, %v879
    %v894 = vadd.f32 %v866, %v879
    %v895 = vadd.f32 %v867, %v884
    %v896 = vadd.f32 %v868, %v884
    %v897 = vadd.f32 %v869, %v889
    %v898 = vadd.f32 %v870, %v889
    %903 = vrot.lane.b32.xlu0 %v891, 4
    %v904 = vpop.permute.xlu0 %903
    %905 = vrot.lane.b32.xlu0 %v893, 4
    %v906 = vpop.permute.xlu0 %905
    %907 = vrot.lane.b32.xlu0 %v895, 4
    %v908 = vpop.permute.xlu0 %907
    %909 = vrot.lane.b32.xlu0 %v897, 4
    %v910 = vpop.permute.xlu0 %909
    %vm915 = vcmask 1047584
    %916 = vst.msk [vmem:[#allocation3] sm:$0xff] %vm915, %v904
    %917 = vst.msk [vmem:[#allocation3 + $0x8] sm:$0xff] %vm220, %v904
    %918 = vst.msk [vmem:[#allocation3 + $0x10] sm:$0xff] %vm915, %v906
    %919 = vst.msk [vmem:[#allocation3 + $0x18] sm:$0xff] %vm220, %v906
    %920 = vst.msk [vmem:[#allocation3 + $0x20] sm:$0xff] %vm915, %v908
    %921 = vst.msk [vmem:[#allocation3 + $0x28] sm:$0xff] %vm220, %v908
    %922 = vst.msk [vmem:[#allocation3 + $0x30] sm:$0xff] %vm915, %v910
    %923 = vst.msk [vmem:[#allocation3 + $0x38] sm:$0xff] %vm220, %v910
    %928 = vrot.lane.b32.xlu0 %v892, 4
    %v929 = vpop.permute.xlu0 %928
    %930 = vrot.lane.b32.xlu0 %v894, 4
    %v931 = vpop.permute.xlu0 %930
    %932 = vrot.lane.b32.xlu0 %v896, 4
    %v933 = vpop.permute.xlu0 %932
    %934 = vrot.lane.b32.xlu0 %v898, 4
    %v935 = vpop.permute.xlu0 %934
    %s940 = scalar_lea.vmem [#allocation3], 64
    %941 = vst.msk [vmem:[%s940] sm:$0xff] %vm915, %v929
    %942 = vst.msk [vmem:[%s940 + $0x8] sm:$0xff] %vm220, %v929
    %943 = vst.msk [vmem:[%s940 + $0x10] sm:$0xff] %vm915, %v931
    %944 = vst.msk [vmem:[%s940 + $0x18] sm:$0xff] %vm220, %v931
    %945 = vst.msk [vmem:[%s940 + $0x20] sm:$0xff] %vm915, %v933
    %946 = vst.msk [vmem:[%s940 + $0x28] sm:$0xff] %vm220, %v933
    %947 = vst.msk [vmem:[%s940 + $0x30] sm:$0xff] %vm915, %v935
    %948 = vst.msk [vmem:[%s940 + $0x38] sm:$0xff] %vm220, %v935
    %v949 = vld [vmem:[#allocation3] sm:$0xff]
    %v950 = vld [vmem:[#allocation3 + $0x10] sm:$0xff]
    %v951 = vld [vmem:[#allocation3 + $0x20] sm:$0xff]
    %v952 = vld [vmem:[#allocation3 + $0x30] sm:$0xff]
    %v953 = vld [vmem:[#allocation3 + $0x8] sm:$0xff]
    %v954 = vld [vmem:[#allocation3 + $0x18] sm:$0xff]
    %v955 = vld [vmem:[#allocation3 + $0x28] sm:$0xff]
    %v956 = vld [vmem:[#allocation3 + $0x38] sm:$0xff]
    %965 = vrot.lane.b32.xlu0 %v949, 127
    %v966 = vpop.permute.xlu0 %965
    %967 = vrot.lane.b32.xlu0 %v953, 127
    %v968 = vpop.permute.xlu0 %967
    %969 = vrot.lane.b32.xlu0 %v950, 127
    %v970 = vpop.permute.xlu0 %969
    %971 = vrot.lane.b32.xlu0 %v954, 127
    %v972 = vpop.permute.xlu0 %971
    %973 = vrot.lane.b32.xlu0 %v951, 127
    %v974 = vpop.permute.xlu0 %973
    %975 = vrot.lane.b32.xlu0 %v955, 127
    %v976 = vpop.permute.xlu0 %975
    %977 = vrot.lane.b32.xlu0 %v952, 127
    %v978 = vpop.permute.xlu0 %977
    %979 = vrot.lane.b32.xlu0 %v956, 127
    %v980 = vpop.permute.xlu0 %979
    %v981 = vsel %vm289, %v966, %v968
    %v982 = vsel %vm289, %v970, %v972
    %v983 = vsel %vm289, %v974, %v976
    %v984 = vsel %vm289, %v978, %v980
    %989 = vrot.lane.b32.xlu0 %v949, 126
    %v990 = vpop.permute.xlu0 %989
    %991 = vrot.lane.b32.xlu0 %v953, 126
    %v992 = vpop.permute.xlu0 %991
    %993 = vrot.lane.b32.xlu0 %v950, 126
    %v994 = vpop.permute.xlu0 %993
    %995 = vrot.lane.b32.xlu0 %v954, 126
    %v996 = vpop.permute.xlu0 %995
    %997 = vrot.lane.b32.xlu0 %v951, 126
    %v998 = vpop.permute.xlu0 %997
    %999 = vrot.lane.b32.xlu0 %v955, 126
    %v1000 = vpop.permute.xlu0 %999
    %1001 = vrot.lane.b32.xlu0 %v952, 126
    %v1002 = vpop.permute.xlu0 %1001
    %1003 = vrot.lane.b32.xlu0 %v956, 126
    %v1004 = vpop.permute.xlu0 %1003
    %v1005 = vsel %vm339, %v990, %v992
    %v1006 = vsel %vm339, %v994, %v996
    %v1007 = vsel %vm339, %v998, %v1000
    %v1008 = vsel %vm339, %v1002, %v1004
    %1013 = vrot.lane.b32.xlu0 %v949, 125
    %v1014 = vpop.permute.xlu0 %1013
    %1015 = vrot.lane.b32.xlu0 %v953, 125
    %v1016 = vpop.permute.xlu0 %1015
    %1017 = vrot.lane.b32.xlu0 %v950, 125
    %v1018 = vpop.permute.xlu0 %1017
    %1019 = vrot.lane.b32.xlu0 %v954, 125
    %v1020 = vpop.permute.xlu0 %1019
    %1021 = vrot.lane.b32.xlu0 %v951, 125
    %v1022 = vpop.permute.xlu0 %1021
    %1023 = vrot.lane.b32.xlu0 %v955, 125
    %v1024 = vpop.permute.xlu0 %1023
    %1025 = vrot.lane.b32.xlu0 %v952, 125
    %v1026 = vpop.permute.xlu0 %1025
    %1027 = vrot.lane.b32.xlu0 %v956, 125
    %v1028 = vpop.permute.xlu0 %1027
    %v1029 = vsel %vm386, %v1014, %v1016
    %v1030 = vsel %vm386, %v1018, %v1020
    %v1031 = vsel %vm386, %v1022, %v1024
    %v1032 = vsel %vm386, %v1026, %v1028
    %1037 = vrot.lane.b32.xlu0 %v949, 124
    %v1038 = vpop.permute.xlu0 %1037
    %1039 = vrot.lane.b32.xlu0 %v953, 124
    %v1040 = vpop.permute.xlu0 %1039
    %1041 = vrot.lane.b32.xlu0 %v950, 124
    %v1042 = vpop.permute.xlu0 %1041
    %1043 = vrot.lane.b32.xlu0 %v954, 124
    %v1044 = vpop.permute.xlu0 %1043
    %1045 = vrot.lane.b32.xlu0 %v951, 124
    %v1046 = vpop.permute.xlu0 %1045
    %1047 = vrot.lane.b32.xlu0 %v955, 124
    %v1048 = vpop.permute.xlu0 %1047
    %1049 = vrot.lane.b32.xlu0 %v952, 124
    %v1050 = vpop.permute.xlu0 %1049
    %1051 = vrot.lane.b32.xlu0 %v956, 124
    %v1052 = vpop.permute.xlu0 %1051
    %v1053 = vsel %vm433, %v1038, %v1040
    %v1054 = vsel %vm433, %v1042, %v1044
    %v1055 = vsel %vm433, %v1046, %v1048
    %v1056 = vsel %vm433, %v1050, %v1052
    %1061 = vrot.lane.b32.xlu0 %v949, 123
    %v1062 = vpop.permute.xlu0 %1061
    %1063 = vrot.lane.b32.xlu0 %v953, 123
    %v1064 = vpop.permute.xlu0 %1063
    %1065 = vrot.lane.b32.xlu0 %v950, 123
    %v1066 = vpop.permute.xlu0 %1065
    %1067 = vrot.lane.b32.xlu0 %v954, 123
    %v1068 = vpop.permute.xlu0 %1067
    %1069 = vrot.lane.b32.xlu0 %v951, 123
    %v1070 = vpop.permute.xlu0 %1069
    %1071 = vrot.lane.b32.xlu0 %v955, 123
    %v1072 = vpop.permute.xlu0 %1071
    %1073 = vrot.lane.b32.xlu0 %v952, 123
    %v1074 = vpop.permute.xlu0 %1073
    %1075 = vrot.lane.b32.xlu0 %v956, 123
    %v1076 = vpop.permute.xlu0 %1075
    %v1077 = vsel %vm480, %v1062, %v1064
    %v1078 = vsel %vm480, %v1066, %v1068
    %v1079 = vsel %vm480, %v1070, %v1072
    %v1080 = vsel %vm480, %v1074, %v1076
    %1085 = vrot.lane.b32.xlu0 %v949, 122
    %v1086 = vpop.permute.xlu0 %1085
    %1087 = vrot.lane.b32.xlu0 %v953, 122
    %v1088 = vpop.permute.xlu0 %1087
    %1089 = vrot.lane.b32.xlu0 %v950, 122
    %v1090 = vpop.permute.xlu0 %1089
    %1091 = vrot.lane.b32.xlu0 %v954, 122
    %v1092 = vpop.permute.xlu0 %1091
    %1093 = vrot.lane.b32.xlu0 %v951, 122
    %v1094 = vpop.permute.xlu0 %1093
    %1095 = vrot.lane.b32.xlu0 %v955, 122
    %v1096 = vpop.permute.xlu0 %1095
    %1097 = vrot.lane.b32.xlu0 %v952, 122
    %v1098 = vpop.permute.xlu0 %1097
    %1099 = vrot.lane.b32.xlu0 %v956, 122
    %v1100 = vpop.permute.xlu0 %1099
    %v1101 = vsel %vm527, %v1086, %v1088
    %v1102 = vsel %vm527, %v1090, %v1092
    %v1103 = vsel %vm527, %v1094, %v1096
    %v1104 = vsel %vm527, %v1098, %v1100
    %1109 = vrot.lane.b32.xlu0 %v949, 121
    %v1110 = vpop.permute.xlu0 %1109
    %1111 = vrot.lane.b32.xlu0 %v953, 121
    %v1112 = vpop.permute.xlu0 %1111
    %1113 = vrot.lane.b32.xlu0 %v950, 121
    %v1114 = vpop.permute.xlu0 %1113
    %1115 = vrot.lane.b32.xlu0 %v954, 121
    %v1116 = vpop.permute.xlu0 %1115
    %1117 = vrot.lane.b32.xlu0 %v951, 121
    %v1118 = vpop.permute.xlu0 %1117
    %1119 = vrot.lane.b32.xlu0 %v955, 121
    %v1120 = vpop.permute.xlu0 %1119
    %1121 = vrot.lane.b32.xlu0 %v952, 121
    %v1122 = vpop.permute.xlu0 %1121
    %1123 = vrot.lane.b32.xlu0 %v956, 121
    %v1124 = vpop.permute.xlu0 %1123
    %v1125 = vsel %vm574, %v1110, %v1112
    %v1126 = vsel %vm574, %v1114, %v1116
    %v1127 = vsel %vm574, %v1118, %v1120
    %v1128 = vsel %vm574, %v1122, %v1124
    %1133 = vrot.lane.b32.xlu0 %v949, 120
    %v1134 = vpop.permute.xlu0 %1133
    %1135 = vrot.lane.b32.xlu0 %v953, 120
    %v1136 = vpop.permute.xlu0 %1135
    %1137 = vrot.lane.b32.xlu0 %v950, 120
    %v1138 = vpop.permute.xlu0 %1137
    %1139 = vrot.lane.b32.xlu0 %v954, 120
    %v1140 = vpop.permute.xlu0 %1139
    %1141 = vrot.lane.b32.xlu0 %v951, 120
    %v1142 = vpop.permute.xlu0 %1141
    %1143 = vrot.lane.b32.xlu0 %v955, 120
    %v1144 = vpop.permute.xlu0 %1143
    %1145 = vrot.lane.b32.xlu0 %v952, 120
    %v1146 = vpop.permute.xlu0 %1145
    %1147 = vrot.lane.b32.xlu0 %v956, 120
    %v1148 = vpop.permute.xlu0 %1147
    %v1149 = vsel %vm621, %v1134, %v1136
    %v1150 = vsel %vm621, %v1138, %v1140
    %v1151 = vsel %vm621, %v1142, %v1144
    %v1152 = vsel %vm621, %v1146, %v1148
    %v1157 = vld [vmem:[%s940] sm:$0xff]
    %v1158 = vld [vmem:[%s940 + $0x10] sm:$0xff]
    %v1159 = vld [vmem:[%s940 + $0x20] sm:$0xff]
    %v1160 = vld [vmem:[%s940 + $0x30] sm:$0xff]
    %v1161 = vld [vmem:[%s940 + $0x8] sm:$0xff]
    %v1162 = vld [vmem:[%s940 + $0x18] sm:$0xff]
    %v1163 = vld [vmem:[%s940 + $0x28] sm:$0xff]
    %v1164 = vld [vmem:[%s940 + $0x38] sm:$0xff]
    %1173 = vrot.lane.b32.xlu0 %v1157, 127
    %v1174 = vpop.permute.xlu0 %1173
    %1175 = vrot.lane.b32.xlu0 %v1161, 127
    %v1176 = vpop.permute.xlu0 %1175
    %1177 = vrot.lane.b32.xlu0 %v1158, 127
    %v1178 = vpop.permute.xlu0 %1177
    %1179 = vrot.lane.b32.xlu0 %v1162, 127
    %v1180 = vpop.permute.xlu0 %1179
    %1181 = vrot.lane.b32.xlu0 %v1159, 127
    %v1182 = vpop.permute.xlu0 %1181
    %1183 = vrot.lane.b32.xlu0 %v1163, 127
    %v1184 = vpop.permute.xlu0 %1183
    %1185 = vrot.lane.b32.xlu0 %v1160, 127
    %v1186 = vpop.permute.xlu0 %1185
    %1187 = vrot.lane.b32.xlu0 %v1164, 127
    %v1188 = vpop.permute.xlu0 %1187
    %v1189 = vsel %vm289, %v1174, %v1176
    %v1190 = vsel %vm289, %v1178, %v1180
    %v1191 = vsel %vm289, %v1182, %v1184
    %v1192 = vsel %vm289, %v1186, %v1188
    %1197 = vrot.lane.b32.xlu0 %v1157, 126
    %v1198 = vpop.permute.xlu0 %1197
    %1199 = vrot.lane.b32.xlu0 %v1161, 126
    %v1200 = vpop.permute.xlu0 %1199
    %1201 = vrot.lane.b32.xlu0 %v1158, 126
    %v1202 = vpop.permute.xlu0 %1201
    %1203 = vrot.lane.b32.xlu0 %v1162, 126
    %v1204 = vpop.permute.xlu0 %1203
    %1205 = vrot.lane.b32.xlu0 %v1159, 126
    %v1206 = vpop.permute.xlu0 %1205
    %1207 = vrot.lane.b32.xlu0 %v1163, 126
    %v1208 = vpop.permute.xlu0 %1207
    %1209 = vrot.lane.b32.xlu0 %v1160, 126
    %v1210 = vpop.permute.xlu0 %1209
    %1211 = vrot.lane.b32.xlu0 %v1164, 126
    %v1212 = vpop.permute.xlu0 %1211
    %v1213 = vsel %vm339, %v1198, %v1200
    %v1214 = vsel %vm339, %v1202, %v1204
    %v1215 = vsel %vm339, %v1206, %v1208
    %v1216 = vsel %vm339, %v1210, %v1212
    %1221 = vrot.lane.b32.xlu0 %v1157, 125
    %v1222 = vpop.permute.xlu0 %1221
    %1223 = vrot.lane.b32.xlu0 %v1161, 125
    %v1224 = vpop.permute.xlu0 %1223
    %1225 = vrot.lane.b32.xlu0 %v1158, 125
    %v1226 = vpop.permute.xlu0 %1225
    %1227 = vrot.lane.b32.xlu0 %v1162, 125
    %v1228 = vpop.permute.xlu0 %1227
    %1229 = vrot.lane.b32.xlu0 %v1159, 125
    %v1230 = vpop.permute.xlu0 %1229
    %1231 = vrot.lane.b32.xlu0 %v1163, 125
    %v1232 = vpop.permute.xlu0 %1231
    %1233 = vrot.lane.b32.xlu0 %v1160, 125
    %v1234 = vpop.permute.xlu0 %1233
    %1235 = vrot.lane.b32.xlu0 %v1164, 125
    %v1236 = vpop.permute.xlu0 %1235
    %v1237 = vsel %vm386, %v1222, %v1224
    %v1238 = vsel %vm386, %v1226, %v1228
    %v1239 = vsel %vm386, %v1230, %v1232
    %v1240 = vsel %vm386, %v1234, %v1236
    %1245 = vrot.lane.b32.xlu0 %v1157, 124
    %v1246 = vpop.permute.xlu0 %1245
    %1247 = vrot.lane.b32.xlu0 %v1161, 124
    %v1248 = vpop.permute.xlu0 %1247
    %1249 = vrot.lane.b32.xlu0 %v1158, 124
    %v1250 = vpop.permute.xlu0 %1249
    %1251 = vrot.lane.b32.xlu0 %v1162, 124
    %v1252 = vpop.permute.xlu0 %1251
    %1253 = vrot.lane.b32.xlu0 %v1159, 124
    %v1254 = vpop.permute.xlu0 %1253
    %1255 = vrot.lane.b32.xlu0 %v1163, 124
    %v1256 = vpop.permute.xlu0 %1255
    %1257 = vrot.lane.b32.xlu0 %v1160, 124
    %v1258 = vpop.permute.xlu0 %1257
    %1259 = vrot.lane.b32.xlu0 %v1164, 124
    %v1260 = vpop.permute.xlu0 %1259
    %v1261 = vsel %vm433, %v1246, %v1248
    %v1262 = vsel %vm433, %v1250, %v1252
    %v1263 = vsel %vm433, %v1254, %v1256
    %v1264 = vsel %vm433, %v1258, %v1260
    %1269 = vrot.lane.b32.xlu0 %v1157, 123
    %v1270 = vpop.permute.xlu0 %1269
    %1271 = vrot.lane.b32.xlu0 %v1161, 123
    %v1272 = vpop.permute.xlu0 %1271
    %1273 = vrot.lane.b32.xlu0 %v1158, 123
    %v1274 = vpop.permute.xlu0 %1273
    %1275 = vrot.lane.b32.xlu0 %v1162, 123
    %v1276 = vpop.permute.xlu0 %1275
    %1277 = vrot.lane.b32.xlu0 %v1159, 123
    %v1278 = vpop.permute.xlu0 %1277
    %1279 = vrot.lane.b32.xlu0 %v1163, 123
    %v1280 = vpop.permute.xlu0 %1279
    %1281 = vrot.lane.b32.xlu0 %v1160, 123
    %v1282 = vpop.permute.xlu0 %1281
    %1283 = vrot.lane.b32.xlu0 %v1164, 123
    %v1284 = vpop.permute.xlu0 %1283
    %v1285 = vsel %vm480, %v1270, %v1272
    %v1286 = vsel %vm480, %v1274, %v1276
    %v1287 = vsel %vm480, %v1278, %v1280
    %v1288 = vsel %vm480, %v1282, %v1284
    %1293 = vrot.lane.b32.xlu0 %v1157, 122
    %v1294 = vpop.permute.xlu0 %1293
    %1295 = vrot.lane.b32.xlu0 %v1161, 122
    %v1296 = vpop.permute.xlu0 %1295
    %1297 = vrot.lane.b32.xlu0 %v1158, 122
    %v1298 = vpop.permute.xlu0 %1297
    %1299 = vrot.lane.b32.xlu0 %v1162, 122
    %v1300 = vpop.permute.xlu0 %1299
    %1301 = vrot.lane.b32.xlu0 %v1159, 122
    %v1302 = vpop.permute.xlu0 %1301
    %1303 = vrot.lane.b32.xlu0 %v1163, 122
    %v1304 = vpop.permute.xlu0 %1303
    %1305 = vrot.lane.b32.xlu0 %v1160, 122
    %v1306 = vpop.permute.xlu0 %1305
    %1307 = vrot.lane.b32.xlu0 %v1164, 122
    %v1308 = vpop.permute.xlu0 %1307
    %v1309 = vsel %vm527, %v1294, %v1296
    %v1310 = vsel %vm527, %v1298, %v1300
    %v1311 = vsel %vm527, %v1302, %v1304
    %v1312 = vsel %vm527, %v1306, %v1308
    %1317 = vrot.lane.b32.xlu0 %v1157, 121
    %v1318 = vpop.permute.xlu0 %1317
    %1319 = vrot.lane.b32.xlu0 %v1161, 121
    %v1320 = vpop.permute.xlu0 %1319
    %1321 = vrot.lane.b32.xlu0 %v1158, 121
    %v1322 = vpop.permute.xlu0 %1321
    %1323 = vrot.lane.b32.xlu0 %v1162, 121
    %v1324 = vpop.permute.xlu0 %1323
    %1325 = vrot.lane.b32.xlu0 %v1159, 121
    %v1326 = vpop.permute.xlu0 %1325
    %1327 = vrot.lane.b32.xlu0 %v1163, 121
    %v1328 = vpop.permute.xlu0 %1327
    %1329 = vrot.lane.b32.xlu0 %v1160, 121
    %v1330 = vpop.permute.xlu0 %1329
    %1331 = vrot.lane.b32.xlu0 %v1164, 121
    %v1332 = vpop.permute.xlu0 %1331
    %v1333 = vsel %vm574, %v1318, %v1320
    %v1334 = vsel %vm574, %v1322, %v1324
    %v1335 = vsel %vm574, %v1326, %v1328
    %v1336 = vsel %vm574, %v1330, %v1332
    %1341 = vrot.lane.b32.xlu0 %v1157, 120
    %v1342 = vpop.permute.xlu0 %1341
    %1343 = vrot.lane.b32.xlu0 %v1161, 120
    %v1344 = vpop.permute.xlu0 %1343
    %1345 = vrot.lane.b32.xlu0 %v1158, 120
    %v1346 = vpop.permute.xlu0 %1345
    %1347 = vrot.lane.b32.xlu0 %v1162, 120
    %v1348 = vpop.permute.xlu0 %1347
    %1349 = vrot.lane.b32.xlu0 %v1159, 120
    %v1350 = vpop.permute.xlu0 %1349
    %1351 = vrot.lane.b32.xlu0 %v1163, 120
    %v1352 = vpop.permute.xlu0 %1351
    %1353 = vrot.lane.b32.xlu0 %v1160, 120
    %v1354 = vpop.permute.xlu0 %1353
    %1355 = vrot.lane.b32.xlu0 %v1164, 120
    %v1356 = vpop.permute.xlu0 %1355
    %v1357 = vsel %vm621, %v1342, %v1344
    %v1358 = vsel %vm621, %v1346, %v1348
    %v1359 = vsel %vm621, %v1350, %v1352
    %v1360 = vsel %vm621, %v1354, %v1356
    %v1365 = vld [vmem:[#allocation8] sm:$0xff]
    %v1366 = vld [vmem:[#allocation8 + $0x8] sm:$0xff]
    %v1367 = vld [vmem:[#allocation8 + $0x10] sm:$0xff]
    %v1368 = vld [vmem:[#allocation8 + $0x18] sm:$0xff]
    %v1369 = vld [vmem:[#allocation8 + $0x20] sm:$0xff]
    %v1370 = vld [vmem:[#allocation8 + $0x28] sm:$0xff]
    %v1371 = vld [vmem:[#allocation8 + $0x30] sm:$0xff]
    %v1372 = vld [vmem:[#allocation8 + $0x38] sm:$0xff]
    %v1373 = vld [vmem:[#allocation8 + $0x40] sm:$0xff]
    %v1374 = vld [vmem:[#allocation8 + $0x48] sm:$0xff]
    %v1375 = vld [vmem:[#allocation8 + $0x50] sm:$0xff]
    %v1376 = vld [vmem:[#allocation8 + $0x58] sm:$0xff]
    %v1377 = vld [vmem:[#allocation8 + $0x60] sm:$0xff]
    %v1378 = vld [vmem:[#allocation8 + $0x68] sm:$0xff]
    %v1379 = vld [vmem:[#allocation8 + $0x70] sm:$0xff]
    %v1380 = vld [vmem:[#allocation8 + $0x78] sm:$0xff]
    %v1381 = vld [vmem:[#allocation8 + $0x80] sm:$0xff]
    %v1382 = vld [vmem:[#allocation8 + $0x88] sm:$0xff]
    %v1383 = vld [vmem:[#allocation8 + $0x90] sm:$0xff]
    %v1384 = vld [vmem:[#allocation8 + $0x98] sm:$0xff]
    %v1385 = vld [vmem:[#allocation8 + $0xa0] sm:$0xff]
    %v1386 = vld [vmem:[#allocation8 + $0xa8] sm:$0xff]
    %v1387 = vld [vmem:[#allocation8 + $0xb0] sm:$0xff]
    %v1388 = vld [vmem:[#allocation8 + $0xb8] sm:$0xff]
    %v1389 = vld [vmem:[%s6] sm:$0xff]
    %v1390 = vld [vmem:[%s6 + $0x8] sm:$0xff]
    %v1391 = vld [vmem:[%s6 + $0x10] sm:$0xff]
    %v1392 = vld [vmem:[%s6 + $0x18] sm:$0xff]
    %v1393 = vld [vmem:[%s6 + $0x20] sm:$0xff]
    %v1394 = vld [vmem:[%s6 + $0x28] sm:$0xff]
    %v1395 = vld [vmem:[%s6 + $0x30] sm:$0xff]
    %v1396 = vld [vmem:[%s6 + $0x38] sm:$0xff]
    %1398 = vset.pattern.permute.xlu0 0
    %1399 = vperm.xlu0 %1398, %v1389
    %v1400 = vpop.permute.xlu0 %1399
    %1403 = vset.pattern.permute.xlu0 0
    %1404 = vperm.xlu0 %1403, %v1390
    %v1405 = vpop.permute.xlu0 %1404
    %1408 = vset.pattern.permute.xlu0 0
    %1409 = vperm.xlu0 %1408, %v1391
    %v1410 = vpop.permute.xlu0 %1409
    %1413 = vset.pattern.permute.xlu0 0
    %1414 = vperm.xlu0 %1413, %v1392
    %v1415 = vpop.permute.xlu0 %1414
    %1418 = vset.pattern.permute.xlu0 0
    %1419 = vperm.xlu0 %1418, %v1393
    %v1420 = vpop.permute.xlu0 %1419
    %1423 = vset.pattern.permute.xlu0 0
    %1424 = vperm.xlu0 %1423, %v1394
    %v1425 = vpop.permute.xlu0 %1424
    %1428 = vset.pattern.permute.xlu0 0
    %1429 = vperm.xlu0 %1428, %v1395
    %v1430 = vpop.permute.xlu0 %1429
    %1433 = vset.pattern.permute.xlu0 0
    %1434 = vperm.xlu0 %1433, %v1396
    %v1435 = vpop.permute.xlu0 %1434
    %vm1437 = vcmask 261120
    %v1439 = vsel %vm1437, %v1367, 0
    %v1442 = vsel %vm1437, %v1370, 0
    %v1445 = vsel %vm1437, %v1373, 0
    %v1448 = vsel %vm1437, %v1376, 0
    %v1451 = vsel %vm1437, %v1379, 0
    %v1454 = vsel %vm1437, %v1382, 0
    %v1457 = vsel %vm1437, %v1385, 0
    %v1460 = vsel %vm1437, %v1388, 0
    %1462 = vmatpush.msra.mxu0 %v1032
    %1463 = vmatpush.msra.mxu0 %v1031
    %1464 = vmatpush.msra.mxu0 %v1030
    %1465 = vmatpush.msra.mxu0 %v1029
    %1466 = vmatpush.msra.mxu0 %v1008
    %1467 = vmatpush.msra.mxu0 %v1007
    %1468 = vmatpush.msra.mxu0 %v1006
    %1469 = vmatpush.msra.mxu0 %v1005
    %1470 = vmatpush.msra.mxu0 %v984
    %1471 = vmatpush.msra.mxu0 %v983
    %1472 = vmatpush.msra.mxu0 %v982
    %1473 = vmatpush.msra.mxu0 %v981
    %1474 = vmatpush.msra.mxu0 %v952
    %1475 = vmatpush.msra.mxu0 %v951
    %1476 = vmatpush.msra.mxu0 %v950
    %1477 = vmatpush.msra.mxu0 %v949
    %1478 = vmatmul.f32.gmra.mxu0 %v1365
    %v1479 = vpop.f32.mrf.mxu0
    %v1480 = vadd.f32 %v1400, %v1479
    %1481 = vmatmul.f32.gmra.mxu0 %v1368
    %v1482 = vpop.f32.mrf.mxu0
    %v1483 = vadd.f32 %v1405, %v1482
    %1484 = vmatmul.f32.gmra.mxu0 %v1371
    %v1485 = vpop.f32.mrf.mxu0
    %v1486 = vadd.f32 %v1410, %v1485
    %1487 = vmatmul.f32.gmra.mxu0 %v1374
    %v1488 = vpop.f32.mrf.mxu0
    %v1489 = vadd.f32 %v1415, %v1488
    %1490 = vmatmul.f32.gmra.mxu0 %v1377
    %v1491 = vpop.f32.mrf.mxu0
    %v1492 = vadd.f32 %v1420, %v1491
    %1493 = vmatmul.f32.gmra.mxu0 %v1380
    %v1494 = vpop.f32.mrf.mxu0
    %v1495 = vadd.f32 %v1425, %v1494
    %1496 = vmatmul.f32.gmra.mxu0 %v1383
    %v1497 = vpop.f32.mrf.mxu0
    %v1498 = vadd.f32 %v1430, %v1497
    %1499 = vmatmul.f32.gmra.mxu0 %v1386
    %v1500 = vpop.f32.mrf.mxu0
    %v1501 = vadd.f32 %v1435, %v1500
    %1502 = vdwg.mxu0
    %1503 = vmatpush.msra.mxu0 %v1128
    %1504 = vmatpush.msra.mxu0 %v1127
    %1505 = vmatpush.msra.mxu0 %v1126
    %1506 = vmatpush.msra.mxu0 %v1125
    %1507 = vmatpush.msra.mxu0 %v1104
    %1508 = vmatpush.msra.mxu0 %v1103
    %1509 = vmatpush.msra.mxu0 %v1102
    %1510 = vmatpush.msra.mxu0 %v1101
    %1511 = vmatpush.msra.mxu0 %v1080
    %1512 = vmatpush.msra.mxu0 %v1079
    %1513 = vmatpush.msra.mxu0 %v1078
    %1514 = vmatpush.msra.mxu0 %v1077
    %1515 = vmatpush.msra.mxu0 %v1056
    %1516 = vmatpush.msra.mxu0 %v1055
    %1517 = vmatpush.msra.mxu0 %v1054
    %1518 = vmatpush.msra.mxu0 %v1053
    %1519 = vmatmul.f32.gmra.mxu0 %v1366
    %v1520 = vpop.f32.mrf.mxu0
    %v1521 = vadd.f32 %v1480, %v1520
    %1522 = vmatmul.f32.gmra.mxu0 %v1369
    %v1523 = vpop.f32.mrf.mxu0
    %v1524 = vadd.f32 %v1483, %v1523
    %1525 = vmatmul.f32.gmra.mxu0 %v1372
    %v1526 = vpop.f32.mrf.mxu0
    %v1527 = vadd.f32 %v1486, %v1526
    %1528 = vmatmul.f32.gmra.mxu0 %v1375
    %v1529 = vpop.f32.mrf.mxu0
    %v1530 = vadd.f32 %v1489, %v1529
    %1531 = vmatmul.f32.gmra.mxu0 %v1378
    %v1532 = vpop.f32.mrf.mxu0
    %v1533 = vadd.f32 %v1492, %v1532
    %1534 = vmatmul.f32.gmra.mxu0 %v1381
    %v1535 = vpop.f32.mrf.mxu0
    %v1536 = vadd.f32 %v1495, %v1535
    %1537 = vmatmul.f32.gmra.mxu0 %v1384
    %v1538 = vpop.f32.mrf.mxu0
    %v1539 = vadd.f32 %v1498, %v1538
    %1540 = vmatmul.f32.gmra.mxu0 %v1387
    %v1541 = vpop.f32.mrf.mxu0
    %v1542 = vadd.f32 %v1501, %v1541
    %1543 = vdwg.mxu0
    %1544 = vmatpush.msra.mxu0 0.0
    %1545 = vmatpush.msra.mxu0 0.0
    %1546 = vmatpush.msra.mxu0 0.0
    %1547 = vmatpush.msra.mxu0 0.0
    %1548 = vmatpush.msra.mxu0 0.0
    %1549 = vmatpush.msra.mxu0 0.0
    %1550 = vmatpush.msra.mxu0 0.0
    %1551 = vmatpush.msra.mxu0 0.0
    %1552 = vmatpush.msra.mxu0 0.0
    %1553 = vmatpush.msra.mxu0 0.0
    %1554 = vmatpush.msra.mxu0 0.0
    %1555 = vmatpush.msra.mxu0 0.0
    %1556 = vmatpush.msra.mxu0 %v1152
    %1557 = vmatpush.msra.mxu0 %v1151
    %1558 = vmatpush.msra.mxu0 %v1150
    %1559 = vmatpush.msra.mxu0 %v1149
    %1560 = vmatmul.f32.gmra.mxu0 %v1439
    %v1561 = vpop.f32.mrf.mxu0
    %v1562 = vadd.f32 %v1521, %v1561
    %1563 = vmatmul.f32.gmra.mxu0 %v1442
    %v1564 = vpop.f32.mrf.mxu0
    %v1565 = vadd.f32 %v1524, %v1564
    %1566 = vmatmul.f32.gmra.mxu0 %v1445
    %v1567 = vpop.f32.mrf.mxu0
    %v1568 = vadd.f32 %v1527, %v1567
    %1569 = vmatmul.f32.gmra.mxu0 %v1448
    %v1570 = vpop.f32.mrf.mxu0
    %v1571 = vadd.f32 %v1530, %v1570
    %1572 = vmatmul.f32.gmra.mxu0 %v1451
    %v1573 = vpop.f32.mrf.mxu0
    %v1574 = vadd.f32 %v1533, %v1573
    %1575 = vmatmul.f32.gmra.mxu0 %v1454
    %v1576 = vpop.f32.mrf.mxu0
    %v1577 = vadd.f32 %v1536, %v1576
    %1578 = vmatmul.f32.gmra.mxu0 %v1457
    %v1579 = vpop.f32.mrf.mxu0
    %v1580 = vadd.f32 %v1539, %v1579
    %1581 = vmatmul.f32.gmra.mxu0 %v1460
    %v1582 = vpop.f32.mrf.mxu0
    %v1583 = vadd.f32 %v1542, %v1582
    %1584 = vdwg.mxu0
    %1585 = vmatpush.msra.mxu0 %v1240
    %1586 = vmatpush.msra.mxu0 %v1239
    %1587 = vmatpush.msra.mxu0 %v1238
    %1588 = vmatpush.msra.mxu0 %v1237
    %1589 = vmatpush.msra.mxu0 %v1216
    %1590 = vmatpush.msra.mxu0 %v1215
    %1591 = vmatpush.msra.mxu0 %v1214
    %1592 = vmatpush.msra.mxu0 %v1213
    %1593 = vmatpush.msra.mxu0 %v1192
    %1594 = vmatpush.msra.mxu0 %v1191
    %1595 = vmatpush.msra.mxu0 %v1190
    %1596 = vmatpush.msra.mxu0 %v1189
    %1597 = vmatpush.msra.mxu0 %v1160
    %1598 = vmatpush.msra.mxu0 %v1159
    %1599 = vmatpush.msra.mxu0 %v1158
    %1600 = vmatpush.msra.mxu0 %v1157
    %1601 = vmatmul.f32.gmra.mxu0 %v1365
    %v1602 = vpop.f32.mrf.mxu0
    %v1603 = vadd.f32 %v1400, %v1602
    %1604 = vmatmul.f32.gmra.mxu0 %v1368
    %v1605 = vpop.f32.mrf.mxu0
    %v1606 = vadd.f32 %v1405, %v1605
    %1607 = vmatmul.f32.gmra.mxu0 %v1371
    %v1608 = vpop.f32.mrf.mxu0
    %v1609 = vadd.f32 %v1410, %v1608
    %1610 = vmatmul.f32.gmra.mxu0 %v1374
    %v1611 = vpop.f32.mrf.mxu0
    %v1612 = vadd.f32 %v1415, %v1611
    %1613 = vmatmul.f32.gmra.mxu0 %v1377
    %v1614 = vpop.f32.mrf.mxu0
    %v1615 = vadd.f32 %v1420, %v1614
    %1616 = vmatmul.f32.gmra.mxu0 %v1380
    %v1617 = vpop.f32.mrf.mxu0
    %v1618 = vadd.f32 %v1425, %v1617
    %1619 = vmatmul.f32.gmra.mxu0 %v1383
    %v1620 = vpop.f32.mrf.mxu0
    %v1621 = vadd.f32 %v1430, %v1620
    %1622 = vmatmul.f32.gmra.mxu0 %v1386
    %v1623 = vpop.f32.mrf.mxu0
    %v1624 = vadd.f32 %v1435, %v1623
    %1625 = vdwg.mxu0
    %1626 = vmatpush.msra.mxu0 %v1336
    %1627 = vmatpush.msra.mxu0 %v1335
    %1628 = vmatpush.msra.mxu0 %v1334
    %1629 = vmatpush.msra.mxu0 %v1333
    %1630 = vmatpush.msra.mxu0 %v1312
    %1631 = vmatpush.msra.mxu0 %v1311
    %1632 = vmatpush.msra.mxu0 %v1310
    %1633 = vmatpush.msra.mxu0 %v1309
    %1634 = vmatpush.msra.mxu0 %v1288
    %1635 = vmatpush.msra.mxu0 %v1287
    %1636 = vmatpush.msra.mxu0 %v1286
    %1637 = vmatpush.msra.mxu0 %v1285
    %1638 = vmatpush.msra.mxu0 %v1264
    %1639 = vmatpush.msra.mxu0 %v1263
    %1640 = vmatpush.msra.mxu0 %v1262
    %1641 = vmatpush.msra.mxu0 %v1261
    %1642 = vmatmul.f32.gmra.mxu0 %v1366
    %v1643 = vpop.f32.mrf.mxu0
    %v1644 = vadd.f32 %v1603, %v1643
    %1645 = vmatmul.f32.gmra.mxu0 %v1369
    %v1646 = vpop.f32.mrf.mxu0
    %v1647 = vadd.f32 %v1606, %v1646
    %1648 = vmatmul.f32.gmra.mxu0 %v1372
    %v1649 = vpop.f32.mrf.mxu0
    %v1650 = vadd.f32 %v1609, %v1649
    %1651 = vmatmul.f32.gmra.mxu0 %v1375
    %v1652 = vpop.f32.mrf.mxu0
    %v1653 = vadd.f32 %v1612, %v1652
    %1654 = vmatmul.f32.gmra.mxu0 %v1378
    %v1655 = vpop.f32.mrf.mxu0
    %v1656 = vadd.f32 %v1615, %v1655
    %1657 = vmatmul.f32.gmra.mxu0 %v1381
    %v1658 = vpop.f32.mrf.mxu0
    %v1659 = vadd.f32 %v1618, %v1658
    %1660 = vmatmul.f32.gmra.mxu0 %v1384
    %v1661 = vpop.f32.mrf.mxu0
    %v1662 = vadd.f32 %v1621, %v1661
    %1663 = vmatmul.f32.gmra.mxu0 %v1387
    %v1664 = vpop.f32.mrf.mxu0
    %v1665 = vadd.f32 %v1624, %v1664
    %1666 = vdwg.mxu0
    %1667 = vmatpush.msra.mxu0 0.0
    %1668 = vmatpush.msra.mxu0 0.0
    %1669 = vmatpush.msra.mxu0 0.0
    %1670 = vmatpush.msra.mxu0 0.0
    %1671 = vmatpush.msra.mxu0 0.0
    %1672 = vmatpush.msra.mxu0 0.0
    %1673 = vmatpush.msra.mxu0 0.0
    %1674 = vmatpush.msra.mxu0 0.0
    %1675 = vmatpush.msra.mxu0 0.0
    %1676 = vmatpush.msra.mxu0 0.0
    %1677 = vmatpush.msra.mxu0 0.0
    %1678 = vmatpush.msra.mxu0 0.0
    %1679 = vmatpush.msra.mxu0 %v1360
    %1680 = vmatpush.msra.mxu0 %v1359
    %1681 = vmatpush.msra.mxu0 %v1358
    %1682 = vmatpush.msra.mxu0 %v1357
    %1683 = vmatmul.f32.gmra.mxu0 %v1439
    %v1684 = vpop.f32.mrf.mxu0
    %v1685 = vadd.f32 %v1644, %v1684
    %1686 = vmatmul.f32.gmra.mxu0 %v1442
    %v1687 = vpop.f32.mrf.mxu0
    %v1688 = vadd.f32 %v1647, %v1687
    %1689 = vmatmul.f32.gmra.mxu0 %v1445
    %v1690 = vpop.f32.mrf.mxu0
    %v1691 = vadd.f32 %v1650, %v1690
    %1692 = vmatmul.f32.gmra.mxu0 %v1448
    %v1693 = vpop.f32.mrf.mxu0
    %v1694 = vadd.f32 %v1653, %v1693
    %1695 = vmatmul.f32.gmra.mxu0 %v1451
    %v1696 = vpop.f32.mrf.mxu0
    %v1697 = vadd.f32 %v1656, %v1696
    %1698 = vmatmul.f32.gmra.mxu0 %v1454
    %v1699 = vpop.f32.mrf.mxu0
    %v1700 = vadd.f32 %v1659, %v1699
    %1701 = vmatmul.f32.gmra.mxu0 %v1457
    %v1702 = vpop.f32.mrf.mxu0
    %v1703 = vadd.f32 %v1662, %v1702
    %1704 = vmatmul.f32.gmra.mxu0 %v1460
    %v1705 = vpop.f32.mrf.mxu0
    %v1706 = vadd.f32 %v1665, %v1705
    %1707 = vdwg.mxu0
    %vm1708 = vcmp.gt.f32.partialorder %v1562, 0.0
    %vm1709 = vcmp.gt.f32.partialorder %v1685, 0.0
    %vm1710 = vcmp.gt.f32.partialorder %v1565, 0.0
    %vm1711 = vcmp.gt.f32.partialorder %v1688, 0.0
    %vm1712 = vcmp.gt.f32.partialorder %v1568, 0.0
    %vm1713 = vcmp.gt.f32.partialorder %v1691, 0.0
    %vm1714 = vcmp.gt.f32.partialorder %v1571, 0.0
    %vm1715 = vcmp.gt.f32.partialorder %v1694, 0.0
    %vm1716 = vcmp.gt.f32.partialorder %v1574, 0.0
    %vm1717 = vcmp.gt.f32.partialorder %v1697, 0.0
    %vm1718 = vcmp.gt.f32.partialorder %v1577, 0.0
    %vm1719 = vcmp.gt.f32.partialorder %v1700, 0.0
    %vm1720 = vcmp.gt.f32.partialorder %v1580, 0.0
    %vm1721 = vcmp.gt.f32.partialorder %v1703, 0.0
    %vm1722 = vcmp.gt.f32.partialorder %v1583, 0.0
    %vm1723 = vcmp.gt.f32.partialorder %v1706, 0.0
    %v1724 = vmul.f32 %v1562, 0.2
    %v1725 = vmul.f32 %v1685, 0.2
    %v1726 = vmul.f32 %v1565, 0.2
    %v1727 = vmul.f32 %v1688, 0.2
    %v1728 = vmul.f32 %v1568, 0.2
    %v1729 = vmul.f32 %v1691, 0.2
    %v1730 = vmul.f32 %v1571, 0.2
    %v1731 = vmul.f32 %v1694, 0.2
    %v1732 = vmul.f32 %v1574, 0.2
    %v1733 = vmul.f32 %v1697, 0.2
    %v1734 = vmul.f32 %v1577, 0.2
    %v1735 = vmul.f32 %v1700, 0.2
    %v1736 = vmul.f32 %v1580, 0.2
    %v1737 = vmul.f32 %v1703, 0.2
    %v1738 = vmul.f32 %v1583, 0.2
    %v1739 = vmul.f32 %v1706, 0.2
    %v1740 = vsel %vm1708, %v1562, %v1724
    %v1741 = vsel %vm1709, %v1685, %v1725
    %v1742 = vsel %vm1710, %v1565, %v1726
    %v1743 = vsel %vm1711, %v1688, %v1727
    %v1744 = vsel %vm1712, %v1568, %v1728
    %v1745 = vsel %vm1713, %v1691, %v1729
    %v1746 = vsel %vm1714, %v1571, %v1730
    %v1747 = vsel %vm1715, %v1694, %v1731
    %v1748 = vsel %vm1716, %v1574, %v1732
    %v1749 = vsel %vm1717, %v1697, %v1733
    %v1750 = vsel %vm1718, %v1577, %v1734
    %v1751 = vsel %vm1719, %v1700, %v1735
    %v1752 = vsel %vm1720, %v1580, %v1736
    %v1753 = vsel %vm1721, %v1703, %v1737
    %v1754 = vsel %vm1722, %v1583, %v1738
    %v1755 = vsel %vm1723, %v1706, %v1739
    %v1756 = vadd.f32 %v1740, %v1741
    %1757 = vadd.xlane.f32.xlu0 %v1756
    %v1758 = vpop.xlane.xlu0 %1757
    %v1759 = vadd.f32 %v1742, %v1743
    %1760 = vadd.xlane.f32.xlu0 %v1759
    %v1761 = vpop.xlane.xlu0 %1760
    %v1762 = vadd.f32 %v1744, %v1745
    %1763 = vadd.xlane.f32.xlu0 %v1762
    %v1764 = vpop.xlane.xlu0 %1763
    %v1765 = vadd.f32 %v1746, %v1747
    %1766 = vadd.xlane.f32.xlu0 %v1765
    %v1767 = vpop.xlane.xlu0 %1766
    %v1768 = vadd.f32 %v1748, %v1749
    %1769 = vadd.xlane.f32.xlu0 %v1768
    %v1770 = vpop.xlane.xlu0 %1769
    %v1771 = vadd.f32 %v1750, %v1751
    %1772 = vadd.xlane.f32.xlu0 %v1771
    %v1773 = vpop.xlane.xlu0 %1772
    %v1774 = vadd.f32 %v1752, %v1753
    %1775 = vadd.xlane.f32.xlu0 %v1774
    %v1776 = vpop.xlane.xlu0 %1775
    %v1777 = vadd.f32 %v1754, %v1755
    %1778 = vadd.xlane.f32.xlu0 %v1777
    %v1779 = vpop.xlane.xlu0 %1778
    %v1780 = vmul.f32 %v1758, %v738
    %v1781 = vmul.f32 %v1761, %v738
    %v1782 = vmul.f32 %v1764, %v738
    %v1783 = vmul.f32 %v1767, %v738
    %v1784 = vmul.f32 %v1770, %v738
    %v1785 = vmul.f32 %v1773, %v738
    %v1786 = vmul.f32 %v1776, %v738
    %v1787 = vmul.f32 %v1779, %v738
    %v1788 = vmul.f32 %v1740, %v1740
    %v1789 = vmul.f32 %v1741, %v1741
    %v1790 = vmul.f32 %v1742, %v1742
    %v1791 = vmul.f32 %v1743, %v1743
    %v1792 = vmul.f32 %v1744, %v1744
    %v1793 = vmul.f32 %v1745, %v1745
    %v1794 = vmul.f32 %v1746, %v1746
    %v1795 = vmul.f32 %v1747, %v1747
    %v1796 = vmul.f32 %v1748, %v1748
    %v1797 = vmul.f32 %v1749, %v1749
    %v1798 = vmul.f32 %v1750, %v1750
    %v1799 = vmul.f32 %v1751, %v1751
    %v1800 = vmul.f32 %v1752, %v1752
    %v1801 = vmul.f32 %v1753, %v1753
    %v1802 = vmul.f32 %v1754, %v1754
    %v1803 = vmul.f32 %v1755, %v1755
    %v1804 = vadd.f32 %v1788, %v1789
    %1805 = vadd.xlane.f32.xlu0 %v1804
    %v1806 = vpop.xlane.xlu0 %1805
    %v1807 = vadd.f32 %v1790, %v1791
    %1808 = vadd.xlane.f32.xlu0 %v1807
    %v1809 = vpop.xlane.xlu0 %1808
    %v1810 = vadd.f32 %v1792, %v1793
    %1811 = vadd.xlane.f32.xlu0 %v1810
    %v1812 = vpop.xlane.xlu0 %1811
    %v1813 = vadd.f32 %v1794, %v1795
    %1814 = vadd.xlane.f32.xlu0 %v1813
    %v1815 = vpop.xlane.xlu0 %1814
    %v1816 = vadd.f32 %v1796, %v1797
    %1817 = vadd.xlane.f32.xlu0 %v1816
    %v1818 = vpop.xlane.xlu0 %1817
    %v1819 = vadd.f32 %v1798, %v1799
    %1820 = vadd.xlane.f32.xlu0 %v1819
    %v1821 = vpop.xlane.xlu0 %1820
    %v1822 = vadd.f32 %v1800, %v1801
    %1823 = vadd.xlane.f32.xlu0 %v1822
    %v1824 = vpop.xlane.xlu0 %1823
    %v1825 = vadd.f32 %v1802, %v1803
    %1826 = vadd.xlane.f32.xlu0 %v1825
    %v1827 = vpop.xlane.xlu0 %1826
    %v1828 = vmul.f32 %v1806, %v738
    %v1829 = vmul.f32 %v1809, %v738
    %v1830 = vmul.f32 %v1812, %v738
    %v1831 = vmul.f32 %v1815, %v738
    %v1832 = vmul.f32 %v1818, %v738
    %v1833 = vmul.f32 %v1821, %v738
    %v1834 = vmul.f32 %v1824, %v738
    %v1835 = vmul.f32 %v1827, %v738
    %v1836 = vmul.f32 %v1780, %v1780
    %v1837 = vmul.f32 %v1781, %v1781
    %v1838 = vmul.f32 %v1782, %v1782
    %v1839 = vmul.f32 %v1783, %v1783
    %v1840 = vmul.f32 %v1784, %v1784
    %v1841 = vmul.f32 %v1785, %v1785
    %v1842 = vmul.f32 %v1786, %v1786
    %v1843 = vmul.f32 %v1787, %v1787
    %v1844 = vsub.f32 %v1828, %v1836
    %v1845 = vsub.f32 %v1829, %v1837
    %v1846 = vsub.f32 %v1830, %v1838
    %v1847 = vsub.f32 %v1831, %v1839
    %v1848 = vsub.f32 %v1832, %v1840
    %v1849 = vsub.f32 %v1833, %v1841
    %v1850 = vsub.f32 %v1834, %v1842
    %v1851 = vsub.f32 %v1835, %v1843
    %v1852 = vmax.f32 %v1844, 0.0
    %v1853 = vmax.f32 %v1845, 0.0
    %v1854 = vmax.f32 %v1846, 0.0
    %v1855 = vmax.f32 %v1847, 0.0
    %v1856 = vmax.f32 %v1848, 0.0
    %v1857 = vmax.f32 %v1849, 0.0
    %v1858 = vmax.f32 %v1850, 0.0
    %v1859 = vmax.f32 %v1851, 0.0
    %v1860 = vld [vmem:[%s7] sm:$0xff]
    %v1861 = vld [vmem:[%s7 + $0x8] sm:$0xff]
    %v1862 = vld [vmem:[%s7 + $0x10] sm:$0xff]
    %v1863 = vld [vmem:[%s7 + $0x18] sm:$0xff]
    %v1864 = vld [vmem:[%s7 + $0x20] sm:$0xff]
    %v1865 = vld [vmem:[%s7 + $0x28] sm:$0xff]
    %v1866 = vld [vmem:[%s7 + $0x30] sm:$0xff]
    %v1867 = vld [vmem:[%s7 + $0x38] sm:$0xff]
    %v1868 = vadd.f32 %v1852, 1e-05
    %v1869 = vadd.f32 %v1853, 1e-05
    %v1870 = vadd.f32 %v1854, 1e-05
    %v1871 = vadd.f32 %v1855, 1e-05
    %v1872 = vadd.f32 %v1856, 1e-05
    %v1873 = vadd.f32 %v1857, 1e-05
    %v1874 = vadd.f32 %v1858, 1e-05
    %v1875 = vadd.f32 %v1859, 1e-05
    %v1876 = vrsqrt.pop %v1868
    %v1877 = vmul.f32 %v1876, %v1868
    %v1878 = vmul.f32 %v1877, %v1876
    %v1879 = vmul.f32 0.5, %v1878
    %v1880 = vsub.f32 1.5, %v1879
    %v1881 = vmul.f32 %v1876, %v1880
    %vm1882 = vweird.f32 %v1868
    %vm1883 = vweird.f32 %v1876
    %vm1884 = vmor %vm1882, %vm1883
    %v1885 = vsel %vm1884, %v1876, %v1881
    %v1886 = vrsqrt.pop %v1869
    %v1887 = vmul.f32 %v1886, %v1869
    %v1888 = vmul.f32 %v1887, %v1886
    %v1889 = vmul.f32 0.5, %v1888
    %v1890 = vsub.f32 1.5, %v1889
    %v1891 = vmul.f32 %v1886, %v1890
    %vm1892 = vweird.f32 %v1869
    %vm1893 = vweird.f32 %v1886
    %vm1894 = vmor %vm1892, %vm1893
    %v1895 = vsel %vm1894, %v1886, %v1891
    %v1896 = vrsqrt.pop %v1870
    %v1897 = vmul.f32 %v1896, %v1870
    %v1898 = vmul.f32 %v1897, %v1896
    %v1899 = vmul.f32 0.5, %v1898
    %v1900 = vsub.f32 1.5, %v1899
    %v1901 = vmul.f32 %v1896, %v1900
    %vm1902 = vweird.f32 %v1870
    %vm1903 = vweird.f32 %v1896
    %vm1904 = vmor %vm1902, %vm1903
    %v1905 = vsel %vm1904, %v1896, %v1901
    %v1906 = vrsqrt.pop %v1871
    %v1907 = vmul.f32 %v1906, %v1871
    %v1908 = vmul.f32 %v1907, %v1906
    %v1909 = vmul.f32 0.5, %v1908
    %v1910 = vsub.f32 1.5, %v1909
    %v1911 = vmul.f32 %v1906, %v1910
    %vm1912 = vweird.f32 %v1871
    %vm1913 = vweird.f32 %v1906
    %vm1914 = vmor %vm1912, %vm1913
    %v1915 = vsel %vm1914, %v1906, %v1911
    %v1916 = vrsqrt.pop %v1872
    %v1917 = vmul.f32 %v1916, %v1872
    %v1918 = vmul.f32 %v1917, %v1916
    %v1919 = vmul.f32 0.5, %v1918
    %v1920 = vsub.f32 1.5, %v1919
    %v1921 = vmul.f32 %v1916, %v1920
    %vm1922 = vweird.f32 %v1872
    %vm1923 = vweird.f32 %v1916
    %vm1924 = vmor %vm1922, %vm1923
    %v1925 = vsel %vm1924, %v1916, %v1921
    %v1926 = vrsqrt.pop %v1873
    %v1927 = vmul.f32 %v1926, %v1873
    %v1928 = vmul.f32 %v1927, %v1926
    %v1929 = vmul.f32 0.5, %v1928
    %v1930 = vsub.f32 1.5, %v1929
    %v1931 = vmul.f32 %v1926, %v1930
    %vm1932 = vweird.f32 %v1873
    %vm1933 = vweird.f32 %v1926
    %vm1934 = vmor %vm1932, %vm1933
    %v1935 = vsel %vm1934, %v1926, %v1931
    %v1936 = vrsqrt.pop %v1874
    %v1937 = vmul.f32 %v1936, %v1874
    %v1938 = vmul.f32 %v1937, %v1936
    %v1939 = vmul.f32 0.5, %v1938
    %v1940 = vsub.f32 1.5, %v1939
    %v1941 = vmul.f32 %v1936, %v1940
    %vm1942 = vweird.f32 %v1874
    %vm1943 = vweird.f32 %v1936
    %vm1944 = vmor %vm1942, %vm1943
    %v1945 = vsel %vm1944, %v1936, %v1941
    %v1946 = vrsqrt.pop %v1875
    %v1947 = vmul.f32 %v1946, %v1875
    %v1948 = vmul.f32 %v1947, %v1946
    %v1949 = vmul.f32 0.5, %v1948
    %v1950 = vsub.f32 1.5, %v1949
    %v1951 = vmul.f32 %v1946, %v1950
    %vm1952 = vweird.f32 %v1875
    %vm1953 = vweird.f32 %v1946
    %vm1954 = vmor %vm1952, %vm1953
    %v1955 = vsel %vm1954, %v1946, %v1951
    %v1956 = vmul.f32 %v1860, %v1885
    %v1957 = vmul.f32 %v1861, %v1895
    %v1958 = vmul.f32 %v1862, %v1905
    %v1959 = vmul.f32 %v1863, %v1915
    %v1960 = vmul.f32 %v1864, %v1925
    %v1961 = vmul.f32 %v1865, %v1935
    %v1962 = vmul.f32 %v1866, %v1945
    %v1963 = vmul.f32 %v1867, %v1955
    %v1964 = vld [vmem:[%s8] sm:$0xff]
    %v1965 = vld [vmem:[%s8 + $0x8] sm:$0xff]
    %v1966 = vld [vmem:[%s8 + $0x10] sm:$0xff]
    %v1967 = vld [vmem:[%s8 + $0x18] sm:$0xff]
    %v1968 = vld [vmem:[%s8 + $0x20] sm:$0xff]
    %v1969 = vld [vmem:[%s8 + $0x28] sm:$0xff]
    %v1970 = vld [vmem:[%s8 + $0x30] sm:$0xff]
    %v1971 = vld [vmem:[%s8 + $0x38] sm:$0xff]
    %v1972 = vmul.f32 %v1780, %v1956
    %v1973 = vmul.f32 %v1781, %v1957
    %v1974 = vmul.f32 %v1782, %v1958
    %v1975 = vmul.f32 %v1783, %v1959
    %v1976 = vmul.f32 %v1784, %v1960
    %v1977 = vmul.f32 %v1785, %v1961
    %v1978 = vmul.f32 %v1786, %v1962
    %v1979 = vmul.f32 %v1787, %v1963
    %v1980 = vsub.f32 %v1964, %v1972
    %v1981 = vsub.f32 %v1965, %v1973
    %v1982 = vsub.f32 %v1966, %v1974
    %v1983 = vsub.f32 %v1967, %v1975
    %v1984 = vsub.f32 %v1968, %v1976
    %v1985 = vsub.f32 %v1969, %v1977
    %v1986 = vsub.f32 %v1970, %v1978
    %v1987 = vsub.f32 %v1971, %v1979
    %1989 = vset.pattern.permute.xlu0 0
    %1990 = vperm.xlu0 %1989, %v1956
    %v1991 = vpop.permute.xlu0 %1990
    %1994 = vset.pattern.permute.xlu0 0
    %1995 = vperm.xlu0 %1994, %v1957
    %v1996 = vpop.permute.xlu0 %1995
    %1999 = vset.pattern.permute.xlu0 0
    %2000 = vperm.xlu0 %1999, %v1958
    %v2001 = vpop.permute.xlu0 %2000
    %2004 = vset.pattern.permute.xlu0 0
    %2005 = vperm.xlu0 %2004, %v1959
    %v2006 = vpop.permute.xlu0 %2005
    %2009 = vset.pattern.permute.xlu0 0
    %2010 = vperm.xlu0 %2009, %v1960
    %v2011 = vpop.permute.xlu0 %2010
    %2014 = vset.pattern.permute.xlu0 0
    %2015 = vperm.xlu0 %2014, %v1961
    %v2016 = vpop.permute.xlu0 %2015
    %2019 = vset.pattern.permute.xlu0 0
    %2020 = vperm.xlu0 %2019, %v1962
    %v2021 = vpop.permute.xlu0 %2020
    %2024 = vset.pattern.permute.xlu0 0
    %2025 = vperm.xlu0 %2024, %v1963
    %v2026 = vpop.permute.xlu0 %2025
    %v2028 = vmul.f32 %v1740, %v1991
    %v2029 = vmul.f32 %v1741, %v1991
    %v2030 = vmul.f32 %v1742, %v1996
    %v2031 = vmul.f32 %v1743, %v1996
    %v2032 = vmul.f32 %v1744, %v2001
    %v2033 = vmul.f32 %v1745, %v2001
    %v2034 = vmul.f32 %v1746, %v2006
    %v2035 = vmul.f32 %v1747, %v2006
    %v2036 = vmul.f32 %v1748, %v2011
    %v2037 = vmul.f32 %v1749, %v2011
    %v2038 = vmul.f32 %v1750, %v2016
    %v2039 = vmul.f32 %v1751, %v2016
    %v2040 = vmul.f32 %v1752, %v2021
    %v2041 = vmul.f32 %v1753, %v2021
    %v2042 = vmul.f32 %v1754, %v2026
    %v2043 = vmul.f32 %v1755, %v2026
    %2045 = vset.pattern.permute.xlu0 0
    %2046 = vperm.xlu0 %2045, %v1980
    %v2047 = vpop.permute.xlu0 %2046
    %2050 = vset.pattern.permute.xlu0 0
    %2051 = vperm.xlu0 %2050, %v1981
    %v2052 = vpop.permute.xlu0 %2051
    %2055 = vset.pattern.permute.xlu0 0
    %2056 = vperm.xlu0 %2055, %v1982
    %v2057 = vpop.permute.xlu0 %2056
    %2060 = vset.pattern.permute.xlu0 0
    %2061 = vperm.xlu0 %2060, %v1983
    %v2062 = vpop.permute.xlu0 %2061
    %2065 = vset.pattern.permute.xlu0 0
    %2066 = vperm.xlu0 %2065, %v1984
    %v2067 = vpop.permute.xlu0 %2066
    %2070 = vset.pattern.permute.xlu0 0
    %2071 = vperm.xlu0 %2070, %v1985
    %v2072 = vpop.permute.xlu0 %2071
    %2075 = vset.pattern.permute.xlu0 0
    %2076 = vperm.xlu0 %2075, %v1986
    %v2077 = vpop.permute.xlu0 %2076
    %2080 = vset.pattern.permute.xlu0 0
    %2081 = vperm.xlu0 %2080, %v1987
    %v2082 = vpop.permute.xlu0 %2081
    %v2084 = vadd.f32 %v2028, %v2047
    %v2085 = vadd.f32 %v2029, %v2047
    %v2086 = vadd.f32 %v2030, %v2052
    %v2087 = vadd.f32 %v2031, %v2052
    %v2088 = vadd.f32 %v2032, %v2057
    %v2089 = vadd.f32 %v2033, %v2057
    %v2090 = vadd.f32 %v2034, %v2062
    %v2091 = vadd.f32 %v2035, %v2062
    %v2092 = vadd.f32 %v2036, %v2067
    %v2093 = vadd.f32 %v2037, %v2067
    %v2094 = vadd.f32 %v2038, %v2072
    %v2095 = vadd.f32 %v2039, %v2072
    %v2096 = vadd.f32 %v2040, %v2077
    %v2097 = vadd.f32 %v2041, %v2077
    %v2098 = vadd.f32 %v2042, %v2082
    %v2099 = vadd.f32 %v2043, %v2082
    %2108 = vrot.lane.b32.xlu0 %v2084, 4
    %v2109 = vpop.permute.xlu0 %2108
    %2110 = vrot.lane.b32.xlu0 %v2086, 4
    %v2111 = vpop.permute.xlu0 %2110
    %2112 = vrot.lane.b32.xlu0 %v2088, 4
    %v2113 = vpop.permute.xlu0 %2112
    %2114 = vrot.lane.b32.xlu0 %v2090, 4
    %v2115 = vpop.permute.xlu0 %2114
    %2116 = vrot.lane.b32.xlu0 %v2092, 4
    %v2117 = vpop.permute.xlu0 %2116
    %2118 = vrot.lane.b32.xlu0 %v2094, 4
    %v2119 = vpop.permute.xlu0 %2118
    %2120 = vrot.lane.b32.xlu0 %v2096, 4
    %v2121 = vpop.permute.xlu0 %2120
    %2122 = vrot.lane.b32.xlu0 %v2098, 4
    %v2123 = vpop.permute.xlu0 %2122
    %2132 = vst.msk [vmem:[#allocation4] sm:$0xff] %vm915, %v2109
    %2133 = vst.msk [vmem:[#allocation4 + $0x8] sm:$0xff] %vm220, %v2109
    %2134 = vst.msk [vmem:[#allocation4 + $0x10] sm:$0xff] %vm915, %v2111
    %2135 = vst.msk [vmem:[#allocation4 + $0x18] sm:$0xff] %vm220, %v2111
    %2136 = vst.msk [vmem:[#allocation4 + $0x20] sm:$0xff] %vm915, %v2113
    %2137 = vst.msk [vmem:[#allocation4 + $0x28] sm:$0xff] %vm220, %v2113
    %2138 = vst.msk [vmem:[#allocation4 + $0x30] sm:$0xff] %vm915, %v2115
    %2139 = vst.msk [vmem:[#allocation4 + $0x38] sm:$0xff] %vm220, %v2115
    %2140 = vst.msk [vmem:[#allocation4 + $0x40] sm:$0xff] %vm915, %v2117
    %2141 = vst.msk [vmem:[#allocation4 + $0x48] sm:$0xff] %vm220, %v2117
    %2142 = vst.msk [vmem:[#allocation4 + $0x50] sm:$0xff] %vm915, %v2119
    %2143 = vst.msk [vmem:[#allocation4 + $0x58] sm:$0xff] %vm220, %v2119
    %2144 = vst.msk [vmem:[#allocation4 + $0x60] sm:$0xff] %vm915, %v2121
    %2145 = vst.msk [vmem:[#allocation4 + $0x68] sm:$0xff] %vm220, %v2121
    %2146 = vst.msk [vmem:[#allocation4 + $0x70] sm:$0xff] %vm915, %v2123
    %2147 = vst.msk [vmem:[#allocation4 + $0x78] sm:$0xff] %vm220, %v2123
    %2156 = vrot.lane.b32.xlu0 %v2085, 4
    %v2157 = vpop.permute.xlu0 %2156
    %2158 = vrot.lane.b32.xlu0 %v2087, 4
    %v2159 = vpop.permute.xlu0 %2158
    %2160 = vrot.lane.b32.xlu0 %v2089, 4
    %v2161 = vpop.permute.xlu0 %2160
    %2162 = vrot.lane.b32.xlu0 %v2091, 4
    %v2163 = vpop.permute.xlu0 %2162
    %2164 = vrot.lane.b32.xlu0 %v2093, 4
    %v2165 = vpop.permute.xlu0 %2164
    %2166 = vrot.lane.b32.xlu0 %v2095, 4
    %v2167 = vpop.permute.xlu0 %2166
    %2168 = vrot.lane.b32.xlu0 %v2097, 4
    %v2169 = vpop.permute.xlu0 %2168
    %2170 = vrot.lane.b32.xlu0 %v2099, 4
    %v2171 = vpop.permute.xlu0 %2170
    %s2180 = scalar_lea.vmem [#allocation4], 128
    %2181 = vst.msk [vmem:[%s2180] sm:$0xff] %vm915, %v2157
    %2182 = vst.msk [vmem:[%s2180 + $0x8] sm:$0xff] %vm220, %v2157
    %2183 = vst.msk [vmem:[%s2180 + $0x10] sm:$0xff] %vm915, %v2159
    %2184 = vst.msk [vmem:[%s2180 + $0x18] sm:$0xff] %vm220, %v2159
    %2185 = vst.msk [vmem:[%s2180 + $0x20] sm:$0xff] %vm915, %v2161
    %2186 = vst.msk [vmem:[%s2180 + $0x28] sm:$0xff] %vm220, %v2161
    %2187 = vst.msk [vmem:[%s2180 + $0x30] sm:$0xff] %vm915, %v2163
    %2188 = vst.msk [vmem:[%s2180 + $0x38] sm:$0xff] %vm220, %v2163
    %2189 = vst.msk [vmem:[%s2180 + $0x40] sm:$0xff] %vm915, %v2165
    %2190 = vst.msk [vmem:[%s2180 + $0x48] sm:$0xff] %vm220, %v2165
    %2191 = vst.msk [vmem:[%s2180 + $0x50] sm:$0xff] %vm915, %v2167
    %2192 = vst.msk [vmem:[%s2180 + $0x58] sm:$0xff] %vm220, %v2167
    %2193 = vst.msk [vmem:[%s2180 + $0x60] sm:$0xff] %vm915, %v2169
    %2194 = vst.msk [vmem:[%s2180 + $0x68] sm:$0xff] %vm220, %v2169
    %2195 = vst.msk [vmem:[%s2180 + $0x70] sm:$0xff] %vm915, %v2171
    %2196 = vst.msk [vmem:[%s2180 + $0x78] sm:$0xff] %vm220, %v2171
    %v2197 = vld [vmem:[#allocation4] sm:$0xff]
    %v2198 = vld [vmem:[#allocation4 + $0x10] sm:$0xff]
    %v2199 = vld [vmem:[#allocation4 + $0x20] sm:$0xff]
    %v2200 = vld [vmem:[#allocation4 + $0x30] sm:$0xff]
    %v2201 = vld [vmem:[#allocation4 + $0x40] sm:$0xff]
    %v2202 = vld [vmem:[#allocation4 + $0x50] sm:$0xff]
    %v2203 = vld [vmem:[#allocation4 + $0x60] sm:$0xff]
    %v2204 = vld [vmem:[#allocation4 + $0x70] sm:$0xff]
    %v2205 = vld [vmem:[#allocation4 + $0x8] sm:$0xff]
    %v2206 = vld [vmem:[#allocation4 + $0x18] sm:$0xff]
    %v2207 = vld [vmem:[#allocation4 + $0x28] sm:$0xff]
    %v2208 = vld [vmem:[#allocation4 + $0x38] sm:$0xff]
    %v2209 = vld [vmem:[#allocation4 + $0x48] sm:$0xff]
    %v2210 = vld [vmem:[#allocation4 + $0x58] sm:$0xff]
    %v2211 = vld [vmem:[#allocation4 + $0x68] sm:$0xff]
    %v2212 = vld [vmem:[#allocation4 + $0x78] sm:$0xff]
    %2229 = vrot.lane.b32.xlu0 %v2197, 127
    %v2230 = vpop.permute.xlu0 %2229
    %2231 = vrot.lane.b32.xlu0 %v2205, 127
    %v2232 = vpop.permute.xlu0 %2231
    %2233 = vrot.lane.b32.xlu0 %v2198, 127
    %v2234 = vpop.permute.xlu0 %2233
    %2235 = vrot.lane.b32.xlu0 %v2206, 127
    %v2236 = vpop.permute.xlu0 %2235
    %2237 = vrot.lane.b32.xlu0 %v2199, 127
    %v2238 = vpop.permute.xlu0 %2237
    %2239 = vrot.lane.b32.xlu0 %v2207, 127
    %v2240 = vpop.permute.xlu0 %2239
    %2241 = vrot.lane.b32.xlu0 %v2200, 127
    %v2242 = vpop.permute.xlu0 %2241
    %2243 = vrot.lane.b32.xlu0 %v2208, 127
    %v2244 = vpop.permute.xlu0 %2243
    %2245 = vrot.lane.b32.xlu0 %v2201, 127
    %v2246 = vpop.permute.xlu0 %2245
    %2247 = vrot.lane.b32.xlu0 %v2209, 127
    %v2248 = vpop.permute.xlu0 %2247
    %2249 = vrot.lane.b32.xlu0 %v2202, 127
    %v2250 = vpop.permute.xlu0 %2249
    %2251 = vrot.lane.b32.xlu0 %v2210, 127
    %v2252 = vpop.permute.xlu0 %2251
    %2253 = vrot.lane.b32.xlu0 %v2203, 127
    %v2254 = vpop.permute.xlu0 %2253
    %2255 = vrot.lane.b32.xlu0 %v2211, 127
    %v2256 = vpop.permute.xlu0 %2255
    %2257 = vrot.lane.b32.xlu0 %v2204, 127
    %v2258 = vpop.permute.xlu0 %2257
    %2259 = vrot.lane.b32.xlu0 %v2212, 127
    %v2260 = vpop.permute.xlu0 %2259
    %v2261 = vsel %vm289, %v2230, %v2232
    %v2262 = vsel %vm289, %v2234, %v2236
    %v2263 = vsel %vm289, %v2238, %v2240
    %v2264 = vsel %vm289, %v2242, %v2244
    %v2265 = vsel %vm289, %v2246, %v2248
    %v2266 = vsel %vm289, %v2250, %v2252
    %v2267 = vsel %vm289, %v2254, %v2256
    %v2268 = vsel %vm289, %v2258, %v2260
    %2277 = vrot.lane.b32.xlu0 %v2197, 126
    %v2278 = vpop.permute.xlu0 %2277
    %2279 = vrot.lane.b32.xlu0 %v2205, 126
    %v2280 = vpop.permute.xlu0 %2279
    %2281 = vrot.lane.b32.xlu0 %v2198, 126
    %v2282 = vpop.permute.xlu0 %2281
    %2283 = vrot.lane.b32.xlu0 %v2206, 126
    %v2284 = vpop.permute.xlu0 %2283
    %2285 = vrot.lane.b32.xlu0 %v2199, 126
    %v2286 = vpop.permute.xlu0 %2285
    %2287 = vrot.lane.b32.xlu0 %v2207, 126
    %v2288 = vpop.permute.xlu0 %2287
    %2289 = vrot.lane.b32.xlu0 %v2200, 126
    %v2290 = vpop.permute.xlu0 %2289
    %2291 = vrot.lane.b32.xlu0 %v2208, 126
    %v2292 = vpop.permute.xlu0 %2291
    %2293 = vrot.lane.b32.xlu0 %v2201, 126
    %v2294 = vpop.permute.xlu0 %2293
    %2295 = vrot.lane.b32.xlu0 %v2209, 126
    %v2296 = vpop.permute.xlu0 %2295
    %2297 = vrot.lane.b32.xlu0 %v2202, 126
    %v2298 = vpop.permute.xlu0 %2297
    %2299 = vrot.lane.b32.xlu0 %v2210, 126
    %v2300 = vpop.permute.xlu0 %2299
    %2301 = vrot.lane.b32.xlu0 %v2203, 126
    %v2302 = vpop.permute.xlu0 %2301
    %2303 = vrot.lane.b32.xlu0 %v2211, 126
    %v2304 = vpop.permute.xlu0 %2303
    %2305 = vrot.lane.b32.xlu0 %v2204, 126
    %v2306 = vpop.permute.xlu0 %2305
    %2307 = vrot.lane.b32.xlu0 %v2212, 126
    %v2308 = vpop.permute.xlu0 %2307
    %v2309 = vsel %vm339, %v2278, %v2280
    %v2310 = vsel %vm339, %v2282, %v2284
    %v2311 = vsel %vm339, %v2286, %v2288
    %v2312 = vsel %vm339, %v2290, %v2292
    %v2313 = vsel %vm339, %v2294, %v2296
    %v2314 = vsel %vm339, %v2298, %v2300
    %v2315 = vsel %vm339, %v2302, %v2304
    %v2316 = vsel %vm339, %v2306, %v2308
    %2325 = vrot.lane.b32.xlu0 %v2197, 125
    %v2326 = vpop.permute.xlu0 %2325
    %2327 = vrot.lane.b32.xlu0 %v2205, 125
    %v2328 = vpop.permute.xlu0 %2327
    %2329 = vrot.lane.b32.xlu0 %v2198, 125
    %v2330 = vpop.permute.xlu0 %2329
    %2331 = vrot.lane.b32.xlu0 %v2206, 125
    %v2332 = vpop.permute.xlu0 %2331
    %2333 = vrot.lane.b32.xlu0 %v2199, 125
    %v2334 = vpop.permute.xlu0 %2333
    %2335 = vrot.lane.b32.xlu0 %v2207, 125
    %v2336 = vpop.permute.xlu0 %2335
    %2337 = vrot.lane.b32.xlu0 %v2200, 125
    %v2338 = vpop.permute.xlu0 %2337
    %2339 = vrot.lane.b32.xlu0 %v2208, 125
    %v2340 = vpop.permute.xlu0 %2339
    %2341 = vrot.lane.b32.xlu0 %v2201, 125
    %v2342 = vpop.permute.xlu0 %2341
    %2343 = vrot.lane.b32.xlu0 %v2209, 125
    %v2344 = vpop.permute.xlu0 %2343
    %2345 = vrot.lane.b32.xlu0 %v2202, 125
    %v2346 = vpop.permute.xlu0 %2345
    %2347 = vrot.lane.b32.xlu0 %v2210, 125
    %v2348 = vpop.permute.xlu0 %2347
    %2349 = vrot.lane.b32.xlu0 %v2203, 125
    %v2350 = vpop.permute.xlu0 %2349
    %2351 = vrot.lane.b32.xlu0 %v2211, 125
    %v2352 = vpop.permute.xlu0 %2351
    %2353 = vrot.lane.b32.xlu0 %v2204, 125
    %v2354 = vpop.permute.xlu0 %2353
    %2355 = vrot.lane.b32.xlu0 %v2212, 125
    %v2356 = vpop.permute.xlu0 %2355
    %v2357 = vsel %vm386, %v2326, %v2328
    %v2358 = vsel %vm386, %v2330, %v2332
    %v2359 = vsel %vm386, %v2334, %v2336
    %v2360 = vsel %vm386, %v2338, %v2340
    %v2361 = vsel %vm386, %v2342, %v2344
    %v2362 = vsel %vm386, %v2346, %v2348
    %v2363 = vsel %vm386, %v2350, %v2352
    %v2364 = vsel %vm386, %v2354, %v2356
    %2373 = vrot.lane.b32.xlu0 %v2197, 124
    %v2374 = vpop.permute.xlu0 %2373
    %2375 = vrot.lane.b32.xlu0 %v2205, 124
    %v2376 = vpop.permute.xlu0 %2375
    %2377 = vrot.lane.b32.xlu0 %v2198, 124
    %v2378 = vpop.permute.xlu0 %2377
    %2379 = vrot.lane.b32.xlu0 %v2206, 124
    %v2380 = vpop.permute.xlu0 %2379
    %2381 = vrot.lane.b32.xlu0 %v2199, 124
    %v2382 = vpop.permute.xlu0 %2381
    %2383 = vrot.lane.b32.xlu0 %v2207, 124
    %v2384 = vpop.permute.xlu0 %2383
    %2385 = vrot.lane.b32.xlu0 %v2200, 124
    %v2386 = vpop.permute.xlu0 %2385
    %2387 = vrot.lane.b32.xlu0 %v2208, 124
    %v2388 = vpop.permute.xlu0 %2387
    %2389 = vrot.lane.b32.xlu0 %v2201, 124
    %v2390 = vpop.permute.xlu0 %2389
    %2391 = vrot.lane.b32.xlu0 %v2209, 124
    %v2392 = vpop.permute.xlu0 %2391
    %2393 = vrot.lane.b32.xlu0 %v2202, 124
    %v2394 = vpop.permute.xlu0 %2393
    %2395 = vrot.lane.b32.xlu0 %v2210, 124
    %v2396 = vpop.permute.xlu0 %2395
    %2397 = vrot.lane.b32.xlu0 %v2203, 124
    %v2398 = vpop.permute.xlu0 %2397
    %2399 = vrot.lane.b32.xlu0 %v2211, 124
    %v2400 = vpop.permute.xlu0 %2399
    %2401 = vrot.lane.b32.xlu0 %v2204, 124
    %v2402 = vpop.permute.xlu0 %2401
    %2403 = vrot.lane.b32.xlu0 %v2212, 124
    %v2404 = vpop.permute.xlu0 %2403
    %v2405 = vsel %vm433, %v2374, %v2376
    %v2406 = vsel %vm433, %v2378, %v2380
    %v2407 = vsel %vm433, %v2382, %v2384
    %v2408 = vsel %vm433, %v2386, %v2388
    %v2409 = vsel %vm433, %v2390, %v2392
    %v2410 = vsel %vm433, %v2394, %v2396
    %v2411 = vsel %vm433, %v2398, %v2400
    %v2412 = vsel %vm433, %v2402, %v2404
    %2421 = vrot.lane.b32.xlu0 %v2197, 123
    %v2422 = vpop.permute.xlu0 %2421
    %2423 = vrot.lane.b32.xlu0 %v2205, 123
    %v2424 = vpop.permute.xlu0 %2423
    %2425 = vrot.lane.b32.xlu0 %v2198, 123
    %v2426 = vpop.permute.xlu0 %2425
    %2427 = vrot.lane.b32.xlu0 %v2206, 123
    %v2428 = vpop.permute.xlu0 %2427
    %2429 = vrot.lane.b32.xlu0 %v2199, 123
    %v2430 = vpop.permute.xlu0 %2429
    %2431 = vrot.lane.b32.xlu0 %v2207, 123
    %v2432 = vpop.permute.xlu0 %2431
    %2433 = vrot.lane.b32.xlu0 %v2200, 123
    %v2434 = vpop.permute.xlu0 %2433
    %2435 = vrot.lane.b32.xlu0 %v2208, 123
    %v2436 = vpop.permute.xlu0 %2435
    %2437 = vrot.lane.b32.xlu0 %v2201, 123
    %v2438 = vpop.permute.xlu0 %2437
    %2439 = vrot.lane.b32.xlu0 %v2209, 123
    %v2440 = vpop.permute.xlu0 %2439
    %2441 = vrot.lane.b32.xlu0 %v2202, 123
    %v2442 = vpop.permute.xlu0 %2441
    %2443 = vrot.lane.b32.xlu0 %v2210, 123
    %v2444 = vpop.permute.xlu0 %2443
    %2445 = vrot.lane.b32.xlu0 %v2203, 123
    %v2446 = vpop.permute.xlu0 %2445
    %2447 = vrot.lane.b32.xlu0 %v2211, 123
    %v2448 = vpop.permute.xlu0 %2447
    %2449 = vrot.lane.b32.xlu0 %v2204, 123
    %v2450 = vpop.permute.xlu0 %2449
    %2451 = vrot.lane.b32.xlu0 %v2212, 123
    %v2452 = vpop.permute.xlu0 %2451
    %v2453 = vsel %vm480, %v2422, %v2424
    %v2454 = vsel %vm480, %v2426, %v2428
    %v2455 = vsel %vm480, %v2430, %v2432
    %v2456 = vsel %vm480, %v2434, %v2436
    %v2457 = vsel %vm480, %v2438, %v2440
    %v2458 = vsel %vm480, %v2442, %v2444
    %v2459 = vsel %vm480, %v2446, %v2448
    %v2460 = vsel %vm480, %v2450, %v2452
    %2469 = vrot.lane.b32.xlu0 %v2197, 122
    %v2470 = vpop.permute.xlu0 %2469
    %2471 = vrot.lane.b32.xlu0 %v2205, 122
    %v2472 = vpop.permute.xlu0 %2471
    %2473 = vrot.lane.b32.xlu0 %v2198, 122
    %v2474 = vpop.permute.xlu0 %2473
    %2475 = vrot.lane.b32.xlu0 %v2206, 122
    %v2476 = vpop.permute.xlu0 %2475
    %2477 = vrot.lane.b32.xlu0 %v2199, 122
    %v2478 = vpop.permute.xlu0 %2477
    %2479 = vrot.lane.b32.xlu0 %v2207, 122
    %v2480 = vpop.permute.xlu0 %2479
    %2481 = vrot.lane.b32.xlu0 %v2200, 122
    %v2482 = vpop.permute.xlu0 %2481
    %2483 = vrot.lane.b32.xlu0 %v2208, 122
    %v2484 = vpop.permute.xlu0 %2483
    %2485 = vrot.lane.b32.xlu0 %v2201, 122
    %v2486 = vpop.permute.xlu0 %2485
    %2487 = vrot.lane.b32.xlu0 %v2209, 122
    %v2488 = vpop.permute.xlu0 %2487
    %2489 = vrot.lane.b32.xlu0 %v2202, 122
    %v2490 = vpop.permute.xlu0 %2489
    %2491 = vrot.lane.b32.xlu0 %v2210, 122
    %v2492 = vpop.permute.xlu0 %2491
    %2493 = vrot.lane.b32.xlu0 %v2203, 122
    %v2494 = vpop.permute.xlu0 %2493
    %2495 = vrot.lane.b32.xlu0 %v2211, 122
    %v2496 = vpop.permute.xlu0 %2495
    %2497 = vrot.lane.b32.xlu0 %v2204, 122
    %v2498 = vpop.permute.xlu0 %2497
    %2499 = vrot.lane.b32.xlu0 %v2212, 122
    %v2500 = vpop.permute.xlu0 %2499
    %v2501 = vsel %vm527, %v2470, %v2472
    %v2502 = vsel %vm527, %v2474, %v2476
    %v2503 = vsel %vm527, %v2478, %v2480
    %v2504 = vsel %vm527, %v2482, %v2484
    %v2505 = vsel %vm527, %v2486, %v2488
    %v2506 = vsel %vm527, %v2490, %v2492
    %v2507 = vsel %vm527, %v2494, %v2496
    %v2508 = vsel %vm527, %v2498, %v2500
    %2517 = vrot.lane.b32.xlu0 %v2197, 121
    %v2518 = vpop.permute.xlu0 %2517
    %2519 = vrot.lane.b32.xlu0 %v2205, 121
    %v2520 = vpop.permute.xlu0 %2519
    %2521 = vrot.lane.b32.xlu0 %v2198, 121
    %v2522 = vpop.permute.xlu0 %2521
    %2523 = vrot.lane.b32.xlu0 %v2206, 121
    %v2524 = vpop.permute.xlu0 %2523
    %2525 = vrot.lane.b32.xlu0 %v2199, 121
    %v2526 = vpop.permute.xlu0 %2525
    %2527 = vrot.lane.b32.xlu0 %v2207, 121
    %v2528 = vpop.permute.xlu0 %2527
    %2529 = vrot.lane.b32.xlu0 %v2200, 121
    %v2530 = vpop.permute.xlu0 %2529
    %2531 = vrot.lane.b32.xlu0 %v2208, 121
    %v2532 = vpop.permute.xlu0 %2531
    %2533 = vrot.lane.b32.xlu0 %v2201, 121
    %v2534 = vpop.permute.xlu0 %2533
    %2535 = vrot.lane.b32.xlu0 %v2209, 121
    %v2536 = vpop.permute.xlu0 %2535
    %2537 = vrot.lane.b32.xlu0 %v2202, 121
    %v2538 = vpop.permute.xlu0 %2537
    %2539 = vrot.lane.b32.xlu0 %v2210, 121
    %v2540 = vpop.permute.xlu0 %2539
    %2541 = vrot.lane.b32.xlu0 %v2203, 121
    %v2542 = vpop.permute.xlu0 %2541
    %2543 = vrot.lane.b32.xlu0 %v2211, 121
    %v2544 = vpop.permute.xlu0 %2543
    %2545 = vrot.lane.b32.xlu0 %v2204, 121
    %v2546 = vpop.permute.xlu0 %2545
    %2547 = vrot.lane.b32.xlu0 %v2212, 121
    %v2548 = vpop.permute.xlu0 %2547
    %v2549 = vsel %vm574, %v2518, %v2520
    %v2550 = vsel %vm574, %v2522, %v2524
    %v2551 = vsel %vm574, %v2526, %v2528
    %v2552 = vsel %vm574, %v2530, %v2532
    %v2553 = vsel %vm574, %v2534, %v2536
    %v2554 = vsel %vm574, %v2538, %v2540
    %v2555 = vsel %vm574, %v2542, %v2544
    %v2556 = vsel %vm574, %v2546, %v2548
    %2565 = vrot.lane.b32.xlu0 %v2197, 120
    %v2566 = vpop.permute.xlu0 %2565
    %2567 = vrot.lane.b32.xlu0 %v2205, 120
    %v2568 = vpop.permute.xlu0 %2567
    %2569 = vrot.lane.b32.xlu0 %v2198, 120
    %v2570 = vpop.permute.xlu0 %2569
    %2571 = vrot.lane.b32.xlu0 %v2206, 120
    %v2572 = vpop.permute.xlu0 %2571
    %2573 = vrot.lane.b32.xlu0 %v2199, 120
    %v2574 = vpop.permute.xlu0 %2573
    %2575 = vrot.lane.b32.xlu0 %v2207, 120
    %v2576 = vpop.permute.xlu0 %2575
    %2577 = vrot.lane.b32.xlu0 %v2200, 120
    %v2578 = vpop.permute.xlu0 %2577
    %2579 = vrot.lane.b32.xlu0 %v2208, 120
    %v2580 = vpop.permute.xlu0 %2579
    %2581 = vrot.lane.b32.xlu0 %v2201, 120
    %v2582 = vpop.permute.xlu0 %2581
    %2583 = vrot.lane.b32.xlu0 %v2209, 120
    %v2584 = vpop.permute.xlu0 %2583
    %2585 = vrot.lane.b32.xlu0 %v2202, 120
    %v2586 = vpop.permute.xlu0 %2585
    %2587 = vrot.lane.b32.xlu0 %v2210, 120
    %v2588 = vpop.permute.xlu0 %2587
    %2589 = vrot.lane.b32.xlu0 %v2203, 120
    %v2590 = vpop.permute.xlu0 %2589
    %2591 = vrot.lane.b32.xlu0 %v2211, 120
    %v2592 = vpop.permute.xlu0 %2591
    %2593 = vrot.lane.b32.xlu0 %v2204, 120
    %v2594 = vpop.permute.xlu0 %2593
    %2595 = vrot.lane.b32.xlu0 %v2212, 120
    %v2596 = vpop.permute.xlu0 %2595
    %v2597 = vsel %vm621, %v2566, %v2568
    %v2598 = vsel %vm621, %v2570, %v2572
    %v2599 = vsel %vm621, %v2574, %v2576
    %v2600 = vsel %vm621, %v2578, %v2580
    %v2601 = vsel %vm621, %v2582, %v2584
    %v2602 = vsel %vm621, %v2586, %v2588
    %v2603 = vsel %vm621, %v2590, %v2592
    %v2604 = vsel %vm621, %v2594, %v2596
    %v2613 = vld [vmem:[%s2180] sm:$0xff]
    %v2614 = vld [vmem:[%s2180 + $0x10] sm:$0xff]
    %v2615 = vld [vmem:[%s2180 + $0x20] sm:$0xff]
    %v2616 = vld [vmem:[%s2180 + $0x30] sm:$0xff]
    %v2617 = vld [vmem:[%s2180 + $0x40] sm:$0xff]
    %v2618 = vld [vmem:[%s2180 + $0x50] sm:$0xff]
    %v2619 = vld [vmem:[%s2180 + $0x60] sm:$0xff]
    %v2620 = vld [vmem:[%s2180 + $0x70] sm:$0xff]
    %v2621 = vld [vmem:[%s2180 + $0x8] sm:$0xff]
    %v2622 = vld [vmem:[%s2180 + $0x18] sm:$0xff]
    %v2623 = vld [vmem:[%s2180 + $0x28] sm:$0xff]
    %v2624 = vld [vmem:[%s2180 + $0x38] sm:$0xff]
    %v2625 = vld [vmem:[%s2180 + $0x48] sm:$0xff]
    %v2626 = vld [vmem:[%s2180 + $0x58] sm:$0xff]
    %v2627 = vld [vmem:[%s2180 + $0x68] sm:$0xff]
    %v2628 = vld [vmem:[%s2180 + $0x78] sm:$0xff]
    %2645 = vrot.lane.b32.xlu0 %v2613, 127
    %v2646 = vpop.permute.xlu0 %2645
    %2647 = vrot.lane.b32.xlu0 %v2621, 127
    %v2648 = vpop.permute.xlu0 %2647
    %2649 = vrot.lane.b32.xlu0 %v2614, 127
    %v2650 = vpop.permute.xlu0 %2649
    %2651 = vrot.lane.b32.xlu0 %v2622, 127
    %v2652 = vpop.permute.xlu0 %2651
    %2653 = vrot.lane.b32.xlu0 %v2615, 127
    %v2654 = vpop.permute.xlu0 %2653
    %2655 = vrot.lane.b32.xlu0 %v2623, 127
    %v2656 = vpop.permute.xlu0 %2655
    %2657 = vrot.lane.b32.xlu0 %v2616, 127
    %v2658 = vpop.permute.xlu0 %2657
    %2659 = vrot.lane.b32.xlu0 %v2624, 127
    %v2660 = vpop.permute.xlu0 %2659
    %2661 = vrot.lane.b32.xlu0 %v2617, 127
    %v2662 = vpop.permute.xlu0 %2661
    %2663 = vrot.lane.b32.xlu0 %v2625, 127
    %v2664 = vpop.permute.xlu0 %2663
    %2665 = vrot.lane.b32.xlu0 %v2618, 127
    %v2666 = vpop.permute.xlu0 %2665
    %2667 = vrot.lane.b32.xlu0 %v2626, 127
    %v2668 = vpop.permute.xlu0 %2667
    %2669 = vrot.lane.b32.xlu0 %v2619, 127
    %v2670 = vpop.permute.xlu0 %2669
    %2671 = vrot.lane.b32.xlu0 %v2627, 127
    %v2672 = vpop.permute.xlu0 %2671
    %2673 = vrot.lane.b32.xlu0 %v2620, 127
    %v2674 = vpop.permute.xlu0 %2673
    %2675 = vrot.lane.b32.xlu0 %v2628, 127
    %v2676 = vpop.permute.xlu0 %2675
    %v2677 = vsel %vm289, %v2646, %v2648
    %v2678 = vsel %vm289, %v2650, %v2652
    %v2679 = vsel %vm289, %v2654, %v2656
    %v2680 = vsel %vm289, %v2658, %v2660
    %v2681 = vsel %vm289, %v2662, %v2664
    %v2682 = vsel %vm289, %v2666, %v2668
    %v2683 = vsel %vm289, %v2670, %v2672
    %v2684 = vsel %vm289, %v2674, %v2676
    %2693 = vrot.lane.b32.xlu0 %v2613, 126
    %v2694 = vpop.permute.xlu0 %2693
    %2695 = vrot.lane.b32.xlu0 %v2621, 126
    %v2696 = vpop.permute.xlu0 %2695
    %2697 = vrot.lane.b32.xlu0 %v2614, 126
    %v2698 = vpop.permute.xlu0 %2697
    %2699 = vrot.lane.b32.xlu0 %v2622, 126
    %v2700 = vpop.permute.xlu0 %2699
    %2701 = vrot.lane.b32.xlu0 %v2615, 126
    %v2702 = vpop.permute.xlu0 %2701
    %2703 = vrot.lane.b32.xlu0 %v2623, 126
    %v2704 = vpop.permute.xlu0 %2703
    %2705 = vrot.lane.b32.xlu0 %v2616, 126
    %v2706 = vpop.permute.xlu0 %2705
    %2707 = vrot.lane.b32.xlu0 %v2624, 126
    %v2708 = vpop.permute.xlu0 %2707
    %2709 = vrot.lane.b32.xlu0 %v2617, 126
    %v2710 = vpop.permute.xlu0 %2709
    %2711 = vrot.lane.b32.xlu0 %v2625, 126
    %v2712 = vpop.permute.xlu0 %2711
    %2713 = vrot.lane.b32.xlu0 %v2618, 126
    %v2714 = vpop.permute.xlu0 %2713
    %2715 = vrot.lane.b32.xlu0 %v2626, 126
    %v2716 = vpop.permute.xlu0 %2715
    %2717 = vrot.lane.b32.xlu0 %v2619, 126
    %v2718 = vpop.permute.xlu0 %2717
    %2719 = vrot.lane.b32.xlu0 %v2627, 126
    %v2720 = vpop.permute.xlu0 %2719
    %2721 = vrot.lane.b32.xlu0 %v2620, 126
    %v2722 = vpop.permute.xlu0 %2721
    %2723 = vrot.lane.b32.xlu0 %v2628, 126
    %v2724 = vpop.permute.xlu0 %2723
    %v2725 = vsel %vm339, %v2694, %v2696
    %v2726 = vsel %vm339, %v2698, %v2700
    %v2727 = vsel %vm339, %v2702, %v2704
    %v2728 = vsel %vm339, %v2706, %v2708
    %v2729 = vsel %vm339, %v2710, %v2712
    %v2730 = vsel %vm339, %v2714, %v2716
    %v2731 = vsel %vm339, %v2718, %v2720
    %v2732 = vsel %vm339, %v2722, %v2724
    %2741 = vrot.lane.b32.xlu0 %v2613, 125
    %v2742 = vpop.permute.xlu0 %2741
    %2743 = vrot.lane.b32.xlu0 %v2621, 125
    %v2744 = vpop.permute.xlu0 %2743
    %2745 = vrot.lane.b32.xlu0 %v2614, 125
    %v2746 = vpop.permute.xlu0 %2745
    %2747 = vrot.lane.b32.xlu0 %v2622, 125
    %v2748 = vpop.permute.xlu0 %2747
    %2749 = vrot.lane.b32.xlu0 %v2615, 125
    %v2750 = vpop.permute.xlu0 %2749
    %2751 = vrot.lane.b32.xlu0 %v2623, 125
    %v2752 = vpop.permute.xlu0 %2751
    %2753 = vrot.lane.b32.xlu0 %v2616, 125
    %v2754 = vpop.permute.xlu0 %2753
    %2755 = vrot.lane.b32.xlu0 %v2624, 125
    %v2756 = vpop.permute.xlu0 %2755
    %2757 = vrot.lane.b32.xlu0 %v2617, 125
    %v2758 = vpop.permute.xlu0 %2757
    %2759 = vrot.lane.b32.xlu0 %v2625, 125
    %v2760 = vpop.permute.xlu0 %2759
    %2761 = vrot.lane.b32.xlu0 %v2618, 125
    %v2762 = vpop.permute.xlu0 %2761
    %2763 = vrot.lane.b32.xlu0 %v2626, 125
    %v2764 = vpop.permute.xlu0 %2763
    %2765 = vrot.lane.b32.xlu0 %v2619, 125
    %v2766 = vpop.permute.xlu0 %2765
    %2767 = vrot.lane.b32.xlu0 %v2627, 125
    %v2768 = vpop.permute.xlu0 %2767
    %2769 = vrot.lane.b32.xlu0 %v2620, 125
    %v2770 = vpop.permute.xlu0 %2769
    %2771 = vrot.lane.b32.xlu0 %v2628, 125
    %v2772 = vpop.permute.xlu0 %2771
    %v2773 = vsel %vm386, %v2742, %v2744
    %v2774 = vsel %vm386, %v2746, %v2748
    %v2775 = vsel %vm386, %v2750, %v2752
    %v2776 = vsel %vm386, %v2754, %v2756
    %v2777 = vsel %vm386, %v2758, %v2760
    %v2778 = vsel %vm386, %v2762, %v2764
    %v2779 = vsel %vm386, %v2766, %v2768
    %v2780 = vsel %vm386, %v2770, %v2772
    %2789 = vrot.lane.b32.xlu0 %v2613, 124
    %v2790 = vpop.permute.xlu0 %2789
    %2791 = vrot.lane.b32.xlu0 %v2621, 124
    %v2792 = vpop.permute.xlu0 %2791
    %2793 = vrot.lane.b32.xlu0 %v2614, 124
    %v2794 = vpop.permute.xlu0 %2793
    %2795 = vrot.lane.b32.xlu0 %v2622, 124
    %v2796 = vpop.permute.xlu0 %2795
    %2797 = vrot.lane.b32.xlu0 %v2615, 124
    %v2798 = vpop.permute.xlu0 %2797
    %2799 = vrot.lane.b32.xlu0 %v2623, 124
    %v2800 = vpop.permute.xlu0 %2799
    %2801 = vrot.lane.b32.xlu0 %v2616, 124
    %v2802 = vpop.permute.xlu0 %2801
    %2803 = vrot.lane.b32.xlu0 %v2624, 124
    %v2804 = vpop.permute.xlu0 %2803
    %2805 = vrot.lane.b32.xlu0 %v2617, 124
    %v2806 = vpop.permute.xlu0 %2805
    %2807 = vrot.lane.b32.xlu0 %v2625, 124
    %v2808 = vpop.permute.xlu0 %2807
    %2809 = vrot.lane.b32.xlu0 %v2618, 124
    %v2810 = vpop.permute.xlu0 %2809
    %2811 = vrot.lane.b32.xlu0 %v2626, 124
    %v2812 = vpop.permute.xlu0 %2811
    %2813 = vrot.lane.b32.xlu0 %v2619, 124
    %v2814 = vpop.permute.xlu0 %2813
    %2815 = vrot.lane.b32.xlu0 %v2627, 124
    %v2816 = vpop.permute.xlu0 %2815
    %2817 = vrot.lane.b32.xlu0 %v2620, 124
    %v2818 = vpop.permute.xlu0 %2817
    %2819 = vrot.lane.b32.xlu0 %v2628, 124
    %v2820 = vpop.permute.xlu0 %2819
    %v2821 = vsel %vm433, %v2790, %v2792
    %v2822 = vsel %vm433, %v2794, %v2796
    %v2823 = vsel %vm433, %v2798, %v2800
    %v2824 = vsel %vm433, %v2802, %v2804
    %v2825 = vsel %vm433, %v2806, %v2808
    %v2826 = vsel %vm433, %v2810, %v2812
    %v2827 = vsel %vm433, %v2814, %v2816
    %v2828 = vsel %vm433, %v2818, %v2820
    %2837 = vrot.lane.b32.xlu0 %v2613, 123
    %v2838 = vpop.permute.xlu0 %2837
    %2839 = vrot.lane.b32.xlu0 %v2621, 123
    %v2840 = vpop.permute.xlu0 %2839
    %2841 = vrot.lane.b32.xlu0 %v2614, 123
    %v2842 = vpop.permute.xlu0 %2841
    %2843 = vrot.lane.b32.xlu0 %v2622, 123
    %v2844 = vpop.permute.xlu0 %2843
    %2845 = vrot.lane.b32.xlu0 %v2615, 123
    %v2846 = vpop.permute.xlu0 %2845
    %2847 = vrot.lane.b32.xlu0 %v2623, 123
    %v2848 = vpop.permute.xlu0 %2847
    %2849 = vrot.lane.b32.xlu0 %v2616, 123
    %v2850 = vpop.permute.xlu0 %2849
    %2851 = vrot.lane.b32.xlu0 %v2624, 123
    %v2852 = vpop.permute.xlu0 %2851
    %2853 = vrot.lane.b32.xlu0 %v2617, 123
    %v2854 = vpop.permute.xlu0 %2853
    %2855 = vrot.lane.b32.xlu0 %v2625, 123
    %v2856 = vpop.permute.xlu0 %2855
    %2857 = vrot.lane.b32.xlu0 %v2618, 123
    %v2858 = vpop.permute.xlu0 %2857
    %2859 = vrot.lane.b32.xlu0 %v2626, 123
    %v2860 = vpop.permute.xlu0 %2859
    %2861 = vrot.lane.b32.xlu0 %v2619, 123
    %v2862 = vpop.permute.xlu0 %2861
    %2863 = vrot.lane.b32.xlu0 %v2627, 123
    %v2864 = vpop.permute.xlu0 %2863
    %2865 = vrot.lane.b32.xlu0 %v2620, 123
    %v2866 = vpop.permute.xlu0 %2865
    %2867 = vrot.lane.b32.xlu0 %v2628, 123
    %v2868 = vpop.permute.xlu0 %2867
    %v2869 = vsel %vm480, %v2838, %v2840
    %v2870 = vsel %vm480, %v2842, %v2844
    %v2871 = vsel %vm480, %v2846, %v2848
    %v2872 = vsel %vm480, %v2850, %v2852
    %v2873 = vsel %vm480, %v2854, %v2856
    %v2874 = vsel %vm480, %v2858, %v2860
    %v2875 = vsel %vm480, %v2862, %v2864
    %v2876 = vsel %vm480, %v2866, %v2868
    %2885 = vrot.lane.b32.xlu0 %v2613, 122
    %v2886 = vpop.permute.xlu0 %2885
    %2887 = vrot.lane.b32.xlu0 %v2621, 122
    %v2888 = vpop.permute.xlu0 %2887
    %2889 = vrot.lane.b32.xlu0 %v2614, 122
    %v2890 = vpop.permute.xlu0 %2889
    %2891 = vrot.lane.b32.xlu0 %v2622, 122
    %v2892 = vpop.permute.xlu0 %2891
    %2893 = vrot.lane.b32.xlu0 %v2615, 122
    %v2894 = vpop.permute.xlu0 %2893
    %2895 = vrot.lane.b32.xlu0 %v2623, 122
    %v2896 = vpop.permute.xlu0 %2895
    %2897 = vrot.lane.b32.xlu0 %v2616, 122
    %v2898 = vpop.permute.xlu0 %2897
    %2899 = vrot.lane.b32.xlu0 %v2624, 122
    %v2900 = vpop.permute.xlu0 %2899
    %2901 = vrot.lane.b32.xlu0 %v2617, 122
    %v2902 = vpop.permute.xlu0 %2901
    %2903 = vrot.lane.b32.xlu0 %v2625, 122
    %v2904 = vpop.permute.xlu0 %2903
    %2905 = vrot.lane.b32.xlu0 %v2618, 122
    %v2906 = vpop.permute.xlu0 %2905
    %2907 = vrot.lane.b32.xlu0 %v2626, 122
    %v2908 = vpop.permute.xlu0 %2907
    %2909 = vrot.lane.b32.xlu0 %v2619, 122
    %v2910 = vpop.permute.xlu0 %2909
    %2911 = vrot.lane.b32.xlu0 %v2627, 122
    %v2912 = vpop.permute.xlu0 %2911
    %2913 = vrot.lane.b32.xlu0 %v2620, 122
    %v2914 = vpop.permute.xlu0 %2913
    %2915 = vrot.lane.b32.xlu0 %v2628, 122
    %v2916 = vpop.permute.xlu0 %2915
    %v2917 = vsel %vm527, %v2886, %v2888
    %v2918 = vsel %vm527, %v2890, %v2892
    %v2919 = vsel %vm527, %v2894, %v2896
    %v2920 = vsel %vm527, %v2898, %v2900
    %v2921 = vsel %vm527, %v2902, %v2904
    %v2922 = vsel %vm527, %v2906, %v2908
    %v2923 = vsel %vm527, %v2910, %v2912
    %v2924 = vsel %vm527, %v2914, %v2916
    %2933 = vrot.lane.b32.xlu0 %v2613, 121
    %v2934 = vpop.permute.xlu0 %2933
    %2935 = vrot.lane.b32.xlu0 %v2621, 121
    %v2936 = vpop.permute.xlu0 %2935
    %2937 = vrot.lane.b32.xlu0 %v2614, 121
    %v2938 = vpop.permute.xlu0 %2937
    %2939 = vrot.lane.b32.xlu0 %v2622, 121
    %v2940 = vpop.permute.xlu0 %2939
    %2941 = vrot.lane.b32.xlu0 %v2615, 121
    %v2942 = vpop.permute.xlu0 %2941
    %2943 = vrot.lane.b32.xlu0 %v2623, 121
    %v2944 = vpop.permute.xlu0 %2943
    %2945 = vrot.lane.b32.xlu0 %v2616, 121
    %v2946 = vpop.permute.xlu0 %2945
    %2947 = vrot.lane.b32.xlu0 %v2624, 121
    %v2948 = vpop.permute.xlu0 %2947
    %2949 = vrot.lane.b32.xlu0 %v2617, 121
    %v2950 = vpop.permute.xlu0 %2949
    %2951 = vrot.lane.b32.xlu0 %v2625, 121
    %v2952 = vpop.permute.xlu0 %2951
    %2953 = vrot.lane.b32.xlu0 %v2618, 121
    %v2954 = vpop.permute.xlu0 %2953
    %2955 = vrot.lane.b32.xlu0 %v2626, 121
    %v2956 = vpop.permute.xlu0 %2955
    %2957 = vrot.lane.b32.xlu0 %v2619, 121
    %v2958 = vpop.permute.xlu0 %2957
    %2959 = vrot.lane.b32.xlu0 %v2627, 121
    %v2960 = vpop.permute.xlu0 %2959
    %2961 = vrot.lane.b32.xlu0 %v2620, 121
    %v2962 = vpop.permute.xlu0 %2961
    %2963 = vrot.lane.b32.xlu0 %v2628, 121
    %v2964 = vpop.permute.xlu0 %2963
    %v2965 = vsel %vm574, %v2934, %v2936
    %v2966 = vsel %vm574, %v2938, %v2940
    %v2967 = vsel %vm574, %v2942, %v2944
    %v2968 = vsel %vm574, %v2946, %v2948
    %v2969 = vsel %vm574, %v2950, %v2952
    %v2970 = vsel %vm574, %v2954, %v2956
    %v2971 = vsel %vm574, %v2958, %v2960
    %v2972 = vsel %vm574, %v2962, %v2964
    %2981 = vrot.lane.b32.xlu0 %v2613, 120
    %v2982 = vpop.permute.xlu0 %2981
    %2983 = vrot.lane.b32.xlu0 %v2621, 120
    %v2984 = vpop.permute.xlu0 %2983
    %2985 = vrot.lane.b32.xlu0 %v2614, 120
    %v2986 = vpop.permute.xlu0 %2985
    %2987 = vrot.lane.b32.xlu0 %v2622, 120
    %v2988 = vpop.permute.xlu0 %2987
    %2989 = vrot.lane.b32.xlu0 %v2615, 120
    %v2990 = vpop.permute.xlu0 %2989
    %2991 = vrot.lane.b32.xlu0 %v2623, 120
    %v2992 = vpop.permute.xlu0 %2991
    %2993 = vrot.lane.b32.xlu0 %v2616, 120
    %v2994 = vpop.permute.xlu0 %2993
    %2995 = vrot.lane.b32.xlu0 %v2624, 120
    %v2996 = vpop.permute.xlu0 %2995
    %2997 = vrot.lane.b32.xlu0 %v2617, 120
    %v2998 = vpop.permute.xlu0 %2997
    %2999 = vrot.lane.b32.xlu0 %v2625, 120
    %v3000 = vpop.permute.xlu0 %2999
    %3001 = vrot.lane.b32.xlu0 %v2618, 120
    %v3002 = vpop.permute.xlu0 %3001
    %3003 = vrot.lane.b32.xlu0 %v2626, 120
    %v3004 = vpop.permute.xlu0 %3003
    %3005 = vrot.lane.b32.xlu0 %v2619, 120
    %v3006 = vpop.permute.xlu0 %3005
    %3007 = vrot.lane.b32.xlu0 %v2627, 120
    %v3008 = vpop.permute.xlu0 %3007
    %3009 = vrot.lane.b32.xlu0 %v2620, 120
    %v3010 = vpop.permute.xlu0 %3009
    %3011 = vrot.lane.b32.xlu0 %v2628, 120
    %v3012 = vpop.permute.xlu0 %3011
    %v3013 = vsel %vm621, %v2982, %v2984
    %v3014 = vsel %vm621, %v2986, %v2988
    %v3015 = vsel %vm621, %v2990, %v2992
    %v3016 = vsel %vm621, %v2994, %v2996
    %v3017 = vsel %vm621, %v2998, %v3000
    %v3018 = vsel %vm621, %v3002, %v3004
    %v3019 = vsel %vm621, %v3006, %v3008
    %v3020 = vsel %vm621, %v3010, %v3012
    %v3029 = vld [vmem:[#allocation11] sm:$0xff]
    %v3030 = vld [vmem:[#allocation11 + $0x8] sm:$0xff]
    %v3031 = vld [vmem:[#allocation11 + $0x10] sm:$0xff]
    %v3032 = vld [vmem:[#allocation11 + $0x18] sm:$0xff]
    %v3033 = vld [vmem:[#allocation11 + $0x20] sm:$0xff]
    %v3034 = vld [vmem:[#allocation11 + $0x28] sm:$0xff]
    %v3035 = vld [vmem:[#allocation11 + $0x30] sm:$0xff]
    %v3036 = vld [vmem:[#allocation11 + $0x38] sm:$0xff]
    %v3037 = vld [vmem:[#allocation11 + $0x40] sm:$0xff]
    %v3038 = vld [vmem:[#allocation11 + $0x48] sm:$0xff]
    %v3039 = vld [vmem:[#allocation11 + $0x50] sm:$0xff]
    %v3040 = vld [vmem:[#allocation11 + $0x58] sm:$0xff]
    %v3041 = vld [vmem:[#allocation11 + $0x60] sm:$0xff]
    %v3042 = vld [vmem:[#allocation11 + $0x68] sm:$0xff]
    %v3043 = vld [vmem:[#allocation11 + $0x70] sm:$0xff]
    %v3044 = vld [vmem:[#allocation11 + $0x78] sm:$0xff]
    %v3045 = vld [vmem:[#allocation11 + $0x80] sm:$0xff]
    %v3046 = vld [vmem:[#allocation11 + $0x88] sm:$0xff]
    %v3047 = vld [vmem:[#allocation11 + $0x90] sm:$0xff]
    %v3048 = vld [vmem:[#allocation11 + $0x98] sm:$0xff]
    %v3049 = vld [vmem:[#allocation11 + $0xa0] sm:$0xff]
    %v3050 = vld [vmem:[#allocation11 + $0xa8] sm:$0xff]
    %v3051 = vld [vmem:[#allocation11 + $0xb0] sm:$0xff]
    %v3052 = vld [vmem:[#allocation11 + $0xb8] sm:$0xff]
    %v3053 = vld [vmem:[#allocation11 + $0xc0] sm:$0xff]
    %v3054 = vld [vmem:[#allocation11 + $0xc8] sm:$0xff]
    %v3055 = vld [vmem:[#allocation11 + $0xd0] sm:$0xff]
    %v3056 = vld [vmem:[#allocation11 + $0xd8] sm:$0xff]
    %v3057 = vld [vmem:[#allocation11 + $0xe0] sm:$0xff]
    %v3058 = vld [vmem:[#allocation11 + $0xe8] sm:$0xff]
    %v3059 = vld [vmem:[#allocation11 + $0xf0] sm:$0xff]
    %v3060 = vld [vmem:[#allocation11 + $0xf8] sm:$0xff]
    %v3061 = vld [vmem:[#allocation11 + $0x100] sm:$0xff]
    %v3062 = vld [vmem:[#allocation11 + $0x108] sm:$0xff]
    %v3063 = vld [vmem:[#allocation11 + $0x110] sm:$0xff]
    %v3064 = vld [vmem:[#allocation11 + $0x118] sm:$0xff]
    %v3065 = vld [vmem:[#allocation11 + $0x120] sm:$0xff]
    %v3066 = vld [vmem:[#allocation11 + $0x128] sm:$0xff]
    %v3067 = vld [vmem:[#allocation11 + $0x130] sm:$0xff]
    %v3068 = vld [vmem:[#allocation11 + $0x138] sm:$0xff]
    %v3069 = vld [vmem:[%s10] sm:$0xff]
    %v3070 = vld [vmem:[%s10 + $0x8] sm:$0xff]
    %v3071 = vld [vmem:[%s10 + $0x10] sm:$0xff]
    %v3072 = vld [vmem:[%s10 + $0x18] sm:$0xff]
    %v3073 = vld [vmem:[%s10 + $0x20] sm:$0xff]
    %v3074 = vld [vmem:[%s10 + $0x28] sm:$0xff]
    %v3075 = vld [vmem:[%s10 + $0x30] sm:$0xff]
    %v3076 = vld [vmem:[%s10 + $0x38] sm:$0xff]
    %3078 = vset.pattern.permute.xlu0 0
    %3079 = vperm.xlu0 %3078, %v3069
    %v3080 = vpop.permute.xlu0 %3079
    %3083 = vset.pattern.permute.xlu0 0
    %3084 = vperm.xlu0 %3083, %v3070
    %v3085 = vpop.permute.xlu0 %3084
    %3088 = vset.pattern.permute.xlu0 0
    %3089 = vperm.xlu0 %3088, %v3071
    %v3090 = vpop.permute.xlu0 %3089
    %3093 = vset.pattern.permute.xlu0 0
    %3094 = vperm.xlu0 %3093, %v3072
    %v3095 = vpop.permute.xlu0 %3094
    %3098 = vset.pattern.permute.xlu0 0
    %3099 = vperm.xlu0 %3098, %v3073
    %v3100 = vpop.permute.xlu0 %3099
    %3103 = vset.pattern.permute.xlu0 0
    %3104 = vperm.xlu0 %3103, %v3074
    %v3105 = vpop.permute.xlu0 %3104
    %3108 = vset.pattern.permute.xlu0 0
    %3109 = vperm.xlu0 %3108, %v3075
    %v3110 = vpop.permute.xlu0 %3109
    %3113 = vset.pattern.permute.xlu0 0
    %3114 = vperm.xlu0 %3113, %v3076
    %v3115 = vpop.permute.xlu0 %3114
    %vm3117 = vcmask 523264
    %v3119 = vsel %vm3117, %v3033, 0
    %v3122 = vsel %vm3117, %v3038, 0
    %v3125 = vsel %vm3117, %v3043, 0
    %v3128 = vsel %vm3117, %v3048, 0
    %v3131 = vsel %vm3117, %v3053, 0
    %v3134 = vsel %vm3117, %v3058, 0
    %v3137 = vsel %vm3117, %v3063, 0
    %v3140 = vsel %vm3117, %v3068, 0
    %3142 = vmatpush.msra.mxu0 %v2268
    %3143 = vmatpush.msra.mxu0 %v2267
    %3144 = vmatpush.msra.mxu0 %v2266
    %3145 = vmatpush.msra.mxu0 %v2265
    %3146 = vmatpush.msra.mxu0 %v2264
    %3147 = vmatpush.msra.mxu0 %v2263
    %3148 = vmatpush.msra.mxu0 %v2262
    %3149 = vmatpush.msra.mxu0 %v2261
    %3150 = vmatpush.msra.mxu0 %v2204
    %3151 = vmatpush.msra.mxu0 %v2203
    %3152 = vmatpush.msra.mxu0 %v2202
    %3153 = vmatpush.msra.mxu0 %v2201
    %3154 = vmatpush.msra.mxu0 %v2200
    %3155 = vmatpush.msra.mxu0 %v2199
    %3156 = vmatpush.msra.mxu0 %v2198
    %3157 = vmatpush.msra.mxu0 %v2197
    %3158 = vmatmul.f32.gmra.mxu0 %v3029
    %v3159 = vpop.f32.mrf.mxu0
    %v3160 = vadd.f32 %v3080, %v3159
    %3161 = vmatmul.f32.gmra.mxu0 %v3034
    %v3162 = vpop.f32.mrf.mxu0
    %v3163 = vadd.f32 %v3085, %v3162
    %3164 = vmatmul.f32.gmra.mxu0 %v3039
    %v3165 = vpop.f32.mrf.mxu0
    %v3166 = vadd.f32 %v3090, %v3165
    %3167 = vmatmul.f32.gmra.mxu0 %v3044
    %v3168 = vpop.f32.mrf.mxu0
    %v3169 = vadd.f32 %v3095, %v3168
    %3170 = vmatmul.f32.gmra.mxu0 %v3049
    %v3171 = vpop.f32.mrf.mxu0
    %v3172 = vadd.f32 %v3100, %v3171
    %3173 = vmatmul.f32.gmra.mxu0 %v3054
    %v3174 = vpop.f32.mrf.mxu0
    %v3175 = vadd.f32 %v3105, %v3174
    %3176 = vmatmul.f32.gmra.mxu0 %v3059
    %v3177 = vpop.f32.mrf.mxu0
    %v3178 = vadd.f32 %v3110, %v3177
    %3179 = vmatmul.f32.gmra.mxu0 %v3064
    %v3180 = vpop.f32.mrf.mxu0
    %v3181 = vadd.f32 %v3115, %v3180
    %3182 = vdwg.mxu0
    %3183 = vmatpush.msra.mxu0 %v2364
    %3184 = vmatpush.msra.mxu0 %v2363
    %3185 = vmatpush.msra.mxu0 %v2362
    %3186 = vmatpush.msra.mxu0 %v2361
    %3187 = vmatpush.msra.mxu0 %v2360
    %3188 = vmatpush.msra.mxu0 %v2359
    %3189 = vmatpush.msra.mxu0 %v2358
    %3190 = vmatpush.msra.mxu0 %v2357
    %3191 = vmatpush.msra.mxu0 %v2316
    %3192 = vmatpush.msra.mxu0 %v2315
    %3193 = vmatpush.msra.mxu0 %v2314
    %3194 = vmatpush.msra.mxu0 %v2313
    %3195 = vmatpush.msra.mxu0 %v2312
    %3196 = vmatpush.msra.mxu0 %v2311
    %3197 = vmatpush.msra.mxu0 %v2310
    %3198 = vmatpush.msra.mxu0 %v2309
    %3199 = vmatmul.f32.gmra.mxu0 %v3030
    %v3200 = vpop.f32.mrf.mxu0
    %v3201 = vadd.f32 %v3160, %v3200
    %3202 = vmatmul.f32.gmra.mxu0 %v3035
    %v3203 = vpop.f32.mrf.mxu0
    %v3204 = vadd.f32 %v3163, %v3203
    %3205 = vmatmul.f32.gmra.mxu0 %v3040
    %v3206 = vpop.f32.mrf.mxu0
    %v3207 = vadd.f32 %v3166, %v3206
    %3208 = vmatmul.f32.gmra.mxu0 %v3045
    %v3209 = vpop.f32.mrf.mxu0
    %v3210 = vadd.f32 %v3169, %v3209
    %3211 = vmatmul.f32.gmra.mxu0 %v3050
    %v3212 = vpop.f32.mrf.mxu0
    %v3213 = vadd.f32 %v3172, %v3212
    %3214 = vmatmul.f32.gmra.mxu0 %v3055
    %v3215 = vpop.f32.mrf.mxu0
    %v3216 = vadd.f32 %v3175, %v3215
    %3217 = vmatmul.f32.gmra.mxu0 %v3060
    %v3218 = vpop.f32.mrf.mxu0
    %v3219 = vadd.f32 %v3178, %v3218
    %3220 = vmatmul.f32.gmra.mxu0 %v3065
    %v3221 = vpop.f32.mrf.mxu0
    %v3222 = vadd.f32 %v3181, %v3221
    %3223 = vdwg.mxu0
    %3224 = vmatpush.msra.mxu0 %v2460
    %3225 = vmatpush.msra.mxu0 %v2459
    %3226 = vmatpush.msra.mxu0 %v2458
    %3227 = vmatpush.msra.mxu0 %v2457
    %3228 = vmatpush.msra.mxu0 %v2456
    %3229 = vmatpush.msra.mxu0 %v2455
    %3230 = vmatpush.msra.mxu0 %v2454
    %3231 = vmatpush.msra.mxu0 %v2453
    %3232 = vmatpush.msra.mxu0 %v2412
    %3233 = vmatpush.msra.mxu0 %v2411
    %3234 = vmatpush.msra.mxu0 %v2410
    %3235 = vmatpush.msra.mxu0 %v2409
    %3236 = vmatpush.msra.mxu0 %v2408
    %3237 = vmatpush.msra.mxu0 %v2407
    %3238 = vmatpush.msra.mxu0 %v2406
    %3239 = vmatpush.msra.mxu0 %v2405
    %3240 = vmatmul.f32.gmra.mxu0 %v3031
    %v3241 = vpop.f32.mrf.mxu0
    %v3242 = vadd.f32 %v3201, %v3241
    %3243 = vmatmul.f32.gmra.mxu0 %v3036
    %v3244 = vpop.f32.mrf.mxu0
    %v3245 = vadd.f32 %v3204, %v3244
    %3246 = vmatmul.f32.gmra.mxu0 %v3041
    %v3247 = vpop.f32.mrf.mxu0
    %v3248 = vadd.f32 %v3207, %v3247
    %3249 = vmatmul.f32.gmra.mxu0 %v3046
    %v3250 = vpop.f32.mrf.mxu0
    %v3251 = vadd.f32 %v3210, %v3250
    %3252 = vmatmul.f32.gmra.mxu0 %v3051
    %v3253 = vpop.f32.mrf.mxu0
    %v3254 = vadd.f32 %v3213, %v3253
    %3255 = vmatmul.f32.gmra.mxu0 %v3056
    %v3256 = vpop.f32.mrf.mxu0
    %v3257 = vadd.f32 %v3216, %v3256
    %3258 = vmatmul.f32.gmra.mxu0 %v3061
    %v3259 = vpop.f32.mrf.mxu0
    %v3260 = vadd.f32 %v3219, %v3259
    %3261 = vmatmul.f32.gmra.mxu0 %v3066
    %v3262 = vpop.f32.mrf.mxu0
    %v3263 = vadd.f32 %v3222, %v3262
    %3264 = vdwg.mxu0
    %3265 = vmatpush.msra.mxu0 %v2556
    %3266 = vmatpush.msra.mxu0 %v2555
    %3267 = vmatpush.msra.mxu0 %v2554
    %3268 = vmatpush.msra.mxu0 %v2553
    %3269 = vmatpush.msra.mxu0 %v2552
    %3270 = vmatpush.msra.mxu0 %v2551
    %3271 = vmatpush.msra.mxu0 %v2550
    %3272 = vmatpush.msra.mxu0 %v2549
    %3273 = vmatpush.msra.mxu0 %v2508
    %3274 = vmatpush.msra.mxu0 %v2507
    %3275 = vmatpush.msra.mxu0 %v2506
    %3276 = vmatpush.msra.mxu0 %v2505
    %3277 = vmatpush.msra.mxu0 %v2504
    %3278 = vmatpush.msra.mxu0 %v2503
    %3279 = vmatpush.msra.mxu0 %v2502
    %3280 = vmatpush.msra.mxu0 %v2501
    %3281 = vmatmul.f32.gmra.mxu0 %v3032
    %v3282 = vpop.f32.mrf.mxu0
    %v3283 = vadd.f32 %v3242, %v3282
    %3284 = vmatmul.f32.gmra.mxu0 %v3037
    %v3285 = vpop.f32.mrf.mxu0
    %v3286 = vadd.f32 %v3245, %v3285
    %3287 = vmatmul.f32.gmra.mxu0 %v3042
    %v3288 = vpop.f32.mrf.mxu0
    %v3289 = vadd.f32 %v3248, %v3288
    %3290 = vmatmul.f32.gmra.mxu0 %v3047
    %v3291 = vpop.f32.mrf.mxu0
    %v3292 = vadd.f32 %v3251, %v3291
    %3293 = vmatmul.f32.gmra.mxu0 %v3052
    %v3294 = vpop.f32.mrf.mxu0
    %v3295 = vadd.f32 %v3254, %v3294
    %3296 = vmatmul.f32.gmra.mxu0 %v3057
    %v3297 = vpop.f32.mrf.mxu0
    %v3298 = vadd.f32 %v3257, %v3297
    %3299 = vmatmul.f32.gmra.mxu0 %v3062
    %v3300 = vpop.f32.mrf.mxu0
    %v3301 = vadd.f32 %v3260, %v3300
    %3302 = vmatmul.f32.gmra.mxu0 %v3067
    %v3303 = vpop.f32.mrf.mxu0
    %v3304 = vadd.f32 %v3263, %v3303
    %3305 = vdwg.mxu0
    %3306 = vmatpush.msra.mxu0 0.0
    %3307 = vmatpush.msra.mxu0 0.0
    %3308 = vmatpush.msra.mxu0 0.0
    %3309 = vmatpush.msra.mxu0 0.0
    %3310 = vmatpush.msra.mxu0 0.0
    %3311 = vmatpush.msra.mxu0 0.0
    %3312 = vmatpush.msra.mxu0 0.0
    %3313 = vmatpush.msra.mxu0 0.0
    %3314 = vmatpush.msra.mxu0 %v2604
    %3315 = vmatpush.msra.mxu0 %v2603
    %3316 = vmatpush.msra.mxu0 %v2602
    %3317 = vmatpush.msra.mxu0 %v2601
    %3318 = vmatpush.msra.mxu0 %v2600
    %3319 = vmatpush.msra.mxu0 %v2599
    %3320 = vmatpush.msra.mxu0 %v2598
    %3321 = vmatpush.msra.mxu0 %v2597
    %3322 = vmatmul.f32.gmra.mxu0 %v3119
    %v3323 = vpop.f32.mrf.mxu0
    %v3324 = vadd.f32 %v3283, %v3323
    %3325 = vmatmul.f32.gmra.mxu0 %v3122
    %v3326 = vpop.f32.mrf.mxu0
    %v3327 = vadd.f32 %v3286, %v3326
    %3328 = vmatmul.f32.gmra.mxu0 %v3125
    %v3329 = vpop.f32.mrf.mxu0
    %v3330 = vadd.f32 %v3289, %v3329
    %3331 = vmatmul.f32.gmra.mxu0 %v3128
    %v3332 = vpop.f32.mrf.mxu0
    %v3333 = vadd.f32 %v3292, %v3332
    %3334 = vmatmul.f32.gmra.mxu0 %v3131
    %v3335 = vpop.f32.mrf.mxu0
    %v3336 = vadd.f32 %v3295, %v3335
    %3337 = vmatmul.f32.gmra.mxu0 %v3134
    %v3338 = vpop.f32.mrf.mxu0
    %v3339 = vadd.f32 %v3298, %v3338
    %3340 = vmatmul.f32.gmra.mxu0 %v3137
    %v3341 = vpop.f32.mrf.mxu0
    %v3342 = vadd.f32 %v3301, %v3341
    %3343 = vmatmul.f32.gmra.mxu0 %v3140
    %v3344 = vpop.f32.mrf.mxu0
    %v3345 = vadd.f32 %v3304, %v3344
    %3346 = vdwg.mxu0
    %3347 = vmatpush.msra.mxu0 %v2684
    %3348 = vmatpush.msra.mxu0 %v2683
    %3349 = vmatpush.msra.mxu0 %v2682
    %3350 = vmatpush.msra.mxu0 %v2681
    %3351 = vmatpush.msra.mxu0 %v2680
    %3352 = vmatpush.msra.mxu0 %v2679
    %3353 = vmatpush.msra.mxu0 %v2678
    %3354 = vmatpush.msra.mxu0 %v2677
    %3355 = vmatpush.msra.mxu0 %v2620
    %3356 = vmatpush.msra.mxu0 %v2619
    %3357 = vmatpush.msra.mxu0 %v2618
    %3358 = vmatpush.msra.mxu0 %v2617
    %3359 = vmatpush.msra.mxu0 %v2616
    %3360 = vmatpush.msra.mxu0 %v2615
    %3361 = vmatpush.msra.mxu0 %v2614
    %3362 = vmatpush.msra.mxu0 %v2613
    %3363 = vmatmul.f32.gmra.mxu0 %v3029
    %v3364 = vpop.f32.mrf.mxu0
    %v3365 = vadd.f32 %v3080, %v3364
    %3366 = vmatmul.f32.gmra.mxu0 %v3034
    %v3367 = vpop.f32.mrf.mxu0
    %v3368 = vadd.f32 %v3085, %v3367
    %3369 = vmatmul.f32.gmra.mxu0 %v3039
    %v3370 = vpop.f32.mrf.mxu0
    %v3371 = vadd.f32 %v3090, %v3370
    %3372 = vmatmul.f32.gmra.mxu0 %v3044
    %v3373 = vpop.f32.mrf.mxu0
    %v3374 = vadd.f32 %v3095, %v3373
    %3375 = vmatmul.f32.gmra.mxu0 %v3049
    %v3376 = vpop.f32.mrf.mxu0
    %v3377 = vadd.f32 %v3100, %v3376
    %3378 = vmatmul.f32.gmra.mxu0 %v3054
    %v3379 = vpop.f32.mrf.mxu0
    %v3380 = vadd.f32 %v3105, %v3379
    %3381 = vmatmul.f32.gmra.mxu0 %v3059
    %v3382 = vpop.f32.mrf.mxu0
    %v3383 = vadd.f32 %v3110, %v3382
    %3384 = vmatmul.f32.gmra.mxu0 %v3064
    %v3385 = vpop.f32.mrf.mxu0
    %v3386 = vadd.f32 %v3115, %v3385
    %3387 = vdwg.mxu0
    %3388 = vmatpush.msra.mxu0 %v2780
    %3389 = vmatpush.msra.mxu0 %v2779
    %3390 = vmatpush.msra.mxu0 %v2778
    %3391 = vmatpush.msra.mxu0 %v2777
    %3392 = vmatpush.msra.mxu0 %v2776
    %3393 = vmatpush.msra.mxu0 %v2775
    %3394 = vmatpush.msra.mxu0 %v2774
    %3395 = vmatpush.msra.mxu0 %v2773
    %3396 = vmatpush.msra.mxu0 %v2732
    %3397 = vmatpush.msra.mxu0 %v2731
    %3398 = vmatpush.msra.mxu0 %v2730
    %3399 = vmatpush.msra.mxu0 %v2729
    %3400 = vmatpush.msra.mxu0 %v2728
    %3401 = vmatpush.msra.mxu0 %v2727
    %3402 = vmatpush.msra.mxu0 %v2726
    %3403 = vmatpush.msra.mxu0 %v2725
    %3404 = vmatmul.f32.gmra.mxu0 %v3030
    %v3405 = vpop.f32.mrf.mxu0
    %v3406 = vadd.f32 %v3365, %v3405
    %3407 = vmatmul.f32.gmra.mxu0 %v3035
    %v3408 = vpop.f32.mrf.mxu0
    %v3409 = vadd.f32 %v3368, %v3408
    %3410 = vmatmul.f32.gmra.mxu0 %v3040
    %v3411 = vpop.f32.mrf.mxu0
    %v3412 = vadd.f32 %v3371, %v3411
    %3413 = vmatmul.f32.gmra.mxu0 %v3045
    %v3414 = vpop.f32.mrf.mxu0
    %v3415 = vadd.f32 %v3374, %v3414
    %3416 = vmatmul.f32.gmra.mxu0 %v3050
    %v3417 = vpop.f32.mrf.mxu0
    %v3418 = vadd.f32 %v3377, %v3417
    %3419 = vmatmul.f32.gmra.mxu0 %v3055
    %v3420 = vpop.f32.mrf.mxu0
    %v3421 = vadd.f32 %v3380, %v3420
    %3422 = vmatmul.f32.gmra.mxu0 %v3060
    %v3423 = vpop.f32.mrf.mxu0
    %v3424 = vadd.f32 %v3383, %v3423
    %3425 = vmatmul.f32.gmra.mxu0 %v3065
    %v3426 = vpop.f32.mrf.mxu0
    %v3427 = vadd.f32 %v3386, %v3426
    %3428 = vdwg.mxu0
    %3429 = vmatpush.msra.mxu0 %v2876
    %3430 = vmatpush.msra.mxu0 %v2875
    %3431 = vmatpush.msra.mxu0 %v2874
    %3432 = vmatpush.msra.mxu0 %v2873
    %3433 = vmatpush.msra.mxu0 %v2872
    %3434 = vmatpush.msra.mxu0 %v2871
    %3435 = vmatpush.msra.mxu0 %v2870
    %3436 = vmatpush.msra.mxu0 %v2869
    %3437 = vmatpush.msra.mxu0 %v2828
    %3438 = vmatpush.msra.mxu0 %v2827
    %3439 = vmatpush.msra.mxu0 %v2826
    %3440 = vmatpush.msra.mxu0 %v2825
    %3441 = vmatpush.msra.mxu0 %v2824
    %3442 = vmatpush.msra.mxu0 %v2823
    %3443 = vmatpush.msra.mxu0 %v2822
    %3444 = vmatpush.msra.mxu0 %v2821
    %3445 = vmatmul.f32.gmra.mxu0 %v3031
    %v3446 = vpop.f32.mrf.mxu0
    %v3447 = vadd.f32 %v3406, %v3446
    %3448 = vmatmul.f32.gmra.mxu0 %v3036
    %v3449 = vpop.f32.mrf.mxu0
    %v3450 = vadd.f32 %v3409, %v3449
    %3451 = vmatmul.f32.gmra.mxu0 %v3041
    %v3452 = vpop.f32.mrf.mxu0
    %v3453 = vadd.f32 %v3412, %v3452
    %3454 = vmatmul.f32.gmra.mxu0 %v3046
    %v3455 = vpop.f32.mrf.mxu0
    %v3456 = vadd.f32 %v3415, %v3455
    %3457 = vmatmul.f32.gmra.mxu0 %v3051
    %v3458 = vpop.f32.mrf.mxu0
    %v3459 = vadd.f32 %v3418, %v3458
    %3460 = vmatmul.f32.gmra.mxu0 %v3056
    %v3461 = vpop.f32.mrf.mxu0
    %v3462 = vadd.f32 %v3421, %v3461
    %3463 = vmatmul.f32.gmra.mxu0 %v3061
    %v3464 = vpop.f32.mrf.mxu0
    %v3465 = vadd.f32 %v3424, %v3464
    %3466 = vmatmul.f32.gmra.mxu0 %v3066
    %v3467 = vpop.f32.mrf.mxu0
    %v3468 = vadd.f32 %v3427, %v3467
    %3469 = vdwg.mxu0
    %3470 = vmatpush.msra.mxu0 %v2972
    %3471 = vmatpush.msra.mxu0 %v2971
    %3472 = vmatpush.msra.mxu0 %v2970
    %3473 = vmatpush.msra.mxu0 %v2969
    %3474 = vmatpush.msra.mxu0 %v2968
    %3475 = vmatpush.msra.mxu0 %v2967
    %3476 = vmatpush.msra.mxu0 %v2966
    %3477 = vmatpush.msra.mxu0 %v2965
    %3478 = vmatpush.msra.mxu0 %v2924
    %3479 = vmatpush.msra.mxu0 %v2923
    %3480 = vmatpush.msra.mxu0 %v2922
    %3481 = vmatpush.msra.mxu0 %v2921
    %3482 = vmatpush.msra.mxu0 %v2920
    %3483 = vmatpush.msra.mxu0 %v2919
    %3484 = vmatpush.msra.mxu0 %v2918
    %3485 = vmatpush.msra.mxu0 %v2917
    %3486 = vmatmul.f32.gmra.mxu0 %v3032
    %v3487 = vpop.f32.mrf.mxu0
    %v3488 = vadd.f32 %v3447, %v3487
    %3489 = vmatmul.f32.gmra.mxu0 %v3037
    %v3490 = vpop.f32.mrf.mxu0
    %v3491 = vadd.f32 %v3450, %v3490
    %3492 = vmatmul.f32.gmra.mxu0 %v3042
    %v3493 = vpop.f32.mrf.mxu0
    %v3494 = vadd.f32 %v3453, %v3493
    %3495 = vmatmul.f32.gmra.mxu0 %v3047
    %v3496 = vpop.f32.mrf.mxu0
    %v3497 = vadd.f32 %v3456, %v3496
    %3498 = vmatmul.f32.gmra.mxu0 %v3052
    %v3499 = vpop.f32.mrf.mxu0
    %v3500 = vadd.f32 %v3459, %v3499
    %3501 = vmatmul.f32.gmra.mxu0 %v3057
    %v3502 = vpop.f32.mrf.mxu0
    %v3503 = vadd.f32 %v3462, %v3502
    %3504 = vmatmul.f32.gmra.mxu0 %v3062
    %v3505 = vpop.f32.mrf.mxu0
    %v3506 = vadd.f32 %v3465, %v3505
    %3507 = vmatmul.f32.gmra.mxu0 %v3067
    %v3508 = vpop.f32.mrf.mxu0
    %v3509 = vadd.f32 %v3468, %v3508
    %3510 = vdwg.mxu0
    %3511 = vmatpush.msra.mxu0 0.0
    %3512 = vmatpush.msra.mxu0 0.0
    %3513 = vmatpush.msra.mxu0 0.0
    %3514 = vmatpush.msra.mxu0 0.0
    %3515 = vmatpush.msra.mxu0 0.0
    %3516 = vmatpush.msra.mxu0 0.0
    %3517 = vmatpush.msra.mxu0 0.0
    %3518 = vmatpush.msra.mxu0 0.0
    %3519 = vmatpush.msra.mxu0 %v3020
    %3520 = vmatpush.msra.mxu0 %v3019
    %3521 = vmatpush.msra.mxu0 %v3018
    %3522 = vmatpush.msra.mxu0 %v3017
    %3523 = vmatpush.msra.mxu0 %v3016
    %3524 = vmatpush.msra.mxu0 %v3015
    %3525 = vmatpush.msra.mxu0 %v3014
    %3526 = vmatpush.msra.mxu0 %v3013
    %3527 = vmatmul.f32.gmra.mxu0 %v3119
    %v3528 = vpop.f32.mrf.mxu0
    %v3529 = vadd.f32 %v3488, %v3528
    %3530 = vmatmul.f32.gmra.mxu0 %v3122
    %v3531 = vpop.f32.mrf.mxu0
    %v3532 = vadd.f32 %v3491, %v3531
    %3533 = vmatmul.f32.gmra.mxu0 %v3125
    %v3534 = vpop.f32.mrf.mxu0
    %v3535 = vadd.f32 %v3494, %v3534
    %3536 = vmatmul.f32.gmra.mxu0 %v3128
    %v3537 = vpop.f32.mrf.mxu0
    %v3538 = vadd.f32 %v3497, %v3537
    %3539 = vmatmul.f32.gmra.mxu0 %v3131
    %v3540 = vpop.f32.mrf.mxu0
    %v3541 = vadd.f32 %v3500, %v3540
    %3542 = vmatmul.f32.gmra.mxu0 %v3134
    %v3543 = vpop.f32.mrf.mxu0
    %v3544 = vadd.f32 %v3503, %v3543
    %3545 = vmatmul.f32.gmra.mxu0 %v3137
    %v3546 = vpop.f32.mrf.mxu0
    %v3547 = vadd.f32 %v3506, %v3546
    %3548 = vmatmul.f32.gmra.mxu0 %v3140
    %v3549 = vpop.f32.mrf.mxu0
    %v3550 = vadd.f32 %v3509, %v3549
    %3551 = vdwg.mxu0
    %vm3552 = vcmp.gt.f32.partialorder %v3324, 0.0
    %vm3553 = vcmp.gt.f32.partialorder %v3529, 0.0
    %vm3554 = vcmp.gt.f32.partialorder %v3327, 0.0
    %vm3555 = vcmp.gt.f32.partialorder %v3532, 0.0
    %vm3556 = vcmp.gt.f32.partialorder %v3330, 0.0
    %vm3557 = vcmp.gt.f32.partialorder %v3535, 0.0
    %vm3558 = vcmp.gt.f32.partialorder %v3333, 0.0
    %vm3559 = vcmp.gt.f32.partialorder %v3538, 0.0
    %vm3560 = vcmp.gt.f32.partialorder %v3336, 0.0
    %vm3561 = vcmp.gt.f32.partialorder %v3541, 0.0
    %vm3562 = vcmp.gt.f32.partialorder %v3339, 0.0
    %vm3563 = vcmp.gt.f32.partialorder %v3544, 0.0
    %vm3564 = vcmp.gt.f32.partialorder %v3342, 0.0
    %vm3565 = vcmp.gt.f32.partialorder %v3547, 0.0
    %vm3566 = vcmp.gt.f32.partialorder %v3345, 0.0
    %vm3567 = vcmp.gt.f32.partialorder %v3550, 0.0
    %v3568 = vmul.f32 %v3324, 0.2
    %v3569 = vmul.f32 %v3529, 0.2
    %v3570 = vmul.f32 %v3327, 0.2
    %v3571 = vmul.f32 %v3532, 0.2
    %v3572 = vmul.f32 %v3330, 0.2
    %v3573 = vmul.f32 %v3535, 0.2
    %v3574 = vmul.f32 %v3333, 0.2
    %v3575 = vmul.f32 %v3538, 0.2
    %v3576 = vmul.f32 %v3336, 0.2
    %v3577 = vmul.f32 %v3541, 0.2
    %v3578 = vmul.f32 %v3339, 0.2
    %v3579 = vmul.f32 %v3544, 0.2
    %v3580 = vmul.f32 %v3342, 0.2
    %v3581 = vmul.f32 %v3547, 0.2
    %v3582 = vmul.f32 %v3345, 0.2
    %v3583 = vmul.f32 %v3550, 0.2
    %v3584 = vsel %vm3552, %v3324, %v3568
    %v3585 = vsel %vm3553, %v3529, %v3569
    %v3586 = vsel %vm3554, %v3327, %v3570
    %v3587 = vsel %vm3555, %v3532, %v3571
    %v3588 = vsel %vm3556, %v3330, %v3572
    %v3589 = vsel %vm3557, %v3535, %v3573
    %v3590 = vsel %vm3558, %v3333, %v3574
    %v3591 = vsel %vm3559, %v3538, %v3575
    %v3592 = vsel %vm3560, %v3336, %v3576
    %v3593 = vsel %vm3561, %v3541, %v3577
    %v3594 = vsel %vm3562, %v3339, %v3578
    %v3595 = vsel %vm3563, %v3544, %v3579
    %v3596 = vsel %vm3564, %v3342, %v3580
    %v3597 = vsel %vm3565, %v3547, %v3581
    %v3598 = vsel %vm3566, %v3345, %v3582
    %v3599 = vsel %vm3567, %v3550, %v3583
    %v3600 = vadd.f32 %v3584, %v3585
    %3601 = vadd.xlane.f32.xlu0 %v3600
    %v3602 = vpop.xlane.xlu0 %3601
    %v3603 = vadd.f32 %v3586, %v3587
    %3604 = vadd.xlane.f32.xlu0 %v3603
    %v3605 = vpop.xlane.xlu0 %3604
    %v3606 = vadd.f32 %v3588, %v3589
    %3607 = vadd.xlane.f32.xlu0 %v3606
    %v3608 = vpop.xlane.xlu0 %3607
    %v3609 = vadd.f32 %v3590, %v3591
    %3610 = vadd.xlane.f32.xlu0 %v3609
    %v3611 = vpop.xlane.xlu0 %3610
    %v3612 = vadd.f32 %v3592, %v3593
    %3613 = vadd.xlane.f32.xlu0 %v3612
    %v3614 = vpop.xlane.xlu0 %3613
    %v3615 = vadd.f32 %v3594, %v3595
    %3616 = vadd.xlane.f32.xlu0 %v3615
    %v3617 = vpop.xlane.xlu0 %3616
    %v3618 = vadd.f32 %v3596, %v3597
    %3619 = vadd.xlane.f32.xlu0 %v3618
    %v3620 = vpop.xlane.xlu0 %3619
    %v3621 = vadd.f32 %v3598, %v3599
    %3622 = vadd.xlane.f32.xlu0 %v3621
    %v3623 = vpop.xlane.xlu0 %3622
    %v3624 = vmul.f32 %v3602, %v738
    %v3625 = vmul.f32 %v3605, %v738
    %v3626 = vmul.f32 %v3608, %v738
    %v3627 = vmul.f32 %v3611, %v738
    %v3628 = vmul.f32 %v3614, %v738
    %v3629 = vmul.f32 %v3617, %v738
    %v3630 = vmul.f32 %v3620, %v738
    %v3631 = vmul.f32 %v3623, %v738
    %v3632 = vmul.f32 %v3584, %v3584
    %v3633 = vmul.f32 %v3585, %v3585
    %v3634 = vmul.f32 %v3586, %v3586
    %v3635 = vmul.f32 %v3587, %v3587
    %v3636 = vmul.f32 %v3588, %v3588
    %v3637 = vmul.f32 %v3589, %v3589
    %v3638 = vmul.f32 %v3590, %v3590
    %v3639 = vmul.f32 %v3591, %v3591
    %v3640 = vmul.f32 %v3592, %v3592
    %v3641 = vmul.f32 %v3593, %v3593
    %v3642 = vmul.f32 %v3594, %v3594
    %v3643 = vmul.f32 %v3595, %v3595
    %v3644 = vmul.f32 %v3596, %v3596
    %v3645 = vmul.f32 %v3597, %v3597
    %v3646 = vmul.f32 %v3598, %v3598
    %v3647 = vmul.f32 %v3599, %v3599
    %v3648 = vadd.f32 %v3632, %v3633
    %3649 = vadd.xlane.f32.xlu0 %v3648
    %v3650 = vpop.xlane.xlu0 %3649
    %v3651 = vadd.f32 %v3634, %v3635
    %3652 = vadd.xlane.f32.xlu0 %v3651
    %v3653 = vpop.xlane.xlu0 %3652
    %v3654 = vadd.f32 %v3636, %v3637
    %3655 = vadd.xlane.f32.xlu0 %v3654
    %v3656 = vpop.xlane.xlu0 %3655
    %v3657 = vadd.f32 %v3638, %v3639
    %3658 = vadd.xlane.f32.xlu0 %v3657
    %v3659 = vpop.xlane.xlu0 %3658
    %v3660 = vadd.f32 %v3640, %v3641
    %3661 = vadd.xlane.f32.xlu0 %v3660
    %v3662 = vpop.xlane.xlu0 %3661
    %v3663 = vadd.f32 %v3642, %v3643
    %3664 = vadd.xlane.f32.xlu0 %v3663
    %v3665 = vpop.xlane.xlu0 %3664
    %v3666 = vadd.f32 %v3644, %v3645
    %3667 = vadd.xlane.f32.xlu0 %v3666
    %v3668 = vpop.xlane.xlu0 %3667
    %v3669 = vadd.f32 %v3646, %v3647
    %3670 = vadd.xlane.f32.xlu0 %v3669
    %v3671 = vpop.xlane.xlu0 %3670
    %v3672 = vmul.f32 %v3650, %v738
    %v3673 = vmul.f32 %v3653, %v738
    %v3674 = vmul.f32 %v3656, %v738
    %v3675 = vmul.f32 %v3659, %v738
    %v3676 = vmul.f32 %v3662, %v738
    %v3677 = vmul.f32 %v3665, %v738
    %v3678 = vmul.f32 %v3668, %v738
    %v3679 = vmul.f32 %v3671, %v738
    %v3680 = vmul.f32 %v3624, %v3624
    %v3681 = vmul.f32 %v3625, %v3625
    %v3682 = vmul.f32 %v3626, %v3626
    %v3683 = vmul.f32 %v3627, %v3627
    %v3684 = vmul.f32 %v3628, %v3628
    %v3685 = vmul.f32 %v3629, %v3629
    %v3686 = vmul.f32 %v3630, %v3630
    %v3687 = vmul.f32 %v3631, %v3631
    %v3688 = vsub.f32 %v3672, %v3680
    %v3689 = vsub.f32 %v3673, %v3681
    %v3690 = vsub.f32 %v3674, %v3682
    %v3691 = vsub.f32 %v3675, %v3683
    %v3692 = vsub.f32 %v3676, %v3684
    %v3693 = vsub.f32 %v3677, %v3685
    %v3694 = vsub.f32 %v3678, %v3686
    %v3695 = vsub.f32 %v3679, %v3687
    %v3696 = vmax.f32 %v3688, 0.0
    %v3697 = vmax.f32 %v3689, 0.0
    %v3698 = vmax.f32 %v3690, 0.0
    %v3699 = vmax.f32 %v3691, 0.0
    %v3700 = vmax.f32 %v3692, 0.0
    %v3701 = vmax.f32 %v3693, 0.0
    %v3702 = vmax.f32 %v3694, 0.0
    %v3703 = vmax.f32 %v3695, 0.0
    %v3704 = vld [vmem:[%s11] sm:$0xff]
    %v3705 = vld [vmem:[%s11 + $0x8] sm:$0xff]
    %v3706 = vld [vmem:[%s11 + $0x10] sm:$0xff]
    %v3707 = vld [vmem:[%s11 + $0x18] sm:$0xff]
    %v3708 = vld [vmem:[%s11 + $0x20] sm:$0xff]
    %v3709 = vld [vmem:[%s11 + $0x28] sm:$0xff]
    %v3710 = vld [vmem:[%s11 + $0x30] sm:$0xff]
    %v3711 = vld [vmem:[%s11 + $0x38] sm:$0xff]
    %v3712 = vadd.f32 %v3696, 1e-05
    %v3713 = vadd.f32 %v3697, 1e-05
    %v3714 = vadd.f32 %v3698, 1e-05
    %v3715 = vadd.f32 %v3699, 1e-05
    %v3716 = vadd.f32 %v3700, 1e-05
    %v3717 = vadd.f32 %v3701, 1e-05
    %v3718 = vadd.f32 %v3702, 1e-05
    %v3719 = vadd.f32 %v3703, 1e-05
    %v3720 = vrsqrt.pop %v3712
    %v3721 = vmul.f32 %v3720, %v3712
    %v3722 = vmul.f32 %v3721, %v3720
    %v3723 = vmul.f32 0.5, %v3722
    %v3724 = vsub.f32 1.5, %v3723
    %v3725 = vmul.f32 %v3720, %v3724
    %vm3726 = vweird.f32 %v3712
    %vm3727 = vweird.f32 %v3720
    %vm3728 = vmor %vm3726, %vm3727
    %v3729 = vsel %vm3728, %v3720, %v3725
    %v3730 = vrsqrt.pop %v3713
    %v3731 = vmul.f32 %v3730, %v3713
    %v3732 = vmul.f32 %v3731, %v3730
    %v3733 = vmul.f32 0.5, %v3732
    %v3734 = vsub.f32 1.5, %v3733
    %v3735 = vmul.f32 %v3730, %v3734
    %vm3736 = vweird.f32 %v3713
    %vm3737 = vweird.f32 %v3730
    %vm3738 = vmor %vm3736, %vm3737
    %v3739 = vsel %vm3738, %v3730, %v3735
    %v3740 = vrsqrt.pop %v3714
    %v3741 = vmul.f32 %v3740, %v3714
    %v3742 = vmul.f32 %v3741, %v3740
    %v3743 = vmul.f32 0.5, %v3742
    %v3744 = vsub.f32 1.5, %v3743
    %v3745 = vmul.f32 %v3740, %v3744
    %vm3746 = vweird.f32 %v3714
    %vm3747 = vweird.f32 %v3740
    %vm3748 = vmor %vm3746, %vm3747
    %v3749 = vsel %vm3748, %v3740, %v3745
    %v3750 = vrsqrt.pop %v3715
    %v3751 = vmul.f32 %v3750, %v3715
    %v3752 = vmul.f32 %v3751, %v3750
    %v3753 = vmul.f32 0.5, %v3752
    %v3754 = vsub.f32 1.5, %v3753
    %v3755 = vmul.f32 %v3750, %v3754
    %vm3756 = vweird.f32 %v3715
    %vm3757 = vweird.f32 %v3750
    %vm3758 = vmor %vm3756, %vm3757
    %v3759 = vsel %vm3758, %v3750, %v3755
    %v3760 = vrsqrt.pop %v3716
    %v3761 = vmul.f32 %v3760, %v3716
    %v3762 = vmul.f32 %v3761, %v3760
    %v3763 = vmul.f32 0.5, %v3762
    %v3764 = vsub.f32 1.5, %v3763
    %v3765 = vmul.f32 %v3760, %v3764
    %vm3766 = vweird.f32 %v3716
    %vm3767 = vweird.f32 %v3760
    %vm3768 = vmor %vm3766, %vm3767
    %v3769 = vsel %vm3768, %v3760, %v3765
    %v3770 = vrsqrt.pop %v3717
    %v3771 = vmul.f32 %v3770, %v3717
    %v3772 = vmul.f32 %v3771, %v3770
    %v3773 = vmul.f32 0.5, %v3772
    %v3774 = vsub.f32 1.5, %v3773
    %v3775 = vmul.f32 %v3770, %v3774
    %vm3776 = vweird.f32 %v3717
    %vm3777 = vweird.f32 %v3770
    %vm3778 = vmor %vm3776, %vm3777
    %v3779 = vsel %vm3778, %v3770, %v3775
    %v3780 = vrsqrt.pop %v3718
    %v3781 = vmul.f32 %v3780, %v3718
    %v3782 = vmul.f32 %v3781, %v3780
    %v3783 = vmul.f32 0.5, %v3782
    %v3784 = vsub.f32 1.5, %v3783
    %v3785 = vmul.f32 %v3780, %v3784
    %vm3786 = vweird.f32 %v3718
    %vm3787 = vweird.f32 %v3780
    %vm3788 = vmor %vm3786, %vm3787
    %v3789 = vsel %vm3788, %v3780, %v3785
    %v3790 = vrsqrt.pop %v3719
    %v3791 = vmul.f32 %v3790, %v3719
    %v3792 = vmul.f32 %v3791, %v3790
    %v3793 = vmul.f32 0.5, %v3792
    %v3794 = vsub.f32 1.5, %v3793
    %v3795 = vmul.f32 %v3790, %v3794
    %vm3796 = vweird.f32 %v3719
    %vm3797 = vweird.f32 %v3790
    %vm3798 = vmor %vm3796, %vm3797
    %v3799 = vsel %vm3798, %v3790, %v3795
    %v3800 = vmul.f32 %v3704, %v3729
    %v3801 = vmul.f32 %v3705, %v3739
    %v3802 = vmul.f32 %v3706, %v3749
    %v3803 = vmul.f32 %v3707, %v3759
    %v3804 = vmul.f32 %v3708, %v3769
    %v3805 = vmul.f32 %v3709, %v3779
    %v3806 = vmul.f32 %v3710, %v3789
    %v3807 = vmul.f32 %v3711, %v3799
    %v3808 = vld [vmem:[%s12] sm:$0xff]
    %v3809 = vld [vmem:[%s12 + $0x8] sm:$0xff]
    %v3810 = vld [vmem:[%s12 + $0x10] sm:$0xff]
    %v3811 = vld [vmem:[%s12 + $0x18] sm:$0xff]
    %v3812 = vld [vmem:[%s12 + $0x20] sm:$0xff]
    %v3813 = vld [vmem:[%s12 + $0x28] sm:$0xff]
    %v3814 = vld [vmem:[%s12 + $0x30] sm:$0xff]
    %v3815 = vld [vmem:[%s12 + $0x38] sm:$0xff]
    %v3816 = vmul.f32 %v3624, %v3800
    %v3817 = vmul.f32 %v3625, %v3801
    %v3818 = vmul.f32 %v3626, %v3802
    %v3819 = vmul.f32 %v3627, %v3803
    %v3820 = vmul.f32 %v3628, %v3804
    %v3821 = vmul.f32 %v3629, %v3805
    %v3822 = vmul.f32 %v3630, %v3806
    %v3823 = vmul.f32 %v3631, %v3807
    %v3824 = vsub.f32 %v3808, %v3816
    %v3825 = vsub.f32 %v3809, %v3817
    %v3826 = vsub.f32 %v3810, %v3818
    %v3827 = vsub.f32 %v3811, %v3819
    %v3828 = vsub.f32 %v3812, %v3820
    %v3829 = vsub.f32 %v3813, %v3821
    %v3830 = vsub.f32 %v3814, %v3822
    %v3831 = vsub.f32 %v3815, %v3823
    %3833 = vset.pattern.permute.xlu0 0
    %3834 = vperm.xlu0 %3833, %v3800
    %v3835 = vpop.permute.xlu0 %3834
    %3838 = vset.pattern.permute.xlu0 0
    %3839 = vperm.xlu0 %3838, %v3801
    %v3840 = vpop.permute.xlu0 %3839
    %3843 = vset.pattern.permute.xlu0 0
    %3844 = vperm.xlu0 %3843, %v3802
    %v3845 = vpop.permute.xlu0 %3844
    %3848 = vset.pattern.permute.xlu0 0
    %3849 = vperm.xlu0 %3848, %v3803
    %v3850 = vpop.permute.xlu0 %3849
    %3853 = vset.pattern.permute.xlu0 0
    %3854 = vperm.xlu0 %3853, %v3804
    %v3855 = vpop.permute.xlu0 %3854
    %3858 = vset.pattern.permute.xlu0 0
    %3859 = vperm.xlu0 %3858, %v3805
    %v3860 = vpop.permute.xlu0 %3859
    %3863 = vset.pattern.permute.xlu0 0
    %3864 = vperm.xlu0 %3863, %v3806
    %v3865 = vpop.permute.xlu0 %3864
    %3868 = vset.pattern.permute.xlu0 0
    %3869 = vperm.xlu0 %3868, %v3807
    %v3870 = vpop.permute.xlu0 %3869
    %v3872 = vmul.f32 %v3584, %v3835
    %v3873 = vmul.f32 %v3585, %v3835
    %v3874 = vmul.f32 %v3586, %v3840
    %v3875 = vmul.f32 %v3587, %v3840
    %v3876 = vmul.f32 %v3588, %v3845
    %v3877 = vmul.f32 %v3589, %v3845
    %v3878 = vmul.f32 %v3590, %v3850
    %v3879 = vmul.f32 %v3591, %v3850
    %v3880 = vmul.f32 %v3592, %v3855
    %v3881 = vmul.f32 %v3593, %v3855
    %v3882 = vmul.f32 %v3594, %v3860
    %v3883 = vmul.f32 %v3595, %v3860
    %v3884 = vmul.f32 %v3596, %v3865
    %v3885 = vmul.f32 %v3597, %v3865
    %v3886 = vmul.f32 %v3598, %v3870
    %v3887 = vmul.f32 %v3599, %v3870
    %3889 = vset.pattern.permute.xlu0 0
    %3890 = vperm.xlu0 %3889, %v3824
    %v3891 = vpop.permute.xlu0 %3890
    %3894 = vset.pattern.permute.xlu0 0
    %3895 = vperm.xlu0 %3894, %v3825
    %v3896 = vpop.permute.xlu0 %3895
    %3899 = vset.pattern.permute.xlu0 0
    %3900 = vperm.xlu0 %3899, %v3826
    %v3901 = vpop.permute.xlu0 %3900
    %3904 = vset.pattern.permute.xlu0 0
    %3905 = vperm.xlu0 %3904, %v3827
    %v3906 = vpop.permute.xlu0 %3905
    %3909 = vset.pattern.permute.xlu0 0
    %3910 = vperm.xlu0 %3909, %v3828
    %v3911 = vpop.permute.xlu0 %3910
    %3914 = vset.pattern.permute.xlu0 0
    %3915 = vperm.xlu0 %3914, %v3829
    %v3916 = vpop.permute.xlu0 %3915
    %3919 = vset.pattern.permute.xlu0 0
    %3920 = vperm.xlu0 %3919, %v3830
    %v3921 = vpop.permute.xlu0 %3920
    %3924 = vset.pattern.permute.xlu0 0
    %3925 = vperm.xlu0 %3924, %v3831
    %v3926 = vpop.permute.xlu0 %3925
    %v3928 = vadd.f32 %v3872, %v3891
    %v3929 = vadd.f32 %v3873, %v3891
    %v3930 = vadd.f32 %v3874, %v3896
    %v3931 = vadd.f32 %v3875, %v3896
    %v3932 = vadd.f32 %v3876, %v3901
    %v3933 = vadd.f32 %v3877, %v3901
    %v3934 = vadd.f32 %v3878, %v3906
    %v3935 = vadd.f32 %v3879, %v3906
    %v3936 = vadd.f32 %v3880, %v3911
    %v3937 = vadd.f32 %v3881, %v3911
    %v3938 = vadd.f32 %v3882, %v3916
    %v3939 = vadd.f32 %v3883, %v3916
    %v3940 = vadd.f32 %v3884, %v3921
    %v3941 = vadd.f32 %v3885, %v3921
    %v3942 = vadd.f32 %v3886, %v3926
    %v3943 = vadd.f32 %v3887, %v3926
    %3952 = vrot.lane.b32.xlu0 %v3928, 4
    %v3953 = vpop.permute.xlu0 %3952
    %3954 = vrot.lane.b32.xlu0 %v3930, 4
    %v3955 = vpop.permute.xlu0 %3954
    %3956 = vrot.lane.b32.xlu0 %v3932, 4
    %v3957 = vpop.permute.xlu0 %3956
    %3958 = vrot.lane.b32.xlu0 %v3934, 4
    %v3959 = vpop.permute.xlu0 %3958
    %3960 = vrot.lane.b32.xlu0 %v3936, 4
    %v3961 = vpop.permute.xlu0 %3960
    %3962 = vrot.lane.b32.xlu0 %v3938, 4
    %v3963 = vpop.permute.xlu0 %3962
    %3964 = vrot.lane.b32.xlu0 %v3940, 4
    %v3965 = vpop.permute.xlu0 %3964
    %3966 = vrot.lane.b32.xlu0 %v3942, 4
    %v3967 = vpop.permute.xlu0 %3966
    %3976 = vst.msk [vmem:[#allocation5] sm:$0xff] %vm915, %v3953
    %3977 = vst.msk [vmem:[#allocation5 + $0x8] sm:$0xff] %vm220, %v3953
    %3978 = vst.msk [vmem:[#allocation5 + $0x10] sm:$0xff] %vm915, %v3955
    %3979 = vst.msk [vmem:[#allocation5 + $0x18] sm:$0xff] %vm220, %v3955
    %3980 = vst.msk [vmem:[#allocation5 + $0x20] sm:$0xff] %vm915, %v3957
    %3981 = vst.msk [vmem:[#allocation5 + $0x28] sm:$0xff] %vm220, %v3957
    %3982 = vst.msk [vmem:[#allocation5 + $0x30] sm:$0xff] %vm915, %v3959
    %3983 = vst.msk [vmem:[#allocation5 + $0x38] sm:$0xff] %vm220, %v3959
    %3984 = vst.msk [vmem:[#allocation5 + $0x40] sm:$0xff] %vm915, %v3961
    %3985 = vst.msk [vmem:[#allocation5 + $0x48] sm:$0xff] %vm220, %v3961
    %3986 = vst.msk [vmem:[#allocation5 + $0x50] sm:$0xff] %vm915, %v3963
    %3987 = vst.msk [vmem:[#allocation5 + $0x58] sm:$0xff] %vm220, %v3963
    %3988 = vst.msk [vmem:[#allocation5 + $0x60] sm:$0xff] %vm915, %v3965
    %3989 = vst.msk [vmem:[#allocation5 + $0x68] sm:$0xff] %vm220, %v3965
    %3990 = vst.msk [vmem:[#allocation5 + $0x70] sm:$0xff] %vm915, %v3967
    %3991 = vst.msk [vmem:[#allocation5 + $0x78] sm:$0xff] %vm220, %v3967
    %4000 = vrot.lane.b32.xlu0 %v3929, 4
    %v4001 = vpop.permute.xlu0 %4000
    %4002 = vrot.lane.b32.xlu0 %v3931, 4
    %v4003 = vpop.permute.xlu0 %4002
    %4004 = vrot.lane.b32.xlu0 %v3933, 4
    %v4005 = vpop.permute.xlu0 %4004
    %4006 = vrot.lane.b32.xlu0 %v3935, 4
    %v4007 = vpop.permute.xlu0 %4006
    %4008 = vrot.lane.b32.xlu0 %v3937, 4
    %v4009 = vpop.permute.xlu0 %4008
    %4010 = vrot.lane.b32.xlu0 %v3939, 4
    %v4011 = vpop.permute.xlu0 %4010
    %4012 = vrot.lane.b32.xlu0 %v3941, 4
    %v4013 = vpop.permute.xlu0 %4012
    %4014 = vrot.lane.b32.xlu0 %v3943, 4
    %v4015 = vpop.permute.xlu0 %4014
    %s4024 = scalar_lea.vmem [#allocation5], 128
    %4025 = vst.msk [vmem:[%s4024] sm:$0xff] %vm915, %v4001
    %4026 = vst.msk [vmem:[%s4024 + $0x8] sm:$0xff] %vm220, %v4001
    %4027 = vst.msk [vmem:[%s4024 + $0x10] sm:$0xff] %vm915, %v4003
    %4028 = vst.msk [vmem:[%s4024 + $0x18] sm:$0xff] %vm220, %v4003
    %4029 = vst.msk [vmem:[%s4024 + $0x20] sm:$0xff] %vm915, %v4005
    %4030 = vst.msk [vmem:[%s4024 + $0x28] sm:$0xff] %vm220, %v4005
    %4031 = vst.msk [vmem:[%s4024 + $0x30] sm:$0xff] %vm915, %v4007
    %4032 = vst.msk [vmem:[%s4024 + $0x38] sm:$0xff] %vm220, %v4007
    %4033 = vst.msk [vmem:[%s4024 + $0x40] sm:$0xff] %vm915, %v4009
    %4034 = vst.msk [vmem:[%s4024 + $0x48] sm:$0xff] %vm220, %v4009
    %4035 = vst.msk [vmem:[%s4024 + $0x50] sm:$0xff] %vm915, %v4011
    %4036 = vst.msk [vmem:[%s4024 + $0x58] sm:$0xff] %vm220, %v4011
    %4037 = vst.msk [vmem:[%s4024 + $0x60] sm:$0xff] %vm915, %v4013
    %4038 = vst.msk [vmem:[%s4024 + $0x68] sm:$0xff] %vm220, %v4013
    %4039 = vst.msk [vmem:[%s4024 + $0x70] sm:$0xff] %vm915, %v4015
    %4040 = vst.msk [vmem:[%s4024 + $0x78] sm:$0xff] %vm220, %v4015
    %v4041 = vld [vmem:[#allocation5] sm:$0xff]
    %v4042 = vld [vmem:[#allocation5 + $0x10] sm:$0xff]
    %v4043 = vld [vmem:[#allocation5 + $0x20] sm:$0xff]
    %v4044 = vld [vmem:[#allocation5 + $0x30] sm:$0xff]
    %v4045 = vld [vmem:[#allocation5 + $0x40] sm:$0xff]
    %v4046 = vld [vmem:[#allocation5 + $0x50] sm:$0xff]
    %v4047 = vld [vmem:[#allocation5 + $0x60] sm:$0xff]
    %v4048 = vld [vmem:[#allocation5 + $0x70] sm:$0xff]
    %v4049 = vld [vmem:[#allocation5 + $0x8] sm:$0xff]
    %v4050 = vld [vmem:[#allocation5 + $0x18] sm:$0xff]
    %v4051 = vld [vmem:[#allocation5 + $0x28] sm:$0xff]
    %v4052 = vld [vmem:[#allocation5 + $0x38] sm:$0xff]
    %v4053 = vld [vmem:[#allocation5 + $0x48] sm:$0xff]
    %v4054 = vld [vmem:[#allocation5 + $0x58] sm:$0xff]
    %v4055 = vld [vmem:[#allocation5 + $0x68] sm:$0xff]
    %v4056 = vld [vmem:[#allocation5 + $0x78] sm:$0xff]
    %4073 = vrot.lane.b32.xlu0 %v4041, 127
    %v4074 = vpop.permute.xlu0 %4073
    %4075 = vrot.lane.b32.xlu0 %v4049, 127
    %v4076 = vpop.permute.xlu0 %4075
    %4077 = vrot.lane.b32.xlu0 %v4042, 127
    %v4078 = vpop.permute.xlu0 %4077
    %4079 = vrot.lane.b32.xlu0 %v4050, 127
    %v4080 = vpop.permute.xlu0 %4079
    %4081 = vrot.lane.b32.xlu0 %v4043, 127
    %v4082 = vpop.permute.xlu0 %4081
    %4083 = vrot.lane.b32.xlu0 %v4051, 127
    %v4084 = vpop.permute.xlu0 %4083
    %4085 = vrot.lane.b32.xlu0 %v4044, 127
    %v4086 = vpop.permute.xlu0 %4085
    %4087 = vrot.lane.b32.xlu0 %v4052, 127
    %v4088 = vpop.permute.xlu0 %4087
    %4089 = vrot.lane.b32.xlu0 %v4045, 127
    %v4090 = vpop.permute.xlu0 %4089
    %4091 = vrot.lane.b32.xlu0 %v4053, 127
    %v4092 = vpop.permute.xlu0 %4091
    %4093 = vrot.lane.b32.xlu0 %v4046, 127
    %v4094 = vpop.permute.xlu0 %4093
    %4095 = vrot.lane.b32.xlu0 %v4054, 127
    %v4096 = vpop.permute.xlu0 %4095
    %4097 = vrot.lane.b32.xlu0 %v4047, 127
    %v4098 = vpop.permute.xlu0 %4097
    %4099 = vrot.lane.b32.xlu0 %v4055, 127
    %v4100 = vpop.permute.xlu0 %4099
    %4101 = vrot.lane.b32.xlu0 %v4048, 127
    %v4102 = vpop.permute.xlu0 %4101
    %4103 = vrot.lane.b32.xlu0 %v4056, 127
    %v4104 = vpop.permute.xlu0 %4103
    %v4105 = vsel %vm289, %v4074, %v4076
    %v4106 = vsel %vm289, %v4078, %v4080
    %v4107 = vsel %vm289, %v4082, %v4084
    %v4108 = vsel %vm289, %v4086, %v4088
    %v4109 = vsel %vm289, %v4090, %v4092
    %v4110 = vsel %vm289, %v4094, %v4096
    %v4111 = vsel %vm289, %v4098, %v4100
    %v4112 = vsel %vm289, %v4102, %v4104
    %4121 = vrot.lane.b32.xlu0 %v4041, 126
    %v4122 = vpop.permute.xlu0 %4121
    %4123 = vrot.lane.b32.xlu0 %v4049, 126
    %v4124 = vpop.permute.xlu0 %4123
    %4125 = vrot.lane.b32.xlu0 %v4042, 126
    %v4126 = vpop.permute.xlu0 %4125
    %4127 = vrot.lane.b32.xlu0 %v4050, 126
    %v4128 = vpop.permute.xlu0 %4127
    %4129 = vrot.lane.b32.xlu0 %v4043, 126
    %v4130 = vpop.permute.xlu0 %4129
    %4131 = vrot.lane.b32.xlu0 %v4051, 126
    %v4132 = vpop.permute.xlu0 %4131
    %4133 = vrot.lane.b32.xlu0 %v4044, 126
    %v4134 = vpop.permute.xlu0 %4133
    %4135 = vrot.lane.b32.xlu0 %v4052, 126
    %v4136 = vpop.permute.xlu0 %4135
    %4137 = vrot.lane.b32.xlu0 %v4045, 126
    %v4138 = vpop.permute.xlu0 %4137
    %4139 = vrot.lane.b32.xlu0 %v4053, 126
    %v4140 = vpop.permute.xlu0 %4139
    %4141 = vrot.lane.b32.xlu0 %v4046, 126
    %v4142 = vpop.permute.xlu0 %4141
    %4143 = vrot.lane.b32.xlu0 %v4054, 126
    %v4144 = vpop.permute.xlu0 %4143
    %4145 = vrot.lane.b32.xlu0 %v4047, 126
    %v4146 = vpop.permute.xlu0 %4145
    %4147 = vrot.lane.b32.xlu0 %v4055, 126
    %v4148 = vpop.permute.xlu0 %4147
    %4149 = vrot.lane.b32.xlu0 %v4048, 126
    %v4150 = vpop.permute.xlu0 %4149
    %4151 = vrot.lane.b32.xlu0 %v4056, 126
    %v4152 = vpop.permute.xlu0 %4151
    %v4153 = vsel %vm339, %v4122, %v4124
    %v4154 = vsel %vm339, %v4126, %v4128
    %v4155 = vsel %vm339, %v4130, %v4132
    %v4156 = vsel %vm339, %v4134, %v4136
    %v4157 = vsel %vm339, %v4138, %v4140
    %v4158 = vsel %vm339, %v4142, %v4144
    %v4159 = vsel %vm339, %v4146, %v4148
    %v4160 = vsel %vm339, %v4150, %v4152
    %4169 = vrot.lane.b32.xlu0 %v4041, 125
    %v4170 = vpop.permute.xlu0 %4169
    %4171 = vrot.lane.b32.xlu0 %v4049, 125
    %v4172 = vpop.permute.xlu0 %4171
    %4173 = vrot.lane.b32.xlu0 %v4042, 125
    %v4174 = vpop.permute.xlu0 %4173
    %4175 = vrot.lane.b32.xlu0 %v4050, 125
    %v4176 = vpop.permute.xlu0 %4175
    %4177 = vrot.lane.b32.xlu0 %v4043, 125
    %v4178 = vpop.permute.xlu0 %4177
    %4179 = vrot.lane.b32.xlu0 %v4051, 125
    %v4180 = vpop.permute.xlu0 %4179
    %4181 = vrot.lane.b32.xlu0 %v4044, 125
    %v4182 = vpop.permute.xlu0 %4181
    %4183 = vrot.lane.b32.xlu0 %v4052, 125
    %v4184 = vpop.permute.xlu0 %4183
    %4185 = vrot.lane.b32.xlu0 %v4045, 125
    %v4186 = vpop.permute.xlu0 %4185
    %4187 = vrot.lane.b32.xlu0 %v4053, 125
    %v4188 = vpop.permute.xlu0 %4187
    %4189 = vrot.lane.b32.xlu0 %v4046, 125
    %v4190 = vpop.permute.xlu0 %4189
    %4191 = vrot.lane.b32.xlu0 %v4054, 125
    %v4192 = vpop.permute.xlu0 %4191
    %4193 = vrot.lane.b32.xlu0 %v4047, 125
    %v4194 = vpop.permute.xlu0 %4193
    %4195 = vrot.lane.b32.xlu0 %v4055, 125
    %v4196 = vpop.permute.xlu0 %4195
    %4197 = vrot.lane.b32.xlu0 %v4048, 125
    %v4198 = vpop.permute.xlu0 %4197
    %4199 = vrot.lane.b32.xlu0 %v4056, 125
    %v4200 = vpop.permute.xlu0 %4199
    %v4201 = vsel %vm386, %v4170, %v4172
    %v4202 = vsel %vm386, %v4174, %v4176
    %v4203 = vsel %vm386, %v4178, %v4180
    %v4204 = vsel %vm386, %v4182, %v4184
    %v4205 = vsel %vm386, %v4186, %v4188
    %v4206 = vsel %vm386, %v4190, %v4192
    %v4207 = vsel %vm386, %v4194, %v4196
    %v4208 = vsel %vm386, %v4198, %v4200
    %4217 = vrot.lane.b32.xlu0 %v4041, 124
    %v4218 = vpop.permute.xlu0 %4217
    %4219 = vrot.lane.b32.xlu0 %v4049, 124
    %v4220 = vpop.permute.xlu0 %4219
    %4221 = vrot.lane.b32.xlu0 %v4042, 124
    %v4222 = vpop.permute.xlu0 %4221
    %4223 = vrot.lane.b32.xlu0 %v4050, 124
    %v4224 = vpop.permute.xlu0 %4223
    %4225 = vrot.lane.b32.xlu0 %v4043, 124
    %v4226 = vpop.permute.xlu0 %4225
    %4227 = vrot.lane.b32.xlu0 %v4051, 124
    %v4228 = vpop.permute.xlu0 %4227
    %4229 = vrot.lane.b32.xlu0 %v4044, 124
    %v4230 = vpop.permute.xlu0 %4229
    %4231 = vrot.lane.b32.xlu0 %v4052, 124
    %v4232 = vpop.permute.xlu0 %4231
    %4233 = vrot.lane.b32.xlu0 %v4045, 124
    %v4234 = vpop.permute.xlu0 %4233
    %4235 = vrot.lane.b32.xlu0 %v4053, 124
    %v4236 = vpop.permute.xlu0 %4235
    %4237 = vrot.lane.b32.xlu0 %v4046, 124
    %v4238 = vpop.permute.xlu0 %4237
    %4239 = vrot.lane.b32.xlu0 %v4054, 124
    %v4240 = vpop.permute.xlu0 %4239
    %4241 = vrot.lane.b32.xlu0 %v4047, 124
    %v4242 = vpop.permute.xlu0 %4241
    %4243 = vrot.lane.b32.xlu0 %v4055, 124
    %v4244 = vpop.permute.xlu0 %4243
    %4245 = vrot.lane.b32.xlu0 %v4048, 124
    %v4246 = vpop.permute.xlu0 %4245
    %4247 = vrot.lane.b32.xlu0 %v4056, 124
    %v4248 = vpop.permute.xlu0 %4247
    %v4249 = vsel %vm433, %v4218, %v4220
    %v4250 = vsel %vm433, %v4222, %v4224
    %v4251 = vsel %vm433, %v4226, %v4228
    %v4252 = vsel %vm433, %v4230, %v4232
    %v4253 = vsel %vm433, %v4234, %v4236
    %v4254 = vsel %vm433, %v4238, %v4240
    %v4255 = vsel %vm433, %v4242, %v4244
    %v4256 = vsel %vm433, %v4246, %v4248
    %4265 = vrot.lane.b32.xlu0 %v4041, 123
    %v4266 = vpop.permute.xlu0 %4265
    %4267 = vrot.lane.b32.xlu0 %v4049, 123
    %v4268 = vpop.permute.xlu0 %4267
    %4269 = vrot.lane.b32.xlu0 %v4042, 123
    %v4270 = vpop.permute.xlu0 %4269
    %4271 = vrot.lane.b32.xlu0 %v4050, 123
    %v4272 = vpop.permute.xlu0 %4271
    %4273 = vrot.lane.b32.xlu0 %v4043, 123
    %v4274 = vpop.permute.xlu0 %4273
    %4275 = vrot.lane.b32.xlu0 %v4051, 123
    %v4276 = vpop.permute.xlu0 %4275
    %4277 = vrot.lane.b32.xlu0 %v4044, 123
    %v4278 = vpop.permute.xlu0 %4277
    %4279 = vrot.lane.b32.xlu0 %v4052, 123
    %v4280 = vpop.permute.xlu0 %4279
    %4281 = vrot.lane.b32.xlu0 %v4045, 123
    %v4282 = vpop.permute.xlu0 %4281
    %4283 = vrot.lane.b32.xlu0 %v4053, 123
    %v4284 = vpop.permute.xlu0 %4283
    %4285 = vrot.lane.b32.xlu0 %v4046, 123
    %v4286 = vpop.permute.xlu0 %4285
    %4287 = vrot.lane.b32.xlu0 %v4054, 123
    %v4288 = vpop.permute.xlu0 %4287
    %4289 = vrot.lane.b32.xlu0 %v4047, 123
    %v4290 = vpop.permute.xlu0 %4289
    %4291 = vrot.lane.b32.xlu0 %v4055, 123
    %v4292 = vpop.permute.xlu0 %4291
    %4293 = vrot.lane.b32.xlu0 %v4048, 123
    %v4294 = vpop.permute.xlu0 %4293
    %4295 = vrot.lane.b32.xlu0 %v4056, 123
    %v4296 = vpop.permute.xlu0 %4295
    %v4297 = vsel %vm480, %v4266, %v4268
    %v4298 = vsel %vm480, %v4270, %v4272
    %v4299 = vsel %vm480, %v4274, %v4276
    %v4300 = vsel %vm480, %v4278, %v4280
    %v4301 = vsel %vm480, %v4282, %v4284
    %v4302 = vsel %vm480, %v4286, %v4288
    %v4303 = vsel %vm480, %v4290, %v4292
    %v4304 = vsel %vm480, %v4294, %v4296
    %4313 = vrot.lane.b32.xlu0 %v4041, 122
    %v4314 = vpop.permute.xlu0 %4313
    %4315 = vrot.lane.b32.xlu0 %v4049, 122
    %v4316 = vpop.permute.xlu0 %4315
    %4317 = vrot.lane.b32.xlu0 %v4042, 122
    %v4318 = vpop.permute.xlu0 %4317
    %4319 = vrot.lane.b32.xlu0 %v4050, 122
    %v4320 = vpop.permute.xlu0 %4319
    %4321 = vrot.lane.b32.xlu0 %v4043, 122
    %v4322 = vpop.permute.xlu0 %4321
    %4323 = vrot.lane.b32.xlu0 %v4051, 122
    %v4324 = vpop.permute.xlu0 %4323
    %4325 = vrot.lane.b32.xlu0 %v4044, 122
    %v4326 = vpop.permute.xlu0 %4325
    %4327 = vrot.lane.b32.xlu0 %v4052, 122
    %v4328 = vpop.permute.xlu0 %4327
    %4329 = vrot.lane.b32.xlu0 %v4045, 122
    %v4330 = vpop.permute.xlu0 %4329
    %4331 = vrot.lane.b32.xlu0 %v4053, 122
    %v4332 = vpop.permute.xlu0 %4331
    %4333 = vrot.lane.b32.xlu0 %v4046, 122
    %v4334 = vpop.permute.xlu0 %4333
    %4335 = vrot.lane.b32.xlu0 %v4054, 122
    %v4336 = vpop.permute.xlu0 %4335
    %4337 = vrot.lane.b32.xlu0 %v4047, 122
    %v4338 = vpop.permute.xlu0 %4337
    %4339 = vrot.lane.b32.xlu0 %v4055, 122
    %v4340 = vpop.permute.xlu0 %4339
    %4341 = vrot.lane.b32.xlu0 %v4048, 122
    %v4342 = vpop.permute.xlu0 %4341
    %4343 = vrot.lane.b32.xlu0 %v4056, 122
    %v4344 = vpop.permute.xlu0 %4343
    %v4345 = vsel %vm527, %v4314, %v4316
    %v4346 = vsel %vm527, %v4318, %v4320
    %v4347 = vsel %vm527, %v4322, %v4324
    %v4348 = vsel %vm527, %v4326, %v4328
    %v4349 = vsel %vm527, %v4330, %v4332
    %v4350 = vsel %vm527, %v4334, %v4336
    %v4351 = vsel %vm527, %v4338, %v4340
    %v4352 = vsel %vm527, %v4342, %v4344
    %4361 = vrot.lane.b32.xlu0 %v4041, 121
    %v4362 = vpop.permute.xlu0 %4361
    %4363 = vrot.lane.b32.xlu0 %v4049, 121
    %v4364 = vpop.permute.xlu0 %4363
    %4365 = vrot.lane.b32.xlu0 %v4042, 121
    %v4366 = vpop.permute.xlu0 %4365
    %4367 = vrot.lane.b32.xlu0 %v4050, 121
    %v4368 = vpop.permute.xlu0 %4367
    %4369 = vrot.lane.b32.xlu0 %v4043, 121
    %v4370 = vpop.permute.xlu0 %4369
    %4371 = vrot.lane.b32.xlu0 %v4051, 121
    %v4372 = vpop.permute.xlu0 %4371
    %4373 = vrot.lane.b32.xlu0 %v4044, 121
    %v4374 = vpop.permute.xlu0 %4373
    %4375 = vrot.lane.b32.xlu0 %v4052, 121
    %v4376 = vpop.permute.xlu0 %4375
    %4377 = vrot.lane.b32.xlu0 %v4045, 121
    %v4378 = vpop.permute.xlu0 %4377
    %4379 = vrot.lane.b32.xlu0 %v4053, 121
    %v4380 = vpop.permute.xlu0 %4379
    %4381 = vrot.lane.b32.xlu0 %v4046, 121
    %v4382 = vpop.permute.xlu0 %4381
    %4383 = vrot.lane.b32.xlu0 %v4054, 121
    %v4384 = vpop.permute.xlu0 %4383
    %4385 = vrot.lane.b32.xlu0 %v4047, 121
    %v4386 = vpop.permute.xlu0 %4385
    %4387 = vrot.lane.b32.xlu0 %v4055, 121
    %v4388 = vpop.permute.xlu0 %4387
    %4389 = vrot.lane.b32.xlu0 %v4048, 121
    %v4390 = vpop.permute.xlu0 %4389
    %4391 = vrot.lane.b32.xlu0 %v4056, 121
    %v4392 = vpop.permute.xlu0 %4391
    %v4393 = vsel %vm574, %v4362, %v4364
    %v4394 = vsel %vm574, %v4366, %v4368
    %v4395 = vsel %vm574, %v4370, %v4372
    %v4396 = vsel %vm574, %v4374, %v4376
    %v4397 = vsel %vm574, %v4378, %v4380
    %v4398 = vsel %vm574, %v4382, %v4384
    %v4399 = vsel %vm574, %v4386, %v4388
    %v4400 = vsel %vm574, %v4390, %v4392
    %4409 = vrot.lane.b32.xlu0 %v4041, 120
    %v4410 = vpop.permute.xlu0 %4409
    %4411 = vrot.lane.b32.xlu0 %v4049, 120
    %v4412 = vpop.permute.xlu0 %4411
    %4413 = vrot.lane.b32.xlu0 %v4042, 120
    %v4414 = vpop.permute.xlu0 %4413
    %4415 = vrot.lane.b32.xlu0 %v4050, 120
    %v4416 = vpop.permute.xlu0 %4415
    %4417 = vrot.lane.b32.xlu0 %v4043, 120
    %v4418 = vpop.permute.xlu0 %4417
    %4419 = vrot.lane.b32.xlu0 %v4051, 120
    %v4420 = vpop.permute.xlu0 %4419
    %4421 = vrot.lane.b32.xlu0 %v4044, 120
    %v4422 = vpop.permute.xlu0 %4421
    %4423 = vrot.lane.b32.xlu0 %v4052, 120
    %v4424 = vpop.permute.xlu0 %4423
    %4425 = vrot.lane.b32.xlu0 %v4045, 120
    %v4426 = vpop.permute.xlu0 %4425
    %4427 = vrot.lane.b32.xlu0 %v4053, 120
    %v4428 = vpop.permute.xlu0 %4427
    %4429 = vrot.lane.b32.xlu0 %v4046, 120
    %v4430 = vpop.permute.xlu0 %4429
    %4431 = vrot.lane.b32.xlu0 %v4054, 120
    %v4432 = vpop.permute.xlu0 %4431
    %4433 = vrot.lane.b32.xlu0 %v4047, 120
    %v4434 = vpop.permute.xlu0 %4433
    %4435 = vrot.lane.b32.xlu0 %v4055, 120
    %v4436 = vpop.permute.xlu0 %4435
    %4437 = vrot.lane.b32.xlu0 %v4048, 120
    %v4438 = vpop.permute.xlu0 %4437
    %4439 = vrot.lane.b32.xlu0 %v4056, 120
    %v4440 = vpop.permute.xlu0 %4439
    %v4441 = vsel %vm621, %v4410, %v4412
    %v4442 = vsel %vm621, %v4414, %v4416
    %v4443 = vsel %vm621, %v4418, %v4420
    %v4444 = vsel %vm621, %v4422, %v4424
    %v4445 = vsel %vm621, %v4426, %v4428
    %v4446 = vsel %vm621, %v4430, %v4432
    %v4447 = vsel %vm621, %v4434, %v4436
    %v4448 = vsel %vm621, %v4438, %v4440
    %v4457 = vld [vmem:[%s4024] sm:$0xff]
    %v4458 = vld [vmem:[%s4024 + $0x10] sm:$0xff]
    %v4459 = vld [vmem:[%s4024 + $0x20] sm:$0xff]
    %v4460 = vld [vmem:[%s4024 + $0x30] sm:$0xff]
    %v4461 = vld [vmem:[%s4024 + $0x40] sm:$0xff]
    %v4462 = vld [vmem:[%s4024 + $0x50] sm:$0xff]
    %v4463 = vld [vmem:[%s4024 + $0x60] sm:$0xff]
    %v4464 = vld [vmem:[%s4024 + $0x70] sm:$0xff]
    %v4465 = vld [vmem:[%s4024 + $0x8] sm:$0xff]
    %v4466 = vld [vmem:[%s4024 + $0x18] sm:$0xff]
    %v4467 = vld [vmem:[%s4024 + $0x28] sm:$0xff]
    %v4468 = vld [vmem:[%s4024 + $0x38] sm:$0xff]
    %v4469 = vld [vmem:[%s4024 + $0x48] sm:$0xff]
    %v4470 = vld [vmem:[%s4024 + $0x58] sm:$0xff]
    %v4471 = vld [vmem:[%s4024 + $0x68] sm:$0xff]
    %v4472 = vld [vmem:[%s4024 + $0x78] sm:$0xff]
    %4489 = vrot.lane.b32.xlu0 %v4457, 127
    %v4490 = vpop.permute.xlu0 %4489
    %4491 = vrot.lane.b32.xlu0 %v4465, 127
    %v4492 = vpop.permute.xlu0 %4491
    %4493 = vrot.lane.b32.xlu0 %v4458, 127
    %v4494 = vpop.permute.xlu0 %4493
    %4495 = vrot.lane.b32.xlu0 %v4466, 127
    %v4496 = vpop.permute.xlu0 %4495
    %4497 = vrot.lane.b32.xlu0 %v4459, 127
    %v4498 = vpop.permute.xlu0 %4497
    %4499 = vrot.lane.b32.xlu0 %v4467, 127
    %v4500 = vpop.permute.xlu0 %4499
    %4501 = vrot.lane.b32.xlu0 %v4460, 127
    %v4502 = vpop.permute.xlu0 %4501
    %4503 = vrot.lane.b32.xlu0 %v4468, 127
    %v4504 = vpop.permute.xlu0 %4503
    %4505 = vrot.lane.b32.xlu0 %v4461, 127
    %v4506 = vpop.permute.xlu0 %4505
    %4507 = vrot.lane.b32.xlu0 %v4469, 127
    %v4508 = vpop.permute.xlu0 %4507
    %4509 = vrot.lane.b32.xlu0 %v4462, 127
    %v4510 = vpop.permute.xlu0 %4509
    %4511 = vrot.lane.b32.xlu0 %v4470, 127
    %v4512 = vpop.permute.xlu0 %4511
    %4513 = vrot.lane.b32.xlu0 %v4463, 127
    %v4514 = vpop.permute.xlu0 %4513
    %4515 = vrot.lane.b32.xlu0 %v4471, 127
    %v4516 = vpop.permute.xlu0 %4515
    %4517 = vrot.lane.b32.xlu0 %v4464, 127
    %v4518 = vpop.permute.xlu0 %4517
    %4519 = vrot.lane.b32.xlu0 %v4472, 127
    %v4520 = vpop.permute.xlu0 %4519
    %v4521 = vsel %vm289, %v4490, %v4492
    %v4522 = vsel %vm289, %v4494, %v4496
    %v4523 = vsel %vm289, %v4498, %v4500
    %v4524 = vsel %vm289, %v4502, %v4504
    %v4525 = vsel %vm289, %v4506, %v4508
    %v4526 = vsel %vm289, %v4510, %v4512
    %v4527 = vsel %vm289, %v4514, %v4516
    %v4528 = vsel %vm289, %v4518, %v4520
    %4537 = vrot.lane.b32.xlu0 %v4457, 126
    %v4538 = vpop.permute.xlu0 %4537
    %4539 = vrot.lane.b32.xlu0 %v4465, 126
    %v4540 = vpop.permute.xlu0 %4539
    %4541 = vrot.lane.b32.xlu0 %v4458, 126
    %v4542 = vpop.permute.xlu0 %4541
    %4543 = vrot.lane.b32.xlu0 %v4466, 126
    %v4544 = vpop.permute.xlu0 %4543
    %4545 = vrot.lane.b32.xlu0 %v4459, 126
    %v4546 = vpop.permute.xlu0 %4545
    %4547 = vrot.lane.b32.xlu0 %v4467, 126
    %v4548 = vpop.permute.xlu0 %4547
    %4549 = vrot.lane.b32.xlu0 %v4460, 126
    %v4550 = vpop.permute.xlu0 %4549
    %4551 = vrot.lane.b32.xlu0 %v4468, 126
    %v4552 = vpop.permute.xlu0 %4551
    %4553 = vrot.lane.b32.xlu0 %v4461, 126
    %v4554 = vpop.permute.xlu0 %4553
    %4555 = vrot.lane.b32.xlu0 %v4469, 126
    %v4556 = vpop.permute.xlu0 %4555
    %4557 = vrot.lane.b32.xlu0 %v4462, 126
    %v4558 = vpop.permute.xlu0 %4557
    %4559 = vrot.lane.b32.xlu0 %v4470, 126
    %v4560 = vpop.permute.xlu0 %4559
    %4561 = vrot.lane.b32.xlu0 %v4463, 126
    %v4562 = vpop.permute.xlu0 %4561
    %4563 = vrot.lane.b32.xlu0 %v4471, 126
    %v4564 = vpop.permute.xlu0 %4563
    %4565 = vrot.lane.b32.xlu0 %v4464, 126
    %v4566 = vpop.permute.xlu0 %4565
    %4567 = vrot.lane.b32.xlu0 %v4472, 126
    %v4568 = vpop.permute.xlu0 %4567
    %v4569 = vsel %vm339, %v4538, %v4540
    %v4570 = vsel %vm339, %v4542, %v4544
    %v4571 = vsel %vm339, %v4546, %v4548
    %v4572 = vsel %vm339, %v4550, %v4552
    %v4573 = vsel %vm339, %v4554, %v4556
    %v4574 = vsel %vm339, %v4558, %v4560
    %v4575 = vsel %vm339, %v4562, %v4564
    %v4576 = vsel %vm339, %v4566, %v4568
    %4585 = vrot.lane.b32.xlu0 %v4457, 125
    %v4586 = vpop.permute.xlu0 %4585
    %4587 = vrot.lane.b32.xlu0 %v4465, 125
    %v4588 = vpop.permute.xlu0 %4587
    %4589 = vrot.lane.b32.xlu0 %v4458, 125
    %v4590 = vpop.permute.xlu0 %4589
    %4591 = vrot.lane.b32.xlu0 %v4466, 125
    %v4592 = vpop.permute.xlu0 %4591
    %4593 = vrot.lane.b32.xlu0 %v4459, 125
    %v4594 = vpop.permute.xlu0 %4593
    %4595 = vrot.lane.b32.xlu0 %v4467, 125
    %v4596 = vpop.permute.xlu0 %4595
    %4597 = vrot.lane.b32.xlu0 %v4460, 125
    %v4598 = vpop.permute.xlu0 %4597
    %4599 = vrot.lane.b32.xlu0 %v4468, 125
    %v4600 = vpop.permute.xlu0 %4599
    %4601 = vrot.lane.b32.xlu0 %v4461, 125
    %v4602 = vpop.permute.xlu0 %4601
    %4603 = vrot.lane.b32.xlu0 %v4469, 125
    %v4604 = vpop.permute.xlu0 %4603
    %4605 = vrot.lane.b32.xlu0 %v4462, 125
    %v4606 = vpop.permute.xlu0 %4605
    %4607 = vrot.lane.b32.xlu0 %v4470, 125
    %v4608 = vpop.permute.xlu0 %4607
    %4609 = vrot.lane.b32.xlu0 %v4463, 125
    %v4610 = vpop.permute.xlu0 %4609
    %4611 = vrot.lane.b32.xlu0 %v4471, 125
    %v4612 = vpop.permute.xlu0 %4611
    %4613 = vrot.lane.b32.xlu0 %v4464, 125
    %v4614 = vpop.permute.xlu0 %4613
    %4615 = vrot.lane.b32.xlu0 %v4472, 125
    %v4616 = vpop.permute.xlu0 %4615
    %v4617 = vsel %vm386, %v4586, %v4588
    %v4618 = vsel %vm386, %v4590, %v4592
    %v4619 = vsel %vm386, %v4594, %v4596
    %v4620 = vsel %vm386, %v4598, %v4600
    %v4621 = vsel %vm386, %v4602, %v4604
    %v4622 = vsel %vm386, %v4606, %v4608
    %v4623 = vsel %vm386, %v4610, %v4612
    %v4624 = vsel %vm386, %v4614, %v4616
    %4633 = vrot.lane.b32.xlu0 %v4457, 124
    %v4634 = vpop.permute.xlu0 %4633
    %4635 = vrot.lane.b32.xlu0 %v4465, 124
    %v4636 = vpop.permute.xlu0 %4635
    %4637 = vrot.lane.b32.xlu0 %v4458, 124
    %v4638 = vpop.permute.xlu0 %4637
    %4639 = vrot.lane.b32.xlu0 %v4466, 124
    %v4640 = vpop.permute.xlu0 %4639
    %4641 = vrot.lane.b32.xlu0 %v4459, 124
    %v4642 = vpop.permute.xlu0 %4641
    %4643 = vrot.lane.b32.xlu0 %v4467, 124
    %v4644 = vpop.permute.xlu0 %4643
    %4645 = vrot.lane.b32.xlu0 %v4460, 124
    %v4646 = vpop.permute.xlu0 %4645
    %4647 = vrot.lane.b32.xlu0 %v4468, 124
    %v4648 = vpop.permute.xlu0 %4647
    %4649 = vrot.lane.b32.xlu0 %v4461, 124
    %v4650 = vpop.permute.xlu0 %4649
    %4651 = vrot.lane.b32.xlu0 %v4469, 124
    %v4652 = vpop.permute.xlu0 %4651
    %4653 = vrot.lane.b32.xlu0 %v4462, 124
    %v4654 = vpop.permute.xlu0 %4653
    %4655 = vrot.lane.b32.xlu0 %v4470, 124
    %v4656 = vpop.permute.xlu0 %4655
    %4657 = vrot.lane.b32.xlu0 %v4463, 124
    %v4658 = vpop.permute.xlu0 %4657
    %4659 = vrot.lane.b32.xlu0 %v4471, 124
    %v4660 = vpop.permute.xlu0 %4659
    %4661 = vrot.lane.b32.xlu0 %v4464, 124
    %v4662 = vpop.permute.xlu0 %4661
    %4663 = vrot.lane.b32.xlu0 %v4472, 124
    %v4664 = vpop.permute.xlu0 %4663
    %v4665 = vsel %vm433, %v4634, %v4636
    %v4666 = vsel %vm433, %v4638, %v4640
    %v4667 = vsel %vm433, %v4642, %v4644
    %v4668 = vsel %vm433, %v4646, %v4648
    %v4669 = vsel %vm433, %v4650, %v4652
    %v4670 = vsel %vm433, %v4654, %v4656
    %v4671 = vsel %vm433, %v4658, %v4660
    %v4672 = vsel %vm433, %v4662, %v4664
    %4681 = vrot.lane.b32.xlu0 %v4457, 123
    %v4682 = vpop.permute.xlu0 %4681
    %4683 = vrot.lane.b32.xlu0 %v4465, 123
    %v4684 = vpop.permute.xlu0 %4683
    %4685 = vrot.lane.b32.xlu0 %v4458, 123
    %v4686 = vpop.permute.xlu0 %4685
    %4687 = vrot.lane.b32.xlu0 %v4466, 123
    %v4688 = vpop.permute.xlu0 %4687
    %4689 = vrot.lane.b32.xlu0 %v4459, 123
    %v4690 = vpop.permute.xlu0 %4689
    %4691 = vrot.lane.b32.xlu0 %v4467, 123
    %v4692 = vpop.permute.xlu0 %4691
    %4693 = vrot.lane.b32.xlu0 %v4460, 123
    %v4694 = vpop.permute.xlu0 %4693
    %4695 = vrot.lane.b32.xlu0 %v4468, 123
    %v4696 = vpop.permute.xlu0 %4695
    %4697 = vrot.lane.b32.xlu0 %v4461, 123
    %v4698 = vpop.permute.xlu0 %4697
    %4699 = vrot.lane.b32.xlu0 %v4469, 123
    %v4700 = vpop.permute.xlu0 %4699
    %4701 = vrot.lane.b32.xlu0 %v4462, 123
    %v4702 = vpop.permute.xlu0 %4701
    %4703 = vrot.lane.b32.xlu0 %v4470, 123
    %v4704 = vpop.permute.xlu0 %4703
    %4705 = vrot.lane.b32.xlu0 %v4463, 123
    %v4706 = vpop.permute.xlu0 %4705
    %4707 = vrot.lane.b32.xlu0 %v4471, 123
    %v4708 = vpop.permute.xlu0 %4707
    %4709 = vrot.lane.b32.xlu0 %v4464, 123
    %v4710 = vpop.permute.xlu0 %4709
    %4711 = vrot.lane.b32.xlu0 %v4472, 123
    %v4712 = vpop.permute.xlu0 %4711
    %v4713 = vsel %vm480, %v4682, %v4684
    %v4714 = vsel %vm480, %v4686, %v4688
    %v4715 = vsel %vm480, %v4690, %v4692
    %v4716 = vsel %vm480, %v4694, %v4696
    %v4717 = vsel %vm480, %v4698, %v4700
    %v4718 = vsel %vm480, %v4702, %v4704
    %v4719 = vsel %vm480, %v4706, %v4708
    %v4720 = vsel %vm480, %v4710, %v4712
    %4729 = vrot.lane.b32.xlu0 %v4457, 122
    %v4730 = vpop.permute.xlu0 %4729
    %4731 = vrot.lane.b32.xlu0 %v4465, 122
    %v4732 = vpop.permute.xlu0 %4731
    %4733 = vrot.lane.b32.xlu0 %v4458, 122
    %v4734 = vpop.permute.xlu0 %4733
    %4735 = vrot.lane.b32.xlu0 %v4466, 122
    %v4736 = vpop.permute.xlu0 %4735
    %4737 = vrot.lane.b32.xlu0 %v4459, 122
    %v4738 = vpop.permute.xlu0 %4737
    %4739 = vrot.lane.b32.xlu0 %v4467, 122
    %v4740 = vpop.permute.xlu0 %4739
    %4741 = vrot.lane.b32.xlu0 %v4460, 122
    %v4742 = vpop.permute.xlu0 %4741
    %4743 = vrot.lane.b32.xlu0 %v4468, 122
    %v4744 = vpop.permute.xlu0 %4743
    %4745 = vrot.lane.b32.xlu0 %v4461, 122
    %v4746 = vpop.permute.xlu0 %4745
    %4747 = vrot.lane.b32.xlu0 %v4469, 122
    %v4748 = vpop.permute.xlu0 %4747
    %4749 = vrot.lane.b32.xlu0 %v4462, 122
    %v4750 = vpop.permute.xlu0 %4749
    %4751 = vrot.lane.b32.xlu0 %v4470, 122
    %v4752 = vpop.permute.xlu0 %4751
    %4753 = vrot.lane.b32.xlu0 %v4463, 122
    %v4754 = vpop.permute.xlu0 %4753
    %4755 = vrot.lane.b32.xlu0 %v4471, 122
    %v4756 = vpop.permute.xlu0 %4755
    %4757 = vrot.lane.b32.xlu0 %v4464, 122
    %v4758 = vpop.permute.xlu0 %4757
    %4759 = vrot.lane.b32.xlu0 %v4472, 122
    %v4760 = vpop.permute.xlu0 %4759
    %v4761 = vsel %vm527, %v4730, %v4732
    %v4762 = vsel %vm527, %v4734, %v4736
    %v4763 = vsel %vm527, %v4738, %v4740
    %v4764 = vsel %vm527, %v4742, %v4744
    %v4765 = vsel %vm527, %v4746, %v4748
    %v4766 = vsel %vm527, %v4750, %v4752
    %v4767 = vsel %vm527, %v4754, %v4756
    %v4768 = vsel %vm527, %v4758, %v4760
    %4777 = vrot.lane.b32.xlu0 %v4457, 121
    %v4778 = vpop.permute.xlu0 %4777
    %4779 = vrot.lane.b32.xlu0 %v4465, 121
    %v4780 = vpop.permute.xlu0 %4779
    %4781 = vrot.lane.b32.xlu0 %v4458, 121
    %v4782 = vpop.permute.xlu0 %4781
    %4783 = vrot.lane.b32.xlu0 %v4466, 121
    %v4784 = vpop.permute.xlu0 %4783
    %4785 = vrot.lane.b32.xlu0 %v4459, 121
    %v4786 = vpop.permute.xlu0 %4785
    %4787 = vrot.lane.b32.xlu0 %v4467, 121
    %v4788 = vpop.permute.xlu0 %4787
    %4789 = vrot.lane.b32.xlu0 %v4460, 121
    %v4790 = vpop.permute.xlu0 %4789
    %4791 = vrot.lane.b32.xlu0 %v4468, 121
    %v4792 = vpop.permute.xlu0 %4791
    %4793 = vrot.lane.b32.xlu0 %v4461, 121
    %v4794 = vpop.permute.xlu0 %4793
    %4795 = vrot.lane.b32.xlu0 %v4469, 121
    %v4796 = vpop.permute.xlu0 %4795
    %4797 = vrot.lane.b32.xlu0 %v4462, 121
    %v4798 = vpop.permute.xlu0 %4797
    %4799 = vrot.lane.b32.xlu0 %v4470, 121
    %v4800 = vpop.permute.xlu0 %4799
    %4801 = vrot.lane.b32.xlu0 %v4463, 121
    %v4802 = vpop.permute.xlu0 %4801
    %4803 = vrot.lane.b32.xlu0 %v4471, 121
    %v4804 = vpop.permute.xlu0 %4803
    %4805 = vrot.lane.b32.xlu0 %v4464, 121
    %v4806 = vpop.permute.xlu0 %4805
    %4807 = vrot.lane.b32.xlu0 %v4472, 121
    %v4808 = vpop.permute.xlu0 %4807
    %v4809 = vsel %vm574, %v4778, %v4780
    %v4810 = vsel %vm574, %v4782, %v4784
    %v4811 = vsel %vm574, %v4786, %v4788
    %v4812 = vsel %vm574, %v4790, %v4792
    %v4813 = vsel %vm574, %v4794, %v4796
    %v4814 = vsel %vm574, %v4798, %v4800
    %v4815 = vsel %vm574, %v4802, %v4804
    %v4816 = vsel %vm574, %v4806, %v4808
    %4825 = vrot.lane.b32.xlu0 %v4457, 120
    %v4826 = vpop.permute.xlu0 %4825
    %4827 = vrot.lane.b32.xlu0 %v4465, 120
    %v4828 = vpop.permute.xlu0 %4827
    %4829 = vrot.lane.b32.xlu0 %v4458, 120
    %v4830 = vpop.permute.xlu0 %4829
    %4831 = vrot.lane.b32.xlu0 %v4466, 120
    %v4832 = vpop.permute.xlu0 %4831
    %4833 = vrot.lane.b32.xlu0 %v4459, 120
    %v4834 = vpop.permute.xlu0 %4833
    %4835 = vrot.lane.b32.xlu0 %v4467, 120
    %v4836 = vpop.permute.xlu0 %4835
    %4837 = vrot.lane.b32.xlu0 %v4460, 120
    %v4838 = vpop.permute.xlu0 %4837
    %4839 = vrot.lane.b32.xlu0 %v4468, 120
    %v4840 = vpop.permute.xlu0 %4839
    %4841 = vrot.lane.b32.xlu0 %v4461, 120
    %v4842 = vpop.permute.xlu0 %4841
    %4843 = vrot.lane.b32.xlu0 %v4469, 120
    %v4844 = vpop.permute.xlu0 %4843
    %4845 = vrot.lane.b32.xlu0 %v4462, 120
    %v4846 = vpop.permute.xlu0 %4845
    %4847 = vrot.lane.b32.xlu0 %v4470, 120
    %v4848 = vpop.permute.xlu0 %4847
    %4849 = vrot.lane.b32.xlu0 %v4463, 120
    %v4850 = vpop.permute.xlu0 %4849
    %4851 = vrot.lane.b32.xlu0 %v4471, 120
    %v4852 = vpop.permute.xlu0 %4851
    %4853 = vrot.lane.b32.xlu0 %v4464, 120
    %v4854 = vpop.permute.xlu0 %4853
    %4855 = vrot.lane.b32.xlu0 %v4472, 120
    %v4856 = vpop.permute.xlu0 %4855
    %v4857 = vsel %vm621, %v4826, %v4828
    %v4858 = vsel %vm621, %v4830, %v4832
    %v4859 = vsel %vm621, %v4834, %v4836
    %v4860 = vsel %vm621, %v4838, %v4840
    %v4861 = vsel %vm621, %v4842, %v4844
    %v4862 = vsel %vm621, %v4846, %v4848
    %v4863 = vsel %vm621, %v4850, %v4852
    %v4864 = vsel %vm621, %v4854, %v4856
    %v4873 = vld [vmem:[#allocation13] sm:$0xff]
    %v4874 = vld [vmem:[#allocation13 + $0x8] sm:$0xff]
    %v4875 = vld [vmem:[#allocation13 + $0x10] sm:$0xff]
    %v4876 = vld [vmem:[#allocation13 + $0x18] sm:$0xff]
    %v4877 = vld [vmem:[#allocation13 + $0x20] sm:$0xff]
    %v4878 = vld [vmem:[#allocation13 + $0x28] sm:$0xff]
    %v4879 = vld [vmem:[#allocation13 + $0x30] sm:$0xff]
    %v4880 = vld [vmem:[#allocation13 + $0x38] sm:$0xff]
    %v4881 = vld [vmem:[#allocation13 + $0x40] sm:$0xff]
    %v4882 = vld [vmem:[#allocation13 + $0x48] sm:$0xff]
    %v4883 = vld [vmem:[#allocation13 + $0x50] sm:$0xff]
    %v4884 = vld [vmem:[#allocation13 + $0x58] sm:$0xff]
    %v4885 = vld [vmem:[#allocation13 + $0x60] sm:$0xff]
    %v4886 = vld [vmem:[#allocation13 + $0x68] sm:$0xff]
    %v4887 = vld [vmem:[#allocation13 + $0x70] sm:$0xff]
    %v4888 = vld [vmem:[#allocation13 + $0x78] sm:$0xff]
    %v4889 = vld [vmem:[#allocation13 + $0x80] sm:$0xff]
    %v4890 = vld [vmem:[#allocation13 + $0x88] sm:$0xff]
    %v4891 = vld [vmem:[#allocation13 + $0x90] sm:$0xff]
    %v4892 = vld [vmem:[#allocation13 + $0x98] sm:$0xff]
    %v4893 = vld [vmem:[%s14] sm:$0xff]
    %v4894 = vld [vmem:[%s14 + $0x8] sm:$0xff]
    %v4895 = vld [vmem:[%s14 + $0x10] sm:$0xff]
    %v4896 = vld [vmem:[%s14 + $0x18] sm:$0xff]
    %4898 = vset.pattern.permute.xlu0 0
    %4899 = vperm.xlu0 %4898, %v4893
    %v4900 = vpop.permute.xlu0 %4899
    %4903 = vset.pattern.permute.xlu0 0
    %4904 = vperm.xlu0 %4903, %v4894
    %v4905 = vpop.permute.xlu0 %4904
    %4908 = vset.pattern.permute.xlu0 0
    %4909 = vperm.xlu0 %4908, %v4895
    %v4910 = vpop.permute.xlu0 %4909
    %4913 = vset.pattern.permute.xlu0 0
    %4914 = vperm.xlu0 %4913, %v4896
    %v4915 = vpop.permute.xlu0 %4914
    %v4918 = vsel %vm3117, %v4877, 0
    %v4921 = vsel %vm3117, %v4882, 0
    %v4924 = vsel %vm3117, %v4887, 0
    %v4927 = vsel %vm3117, %v4892, 0
    %4929 = vmatpush.msra.mxu0 %v4112
    %4930 = vmatpush.msra.mxu0 %v4111
    %4931 = vmatpush.msra.mxu0 %v4110
    %4932 = vmatpush.msra.mxu0 %v4109
    %4933 = vmatpush.msra.mxu0 %v4108
    %4934 = vmatpush.msra.mxu0 %v4107
    %4935 = vmatpush.msra.mxu0 %v4106
    %4936 = vmatpush.msra.mxu0 %v4105
    %4937 = vmatpush.msra.mxu0 %v4048
    %4938 = vmatpush.msra.mxu0 %v4047
    %4939 = vmatpush.msra.mxu0 %v4046
    %4940 = vmatpush.msra.mxu0 %v4045
    %4941 = vmatpush.msra.mxu0 %v4044
    %4942 = vmatpush.msra.mxu0 %v4043
    %4943 = vmatpush.msra.mxu0 %v4042
    %4944 = vmatpush.msra.mxu0 %v4041
    %4945 = vmatmul.f32.gmra.mxu0 %v4873
    %v4946 = vpop.f32.mrf.mxu0
    %v4947 = vadd.f32 %v4900, %v4946
    %4948 = vmatmul.f32.gmra.mxu0 %v4878
    %v4949 = vpop.f32.mrf.mxu0
    %v4950 = vadd.f32 %v4905, %v4949
    %4951 = vmatmul.f32.gmra.mxu0 %v4883
    %v4952 = vpop.f32.mrf.mxu0
    %v4953 = vadd.f32 %v4910, %v4952
    %4954 = vmatmul.f32.gmra.mxu0 %v4888
    %v4955 = vpop.f32.mrf.mxu0
    %v4956 = vadd.f32 %v4915, %v4955
    %4957 = vdwg.mxu0
    %4958 = vmatpush.msra.mxu0 %v4208
    %4959 = vmatpush.msra.mxu0 %v4207
    %4960 = vmatpush.msra.mxu0 %v4206
    %4961 = vmatpush.msra.mxu0 %v4205
    %4962 = vmatpush.msra.mxu0 %v4204
    %4963 = vmatpush.msra.mxu0 %v4203
    %4964 = vmatpush.msra.mxu0 %v4202
    %4965 = vmatpush.msra.mxu0 %v4201
    %4966 = vmatpush.msra.mxu0 %v4160
    %4967 = vmatpush.msra.mxu0 %v4159
    %4968 = vmatpush.msra.mxu0 %v4158
    %4969 = vmatpush.msra.mxu0 %v4157
    %4970 = vmatpush.msra.mxu0 %v4156
    %4971 = vmatpush.msra.mxu0 %v4155
    %4972 = vmatpush.msra.mxu0 %v4154
    %4973 = vmatpush.msra.mxu0 %v4153
    %4974 = vmatmul.f32.gmra.mxu0 %v4874
    %v4975 = vpop.f32.mrf.mxu0
    %v4976 = vadd.f32 %v4947, %v4975
    %4977 = vmatmul.f32.gmra.mxu0 %v4879
    %v4978 = vpop.f32.mrf.mxu0
    %v4979 = vadd.f32 %v4950, %v4978
    %4980 = vmatmul.f32.gmra.mxu0 %v4884
    %v4981 = vpop.f32.mrf.mxu0
    %v4982 = vadd.f32 %v4953, %v4981
    %4983 = vmatmul.f32.gmra.mxu0 %v4889
    %v4984 = vpop.f32.mrf.mxu0
    %v4985 = vadd.f32 %v4956, %v4984
    %4986 = vdwg.mxu0
    %4987 = vmatpush.msra.mxu0 %v4304
    %4988 = vmatpush.msra.mxu0 %v4303
    %4989 = vmatpush.msra.mxu0 %v4302
    %4990 = vmatpush.msra.mxu0 %v4301
    %4991 = vmatpush.msra.mxu0 %v4300
    %4992 = vmatpush.msra.mxu0 %v4299
    %4993 = vmatpush.msra.mxu0 %v4298
    %4994 = vmatpush.msra.mxu0 %v4297
    %4995 = vmatpush.msra.mxu0 %v4256
    %4996 = vmatpush.msra.mxu0 %v4255
    %4997 = vmatpush.msra.mxu0 %v4254
    %4998 = vmatpush.msra.mxu0 %v4253
    %4999 = vmatpush.msra.mxu0 %v4252
    %5000 = vmatpush.msra.mxu0 %v4251
    %5001 = vmatpush.msra.mxu0 %v4250
    %5002 = vmatpush.msra.mxu0 %v4249
    %5003 = vmatmul.f32.gmra.mxu0 %v4875
    %v5004 = vpop.f32.mrf.mxu0
    %v5005 = vadd.f32 %v4976, %v5004
    %5006 = vmatmul.f32.gmra.mxu0 %v4880
    %v5007 = vpop.f32.mrf.mxu0
    %v5008 = vadd.f32 %v4979, %v5007
    %5009 = vmatmul.f32.gmra.mxu0 %v4885
    %v5010 = vpop.f32.mrf.mxu0
    %v5011 = vadd.f32 %v4982, %v5010
    %5012 = vmatmul.f32.gmra.mxu0 %v4890
    %v5013 = vpop.f32.mrf.mxu0
    %v5014 = vadd.f32 %v4985, %v5013
    %5015 = vdwg.mxu0
    %5016 = vmatpush.msra.mxu0 %v4400
    %5017 = vmatpush.msra.mxu0 %v4399
    %5018 = vmatpush.msra.mxu0 %v4398
    %5019 = vmatpush.msra.mxu0 %v4397
    %5020 = vmatpush.msra.mxu0 %v4396
    %5021 = vmatpush.msra.mxu0 %v4395
    %5022 = vmatpush.msra.mxu0 %v4394
    %5023 = vmatpush.msra.mxu0 %v4393
    %5024 = vmatpush.msra.mxu0 %v4352
    %5025 = vmatpush.msra.mxu0 %v4351
    %5026 = vmatpush.msra.mxu0 %v4350
    %5027 = vmatpush.msra.mxu0 %v4349
    %5028 = vmatpush.msra.mxu0 %v4348
    %5029 = vmatpush.msra.mxu0 %v4347
    %5030 = vmatpush.msra.mxu0 %v4346
    %5031 = vmatpush.msra.mxu0 %v4345
    %5032 = vmatmul.f32.gmra.mxu0 %v4876
    %v5033 = vpop.f32.mrf.mxu0
    %v5034 = vadd.f32 %v5005, %v5033
    %5035 = vmatmul.f32.gmra.mxu0 %v4881
    %v5036 = vpop.f32.mrf.mxu0
    %v5037 = vadd.f32 %v5008, %v5036
    %5038 = vmatmul.f32.gmra.mxu0 %v4886
    %v5039 = vpop.f32.mrf.mxu0
    %v5040 = vadd.f32 %v5011, %v5039
    %5041 = vmatmul.f32.gmra.mxu0 %v4891
    %v5042 = vpop.f32.mrf.mxu0
    %v5043 = vadd.f32 %v5014, %v5042
    %5044 = vdwg.mxu0
    %5045 = vmatpush.msra.mxu0 0.0
    %5046 = vmatpush.msra.mxu0 0.0
    %5047 = vmatpush.msra.mxu0 0.0
    %5048 = vmatpush.msra.mxu0 0.0
    %5049 = vmatpush.msra.mxu0 0.0
    %5050 = vmatpush.msra.mxu0 0.0
    %5051 = vmatpush.msra.mxu0 0.0
    %5052 = vmatpush.msra.mxu0 0.0
    %5053 = vmatpush.msra.mxu0 %v4448
    %5054 = vmatpush.msra.mxu0 %v4447
    %5055 = vmatpush.msra.mxu0 %v4446
    %5056 = vmatpush.msra.mxu0 %v4445
    %5057 = vmatpush.msra.mxu0 %v4444
    %5058 = vmatpush.msra.mxu0 %v4443
    %5059 = vmatpush.msra.mxu0 %v4442
    %5060 = vmatpush.msra.mxu0 %v4441
    %5061 = vmatmul.f32.gmra.mxu0 %v4918
    %v5062 = vpop.f32.mrf.mxu0
    %v5063 = vadd.f32 %v5034, %v5062
    %5064 = vmatmul.f32.gmra.mxu0 %v4921
    %v5065 = vpop.f32.mrf.mxu0
    %v5066 = vadd.f32 %v5037, %v5065
    %5067 = vmatmul.f32.gmra.mxu0 %v4924
    %v5068 = vpop.f32.mrf.mxu0
    %v5069 = vadd.f32 %v5040, %v5068
    %5070 = vmatmul.f32.gmra.mxu0 %v4927
    %v5071 = vpop.f32.mrf.mxu0
    %v5072 = vadd.f32 %v5043, %v5071
    %5073 = vdwg.mxu0
    %5074 = vmatpush.msra.mxu0 %v4528
    %5075 = vmatpush.msra.mxu0 %v4527
    %5076 = vmatpush.msra.mxu0 %v4526
    %5077 = vmatpush.msra.mxu0 %v4525
    %5078 = vmatpush.msra.mxu0 %v4524
    %5079 = vmatpush.msra.mxu0 %v4523
    %5080 = vmatpush.msra.mxu0 %v4522
    %5081 = vmatpush.msra.mxu0 %v4521
    %5082 = vmatpush.msra.mxu0 %v4464
    %5083 = vmatpush.msra.mxu0 %v4463
    %5084 = vmatpush.msra.mxu0 %v4462
    %5085 = vmatpush.msra.mxu0 %v4461
    %5086 = vmatpush.msra.mxu0 %v4460
    %5087 = vmatpush.msra.mxu0 %v4459
    %5088 = vmatpush.msra.mxu0 %v4458
    %5089 = vmatpush.msra.mxu0 %v4457
    %5090 = vmatmul.f32.gmra.mxu0 %v4873
    %v5091 = vpop.f32.mrf.mxu0
    %v5092 = vadd.f32 %v4900, %v5091
    %5093 = vmatmul.f32.gmra.mxu0 %v4878
    %v5094 = vpop.f32.mrf.mxu0
    %v5095 = vadd.f32 %v4905, %v5094
    %5096 = vmatmul.f32.gmra.mxu0 %v4883
    %v5097 = vpop.f32.mrf.mxu0
    %v5098 = vadd.f32 %v4910, %v5097
    %5099 = vmatmul.f32.gmra.mxu0 %v4888
    %v5100 = vpop.f32.mrf.mxu0
    %v5101 = vadd.f32 %v4915, %v5100
    %5102 = vdwg.mxu0
    %5103 = vmatpush.msra.mxu0 %v4624
    %5104 = vmatpush.msra.mxu0 %v4623
    %5105 = vmatpush.msra.mxu0 %v4622
    %5106 = vmatpush.msra.mxu0 %v4621
    %5107 = vmatpush.msra.mxu0 %v4620
    %5108 = vmatpush.msra.mxu0 %v4619
    %5109 = vmatpush.msra.mxu0 %v4618
    %5110 = vmatpush.msra.mxu0 %v4617
    %5111 = vmatpush.msra.mxu0 %v4576
    %5112 = vmatpush.msra.mxu0 %v4575
    %5113 = vmatpush.msra.mxu0 %v4574
    %5114 = vmatpush.msra.mxu0 %v4573
    %5115 = vmatpush.msra.mxu0 %v4572
    %5116 = vmatpush.msra.mxu0 %v4571
    %5117 = vmatpush.msra.mxu0 %v4570
    %5118 = vmatpush.msra.mxu0 %v4569
    %5119 = vmatmul.f32.gmra.mxu0 %v4874
    %v5120 = vpop.f32.mrf.mxu0
    %v5121 = vadd.f32 %v5092, %v5120
    %5122 = vmatmul.f32.gmra.mxu0 %v4879
    %v5123 = vpop.f32.mrf.mxu0
    %v5124 = vadd.f32 %v5095, %v5123
    %5125 = vmatmul.f32.gmra.mxu0 %v4884
    %v5126 = vpop.f32.mrf.mxu0
    %v5127 = vadd.f32 %v5098, %v5126
    %5128 = vmatmul.f32.gmra.mxu0 %v4889
    %v5129 = vpop.f32.mrf.mxu0
    %v5130 = vadd.f32 %v5101, %v5129
    %5131 = vdwg.mxu0
    %5132 = vmatpush.msra.mxu0 %v4720
    %5133 = vmatpush.msra.mxu0 %v4719
    %5134 = vmatpush.msra.mxu0 %v4718
    %5135 = vmatpush.msra.mxu0 %v4717
    %5136 = vmatpush.msra.mxu0 %v4716
    %5137 = vmatpush.msra.mxu0 %v4715
    %5138 = vmatpush.msra.mxu0 %v4714
    %5139 = vmatpush.msra.mxu0 %v4713
    %5140 = vmatpush.msra.mxu0 %v4672
    %5141 = vmatpush.msra.mxu0 %v4671
    %5142 = vmatpush.msra.mxu0 %v4670
    %5143 = vmatpush.msra.mxu0 %v4669
    %5144 = vmatpush.msra.mxu0 %v4668
    %5145 = vmatpush.msra.mxu0 %v4667
    %5146 = vmatpush.msra.mxu0 %v4666
    %5147 = vmatpush.msra.mxu0 %v4665
    %5148 = vmatmul.f32.gmra.mxu0 %v4875
    %v5149 = vpop.f32.mrf.mxu0
    %v5150 = vadd.f32 %v5121, %v5149
    %5151 = vmatmul.f32.gmra.mxu0 %v4880
    %v5152 = vpop.f32.mrf.mxu0
    %v5153 = vadd.f32 %v5124, %v5152
    %5154 = vmatmul.f32.gmra.mxu0 %v4885
    %v5155 = vpop.f32.mrf.mxu0
    %v5156 = vadd.f32 %v5127, %v5155
    %5157 = vmatmul.f32.gmra.mxu0 %v4890
    %v5158 = vpop.f32.mrf.mxu0
    %v5159 = vadd.f32 %v5130, %v5158
    %5160 = vdwg.mxu0
    %5161 = vmatpush.msra.mxu0 %v4816
    %5162 = vmatpush.msra.mxu0 %v4815
    %5163 = vmatpush.msra.mxu0 %v4814
    %5164 = vmatpush.msra.mxu0 %v4813
    %5165 = vmatpush.msra.mxu0 %v4812
    %5166 = vmatpush.msra.mxu0 %v4811
    %5167 = vmatpush.msra.mxu0 %v4810
    %5168 = vmatpush.msra.mxu0 %v4809
    %5169 = vmatpush.msra.mxu0 %v4768
    %5170 = vmatpush.msra.mxu0 %v4767
    %5171 = vmatpush.msra.mxu0 %v4766
    %5172 = vmatpush.msra.mxu0 %v4765
    %5173 = vmatpush.msra.mxu0 %v4764
    %5174 = vmatpush.msra.mxu0 %v4763
    %5175 = vmatpush.msra.mxu0 %v4762
    %5176 = vmatpush.msra.mxu0 %v4761
    %5177 = vmatmul.f32.gmra.mxu0 %v4876
    %v5178 = vpop.f32.mrf.mxu0
    %v5179 = vadd.f32 %v5150, %v5178
    %5180 = vmatmul.f32.gmra.mxu0 %v4881
    %v5181 = vpop.f32.mrf.mxu0
    %v5182 = vadd.f32 %v5153, %v5181
    %5183 = vmatmul.f32.gmra.mxu0 %v4886
    %v5184 = vpop.f32.mrf.mxu0
    %v5185 = vadd.f32 %v5156, %v5184
    %5186 = vmatmul.f32.gmra.mxu0 %v4891
    %v5187 = vpop.f32.mrf.mxu0
    %v5188 = vadd.f32 %v5159, %v5187
    %5189 = vdwg.mxu0
    %5190 = vmatpush.msra.mxu0 0.0
    %5191 = vmatpush.msra.mxu0 0.0
    %5192 = vmatpush.msra.mxu0 0.0
    %5193 = vmatpush.msra.mxu0 0.0
    %5194 = vmatpush.msra.mxu0 0.0
    %5195 = vmatpush.msra.mxu0 0.0
    %5196 = vmatpush.msra.mxu0 0.0
    %5197 = vmatpush.msra.mxu0 0.0
    %5198 = vmatpush.msra.mxu0 %v4864
    %5199 = vmatpush.msra.mxu0 %v4863
    %5200 = vmatpush.msra.mxu0 %v4862
    %5201 = vmatpush.msra.mxu0 %v4861
    %5202 = vmatpush.msra.mxu0 %v4860
    %5203 = vmatpush.msra.mxu0 %v4859
    %5204 = vmatpush.msra.mxu0 %v4858
    %5205 = vmatpush.msra.mxu0 %v4857
    %5206 = vmatmul.f32.gmra.mxu0 %v4918
    %v5207 = vpop.f32.mrf.mxu0
    %v5208 = vadd.f32 %v5179, %v5207
    %5209 = vmatmul.f32.gmra.mxu0 %v4921
    %v5210 = vpop.f32.mrf.mxu0
    %v5211 = vadd.f32 %v5182, %v5210
    %5212 = vmatmul.f32.gmra.mxu0 %v4924
    %v5213 = vpop.f32.mrf.mxu0
    %v5214 = vadd.f32 %v5185, %v5213
    %5215 = vmatmul.f32.gmra.mxu0 %v4927
    %v5216 = vpop.f32.mrf.mxu0
    %v5217 = vadd.f32 %v5188, %v5216
    %5218 = vdwg.mxu0
    %vm5219 = vcmp.gt.f32.partialorder %v5063, 0.0
    %vm5220 = vcmp.gt.f32.partialorder %v5208, 0.0
    %vm5221 = vcmp.gt.f32.partialorder %v5066, 0.0
    %vm5222 = vcmp.gt.f32.partialorder %v5211, 0.0
    %vm5223 = vcmp.gt.f32.partialorder %v5069, 0.0
    %vm5224 = vcmp.gt.f32.partialorder %v5214, 0.0
    %vm5225 = vcmp.gt.f32.partialorder %v5072, 0.0
    %vm5226 = vcmp.gt.f32.partialorder %v5217, 0.0
    %v5227 = vmul.f32 %v5063, 0.2
    %v5228 = vmul.f32 %v5208, 0.2
    %v5229 = vmul.f32 %v5066, 0.2
    %v5230 = vmul.f32 %v5211, 0.2
    %v5231 = vmul.f32 %v5069, 0.2
    %v5232 = vmul.f32 %v5214, 0.2
    %v5233 = vmul.f32 %v5072, 0.2
    %v5234 = vmul.f32 %v5217, 0.2
    %v5235 = vsel %vm5219, %v5063, %v5227
    %v5236 = vsel %vm5220, %v5208, %v5228
    %v5237 = vsel %vm5221, %v5066, %v5229
    %v5238 = vsel %vm5222, %v5211, %v5230
    %v5239 = vsel %vm5223, %v5069, %v5231
    %v5240 = vsel %vm5224, %v5214, %v5232
    %v5241 = vsel %vm5225, %v5072, %v5233
    %v5242 = vsel %vm5226, %v5217, %v5234
    %v5243 = vadd.f32 %v5235, %v5236
    %5244 = vadd.xlane.f32.xlu0 %v5243
    %v5245 = vpop.xlane.xlu0 %5244
    %v5246 = vadd.f32 %v5237, %v5238
    %5247 = vadd.xlane.f32.xlu0 %v5246
    %v5248 = vpop.xlane.xlu0 %5247
    %v5249 = vadd.f32 %v5239, %v5240
    %5250 = vadd.xlane.f32.xlu0 %v5249
    %v5251 = vpop.xlane.xlu0 %5250
    %v5252 = vadd.f32 %v5241, %v5242
    %5253 = vadd.xlane.f32.xlu0 %v5252
    %v5254 = vpop.xlane.xlu0 %5253
    %v5255 = vmul.f32 %v5245, %v738
    %v5256 = vmul.f32 %v5248, %v738
    %v5257 = vmul.f32 %v5251, %v738
    %v5258 = vmul.f32 %v5254, %v738
    %v5259 = vmul.f32 %v5235, %v5235
    %v5260 = vmul.f32 %v5236, %v5236
    %v5261 = vmul.f32 %v5237, %v5237
    %v5262 = vmul.f32 %v5238, %v5238
    %v5263 = vmul.f32 %v5239, %v5239
    %v5264 = vmul.f32 %v5240, %v5240
    %v5265 = vmul.f32 %v5241, %v5241
    %v5266 = vmul.f32 %v5242, %v5242
    %v5267 = vadd.f32 %v5259, %v5260
    %5268 = vadd.xlane.f32.xlu0 %v5267
    %v5269 = vpop.xlane.xlu0 %5268
    %v5270 = vadd.f32 %v5261, %v5262
    %5271 = vadd.xlane.f32.xlu0 %v5270
    %v5272 = vpop.xlane.xlu0 %5271
    %v5273 = vadd.f32 %v5263, %v5264
    %5274 = vadd.xlane.f32.xlu0 %v5273
    %v5275 = vpop.xlane.xlu0 %5274
    %v5276 = vadd.f32 %v5265, %v5266
    %5277 = vadd.xlane.f32.xlu0 %v5276
    %v5278 = vpop.xlane.xlu0 %5277
    %v5279 = vmul.f32 %v5269, %v738
    %v5280 = vmul.f32 %v5272, %v738
    %v5281 = vmul.f32 %v5275, %v738
    %v5282 = vmul.f32 %v5278, %v738
    %v5283 = vmul.f32 %v5255, %v5255
    %v5284 = vmul.f32 %v5256, %v5256
    %v5285 = vmul.f32 %v5257, %v5257
    %v5286 = vmul.f32 %v5258, %v5258
    %v5287 = vsub.f32 %v5279, %v5283
    %v5288 = vsub.f32 %v5280, %v5284
    %v5289 = vsub.f32 %v5281, %v5285
    %v5290 = vsub.f32 %v5282, %v5286
    %v5291 = vmax.f32 %v5287, 0.0
    %v5292 = vmax.f32 %v5288, 0.0
    %v5293 = vmax.f32 %v5289, 0.0
    %v5294 = vmax.f32 %v5290, 0.0
    %v5295 = vld [vmem:[%s15] sm:$0xff]
    %v5296 = vld [vmem:[%s15 + $0x8] sm:$0xff]
    %v5297 = vld [vmem:[%s15 + $0x10] sm:$0xff]
    %v5298 = vld [vmem:[%s15 + $0x18] sm:$0xff]
    %v5299 = vadd.f32 %v5291, 1e-05
    %v5300 = vadd.f32 %v5292, 1e-05
    %v5301 = vadd.f32 %v5293, 1e-05
    %v5302 = vadd.f32 %v5294, 1e-05
    %v5303 = vrsqrt.pop %v5299
    %v5304 = vmul.f32 %v5303, %v5299
    %v5305 = vmul.f32 %v5304, %v5303
    %v5306 = vmul.f32 0.5, %v5305
    %v5307 = vsub.f32 1.5, %v5306
    %v5308 = vmul.f32 %v5303, %v5307
    %vm5309 = vweird.f32 %v5299
    %vm5310 = vweird.f32 %v5303
    %vm5311 = vmor %vm5309, %vm5310
    %v5312 = vsel %vm5311, %v5303, %v5308
    %v5313 = vrsqrt.pop %v5300
    %v5314 = vmul.f32 %v5313, %v5300
    %v5315 = vmul.f32 %v5314, %v5313
    %v5316 = vmul.f32 0.5, %v5315
    %v5317 = vsub.f32 1.5, %v5316
    %v5318 = vmul.f32 %v5313, %v5317
    %vm5319 = vweird.f32 %v5300
    %vm5320 = vweird.f32 %v5313
    %vm5321 = vmor %vm5319, %vm5320
    %v5322 = vsel %vm5321, %v5313, %v5318
    %v5323 = vrsqrt.pop %v5301
    %v5324 = vmul.f32 %v5323, %v5301
    %v5325 = vmul.f32 %v5324, %v5323
    %v5326 = vmul.f32 0.5, %v5325
    %v5327 = vsub.f32 1.5, %v5326
    %v5328 = vmul.f32 %v5323, %v5327
    %vm5329 = vweird.f32 %v5301
    %vm5330 = vweird.f32 %v5323
    %vm5331 = vmor %vm5329, %vm5330
    %v5332 = vsel %vm5331, %v5323, %v5328
    %v5333 = vrsqrt.pop %v5302
    %v5334 = vmul.f32 %v5333, %v5302
    %v5335 = vmul.f32 %v5334, %v5333
    %v5336 = vmul.f32 0.5, %v5335
    %v5337 = vsub.f32 1.5, %v5336
    %v5338 = vmul.f32 %v5333, %v5337
    %vm5339 = vweird.f32 %v5302
    %vm5340 = vweird.f32 %v5333
    %vm5341 = vmor %vm5339, %vm5340
    %v5342 = vsel %vm5341, %v5333, %v5338
    %v5343 = vmul.f32 %v5295, %v5312
    %v5344 = vmul.f32 %v5296, %v5322
    %v5345 = vmul.f32 %v5297, %v5332
    %v5346 = vmul.f32 %v5298, %v5342
    %v5347 = vld [vmem:[%s16] sm:$0xff]
    %v5348 = vld [vmem:[%s16 + $0x8] sm:$0xff]
    %v5349 = vld [vmem:[%s16 + $0x10] sm:$0xff]
    %v5350 = vld [vmem:[%s16 + $0x18] sm:$0xff]
    %v5351 = vmul.f32 %v5255, %v5343
    %v5352 = vmul.f32 %v5256, %v5344
    %v5353 = vmul.f32 %v5257, %v5345
    %v5354 = vmul.f32 %v5258, %v5346
    %v5355 = vsub.f32 %v5347, %v5351
    %v5356 = vsub.f32 %v5348, %v5352
    %v5357 = vsub.f32 %v5349, %v5353
    %v5358 = vsub.f32 %v5350, %v5354
    %5360 = vset.pattern.permute.xlu0 0
    %5361 = vperm.xlu0 %5360, %v5343
    %v5362 = vpop.permute.xlu0 %5361
    %5365 = vset.pattern.permute.xlu0 0
    %5366 = vperm.xlu0 %5365, %v5344
    %v5367 = vpop.permute.xlu0 %5366
    %5370 = vset.pattern.permute.xlu0 0
    %5371 = vperm.xlu0 %5370, %v5345
    %v5372 = vpop.permute.xlu0 %5371
    %5375 = vset.pattern.permute.xlu0 0
    %5376 = vperm.xlu0 %5375, %v5346
    %v5377 = vpop.permute.xlu0 %5376
    %v5379 = vmul.f32 %v5235, %v5362
    %v5380 = vmul.f32 %v5236, %v5362
    %v5381 = vmul.f32 %v5237, %v5367
    %v5382 = vmul.f32 %v5238, %v5367
    %v5383 = vmul.f32 %v5239, %v5372
    %v5384 = vmul.f32 %v5240, %v5372
    %v5385 = vmul.f32 %v5241, %v5377
    %v5386 = vmul.f32 %v5242, %v5377
    %5388 = vset.pattern.permute.xlu0 0
    %5389 = vperm.xlu0 %5388, %v5355
    %v5390 = vpop.permute.xlu0 %5389
    %5393 = vset.pattern.permute.xlu0 0
    %5394 = vperm.xlu0 %5393, %v5356
    %v5395 = vpop.permute.xlu0 %5394
    %5398 = vset.pattern.permute.xlu0 0
    %5399 = vperm.xlu0 %5398, %v5357
    %v5400 = vpop.permute.xlu0 %5399
    %5403 = vset.pattern.permute.xlu0 0
    %5404 = vperm.xlu0 %5403, %v5358
    %v5405 = vpop.permute.xlu0 %5404
    %v5407 = vadd.f32 %v5379, %v5390
    %v5408 = vadd.f32 %v5380, %v5390
    %v5409 = vadd.f32 %v5381, %v5395
    %v5410 = vadd.f32 %v5382, %v5395
    %v5411 = vadd.f32 %v5383, %v5400
    %v5412 = vadd.f32 %v5384, %v5400
    %v5413 = vadd.f32 %v5385, %v5405
    %v5414 = vadd.f32 %v5386, %v5405
    %5419 = vrot.lane.b32.xlu0 %v5407, 4
    %v5420 = vpop.permute.xlu0 %5419
    %5421 = vrot.lane.b32.xlu0 %v5409, 4
    %v5422 = vpop.permute.xlu0 %5421
    %5423 = vrot.lane.b32.xlu0 %v5411, 4
    %v5424 = vpop.permute.xlu0 %5423
    %5425 = vrot.lane.b32.xlu0 %v5413, 4
    %v5426 = vpop.permute.xlu0 %5425
    %5431 = vst.msk [vmem:[#allocation6] sm:$0xff] %vm915, %v5420
    %5432 = vst.msk [vmem:[#allocation6 + $0x8] sm:$0xff] %vm220, %v5420
    %5433 = vst.msk [vmem:[#allocation6 + $0x10] sm:$0xff] %vm915, %v5422
    %5434 = vst.msk [vmem:[#allocation6 + $0x18] sm:$0xff] %vm220, %v5422
    %5435 = vst.msk [vmem:[#allocation6 + $0x20] sm:$0xff] %vm915, %v5424
    %5436 = vst.msk [vmem:[#allocation6 + $0x28] sm:$0xff] %vm220, %v5424
    %5437 = vst.msk [vmem:[#allocation6 + $0x30] sm:$0xff] %vm915, %v5426
    %5438 = vst.msk [vmem:[#allocation6 + $0x38] sm:$0xff] %vm220, %v5426
    %5443 = vrot.lane.b32.xlu0 %v5408, 4
    %v5444 = vpop.permute.xlu0 %5443
    %5445 = vrot.lane.b32.xlu0 %v5410, 4
    %v5446 = vpop.permute.xlu0 %5445
    %5447 = vrot.lane.b32.xlu0 %v5412, 4
    %v5448 = vpop.permute.xlu0 %5447
    %5449 = vrot.lane.b32.xlu0 %v5414, 4
    %v5450 = vpop.permute.xlu0 %5449
    %s5455 = scalar_lea.vmem [#allocation6], 64
    %5456 = vst.msk [vmem:[%s5455] sm:$0xff] %vm915, %v5444
    %5457 = vst.msk [vmem:[%s5455 + $0x8] sm:$0xff] %vm220, %v5444
    %5458 = vst.msk [vmem:[%s5455 + $0x10] sm:$0xff] %vm915, %v5446
    %5459 = vst.msk [vmem:[%s5455 + $0x18] sm:$0xff] %vm220, %v5446
    %5460 = vst.msk [vmem:[%s5455 + $0x20] sm:$0xff] %vm915, %v5448
    %5461 = vst.msk [vmem:[%s5455 + $0x28] sm:$0xff] %vm220, %v5448
    %5462 = vst.msk [vmem:[%s5455 + $0x30] sm:$0xff] %vm915, %v5450
    %5463 = vst.msk [vmem:[%s5455 + $0x38] sm:$0xff] %vm220, %v5450
    %v5464 = vld [vmem:[#allocation6] sm:$0xff]
    %v5465 = vld [vmem:[#allocation6 + $0x10] sm:$0xff]
    %v5466 = vld [vmem:[#allocation6 + $0x20] sm:$0xff]
    %v5467 = vld [vmem:[#allocation6 + $0x30] sm:$0xff]
    %v5468 = vld [vmem:[#allocation6 + $0x8] sm:$0xff]
    %v5469 = vld [vmem:[#allocation6 + $0x18] sm:$0xff]
    %v5470 = vld [vmem:[#allocation6 + $0x28] sm:$0xff]
    %v5471 = vld [vmem:[#allocation6 + $0x38] sm:$0xff]
    %5480 = vrot.lane.b32.xlu0 %v5464, 127
    %v5481 = vpop.permute.xlu0 %5480
    %5482 = vrot.lane.b32.xlu0 %v5468, 127
    %v5483 = vpop.permute.xlu0 %5482
    %5484 = vrot.lane.b32.xlu0 %v5465, 127
    %v5485 = vpop.permute.xlu0 %5484
    %5486 = vrot.lane.b32.xlu0 %v5469, 127
    %v5487 = vpop.permute.xlu0 %5486
    %5488 = vrot.lane.b32.xlu0 %v5466, 127
    %v5489 = vpop.permute.xlu0 %5488
    %5490 = vrot.lane.b32.xlu0 %v5470, 127
    %v5491 = vpop.permute.xlu0 %5490
    %5492 = vrot.lane.b32.xlu0 %v5467, 127
    %v5493 = vpop.permute.xlu0 %5492
    %5494 = vrot.lane.b32.xlu0 %v5471, 127
    %v5495 = vpop.permute.xlu0 %5494
    %v5496 = vsel %vm289, %v5481, %v5483
    %v5497 = vsel %vm289, %v5485, %v5487
    %v5498 = vsel %vm289, %v5489, %v5491
    %v5499 = vsel %vm289, %v5493, %v5495
    %5504 = vrot.lane.b32.xlu0 %v5464, 126
    %v5505 = vpop.permute.xlu0 %5504
    %5506 = vrot.lane.b32.xlu0 %v5468, 126
    %v5507 = vpop.permute.xlu0 %5506
    %5508 = vrot.lane.b32.xlu0 %v5465, 126
    %v5509 = vpop.permute.xlu0 %5508
    %5510 = vrot.lane.b32.xlu0 %v5469, 126
    %v5511 = vpop.permute.xlu0 %5510
    %5512 = vrot.lane.b32.xlu0 %v5466, 126
    %v5513 = vpop.permute.xlu0 %5512
    %5514 = vrot.lane.b32.xlu0 %v5470, 126
    %v5515 = vpop.permute.xlu0 %5514
    %5516 = vrot.lane.b32.xlu0 %v5467, 126
    %v5517 = vpop.permute.xlu0 %5516
    %5518 = vrot.lane.b32.xlu0 %v5471, 126
    %v5519 = vpop.permute.xlu0 %5518
    %v5520 = vsel %vm339, %v5505, %v5507
    %v5521 = vsel %vm339, %v5509, %v5511
    %v5522 = vsel %vm339, %v5513, %v5515
    %v5523 = vsel %vm339, %v5517, %v5519
    %5528 = vrot.lane.b32.xlu0 %v5464, 125
    %v5529 = vpop.permute.xlu0 %5528
    %5530 = vrot.lane.b32.xlu0 %v5468, 125
    %v5531 = vpop.permute.xlu0 %5530
    %5532 = vrot.lane.b32.xlu0 %v5465, 125
    %v5533 = vpop.permute.xlu0 %5532
    %5534 = vrot.lane.b32.xlu0 %v5469, 125
    %v5535 = vpop.permute.xlu0 %5534
    %5536 = vrot.lane.b32.xlu0 %v5466, 125
    %v5537 = vpop.permute.xlu0 %5536
    %5538 = vrot.lane.b32.xlu0 %v5470, 125
    %v5539 = vpop.permute.xlu0 %5538
    %5540 = vrot.lane.b32.xlu0 %v5467, 125
    %v5541 = vpop.permute.xlu0 %5540
    %5542 = vrot.lane.b32.xlu0 %v5471, 125
    %v5543 = vpop.permute.xlu0 %5542
    %v5544 = vsel %vm386, %v5529, %v5531
    %v5545 = vsel %vm386, %v5533, %v5535
    %v5546 = vsel %vm386, %v5537, %v5539
    %v5547 = vsel %vm386, %v5541, %v5543
    %5552 = vrot.lane.b32.xlu0 %v5464, 124
    %v5553 = vpop.permute.xlu0 %5552
    %5554 = vrot.lane.b32.xlu0 %v5468, 124
    %v5555 = vpop.permute.xlu0 %5554
    %5556 = vrot.lane.b32.xlu0 %v5465, 124
    %v5557 = vpop.permute.xlu0 %5556
    %5558 = vrot.lane.b32.xlu0 %v5469, 124
    %v5559 = vpop.permute.xlu0 %5558
    %5560 = vrot.lane.b32.xlu0 %v5466, 124
    %v5561 = vpop.permute.xlu0 %5560
    %5562 = vrot.lane.b32.xlu0 %v5470, 124
    %v5563 = vpop.permute.xlu0 %5562
    %5564 = vrot.lane.b32.xlu0 %v5467, 124
    %v5565 = vpop.permute.xlu0 %5564
    %5566 = vrot.lane.b32.xlu0 %v5471, 124
    %v5567 = vpop.permute.xlu0 %5566
    %v5568 = vsel %vm433, %v5553, %v5555
    %v5569 = vsel %vm433, %v5557, %v5559
    %v5570 = vsel %vm433, %v5561, %v5563
    %v5571 = vsel %vm433, %v5565, %v5567
    %5576 = vrot.lane.b32.xlu0 %v5464, 123
    %v5577 = vpop.permute.xlu0 %5576
    %5578 = vrot.lane.b32.xlu0 %v5468, 123
    %v5579 = vpop.permute.xlu0 %5578
    %5580 = vrot.lane.b32.xlu0 %v5465, 123
    %v5581 = vpop.permute.xlu0 %5580
    %5582 = vrot.lane.b32.xlu0 %v5469, 123
    %v5583 = vpop.permute.xlu0 %5582
    %5584 = vrot.lane.b32.xlu0 %v5466, 123
    %v5585 = vpop.permute.xlu0 %5584
    %5586 = vrot.lane.b32.xlu0 %v5470, 123
    %v5587 = vpop.permute.xlu0 %5586
    %5588 = vrot.lane.b32.xlu0 %v5467, 123
    %v5589 = vpop.permute.xlu0 %5588
    %5590 = vrot.lane.b32.xlu0 %v5471, 123
    %v5591 = vpop.permute.xlu0 %5590
    %v5592 = vsel %vm480, %v5577, %v5579
    %v5593 = vsel %vm480, %v5581, %v5583
    %v5594 = vsel %vm480, %v5585, %v5587
    %v5595 = vsel %vm480, %v5589, %v5591
    %5600 = vrot.lane.b32.xlu0 %v5464, 122
    %v5601 = vpop.permute.xlu0 %5600
    %5602 = vrot.lane.b32.xlu0 %v5468, 122
    %v5603 = vpop.permute.xlu0 %5602
    %5604 = vrot.lane.b32.xlu0 %v5465, 122
    %v5605 = vpop.permute.xlu0 %5604
    %5606 = vrot.lane.b32.xlu0 %v5469, 122
    %v5607 = vpop.permute.xlu0 %5606
    %5608 = vrot.lane.b32.xlu0 %v5466, 122
    %v5609 = vpop.permute.xlu0 %5608
    %5610 = vrot.lane.b32.xlu0 %v5470, 122
    %v5611 = vpop.permute.xlu0 %5610
    %5612 = vrot.lane.b32.xlu0 %v5467, 122
    %v5613 = vpop.permute.xlu0 %5612
    %5614 = vrot.lane.b32.xlu0 %v5471, 122
    %v5615 = vpop.permute.xlu0 %5614
    %v5616 = vsel %vm527, %v5601, %v5603
    %v5617 = vsel %vm527, %v5605, %v5607
    %v5618 = vsel %vm527, %v5609, %v5611
    %v5619 = vsel %vm527, %v5613, %v5615
    %5624 = vrot.lane.b32.xlu0 %v5464, 121
    %v5625 = vpop.permute.xlu0 %5624
    %5626 = vrot.lane.b32.xlu0 %v5468, 121
    %v5627 = vpop.permute.xlu0 %5626
    %5628 = vrot.lane.b32.xlu0 %v5465, 121
    %v5629 = vpop.permute.xlu0 %5628
    %5630 = vrot.lane.b32.xlu0 %v5469, 121
    %v5631 = vpop.permute.xlu0 %5630
    %5632 = vrot.lane.b32.xlu0 %v5466, 121
    %v5633 = vpop.permute.xlu0 %5632
    %5634 = vrot.lane.b32.xlu0 %v5470, 121
    %v5635 = vpop.permute.xlu0 %5634
    %5636 = vrot.lane.b32.xlu0 %v5467, 121
    %v5637 = vpop.permute.xlu0 %5636
    %5638 = vrot.lane.b32.xlu0 %v5471, 121
    %v5639 = vpop.permute.xlu0 %5638
    %v5640 = vsel %vm574, %v5625, %v5627
    %v5641 = vsel %vm574, %v5629, %v5631
    %v5642 = vsel %vm574, %v5633, %v5635
    %v5643 = vsel %vm574, %v5637, %v5639
    %5648 = vrot.lane.b32.xlu0 %v5464, 120
    %v5649 = vpop.permute.xlu0 %5648
    %5650 = vrot.lane.b32.xlu0 %v5468, 120
    %v5651 = vpop.permute.xlu0 %5650
    %5652 = vrot.lane.b32.xlu0 %v5465, 120
    %v5653 = vpop.permute.xlu0 %5652
    %5654 = vrot.lane.b32.xlu0 %v5469, 120
    %v5655 = vpop.permute.xlu0 %5654
    %5656 = vrot.lane.b32.xlu0 %v5466, 120
    %v5657 = vpop.permute.xlu0 %5656
    %5658 = vrot.lane.b32.xlu0 %v5470, 120
    %v5659 = vpop.permute.xlu0 %5658
    %5660 = vrot.lane.b32.xlu0 %v5467, 120
    %v5661 = vpop.permute.xlu0 %5660
    %5662 = vrot.lane.b32.xlu0 %v5471, 120
    %v5663 = vpop.permute.xlu0 %5662
    %v5664 = vsel %vm621, %v5649, %v5651
    %v5665 = vsel %vm621, %v5653, %v5655
    %v5666 = vsel %vm621, %v5657, %v5659
    %v5667 = vsel %vm621, %v5661, %v5663
    %v5672 = vld [vmem:[%s5455] sm:$0xff]
    %v5673 = vld [vmem:[%s5455 + $0x10] sm:$0xff]
    %v5674 = vld [vmem:[%s5455 + $0x20] sm:$0xff]
    %v5675 = vld [vmem:[%s5455 + $0x30] sm:$0xff]
    %v5676 = vld [vmem:[%s5455 + $0x8] sm:$0xff]
    %v5677 = vld [vmem:[%s5455 + $0x18] sm:$0xff]
    %v5678 = vld [vmem:[%s5455 + $0x28] sm:$0xff]
    %v5679 = vld [vmem:[%s5455 + $0x38] sm:$0xff]
    %5688 = vrot.lane.b32.xlu0 %v5672, 127
    %v5689 = vpop.permute.xlu0 %5688
    %5690 = vrot.lane.b32.xlu0 %v5676, 127
    %v5691 = vpop.permute.xlu0 %5690
    %5692 = vrot.lane.b32.xlu0 %v5673, 127
    %v5693 = vpop.permute.xlu0 %5692
    %5694 = vrot.lane.b32.xlu0 %v5677, 127
    %v5695 = vpop.permute.xlu0 %5694
    %5696 = vrot.lane.b32.xlu0 %v5674, 127
    %v5697 = vpop.permute.xlu0 %5696
    %5698 = vrot.lane.b32.xlu0 %v5678, 127
    %v5699 = vpop.permute.xlu0 %5698
    %5700 = vrot.lane.b32.xlu0 %v5675, 127
    %v5701 = vpop.permute.xlu0 %5700
    %5702 = vrot.lane.b32.xlu0 %v5679, 127
    %v5703 = vpop.permute.xlu0 %5702
    %v5704 = vsel %vm289, %v5689, %v5691
    %v5705 = vsel %vm289, %v5693, %v5695
    %v5706 = vsel %vm289, %v5697, %v5699
    %v5707 = vsel %vm289, %v5701, %v5703
    %5712 = vrot.lane.b32.xlu0 %v5672, 126
    %v5713 = vpop.permute.xlu0 %5712
    %5714 = vrot.lane.b32.xlu0 %v5676, 126
    %v5715 = vpop.permute.xlu0 %5714
    %5716 = vrot.lane.b32.xlu0 %v5673, 126
    %v5717 = vpop.permute.xlu0 %5716
    %5718 = vrot.lane.b32.xlu0 %v5677, 126
    %v5719 = vpop.permute.xlu0 %5718
    %5720 = vrot.lane.b32.xlu0 %v5674, 126
    %v5721 = vpop.permute.xlu0 %5720
    %5722 = vrot.lane.b32.xlu0 %v5678, 126
    %v5723 = vpop.permute.xlu0 %5722
    %5724 = vrot.lane.b32.xlu0 %v5675, 126
    %v5725 = vpop.permute.xlu0 %5724
    %5726 = vrot.lane.b32.xlu0 %v5679, 126
    %v5727 = vpop.permute.xlu0 %5726
    %v5728 = vsel %vm339, %v5713, %v5715
    %v5729 = vsel %vm339, %v5717, %v5719
    %v5730 = vsel %vm339, %v5721, %v5723
    %v5731 = vsel %vm339, %v5725, %v5727
    %5736 = vrot.lane.b32.xlu0 %v5672, 125
    %v5737 = vpop.permute.xlu0 %5736
    %5738 = vrot.lane.b32.xlu0 %v5676, 125
    %v5739 = vpop.permute.xlu0 %5738
    %5740 = vrot.lane.b32.xlu0 %v5673, 125
    %v5741 = vpop.permute.xlu0 %5740
    %5742 = vrot.lane.b32.xlu0 %v5677, 125
    %v5743 = vpop.permute.xlu0 %5742
    %5744 = vrot.lane.b32.xlu0 %v5674, 125
    %v5745 = vpop.permute.xlu0 %5744
    %5746 = vrot.lane.b32.xlu0 %v5678, 125
    %v5747 = vpop.permute.xlu0 %5746
    %5748 = vrot.lane.b32.xlu0 %v5675, 125
    %v5749 = vpop.permute.xlu0 %5748
    %5750 = vrot.lane.b32.xlu0 %v5679, 125
    %v5751 = vpop.permute.xlu0 %5750
    %v5752 = vsel %vm386, %v5737, %v5739
    %v5753 = vsel %vm386, %v5741, %v5743
    %v5754 = vsel %vm386, %v5745, %v5747
    %v5755 = vsel %vm386, %v5749, %v5751
    %5760 = vrot.lane.b32.xlu0 %v5672, 124
    %v5761 = vpop.permute.xlu0 %5760
    %5762 = vrot.lane.b32.xlu0 %v5676, 124
    %v5763 = vpop.permute.xlu0 %5762
    %5764 = vrot.lane.b32.xlu0 %v5673, 124
    %v5765 = vpop.permute.xlu0 %5764
    %5766 = vrot.lane.b32.xlu0 %v5677, 124
    %v5767 = vpop.permute.xlu0 %5766
    %5768 = vrot.lane.b32.xlu0 %v5674, 124
    %v5769 = vpop.permute.xlu0 %5768
    %5770 = vrot.lane.b32.xlu0 %v5678, 124
    %v5771 = vpop.permute.xlu0 %5770
    %5772 = vrot.lane.b32.xlu0 %v5675, 124
    %v5773 = vpop.permute.xlu0 %5772
    %5774 = vrot.lane.b32.xlu0 %v5679, 124
    %v5775 = vpop.permute.xlu0 %5774
    %v5776 = vsel %vm433, %v5761, %v5763
    %v5777 = vsel %vm433, %v5765, %v5767
    %v5778 = vsel %vm433, %v5769, %v5771
    %v5779 = vsel %vm433, %v5773, %v5775
    %5784 = vrot.lane.b32.xlu0 %v5672, 123
    %v5785 = vpop.permute.xlu0 %5784
    %5786 = vrot.lane.b32.xlu0 %v5676, 123
    %v5787 = vpop.permute.xlu0 %5786
    %5788 = vrot.lane.b32.xlu0 %v5673, 123
    %v5789 = vpop.permute.xlu0 %5788
    %5790 = vrot.lane.b32.xlu0 %v5677, 123
    %v5791 = vpop.permute.xlu0 %5790
    %5792 = vrot.lane.b32.xlu0 %v5674, 123
    %v5793 = vpop.permute.xlu0 %5792
    %5794 = vrot.lane.b32.xlu0 %v5678, 123
    %v5795 = vpop.permute.xlu0 %5794
    %5796 = vrot.lane.b32.xlu0 %v5675, 123
    %v5797 = vpop.permute.xlu0 %5796
    %5798 = vrot.lane.b32.xlu0 %v5679, 123
    %v5799 = vpop.permute.xlu0 %5798
    %v5800 = vsel %vm480, %v5785, %v5787
    %v5801 = vsel %vm480, %v5789, %v5791
    %v5802 = vsel %vm480, %v5793, %v5795
    %v5803 = vsel %vm480, %v5797, %v5799
    %5808 = vrot.lane.b32.xlu0 %v5672, 122
    %v5809 = vpop.permute.xlu0 %5808
    %5810 = vrot.lane.b32.xlu0 %v5676, 122
    %v5811 = vpop.permute.xlu0 %5810
    %5812 = vrot.lane.b32.xlu0 %v5673, 122
    %v5813 = vpop.permute.xlu0 %5812
    %5814 = vrot.lane.b32.xlu0 %v5677, 122
    %v5815 = vpop.permute.xlu0 %5814
    %5816 = vrot.lane.b32.xlu0 %v5674, 122
    %v5817 = vpop.permute.xlu0 %5816
    %5818 = vrot.lane.b32.xlu0 %v5678, 122
    %v5819 = vpop.permute.xlu0 %5818
    %5820 = vrot.lane.b32.xlu0 %v5675, 122
    %v5821 = vpop.permute.xlu0 %5820
    %5822 = vrot.lane.b32.xlu0 %v5679, 122
    %v5823 = vpop.permute.xlu0 %5822
    %v5824 = vsel %vm527, %v5809, %v5811
    %v5825 = vsel %vm527, %v5813, %v5815
    %v5826 = vsel %vm527, %v5817, %v5819
    %v5827 = vsel %vm527, %v5821, %v5823
    %5832 = vrot.lane.b32.xlu0 %v5672, 121
    %v5833 = vpop.permute.xlu0 %5832
    %5834 = vrot.lane.b32.xlu0 %v5676, 121
    %v5835 = vpop.permute.xlu0 %5834
    %5836 = vrot.lane.b32.xlu0 %v5673, 121
    %v5837 = vpop.permute.xlu0 %5836
    %5838 = vrot.lane.b32.xlu0 %v5677, 121
    %v5839 = vpop.permute.xlu0 %5838
    %5840 = vrot.lane.b32.xlu0 %v5674, 121
    %v5841 = vpop.permute.xlu0 %5840
    %5842 = vrot.lane.b32.xlu0 %v5678, 121
    %v5843 = vpop.permute.xlu0 %5842
    %5844 = vrot.lane.b32.xlu0 %v5675, 121
    %v5845 = vpop.permute.xlu0 %5844
    %5846 = vrot.lane.b32.xlu0 %v5679, 121
    %v5847 = vpop.permute.xlu0 %5846
    %v5848 = vsel %vm574, %v5833, %v5835
    %v5849 = vsel %vm574, %v5837, %v5839
    %v5850 = vsel %vm574, %v5841, %v5843
    %v5851 = vsel %vm574, %v5845, %v5847
    %5856 = vrot.lane.b32.xlu0 %v5672, 120
    %v5857 = vpop.permute.xlu0 %5856
    %5858 = vrot.lane.b32.xlu0 %v5676, 120
    %v5859 = vpop.permute.xlu0 %5858
    %5860 = vrot.lane.b32.xlu0 %v5673, 120
    %v5861 = vpop.permute.xlu0 %5860
    %5862 = vrot.lane.b32.xlu0 %v5677, 120
    %v5863 = vpop.permute.xlu0 %5862
    %5864 = vrot.lane.b32.xlu0 %v5674, 120
    %v5865 = vpop.permute.xlu0 %5864
    %5866 = vrot.lane.b32.xlu0 %v5678, 120
    %v5867 = vpop.permute.xlu0 %5866
    %5868 = vrot.lane.b32.xlu0 %v5675, 120
    %v5869 = vpop.permute.xlu0 %5868
    %5870 = vrot.lane.b32.xlu0 %v5679, 120
    %v5871 = vpop.permute.xlu0 %5870
    %v5872 = vsel %vm621, %v5857, %v5859
    %v5873 = vsel %vm621, %v5861, %v5863
    %v5874 = vsel %vm621, %v5865, %v5867
    %v5875 = vsel %vm621, %v5869, %v5871
    %v5880 = vld [vmem:[%s17] sm:$0x7]
    %v5881 = vld [vmem:[#allocation7] sm:$0x1]
    %5883 = vset.pattern.permute.xlu0 0
    %5884 = vperm.xlu0 %5883, %v5881
    %v5885 = vpop.permute.xlu0 %5884
    %v5887 = vperm.slane %v5885, 0
    %v5889 = vperm.slane %v5880, 0
    %v5890 = vperm.slane %v5880, 1
    %v5891 = vperm.slane %v5880, 2
    %v5894 = vsel %vm1437, %v5891, 0
    %5896 = vmatpush.msra.mxu0 %v5547
    %5897 = vmatpush.msra.mxu0 %v5546
    %5898 = vmatpush.msra.mxu0 %v5545
    %5899 = vmatpush.msra.mxu0 %v5544
    %5900 = vmatpush.msra.mxu0 %v5523
    %5901 = vmatpush.msra.mxu0 %v5522
    %5902 = vmatpush.msra.mxu0 %v5521
    %5903 = vmatpush.msra.mxu0 %v5520
    %5904 = vmatpush.msra.mxu0 %v5499
    %5905 = vmatpush.msra.mxu0 %v5498
    %5906 = vmatpush.msra.mxu0 %v5497
    %5907 = vmatpush.msra.mxu0 %v5496
    %5908 = vmatpush.msra.mxu0 %v5467
    %5909 = vmatpush.msra.mxu0 %v5466
    %5910 = vmatpush.msra.mxu0 %v5465
    %5911 = vmatpush.msra.mxu0 %v5464
    %5912 = vmatmul.f32.gmra.mxu0 %v5889
    %v5913 = vpop.f32.mrf.mxu0
    %v5914 = vadd.f32 %v5887, %v5913
    %5915 = vdwg.mxu0
    %5916 = vmatpush.msra.mxu0 %v5643
    %5917 = vmatpush.msra.mxu0 %v5642
    %5918 = vmatpush.msra.mxu0 %v5641
    %5919 = vmatpush.msra.mxu0 %v5640
    %5920 = vmatpush.msra.mxu0 %v5619
    %5921 = vmatpush.msra.mxu0 %v5618
    %5922 = vmatpush.msra.mxu0 %v5617
    %5923 = vmatpush.msra.mxu0 %v5616
    %5924 = vmatpush.msra.mxu0 %v5595
    %5925 = vmatpush.msra.mxu0 %v5594
    %5926 = vmatpush.msra.mxu0 %v5593
    %5927 = vmatpush.msra.mxu0 %v5592
    %5928 = vmatpush.msra.mxu0 %v5571
    %5929 = vmatpush.msra.mxu0 %v5570
    %5930 = vmatpush.msra.mxu0 %v5569
    %5931 = vmatpush.msra.mxu0 %v5568
    %5932 = vmatmul.f32.gmra.mxu0 %v5890
    %v5933 = vpop.f32.mrf.mxu0
    %v5934 = vadd.f32 %v5914, %v5933
    %5935 = vdwg.mxu0
    %5936 = vmatpush.msra.mxu0 0.0
    %5937 = vmatpush.msra.mxu0 0.0
    %5938 = vmatpush.msra.mxu0 0.0
    %5939 = vmatpush.msra.mxu0 0.0
    %5940 = vmatpush.msra.mxu0 0.0
    %5941 = vmatpush.msra.mxu0 0.0
    %5942 = vmatpush.msra.mxu0 0.0
    %5943 = vmatpush.msra.mxu0 0.0
    %5944 = vmatpush.msra.mxu0 0.0
    %5945 = vmatpush.msra.mxu0 0.0
    %5946 = vmatpush.msra.mxu0 0.0
    %5947 = vmatpush.msra.mxu0 0.0
    %5948 = vmatpush.msra.mxu0 %v5667
    %5949 = vmatpush.msra.mxu0 %v5666
    %5950 = vmatpush.msra.mxu0 %v5665
    %5951 = vmatpush.msra.mxu0 %v5664
    %5952 = vmatmul.f32.gmra.mxu0 %v5894
    %v5953 = vpop.f32.mrf.mxu0
    %v5954 = vadd.f32 %v5934, %v5953
    %5955 = vdwg.mxu0
    %5956 = vmatpush.msra.mxu0 %v5755
    %5957 = vmatpush.msra.mxu0 %v5754
    %5958 = vmatpush.msra.mxu0 %v5753
    %5959 = vmatpush.msra.mxu0 %v5752
    %5960 = vmatpush.msra.mxu0 %v5731
    %5961 = vmatpush.msra.mxu0 %v5730
    %5962 = vmatpush.msra.mxu0 %v5729
    %5963 = vmatpush.msra.mxu0 %v5728
    %5964 = vmatpush.msra.mxu0 %v5707
    %5965 = vmatpush.msra.mxu0 %v5706
    %5966 = vmatpush.msra.mxu0 %v5705
    %5967 = vmatpush.msra.mxu0 %v5704
    %5968 = vmatpush.msra.mxu0 %v5675
    %5969 = vmatpush.msra.mxu0 %v5674
    %5970 = vmatpush.msra.mxu0 %v5673
    %5971 = vmatpush.msra.mxu0 %v5672
    %5972 = vmatmul.f32.gmra.mxu0 %v5889
    %v5973 = vpop.f32.mrf.mxu0
    %v5974 = vadd.f32 %v5887, %v5973
    %5975 = vdwg.mxu0
    %5976 = vmatpush.msra.mxu0 %v5851
    %5977 = vmatpush.msra.mxu0 %v5850
    %5978 = vmatpush.msra.mxu0 %v5849
    %5979 = vmatpush.msra.mxu0 %v5848
    %5980 = vmatpush.msra.mxu0 %v5827
    %5981 = vmatpush.msra.mxu0 %v5826
    %5982 = vmatpush.msra.mxu0 %v5825
    %5983 = vmatpush.msra.mxu0 %v5824
    %5984 = vmatpush.msra.mxu0 %v5803
    %5985 = vmatpush.msra.mxu0 %v5802
    %5986 = vmatpush.msra.mxu0 %v5801
    %5987 = vmatpush.msra.mxu0 %v5800
    %5988 = vmatpush.msra.mxu0 %v5779
    %5989 = vmatpush.msra.mxu0 %v5778
    %5990 = vmatpush.msra.mxu0 %v5777
    %5991 = vmatpush.msra.mxu0 %v5776
    %5992 = vmatmul.f32.gmra.mxu0 %v5890
    %v5993 = vpop.f32.mrf.mxu0
    %v5994 = vadd.f32 %v5974, %v5993
    %5995 = vdwg.mxu0
    %5996 = vmatpush.msra.mxu0 0.0
    %5997 = vmatpush.msra.mxu0 0.0
    %5998 = vmatpush.msra.mxu0 0.0
    %5999 = vmatpush.msra.mxu0 0.0
    %6000 = vmatpush.msra.mxu0 0.0
    %6001 = vmatpush.msra.mxu0 0.0
    %6002 = vmatpush.msra.mxu0 0.0
    %6003 = vmatpush.msra.mxu0 0.0
    %6004 = vmatpush.msra.mxu0 0.0
    %6005 = vmatpush.msra.mxu0 0.0
    %6006 = vmatpush.msra.mxu0 0.0
    %6007 = vmatpush.msra.mxu0 0.0
    %6008 = vmatpush.msra.mxu0 %v5875
    %6009 = vmatpush.msra.mxu0 %v5874
    %6010 = vmatpush.msra.mxu0 %v5873
    %6011 = vmatpush.msra.mxu0 %v5872
    %6012 = vmatmul.f32.gmra.mxu0 %v5894
    %v6013 = vpop.f32.mrf.mxu0
    %v6014 = vadd.f32 %v5994, %v6013
    %6015 = vdwg.mxu0
    %6016 = vst [vmem:[#allocation14] sm:$0x1] %v5954
    %s6017 = scalar_lea.vmem [#allocation14], 1
    %6018 = vst [vmem:[%s6017] sm:$0x1] %v6014
    // Predicated region
    $region90: #{tpu_custom_call.1} parent=1 // pred_check
      _
    $region91: #{tpu_custom_call.1} parent=1 // pred_check_branch
      %6020 = sbr.rel (0) target = $region93
    $region92: #{tpu_custom_call.1} parent=1 // pred_region
      %6022 = vsyncadd [#allocation10], 0
      %s6023 = sshll.u32 [#allocation14], 4
      %s6024 = int_to_ptr.vmem [resolvable:$true] %s6023
      %s6025 = sshll.u32 %s19, 4
      %s6026 = int_to_ptr.hbm [resolvable:$true] %s6025
      %6031 = dma.vmem_to_hbm [thread:$0]  %s6024, 32, %s6026, [#allocation10], 16, 16, 1
    $region93: #{tpu_custom_call.1} parent=1 // pred_fallthru
      _
    // Predicated region
    $region94: #{tpu_custom_call.1} parent=1 // pred_check
      _
    $region95: #{tpu_custom_call.1} parent=1 // pred_check_branch
      %6033 = sbr.rel (0) target = $region97
    $region96: #{tpu_custom_call.1} parent=1 // pred_region
      %6035 = dma.done [#allocation10], 32
    $region97: #{tpu_custom_call.1} parent=1 // pred_fallthru
      _
    %6036 = vsyncpa [#allocation9], 1
    %6037 = vsyncpa [#allocation12], 1
    %6038 = vsyncpa [#allocation10], 1

</llo_original>
